<compile_context>
chip_gen: v6e
topology: v6e:2x2x1
jax: 0.10.0
libtpu: 0.0.40
codegen_flags: <defaults>
</compile_context>

<pallas_src>
import functools
import math

import jax
import jax.numpy as jnp
from jax.experimental import pallas as pl
from jax.experimental.pallas import tpu as pltpu


# ============================================================================
# Generic fused matmul kernel: time-embedding MLP, decoder up-convs, and the
# final (ConvTranspose + ReLU + 1x1 output conv) fusion.
#   out = [ @ w_post + b_post ]( act( (a [+ a2]) @ b + bias ) )
# ============================================================================

def _mm_kernel(*refs, act, has_a2, has_post):
    refs = list(refs)
    pos = 0
    a_ref = refs[pos]; pos += 1
    a2_ref = None
    if has_a2:
        a2_ref = refs[pos]; pos += 1
    b_ref = refs[pos]; bias_ref = refs[pos + 1]; pos += 2
    wp_ref = bp_ref = None
    if has_post:
        wp_ref = refs[pos]; bp_ref = refs[pos + 1]; pos += 2
    o_ref = refs[pos]

    a = a_ref[...]
    if a2_ref is not None:
        a = a + a2_ref[...]                       # fused UNet skip add (VPU)

    acc = jnp.dot(a, b_ref[...], preferred_element_type=jnp.float32)
    acc = acc + bias_ref[...].astype(jnp.float32)

    if act == "relu":
        acc = jnp.maximum(acc, 0.0)
    elif act == "silu":
        # sigmoid = 1/(1+exp(-x)); exp + approx reciprocal land on the EUP slot.
        acc = acc * pl.reciprocal(1.0 + jnp.exp(-acc), approx=True)

    if wp_ref is not None:                        # fused trailing 1x1 conv
        acc = jnp.dot(acc.astype(wp_ref.dtype), wp_ref[...],
                      preferred_element_type=jnp.float32)
        acc = acc + bp_ref[...].astype(jnp.float32)

    o_ref[...] = acc.astype(o_ref.dtype)


def _pick_tm(m, cap):
    """Largest M-tile that divides M exactly (no jnp.pad HBM copies)."""
    if m <= cap:
        return m
    for t in range(cap, 7, -1):
        if m % t == 0 and t % 8 == 0:
            return t
    return m


def matmul_fused(a, b, bias, act=None, a2=None, w_post=None, b_post=None, *,
                 out_dtype=jnp.bfloat16, tm_cap=2048):
    m, k = a.shape
    k2, n = b.shape
    assert k == k2
    has_post = w_post is not None
    n_out = w_post.shape[1] if has_post else n

    a = a.astype(jnp.bfloat16)
    b = b.astype(jnp.bfloat16)
    bias = bias.reshape(1, n).astype(jnp.float32)
    if a2 is not None:
        assert a2.shape == (m, k)
        a2 = a2.astype(jnp.bfloat16)
    if has_post:
        w_post = w_post.astype(jnp.bfloat16)
        b_post = b_post.reshape(1, n_out).astype(jnp.float32)

    tm = _pick_tm(m, tm_cap)
    grid = (m // tm,)

    inputs = [a]
    in_specs = [pl.BlockSpec((tm, k), lambda i: (i, 0))]
    if a2 is not None:
        inputs.append(a2)
        in_specs.append(pl.BlockSpec((tm, k), lambda i: (i, 0)))
    inputs += [b, bias]
    in_specs += [pl.BlockSpec((k, n), lambda i: (0, 0)),
                 pl.BlockSpec((1, n), lambda i: (0, 0))]
    if has_post:
        inputs += [w_post, b_post]
        in_specs += [pl.BlockSpec((n, n_out), lambda i: (0, 0)),
                     pl.BlockSpec((1, n_out), lambda i: (0, 0))]

    out_bytes = 2 if out_dtype == jnp.bfloat16 else 4
    need = 2 * (tm * k * 2 * (2 if a2 is not None else 1)
                + k * n * 2 + n * 4
                + (n * n_out * 2 + n_out * 4 if has_post else 0)
                + tm * n_out * out_bytes) + tm * n_out * 4
    vmem = int(min(max(need + (2 << 20), 16 << 20), 48 << 20))

    return pl.pallas_call(
        functools.partial(_mm_kernel, act=act, has_a2=a2 is not None,
                          has_post=has_post),
        out_shape=jax.ShapeDtypeStruct((m, n_out), out_dtype),
        grid=grid,
        in_specs=in_specs,
        out_specs=pl.BlockSpec((tm, n_out), lambda i: (i, 0)),
        compiler_params=pltpu.CompilerParams(
            dimension_semantics=("parallel",), vmem_limit_bytes=vmem),
    )(*inputs)


# ============================================================================
# Fused ConvBlock kernel: conv3x3 (+bias,ReLU) -> conv3x3 (+bias,ReLU[,+temb])
# All taps are constant-offset slices of f32 VMEM scratches; the intermediate
# activation never leaves VMEM.
# ============================================================================

def _conv_block_kernel(*refs, ho, wo, offsets1, pad_input, has_temb):
    refs = list(refs)
    x_ref, w1_ref, b1_ref, w2_ref, b2_ref = refs[:5]
    pos = 5
    temb_ref = None
    if has_temb:
        temb_ref = refs[pos]; pos += 1
    o_ref, s1_ref, s2_ref = refs[pos], refs[pos + 1], refs[pos + 2]

    f32 = jnp.float32
    L = wo + 2                      # row length of the flat layouts
    m = ho * L                      # output rows (valid cols are 0..wo-1)

    col = jax.lax.broadcasted_iota(jnp.int32, (m, 1), 0) % L
    valid = col < wo

    # ---- stage the input into the f32 scratch (all later slices are f32) ----
    if pad_input:
        # x is VALID-flat (junk cols are zero) -> build the zero-padded image.
        s1_ref[...] = jnp.zeros(s1_ref.shape, f32)
        s1_ref[pl.ds(L + 1, m), :] = x_ref[...].astype(f32)
    else:
        # x is the space-to-depth prepped (already padded) stride-2 input.
        s1_ref[...] = x_ref[...].astype(f32)

    # ---- conv1: constant-offset tap slices @ (K, C1) weights ----
    c1 = w1_ref.shape[-1]
    acc = jnp.zeros((m, c1), f32)
    for g, off in enumerate(offsets1):
        a = s1_ref[pl.ds(off, m), :].astype(jnp.bfloat16)
        acc = acc + jnp.dot(a, w1_ref[g], preferred_element_type=f32)
    acc = acc + b1_ref[...].astype(f32)
    acc = jnp.maximum(acc, 0.0)
    acc = jnp.where(valid, acc, 0.0)            # zero junk cols before re-pad

    # ---- hand off conv1 output into conv2's zero-padded scratch (VMEM only) --
    s2_ref[...] = jnp.zeros(s2_ref.shape, f32)
    s2_ref[pl.ds(L + 1, m), :] = acc

    # ---- conv2: 9 constant-offset taps ----
    c2 = w2_ref.shape[-1]
    acc2 = jnp.zeros((m, c2), f32)
    for i in range(9):
        ky, kx = divmod(i, 3)
        a = s2_ref[pl.ds(ky * L + kx, m), :].astype(jnp.bfloat16)
        acc2 = acc2 + jnp.dot(a, w2_ref[i], preferred_element_type=f32)
    acc2 = acc2 + b2_ref[...].astype(f32)
    acc2 = jnp.maximum(acc2, 0.0)
    if has_temb:
        acc2 = acc2 + temb_ref[...].astype(f32)  # (1, C) broadcast, in-kernel
    acc2 = jnp.where(valid, acc2, 0.0)
    o_ref[...] = acc2.astype(o_ref.dtype)


def conv_block(x, w1s, b1, w2s, b2, temb=None, *, ho, wo, cout, pad_input):
    """Fused ConvBlock.  x: (N, rows, Cin) flat layout; output VALID-flat."""
    n = x.shape[0]
    cin = x.shape[-1]
    L = wo + 2
    m = ho * L
    if pad_input:
        assert x.shape[1] == m
        offsets1 = tuple(ky * L + kx for ky in range(3) for kx in range(3))
        s1_rows = (ho + 3) * L
    else:
        assert x.shape[1] == (ho + 2) * L
        offsets1 = (0, 1, L, L + 1)              # merged-tap groups (gy, gx)
        s1_rows = x.shape[1]
    s2_rows = (ho + 3) * L

    inputs = [x, w1s, b1, w2s, b2]
    in_specs = [
        pl.BlockSpec((None, x.shape[1], cin), lambda i: (i, 0, 0)),
        pl.BlockSpec(w1s.shape, lambda i: (0, 0, 0)),
        pl.BlockSpec(b1.shape, lambda i: (0, 0)),
        pl.BlockSpec(w2s.shape, lambda i: (0, 0, 0)),
        pl.BlockSpec(b2.shape, lambda i: (0, 0)),
    ]
    if temb is not None:
        inputs.append(temb)                      # (N, 1, C)
        in_specs.append(pl.BlockSpec((None, 1, cout), lambda i: (i, 0, 0)))

    need = (2 * (x.shape[1] * cin * 2 + m * cout * 2)
            + 2 * (int(w1s.size) * 2 + int(w2s.size) * 2)
            + (s1_rows * cin + s2_rows * cout) * 4
            + 3 * m * cout * 4)
    vmem = int(min(max(need + (4 << 20), 16 << 20), 48 << 20))

    return pl.pallas_call(
        functools.partial(_conv_block_kernel, ho=ho, wo=wo, offsets1=offsets1,
                          pad_input=pad_input, has_temb=temb is not None),
        out_shape=jax.ShapeDtypeStruct((n, m, cout), jnp.bfloat16),
        grid=(n,),
        in_specs=in_specs,
        out_specs=pl.BlockSpec((None, m, cout), lambda i: (i, 0, 0)),
        scratch_shapes=[pltpu.VMEM((s1_rows, cin), jnp.float32),
                        pltpu.VMEM((s2_rows, cout), jnp.float32)],
        compiler_params=pltpu.CompilerParams(
            dimension_semantics=("parallel",), vmem_limit_bytes=vmem),
    )(*inputs)


# ============================================================================
# Wrapper-side layout glue (single XLA passes; no 9x im2col expansion).
# TODO(synk): move the space-to-depth prep and the decoder pixel-shuffle into
# the kernels (strided sublane stores) to remove these remaining HBM passes.
# ============================================================================

def _encoder_prep(x, h, w, c, from_valid_flat):
    """-> (N, (h/2+2)*(w/2+2), 4c) space-to-depth of the zero-padded image."""
    if from_valid_flat:
        x = x.reshape(-1, h, w + 2, c)[:, :, :w, :]
    xp = jnp.pad(x, ((0, 0), (1, 1), (1, 1), (0, 0)))
    ho, wo = h // 2, w // 2
    s = xp.reshape(-1, ho + 1, 2, wo + 1, 2, c)
    s = s.transpose(0, 1, 3, 2, 4, 5).reshape(-1, ho + 1, wo + 1, 4 * c)
    s = jnp.pad(s, ((0, 0), (0, 1), (0, 1), (0, 0)))
    return s.reshape(-1, (ho + 2) * (wo + 2), 4 * c)


def _block_to_valid_flat(y, h, w, c):
    """(N, h*(w+2), 4c) 2x2-block layout -> (N, (2h)*(2w+2), c) VALID-flat."""
    y = y.reshape(-1, h, w + 2, 2, 2, c)
    y = y.transpose(0, 1, 3, 2, 4, 5).reshape(-1, 2 * h, 2 * (w + 2), c)
    return y[:, :, :2 * w + 2, :].reshape(-1, 2 * h * (2 * w + 2), c)


def _block_to_nchw(y, h, w, c):
    y = y.reshape(-1, h, w + 2, 2, 2, c)
    y = y.transpose(0, 1, 3, 2, 4, 5).reshape(-1, 2 * h, 2 * (w + 2), c)
    y = y[:, :, :2 * w, :]
    return jnp.transpose(y, (0, 3, 1, 2))


def sin_encode(t, dim, timesteps=1000.0):
    inv_freq = 1.0 / (10000.0 ** (jnp.arange(0, dim, 2, dtype=jnp.float32) / dim))
    tt = (t / timesteps)[:, None] * inv_freq[None, :]
    return jnp.concatenate([jnp.sin(tt), jnp.cos(tt)], axis=-1)


# ============================================================================
# Parameter construction (deterministic, synthetic), weights pre-laid-out for
# the kernels and pre-cast to bf16 once at init.
# ============================================================================

def _init_conv_dense(key, cin, cout):
    wk, bk = jax.random.split(key)
    w = jax.random.normal(wk, (3, 3, cin, cout), jnp.float32) / math.sqrt(9 * cin)
    b = 0.01 * jax.random.normal(bk, (cout,), jnp.float32)
    return w, b


def _conv1_s2d_weights(w):
    """(3,3,cin,cout) -> (4, 4*cin, cout) merged-tap weights for stride-2."""
    cin, cout = w.shape[2], w.shape[3]
    out = jnp.zeros((4, 4 * cin, cout), jnp.float32)
    for ky in range(3):
        for kx in range(3):
            g = (ky // 2) * 2 + (kx // 2)
            blk = (ky % 2) * 2 + (kx % 2)
            out = out.at[g, blk * cin:(blk + 1) * cin, :].set(w[ky, kx])
    return out.astype(jnp.bfloat16)


def _conv_taps(w):
    return w.reshape(9, w.shape[2], w.shape[3]).astype(jnp.bfloat16)


def _init_linear(key, din, dout, dtype=jnp.bfloat16):
    wk, bk = jax.random.split(key)
    w = (jax.random.normal(wk, (din, dout), jnp.float32) / math.sqrt(din)).astype(dtype)
    b = 0.01 * jax.random.normal(bk, (dout,), jnp.float32)
    return w, b


def _init_upconv(key, cin, cout):
    wk, bk = jax.random.split(key)
    w = jax.random.normal(wk, (cin, cout, 2, 2), jnp.float32) / math.sqrt(4 * cin)
    b = 0.01 * jax.random.normal(bk, (cout,), jnp.float32)
    wcat = jnp.transpose(w, (0, 2, 3, 1)).reshape(cin, 4 * cout).astype(jnp.bfloat16)
    return wcat, jnp.tile(b, 4).reshape(1, 4 * cout)


def init_denoiser_params(key, channels=3, depth=4, channel_depth_base=64):
    channel_depth = [channels] + [channel_depth_base * 2 ** i for i in range(depth)]
    in_out_pairs = list(zip(channel_depth[:-1], channel_depth[1:]))
    emb_dim = channel_depth[-1]
    keys = iter(jax.random.split(key, 4 * depth + 8))
    params = {}
    params["mlp1"] = _init_linear(next(keys), emb_dim, emb_dim)
    params["mlp2"] = _init_linear(next(keys), emb_dim, emb_dim)

    encoders = []
    for cin, cout in in_out_pairs:
        w1, b1 = _init_conv_dense(next(keys), cin, cout)
        w2, b2 = _init_conv_dense(next(keys), cout, cout)
        encoders.append(dict(w1=_conv1_s2d_weights(w1), b1=b1.reshape(1, -1),
                             w2=_conv_taps(w2), b2=b2.reshape(1, -1)))
    params["encoders"] = encoders

    cb = channel_depth[-1]
    wb1, bb1 = _init_conv_dense(next(keys), cb, cb)
    wb2, bb2 = _init_conv_dense(next(keys), cb, cb)
    params["bottleneck"] = dict(w1=_conv_taps(wb1), b1=bb1.reshape(1, -1),
                                w2=_conv_taps(wb2), b2=bb2.reshape(1, -1))

    dec = []
    for in_ch, out_ch in in_out_pairs:           # UpConvBlock(out_ch -> in_ch)
        wcat, b4 = _init_upconv(next(keys), out_ch, in_ch)
        dec.append(dict(w=wcat, b=b4))
    dec = list(reversed(dec))
    # final 1x1 output conv, fused into the last decoder's epilogue (bf16 MXU)
    wout, bout = _init_linear(next(keys), channels, channels, dtype=jnp.float32)
    dec[-1]["w_post"] = jnp.kron(jnp.eye(4, dtype=jnp.float32), wout).astype(jnp.bfloat16)
    dec[-1]["b_post"] = jnp.tile(bout.reshape(-1), 4).reshape(1, 4 * channels)
    params["decoders"] = dec

    cfg = dict(channels=channels, depth=depth, channel_depth=channel_depth)
    return params, cfg


# ============================================================================
# Full forward pass (NCHW in / NCHW out, like the PyTorch module).
# ============================================================================

def denoiser_forward(params, x_nchw, t, *, cfg):
    channels = cfg["channels"]
    depth = cfg["depth"]
    chan = cfg["channel_depth"]
    emb_dim = chan[-1]
    n, _, H, W = x_nchw.shape

    x = jnp.transpose(x_nchw, (0, 2, 3, 1)).astype(jnp.bfloat16)   # NHWC

    # --- time embedding (SinEncoder + Linear/SiLU/Linear) ---
    enc = sin_encode(t, emb_dim)
    w1, b1 = params["mlp1"]
    w2, b2 = params["mlp2"]
    temb = matmul_fused(enc, w1, b1, act="silu")
    temb = matmul_fused(temb, w2, b2, act=None, out_dtype=jnp.float32)  # (N, emb)

    # --- encoders: each block is one fused Pallas kernel ---
    skips = []
    h, w = H, W
    cur = x
    from_vf = False
    for lvl in range(depth):
        cin, cout = chan[lvl], chan[lvl + 1]
        p = params["encoders"][lvl]
        xprep = _encoder_prep(cur, h, w, cin, from_valid_flat=from_vf)
        ho, wo = h // 2, w // 2
        cur = conv_block(xprep, p["w1"], p["b1"], p["w2"], p["b2"],
                         ho=ho, wo=wo, cout=cout, pad_input=False)
        skips.append((cur, ho, wo, cout))
        h, w = ho, wo
        from_vf = True

    # --- bottleneck (stride-1 pair) with the time-embedding add fused in ---
    pb = params["bottleneck"]
    cb = chan[-1]
    cur = conv_block(cur, pb["w1"], pb["b1"], pb["w2"], pb["b2"],
                     temb=temb.reshape(n, 1, cb),
                     ho=h, wo=w, cout=cb, pad_input=True)

    # --- decoders: skip add fused into the upconv matmul; last level also
    #     fuses the 1x1 output conv and returns NCHW ---
    for idx in range(depth):
        skip, sh, sw, sc = skips[-(idx + 1)]
        d = params["decoders"][idx]
        rows = sh * (sw + 2)
        xf = cur.reshape(n * rows, sc)
        sf = skip.reshape(n * rows, sc)
        cout_dec = d["w"].shape[1] // 4
        if idx == depth - 1:
            y = matmul_fused(xf, d["w"], d["b"], act="relu", a2=sf,
                             w_post=d["w_post"], b_post=d["b_post"],
                             out_dtype=jnp.float32)
            y = y.reshape(n, rows, 4 * channels)
            return _block_to_nchw(y, sh, sw, channels)
        y = matmul_fused(xf, d["w"], d["b"], act="relu", a2=sf)
        y = y.reshape(n, rows, 4 * cout_dec)
        cur = _block_to_valid_flat(y, sh, sw, cout_dec)


# ============================================================================
# Demo
# ============================================================================

if __name__ == "__main__":
    # small config consistent with the module constructor:
    #   Denoiser(channels=3, depth=3, channel_depth_base=8) -> channels [3, 8, 16, 32]
    channels, depth, base = 3, 3, 8
    batch, spatial = 2, 16

    key = jax.random.PRNGKey(0)
    kx, kt, kp = jax.random.split(key, 3)
    x = jax.random.normal(kx, (batch, channels, spatial, spatial), jnp.float32)  # NCHW
    t = jax.random.randint(kt, (batch,), 0, 1000).astype(jnp.float32)

    params, cfg = init_denoiser_params(
        kp, channels=channels, depth=depth, channel_depth_base=base)

    fwd = jax.jit(functools.partial(denoiser_forward, cfg=cfg))
    out = jax.block_until_ready(fwd(params, x, t))

    assert out.shape == (batch, channels, spatial, spatial), out.shape
    assert bool(jnp.all(jnp.isfinite(out)))
    print("KERNEL_OK")
</pallas_src>

<mosaic_0001>
module attributes {stable_mosaic.version = 11 : i64} {
  func.func @_mm_kernel(%arg0: i32, %arg1: memref<2x32xbf16, #tpu.memory_space<vmem>>, %arg2: memref<32x32xbf16, #tpu.memory_space<vmem>>, %arg3: memref<1x32xf32, #tpu.memory_space<vmem>>, %arg4: memref<2x32xf32, #tpu.memory_space<vmem>>) attributes {dimension_semantics = [#tpu.dimension_semantics<parallel>], iteration_bounds = array<i64: 1>, scalar_prefetch = 0 : i64, scratch_operands = 0 : i64, tpu.core_type = #tpu.core_type<tc>, window_params = [{transform_indices = @transform_0, window_bounds = array<i64: 2, 32>}, {pipeline_mode = #tpu.pipeline_mode<synchronous>, transform_indices = @transform_1, window_bounds = array<i64: 32, 32>}, {pipeline_mode = #tpu.pipeline_mode<synchronous>, transform_indices = @transform_2, window_bounds = array<i64: 1, 32>}, {transform_indices = @transform_3, window_bounds = array<i64: 2, 32>}]} {
    %c0 = arith.constant 0 : index
    %c0_0 = arith.constant 0 : index
    %0 = vector.load %arg1[%c0, %c0_0] : memref<2x32xbf16, #tpu.memory_space<vmem>>, vector<2x32xbf16>
    %c0_1 = arith.constant 0 : index
    %c0_2 = arith.constant 0 : index
    %1 = vector.load %arg2[%c0_1, %c0_2] : memref<32x32xbf16, #tpu.memory_space<vmem>>, vector<32x32xbf16>
    %cst = arith.constant dense<0.000000e+00> : vector<2x32xf32>
    %2 = tpu.matmul %0, %1, %cst {dimension_numbers = #tpu.dot_dimension_numbers<[1], [0], [0], [1], [0, 0, 1, 1], [], []>} : vector<2x32xbf16>, vector<32x32xbf16>, vector<2x32xf32> -> vector<2x32xf32>
    %c0_3 = arith.constant 0 : index
    %c0_4 = arith.constant 0 : index
    %3 = vector.load %arg3[%c0_3, %c0_4] : memref<1x32xf32, #tpu.memory_space<vmem>>, vector<1x32xf32>
    %4 = vector.broadcast %3 : vector<1x32xf32> to vector<2x32xf32>
    %5 = arith.addf %2, %4 : vector<2x32xf32>
    %c0_5 = arith.constant 0 : index
    %c0_6 = arith.constant 0 : index
    %6 = vector.load %arg4[%c0_5, %c0_6] : memref<2x32xf32, #tpu.memory_space<vmem>>, vector<2x32xf32>
    tpu.vector_store %arg4[%c0_5, %c0_6], %5 {strides = array<i32>} : memref<2x32xf32, #tpu.memory_space<vmem>>, vector<2x32xf32>,
    return
  }
  func.func @transform_0(%arg0: i32) -> (i32, i32) {
    %c0_i32 = arith.constant 0 : i32
    %c0_i32_0 = arith.constant 0 : i32
    return %arg0, %c0_i32 : i32, i32
  }
  func.func @transform_1(%arg0: i32) -> (i32, i32) {
    %c0_i32 = arith.constant 0 : i32
    %c0_i32_0 = arith.constant 0 : i32
    %c0_i32_1 = arith.constant 0 : i32
    return %c0_i32, %c0_i32_0 : i32, i32
  }
  func.func @transform_2(%arg0: i32) -> (i32, i32) {
    %c0_i32 = arith.constant 0 : i32
    %c0_i32_0 = arith.constant 0 : i32
    %c0_i32_1 = arith.constant 0 : i32
    return %c0_i32, %c0_i32_0 : i32, i32
  }
  func.func @transform_3(%arg0: i32) -> (i32, i32) {
    %c0_i32 = arith.constant 0 : i32
    %c0_i32_0 = arith.constant 0 : i32
    return %arg0, %c0_i32 : i32, i32
  }
}

module attributes {stable_mosaic.version = 11 : i64} {
  func.func @_mm_kernel(%arg0: i32, %arg1: memref<2x32xbf16, #tpu.memory_space<vmem>>, %arg2: memref<32x32xbf16, #tpu.memory_space<vmem>>, %arg3: memref<1x32xf32, #tpu.memory_space<vmem>>, %arg4: memref<2x32xbf16, #tpu.memory_space<vmem>>) attributes {dimension_semantics = [#tpu.dimension_semantics<parallel>], iteration_bounds = array<i64: 1>, scalar_prefetch = 0 : i64, scratch_operands = 0 : i64, tpu.core_type = #tpu.core_type<tc>, window_params = [{transform_indices = @transform_0, window_bounds = array<i64: 2, 32>}, {pipeline_mode = #tpu.pipeline_mode<synchronous>, transform_indices = @transform_1, window_bounds = array<i64: 32, 32>}, {pipeline_mode = #tpu.pipeline_mode<synchronous>, transform_indices = @transform_2, window_bounds = array<i64: 1, 32>}, {transform_indices = @transform_3, window_bounds = array<i64: 2, 32>}]} {
    %c0 = arith.constant 0 : index
    %c0_0 = arith.constant 0 : index
    %0 = vector.load %arg1[%c0, %c0_0] : memref<2x32xbf16, #tpu.memory_space<vmem>>, vector<2x32xbf16>
    %c0_1 = arith.constant 0 : index
    %c0_2 = arith.constant 0 : index
    %1 = vector.load %arg2[%c0_1, %c0_2] : memref<32x32xbf16, #tpu.memory_space<vmem>>, vector<32x32xbf16>
    %cst = arith.constant dense<0.000000e+00> : vector<2x32xf32>
    %2 = tpu.matmul %0, %1, %cst {dimension_numbers = #tpu.dot_dimension_numbers<[1], [0], [0], [1], [0, 0, 1, 1], [], []>} : vector<2x32xbf16>, vector<32x32xbf16>, vector<2x32xf32> -> vector<2x32xf32>
    %c0_3 = arith.constant 0 : index
    %c0_4 = arith.constant 0 : index
    %3 = vector.load %arg3[%c0_3, %c0_4] : memref<1x32xf32, #tpu.memory_space<vmem>>, vector<1x32xf32>
    %4 = vector.broadcast %3 : vector<1x32xf32> to vector<2x32xf32>
    %5 = arith.addf %2, %4 : vector<2x32xf32>
    %cst_5 = arith.constant 0.000000e+00 : f32
    %6 = vector.broadcast %cst_5 : f32 to vector<2x32xf32>
    %7 = arith.subf %6, %5 : vector<2x32xf32>
    %8 = math.exp %7 : vector<2x32xf32>
    %cst_6 = arith.constant 1.000000e+00 : f32
    %9 = vector.broadcast %cst_6 : f32 to vector<2x32xf32>
    %10 = arith.addf %9, %8 : vector<2x32xf32>
    %11 = tpu.reciprocal %10 {approx = true} : vector<2x32xf32> -> vector<2x32xf32>
    %12 = arith.mulf %5, %11 : vector<2x32xf32>
    %13 = arith.truncf %12 : vector<2x32xf32> to vector<2x32xbf16>
    %c0_7 = arith.constant 0 : index
    %c0_8 = arith.constant 0 : index
    %14 = vector.load %arg4[%c0_7, %c0_8] : memref<2x32xbf16, #tpu.memory_space<vmem>>, vector<2x32xbf16>
    tpu.vector_store %arg4[%c0_7, %c0_8], %13 {strides = array<i32>} : memref<2x32xbf16, #tpu.memory_space<vmem>>, vector<2x32xbf16>,
    return
  }
  func.func @transform_0(%arg0: i32) -> (i32, i32) {
    %c0_i32 = arith.constant 0 : i32
    %c0_i32_0 = arith.constant 0 : i32
    return %arg0, %c0_i32 : i32, i32
  }
  func.func @transform_1(%arg0: i32) -> (i32, i32) {
    %c0_i32 = arith.constant 0 : i32
    %c0_i32_0 = arith.constant 0 : i32
    %c0_i32_1 = arith.constant 0 : i32
    return %c0_i32, %c0_i32_0 : i32, i32
  }
  func.func @transform_2(%arg0: i32) -> (i32, i32) {
    %c0_i32 = arith.constant 0 : i32
    %c0_i32_0 = arith.constant 0 : i32
    %c0_i32_1 = arith.constant 0 : i32
    return %c0_i32, %c0_i32_0 : i32, i32
  }
  func.func @transform_3(%arg0: i32) -> (i32, i32) {
    %c0_i32 = arith.constant 0 : i32
    %c0_i32_0 = arith.constant 0 : i32
    return %arg0, %c0_i32 : i32, i32
  }
}

module attributes {stable_mosaic.version = 11 : i64} {
  func.func @_conv_block_kernel(%arg0: i32, %arg1: memref<1x100x12xbf16, #tpu.memory_space<vmem>>, %arg2: memref<4x12x8xbf16, #tpu.memory_space<vmem>>, %arg3: memref<1x8xf32, #tpu.memory_space<vmem>>, %arg4: memref<9x8x8xbf16, #tpu.memory_space<vmem>>, %arg5: memref<1x8xf32, #tpu.memory_space<vmem>>, %arg6: memref<1x80x8xbf16, #tpu.memory_space<vmem>>, %arg7: memref<100x12xf32, #tpu.memory_space<vmem>>, %arg8: memref<110x8xf32, #tpu.memory_space<vmem>>) attributes {dimension_semantics = [#tpu.dimension_semantics<parallel>], iteration_bounds = array<i64: 2>, scalar_prefetch = 0 : i64, scratch_operands = 2 : i64, tpu.core_type = #tpu.core_type<tc>, window_params = [{transform_indices = @transform_0, window_bounds = array<i64: 1, 100, 12>}, {pipeline_mode = #tpu.pipeline_mode<synchronous>, transform_indices = @transform_1, window_bounds = array<i64: 4, 12, 8>}, {pipeline_mode = #tpu.pipeline_mode<synchronous>, transform_indices = @transform_2, window_bounds = array<i64: 1, 8>}, {pipeline_mode = #tpu.pipeline_mode<synchronous>, transform_indices = @transform_3, window_bounds = array<i64: 9, 8, 8>}, {pipeline_mode = #tpu.pipeline_mode<synchronous>, transform_indices = @transform_4, window_bounds = array<i64: 1, 8>}, {transform_indices = @transform_5, window_bounds = array<i64: 1, 80, 8>}]} {
    %0 = tpu.iota {dimensions = array<i32: 0>} : vector<80x1xi32>
    %c10_i32 = arith.constant 10 : i32
    %c0_i32 = arith.constant 0 : i32
    %1 = arith.cmpi eq, %c10_i32, %c0_i32 : i32
    %c1_i32 = arith.constant 1 : i32
    %2 = arith.select %1, %c1_i32, %c10_i32 : i32
    %3 = vector.broadcast %2 : i32 to vector<80x1xi32>
    %4 = arith.remsi %0, %3 : vector<80x1xi32>
    %c0_i32_0 = arith.constant 0 : i32
    %5 = vector.broadcast %c0_i32_0 : i32 to vector<80x1xi32>
    %6 = arith.cmpi ne, %4, %5 : vector<80x1xi32>
    %c0_i32_1 = arith.constant 0 : i32
    %7 = vector.broadcast %c0_i32_1 : i32 to vector<80x1xi32>
    %8 = arith.cmpi slt, %4, %7 : vector<80x1xi32>
    %c0_i32_2 = arith.constant 0 : i32
    %9 = arith.cmpi slt, %2, %c0_i32_2 : i32
    %10 = vector.broadcast %9 : i1 to vector<80x1xi1>
    %11 = vector.broadcast %10 : vector<80x1xi1> to vector<80x1xi1>
    %12 = arith.xori %8, %11 : vector<80x1xi1>
    %13 = arith.andi %12, %6 : vector<80x1xi1>
    %14 = vector.broadcast %2 : i32 to vector<80x1xi32>
    %15 = arith.addi %4, %14 : vector<80x1xi32>
    %16 = arith.select %13, %15, %4 : vector<80x1xi1>, vector<80x1xi32>
    %c8_i32 = arith.constant 8 : i32
    %17 = vector.broadcast %c8_i32 : i32 to vector<80x1xi32>
    %18 = arith.cmpi slt, %16, %17 : vector<80x1xi32>
    %c0 = arith.constant 0 : index
    %c0_3 = arith.constant 0 : index
    %c0_4 = arith.constant 0 : index
    %19 = vector.load %arg1[%c0, %c0_3, %c0_4] : memref<1x100x12xbf16, #tpu.memory_space<vmem>>, vector<1x100x12xbf16>
    %20 = vector.shape_cast %19 : vector<1x100x12xbf16> to vector<100x12xbf16>
    %21 = arith.extf %20 : vector<100x12xbf16> to vector<100x12xf32>
    %c0_5 = arith.constant 0 : index
    %c0_6 = arith.constant 0 : index
    %22 = vector.load %arg7[%c0_5, %c0_6] : memref<100x12xf32, #tpu.memory_space<vmem>>, vector<100x12xf32>
    tpu.vector_store %arg7[%c0_5, %c0_6], %21 {strides = array<i32>} : memref<100x12xf32, #tpu.memory_space<vmem>>, vector<100x12xf32>,
    %cst = arith.constant 0.000000e+00 : f32
    %23 = vector.broadcast %cst : f32 to vector<80x8xf32>
    %c0_7 = arith.constant 0 : index
    %c0_8 = arith.constant 0 : index
    %24 = vector.load %arg7[%c0_7, %c0_8] : memref<100x12xf32, #tpu.memory_space<vmem>>, vector<80x12xf32>
    %25 = arith.truncf %24 : vector<80x12xf32> to vector<80x12xbf16>
    %c0_9 = arith.constant 0 : index
    %c0_10 = arith.constant 0 : index
    %c0_11 = arith.constant 0 : index
    %26 = vector.load %arg2[%c0_9, %c0_10, %c0_11] : memref<4x12x8xbf16, #tpu.memory_space<vmem>>, vector<1x12x8xbf16>
    %27 = vector.shape_cast %26 : vector<1x12x8xbf16> to vector<12x8xbf16>
    %cst_12 = arith.constant dense<0.000000e+00> : vector<80x8xf32>
    %28 = tpu.matmul %25, %27, %cst_12 {dimension_numbers = #tpu.dot_dimension_numbers<[1], [0], [0], [1], [0, 0, 1, 1], [], []>} : vector<80x12xbf16>, vector<12x8xbf16>, vector<80x8xf32> -> vector<80x8xf32>
    %29 = arith.addf %23, %28 : vector<80x8xf32>
    %c1 = arith.constant 1 : index
    %c0_13 = arith.constant 0 : index
    %30 = vector.load %arg7[%c1, %c0_13] : memref<100x12xf32, #tpu.memory_space<vmem>>, vector<80x12xf32>
    %31 = arith.truncf %30 : vector<80x12xf32> to vector<80x12xbf16>
    %c1_14 = arith.constant 1 : index
    %c0_15 = arith.constant 0 : index
    %c0_16 = arith.constant 0 : index
    %32 = vector.load %arg2[%c1_14, %c0_15, %c0_16] : memref<4x12x8xbf16, #tpu.memory_space<vmem>>, vector<1x12x8xbf16>
    %33 = vector.shape_cast %32 : vector<1x12x8xbf16> to vector<12x8xbf16>
    %cst_17 = arith.constant dense<0.000000e+00> : vector<80x8xf32>
    %34 = tpu.matmul %31, %33, %cst_17 {dimension_numbers = #tpu.dot_dimension_numbers<[1], [0], [0], [1], [0, 0, 1, 1], [], []>} : vector<80x12xbf16>, vector<12x8xbf16>, vector<80x8xf32> -> vector<80x8xf32>
    %35 = arith.addf %29, %34 : vector<80x8xf32>
    %c10 = arith.constant 10 : index
    %c0_18 = arith.constant 0 : index
    %36 = vector.load %arg7[%c10, %c0_18] : memref<100x12xf32, #tpu.memory_space<vmem>>, vector<80x12xf32>
    %37 = arith.truncf %36 : vector<80x12xf32> to vector<80x12xbf16>
    %c2 = arith.constant 2 : index
    %c0_19 = arith.constant 0 : index
    %c0_20 = arith.constant 0 : index
    %38 = vector.load %arg2[%c2, %c0_19, %c0_20] : memref<4x12x8xbf16, #tpu.memory_space<vmem>>, vector<1x12x8xbf16>
    %39 = vector.shape_cast %38 : vector<1x12x8xbf16> to vector<12x8xbf16>
    %cst_21 = arith.constant dense<0.000000e+00> : vector<80x8xf32>
    %40 = tpu.matmul %37, %39, %cst_21 {dimension_numbers = #tpu.dot_dimension_numbers<[1], [0], [0], [1], [0, 0, 1, 1], [], []>} : vector<80x12xbf16>, vector<12x8xbf16>, vector<80x8xf32> -> vector<80x8xf32>
    %41 = arith.addf %35, %40 : vector<80x8xf32>
    %c11 = arith.constant 11 : index
    %c0_22 = arith.constant 0 : index
    %42 = vector.load %arg7[%c11, %c0_22] : memref<100x12xf32, #tpu.memory_space<vmem>>, vector<80x12xf32>
    %43 = arith.truncf %42 : vector<80x12xf32> to vector<80x12xbf16>
    %c3 = arith.constant 3 : index
    %c0_23 = arith.constant 0 : index
    %c0_24 = arith.constant 0 : index
    %44 = vector.load %arg2[%c3, %c0_23, %c0_24] : memref<4x12x8xbf16, #tpu.memory_space<vmem>>, vector<1x12x8xbf16>
    %45 = vector.shape_cast %44 : vector<1x12x8xbf16> to vector<12x8xbf16>
    %cst_25 = arith.constant dense<0.000000e+00> : vector<80x8xf32>
    %46 = tpu.matmul %43, %45, %cst_25 {dimension_numbers = #tpu.dot_dimension_numbers<[1], [0], [0], [1], [0, 0, 1, 1], [], []>} : vector<80x12xbf16>, vector<12x8xbf16>, vector<80x8xf32> -> vector<80x8xf32>
    %47 = arith.addf %41, %46 : vector<80x8xf32>
    %c0_26 = arith.constant 0 : index
    %c0_27 = arith.constant 0 : index
    %48 = vector.load %arg3[%c0_26, %c0_27] : memref<1x8xf32, #tpu.memory_space<vmem>>, vector<1x8xf32>
    %49 = vector.broadcast %48 : vector<1x8xf32> to vector<80x8xf32>
    %50 = arith.addf %47, %49 : vector<80x8xf32>
    %cst_28 = arith.constant 0.000000e+00 : f32
    %51 = vector.broadcast %cst_28 : f32 to vector<80x8xf32>
    %52 = arith.maximumf %50, %51 : vector<80x8xf32>
    %cst_29 = arith.constant 0.000000e+00 : f32
    %53 = vector.shape_cast %18 : vector<80x1xi1> to vector<80x1xi1>
    %54 = vector.broadcast %53 : vector<80x1xi1> to vector<80x8xi1>
    %55 = vector.broadcast %cst_29 : f32 to vector<80x8xf32>
    %56 = arith.select %54, %52, %55 : vector<80x8xi1>, vector<80x8xf32>
    %cst_30 = arith.constant 0.000000e+00 : f32
    %57 = vector.broadcast %cst_30 : f32 to vector<110x8xf32>
    %c0_31 = arith.constant 0 : index
    %c0_32 = arith.constant 0 : index
    %58 = vector.load %arg8[%c0_31, %c0_32] : memref<110x8xf32, #tpu.memory_space<vmem>>, vector<110x8xf32>
    tpu.vector_store %arg8[%c0_31, %c0_32], %57 {strides = array<i32>} : memref<110x8xf32, #tpu.memory_space<vmem>>, vector<110x8xf32>,
    %c11_33 = arith.constant 11 : index
    %c0_34 = arith.constant 0 : index
    %59 = vector.load %arg8[%c11_33, %c0_34] : memref<110x8xf32, #tpu.memory_space<vmem>>, vector<80x8xf32>
    tpu.vector_store %arg8[%c11_33, %c0_34], %56 {strides = array<i32>} : memref<110x8xf32, #tpu.memory_space<vmem>>, vector<80x8xf32>,
    %cst_35 = arith.constant 0.000000e+00 : f32
    %60 = vector.broadcast %cst_35 : f32 to vector<80x8xf32>
    %c0_36 = arith.constant 0 : index
    %c0_37 = arith.constant 0 : index
    %61 = vector.load %arg8[%c0_36, %c0_37] : memref<110x8xf32, #tpu.memory_space<vmem>>, vector<80x8xf32>
    %62 = arith.truncf %61 : vector<80x8xf32> to vector<80x8xbf16>
    %c0_38 = arith.constant 0 : index
    %c0_39 = arith.constant 0 : index
    %c0_40 = arith.constant 0 : index
    %63 = vector.load %arg4[%c0_38, %c0_39, %c0_40] : memref<9x8x8xbf16, #tpu.memory_space<vmem>>, vector<1x8x8xbf16>
    %64 = vector.shape_cast %63 : vector<1x8x8xbf16> to vector<8x8xbf16>
    %cst_41 = arith.constant dense<0.000000e+00> : vector<80x8xf32>
    %65 = tpu.matmul %62, %64, %cst_41 {dimension_numbers = #tpu.dot_dimension_numbers<[1], [0], [0], [1], [0, 0, 1, 1], [], []>} : vector<80x8xbf16>, vector<8x8xbf16>, vector<80x8xf32> -> vector<80x8xf32>
    %66 = arith.addf %60, %65 : vector<80x8xf32>
    %c1_42 = arith.constant 1 : index
    %c0_43 = arith.constant 0 : index
    %67 = vector.load %arg8[%c1_42, %c0_43] : memref<110x8xf32, #tpu.memory_space<vmem>>, vector<80x8xf32>
    %68 = arith.truncf %67 : vector<80x8xf32> to vector<80x8xbf16>
    %c1_44 = arith.constant 1 : index
    %c0_45 = arith.constant 0 : index
    %c0_46 = arith.constant 0 : index
    %69 = vector.load %arg4[%c1_44, %c0_45, %c0_46] : memref<9x8x8xbf16, #tpu.memory_space<vmem>>, vector<1x8x8xbf16>
    %70 = vector.shape_cast %69 : vector<1x8x8xbf16> to vector<8x8xbf16>
    %cst_47 = arith.constant dense<0.000000e+00> : vector<80x8xf32>
    %71 = tpu.matmul %68, %70, %cst_47 {dimension_numbers = #tpu.dot_dimension_numbers<[1], [0], [0], [1], [0, 0, 1, 1], [], []>} : vector<80x8xbf16>, vector<8x8xbf16>, vector<80x8xf32> -> vector<80x8xf32>
    %72 = arith.addf %66, %71 : vector<80x8xf32>
    %c2_48 = arith.constant 2 : index
    %c0_49 = arith.constant 0 : index
    %73 = vector.load %arg8[%c2_48, %c0_49] : memref<110x8xf32, #tpu.memory_space<vmem>>, vector<80x8xf32>
    %74 = arith.truncf %73 : vector<80x8xf32> to vector<80x8xbf16>
    %c2_50 = arith.constant 2 : index
    %c0_51 = arith.constant 0 : index
    %c0_52 = arith.constant 0 : index
    %75 = vector.load %arg4[%c2_50, %c0_51, %c0_52] : memref<9x8x8xbf16, #tpu.memory_space<vmem>>, vector<1x8x8xbf16>
    %76 = vector.shape_cast %75 : vector<1x8x8xbf16> to vector<8x8xbf16>
    %cst_53 = arith.constant dense<0.000000e+00> : vector<80x8xf32>
    %77 = tpu.matmul %74, %76, %cst_53 {dimension_numbers = #tpu.dot_dimension_numbers<[1], [0], [0], [1], [0, 0, 1, 1], [], []>} : vector<80x8xbf16>, vector<8x8xbf16>, vector<80x8xf32> -> vector<80x8xf32>
    %78 = arith.addf %72, %77 : vector<80x8xf32>
    %c10_54 = arith.constant 10 : index
    %c0_55 = arith.constant 0 : index
    %79 = vector.load %arg8[%c10_54, %c0_55] : memref<110x8xf32, #tpu.memory_space<vmem>>, vector<80x8xf32>
    %80 = arith.truncf %79 : vector<80x8xf32> to vector<80x8xbf16>
    %c3_56 = arith.constant 3 : index
    %c0_57 = arith.constant 0 : index
    %c0_58 = arith.constant 0 : index
    %81 = vector.load %arg4[%c3_56, %c0_57, %c0_58] : memref<9x8x8xbf16, #tpu.memory_space<vmem>>, vector<1x8x8xbf16>
    %82 = vector.shape_cast %81 : vector<1x8x8xbf16> to vector<8x8xbf16>
    %cst_59 = arith.constant dense<0.000000e+00> : vector<80x8xf32>
    %83 = tpu.matmul %80, %82, %cst_59 {dimension_numbers = #tpu.dot_dimension_numbers<[1], [0], [0], [1], [0, 0, 1, 1], [], []>} : vector<80x8xbf16>, vector<8x8xbf16>, vector<80x8xf32> -> vector<80x8xf32>
    %84 = arith.addf %78, %83 : vector<80x8xf32>
    %c11_60 = arith.constant 11 : index
    %c0_61 = arith.constant 0 : index
    %85 = vector.load %arg8[%c11_60, %c0_61] : memref<110x8xf32, #tpu.memory_space<vmem>>, vector<80x8xf32>
    %86 = arith.truncf %85 : vector<80x8xf32> to vector<80x8xbf16>
    %c4 = arith.constant 4 : index
    %c0_62 = arith.constant 0 : index
    %c0_63 = arith.constant 0 : index
    %87 = vector.load %arg4[%c4, %c0_62, %c0_63] : memref<9x8x8xbf16, #tpu.memory_space<vmem>>, vector<1x8x8xbf16>
    %88 = vector.shape_cast %87 : vector<1x8x8xbf16> to vector<8x8xbf16>
    %cst_64 = arith.constant dense<0.000000e+00> : vector<80x8xf32>
    %89 = tpu.matmul %86, %88, %cst_64 {dimension_numbers = #tpu.dot_dimension_numbers<[1], [0], [0], [1], [0, 0, 1, 1], [], []>} : vector<80x8xbf16>, vector<8x8xbf16>, vector<80x8xf32> -> vector<80x8xf32>
    %90 = arith.addf %84, %89 : vector<80x8xf32>
    %c12 = arith.constant 12 : index
    %c0_65 = arith.constant 0 : index
    %91 = vector.load %arg8[%c12, %c0_65] : memref<110x8xf32, #tpu.memory_space<vmem>>, vector<80x8xf32>
    %92 = arith.truncf %91 : vector<80x8xf32> to vector<80x8xbf16>
    %c5 = arith.constant 5 : index
    %c0_66 = arith.constant 0 : index
    %c0_67 = arith.constant 0 : index
    %93 = vector.load %arg4[%c5, %c0_66, %c0_67] : memref<9x8x8xbf16, #tpu.memory_space<vmem>>, vector<1x8x8xbf16>
    %94 = vector.shape_cast %93 : vector<1x8x8xbf16> to vector<8x8xbf16>
    %cst_68 = arith.constant dense<0.000000e+00> : vector<80x8xf32>
    %95 = tpu.matmul %92, %94, %cst_68 {dimension_numbers = #tpu.dot_dimension_numbers<[1], [0], [0], [1], [0, 0, 1, 1], [], []>} : vector<80x8xbf16>, vector<8x8xbf16>, vector<80x8xf32> -> vector<80x8xf32>
    %96 = arith.addf %90, %95 : vector<80x8xf32>
    %c20 = arith.constant 20 : index
    %c0_69 = arith.constant 0 : index
    %97 = vector.load %arg8[%c20, %c0_69] : memref<110x8xf32, #tpu.memory_space<vmem>>, vector<80x8xf32>
    %98 = arith.truncf %97 : vector<80x8xf32> to vector<80x8xbf16>
    %c6 = arith.constant 6 : index
    %c0_70 = arith.constant 0 : index
    %c0_71 = arith.constant 0 : index
    %99 = vector.load %arg4[%c6, %c0_70, %c0_71] : memref<9x8x8xbf16, #tpu.memory_space<vmem>>, vector<1x8x8xbf16>
    %100 = vector.shape_cast %99 : vector<1x8x8xbf16> to vector<8x8xbf16>
    %cst_72 = arith.constant dense<0.000000e+00> : vector<80x8xf32>
    %101 = tpu.matmul %98, %100, %cst_72 {dimension_numbers = #tpu.dot_dimension_numbers<[1], [0], [0], [1], [0, 0, 1, 1], [], []>} : vector<80x8xbf16>, vector<8x8xbf16>, vector<80x8xf32> -> vector<80x8xf32>
    %102 = arith.addf %96, %101 : vector<80x8xf32>
    %c21 = arith.constant 21 : index
    %c0_73 = arith.constant 0 : index
    %103 = vector.load %arg8[%c21, %c0_73] : memref<110x8xf32, #tpu.memory_space<vmem>>, vector<80x8xf32>
    %104 = arith.truncf %103 : vector<80x8xf32> to vector<80x8xbf16>
    %c7 = arith.constant 7 : index
    %c0_74 = arith.constant 0 : index
    %c0_75 = arith.constant 0 : index
    %105 = vector.load %arg4[%c7, %c0_74, %c0_75] : memref<9x8x8xbf16, #tpu.memory_space<vmem>>, vector<1x8x8xbf16>
    %106 = vector.shape_cast %105 : vector<1x8x8xbf16> to vector<8x8xbf16>
    %cst_76 = arith.constant dense<0.000000e+00> : vector<80x8xf32>
    %107 = tpu.matmul %104, %106, %cst_76 {dimension_numbers = #tpu.dot_dimension_numbers<[1], [0], [0], [1], [0, 0, 1, 1], [], []>} : vector<80x8xbf16>, vector<8x8xbf16>, vector<80x8xf32> -> vector<80x8xf32>
    %108 = arith.addf %102, %107 : vector<80x8xf32>
    %c22 = arith.constant 22 : index
    %c0_77 = arith.constant 0 : index
    %109 = vector.load %arg8[%c22, %c0_77] : memref<110x8xf32, #tpu.memory_space<vmem>>, vector<80x8xf32>
    %110 = arith.truncf %109 : vector<80x8xf32> to vector<80x8xbf16>
    %c8 = arith.constant 8 : index
    %c0_78 = arith.constant 0 : index
    %c0_79 = arith.constant 0 : index
    %111 = vector.load %arg4[%c8, %c0_78, %c0_79] : memref<9x8x8xbf16, #tpu.memory_space<vmem>>, vector<1x8x8xbf16>
    %112 = vector.shape_cast %111 : vector<1x8x8xbf16> to vector<8x8xbf16>
    %cst_80 = arith.constant dense<0.000000e+00> : vector<80x8xf32>
    %113 = tpu.matmul %110, %112, %cst_80 {dimension_numbers = #tpu.dot_dimension_numbers<[1], [0], [0], [1], [0, 0, 1, 1], [], []>} : vector<80x8xbf16>, vector<8x8xbf16>, vector<80x8xf32> -> vector<80x8xf32>
    %114 = arith.addf %108, %113 : vector<80x8xf32>
    %c0_81 = arith.constant 0 : index
    %c0_82 = arith.constant 0 : index
    %115 = vector.load %arg5[%c0_81, %c0_82] : memref<1x8xf32, #tpu.memory_space<vmem>>, vector<1x8xf32>
    %116 = vector.broadcast %115 : vector<1x8xf32> to vector<80x8xf32>
    %117 = arith.addf %114, %116 : vector<80x8xf32>
    %cst_83 = arith.constant 0.000000e+00 : f32
    %118 = vector.broadcast %cst_83 : f32 to vector<80x8xf32>
    %119 = arith.maximumf %117, %118 : vector<80x8xf32>
    %cst_84 = arith.constant 0.000000e+00 : f32
    %120 = vector.shape_cast %18 : vector<80x1xi1> to vector<80x1xi1>
    %121 = vector.broadcast %120 : vector<80x1xi1> to vector<80x8xi1>
    %122 = vector.broadcast %cst_84 : f32 to vector<80x8xf32>
    %123 = arith.select %121, %119, %122 : vector<80x8xi1>, vector<80x8xf32>
    %124 = arith.truncf %123 : vector<80x8xf32> to vector<80x8xbf16>
    %c0_85 = arith.constant 0 : index
    %c0_86 = arith.constant 0 : index
    %c0_87 = arith.constant 0 : index
    %125 = vector.load %arg6[%c0_85, %c0_86, %c0_87] : memref<1x80x8xbf16, #tpu.memory_space<vmem>>, vector<1x80x8xbf16>
    %126 = vector.shape_cast %125 : vector<1x80x8xbf16> to vector<80x8xbf16>
    %127 = vector.shape_cast %124 : vector<80x8xbf16> to vector<1x80x8xbf16>
    tpu.vector_store %arg6[%c0_85, %c0_86, %c0_87], %127 {strides = array<i32>} : memref<1x80x8xbf16, #tpu.memory_space<vmem>>, vector<1x80x8xbf16>,
    return
  }
  func.func @transform_0(%arg0: i32) -> (i32, i32, i32) {
    %c0_i32 = arith.constant 0 : i32
    %c0_i32_0 = arith.constant 0 : i32
    %c0_i32_1 = arith.constant 0 : i32
    return %arg0, %c0_i32, %c0_i32_0 : i32, i32, i32
  }
  func.func @transform_1(%arg0: i32) -> (i32, i32, i32) {
    %c0_i32 = arith.constant 0 : i32
    %c0_i32_0 = arith.constant 0 : i32
    %c0_i32_1 = arith.constant 0 : i32
    %c0_i32_2 = arith.constant 0 : i32
    return %c0_i32, %c0_i32_0, %c0_i32_1 : i32, i32, i32
  }
  func.func @transform_2(%arg0: i32) -> (i32, i32) {
    %c0_i32 = arith.constant 0 : i32
    %c0_i32_0 = arith.constant 0 : i32
    %c0_i32_1 = arith.constant 0 : i32
    return %c0_i32, %c0_i32_0 : i32, i32
  }
  func.func @transform_3(%arg0: i32) -> (i32, i32, i32) {
    %c0_i32 = arith.constant 0 : i32
    %c0_i32_0 = arith.constant 0 : i32
    %c0_i32_1 = arith.constant 0 : i32
    %c0_i32_2 = arith.constant 0 : i32
    return %c0_i32, %c0_i32_0, %c0_i32_1 : i32, i32, i32
  }
  func.func @transform_4(%arg0: i32) -> (i32, i32) {
    %c0_i32 = arith.constant 0 : i32
    %c0_i32_0 = arith.constant 0 : i32
    %c0_i32_1 = arith.constant 0 : i32
    return %c0_i32, %c0_i32_0 : i32, i32
  }
  func.func @transform_5(%arg0: i32) -> (i32, i32, i32) {
    %c0_i32 = arith.constant 0 : i32
    %c0_i32_0 = arith.constant 0 : i32
    %c0_i32_1 = arith.constant 0 : i32
    return %arg0, %c0_i32, %c0_i32_0 : i32, i32, i32
  }
}

module attributes {stable_mosaic.version = 11 : i64} {
  func.func @_conv_block_kernel(%arg0: i32, %arg1: memref<1x36x32xbf16, #tpu.memory_space<vmem>>, %arg2: memref<4x32x16xbf16, #tpu.memory_space<vmem>>, %arg3: memref<1x16xf32, #tpu.memory_space<vmem>>, %arg4: memref<9x16x16xbf16, #tpu.memory_space<vmem>>, %arg5: memref<1x16xf32, #tpu.memory_space<vmem>>, %arg6: memref<1x24x16xbf16, #tpu.memory_space<vmem>>, %arg7: memref<36x32xf32, #tpu.memory_space<vmem>>, %arg8: memref<42x16xf32, #tpu.memory_space<vmem>>) attributes {dimension_semantics = [#tpu.dimension_semantics<parallel>], iteration_bounds = array<i64: 2>, scalar_prefetch = 0 : i64, scratch_operands = 2 : i64, tpu.core_type = #tpu.core_type<tc>, window_params = [{transform_indices = @transform_0, window_bounds = array<i64: 1, 36, 32>}, {pipeline_mode = #tpu.pipeline_mode<synchronous>, transform_indices = @transform_1, window_bounds = array<i64: 4, 32, 16>}, {pipeline_mode = #tpu.pipeline_mode<synchronous>, transform_indices = @transform_2, window_bounds = array<i64: 1, 16>}, {pipeline_mode = #tpu.pipeline_mode<synchronous>, transform_indices = @transform_3, window_bounds = array<i64: 9, 16, 16>}, {pipeline_mode = #tpu.pipeline_mode<synchronous>, transform_indices = @transform_4, window_bounds = array<i64: 1, 16>}, {transform_indices = @transform_5, window_bounds = array<i64: 1, 24, 16>}]} {
    %0 = tpu.iota {dimensions = array<i32: 0>} : vector<24x1xi32>
    %c6_i32 = arith.constant 6 : i32
    %c0_i32 = arith.constant 0 : i32
    %1 = arith.cmpi eq, %c6_i32, %c0_i32 : i32
    %c1_i32 = arith.constant 1 : i32
    %2 = arith.select %1, %c1_i32, %c6_i32 : i32
    %3 = vector.broadcast %2 : i32 to vector<24x1xi32>
    %4 = arith.remsi %0, %3 : vector<24x1xi32>
    %c0_i32_0 = arith.constant 0 : i32
    %5 = vector.broadcast %c0_i32_0 : i32 to vector<24x1xi32>
    %6 = arith.cmpi ne, %4, %5 : vector<24x1xi32>
    %c0_i32_1 = arith.constant 0 : i32
    %7 = vector.broadcast %c0_i32_1 : i32 to vector<24x1xi32>
    %8 = arith.cmpi slt, %4, %7 : vector<24x1xi32>
    %c0_i32_2 = arith.constant 0 : i32
    %9 = arith.cmpi slt, %2, %c0_i32_2 : i32
    %10 = vector.broadcast %9 : i1 to vector<24x1xi1>
    %11 = vector.broadcast %10 : vector<24x1xi1> to vector<24x1xi1>
    %12 = arith.xori %8, %11 : vector<24x1xi1>
    %13 = arith.andi %12, %6 : vector<24x1xi1>
    %14 = vector.broadcast %2 : i32 to vector<24x1xi32>
    %15 = arith.addi %4, %14 : vector<24x1xi32>
    %16 = arith.select %13, %15, %4 : vector<24x1xi1>, vector<24x1xi32>
    %c4_i32 = arith.constant 4 : i32
    %17 = vector.broadcast %c4_i32 : i32 to vector<24x1xi32>
    %18 = arith.cmpi slt, %16, %17 : vector<24x1xi32>
    %c0 = arith.constant 0 : index
    %c0_3 = arith.constant 0 : index
    %c0_4 = arith.constant 0 : index
    %19 = vector.load %arg1[%c0, %c0_3, %c0_4] : memref<1x36x32xbf16, #tpu.memory_space<vmem>>, vector<1x36x32xbf16>
    %20 = vector.shape_cast %19 : vector<1x36x32xbf16> to vector<36x32xbf16>
    %21 = arith.extf %20 : vector<36x32xbf16> to vector<36x32xf32>
    %c0_5 = arith.constant 0 : index
    %c0_6 = arith.constant 0 : index
    %22 = vector.load %arg7[%c0_5, %c0_6] : memref<36x32xf32, #tpu.memory_space<vmem>>, vector<36x32xf32>
    tpu.vector_store %arg7[%c0_5, %c0_6], %21 {strides = array<i32>} : memref<36x32xf32, #tpu.memory_space<vmem>>, vector<36x32xf32>,
    %cst = arith.constant 0.000000e+00 : f32
    %23 = vector.broadcast %cst : f32 to vector<24x16xf32>
    %c0_7 = arith.constant 0 : index
    %c0_8 = arith.constant 0 : index
    %24 = vector.load %arg7[%c0_7, %c0_8] : memref<36x32xf32, #tpu.memory_space<vmem>>, vector<24x32xf32>
    %25 = arith.truncf %24 : vector<24x32xf32> to vector<24x32xbf16>
    %c0_9 = arith.constant 0 : index
    %c0_10 = arith.constant 0 : index
    %c0_11 = arith.constant 0 : index
    %26 = vector.load %arg2[%c0_9, %c0_10, %c0_11] : memref<4x32x16xbf16, #tpu.memory_space<vmem>>, vector<1x32x16xbf16>
    %27 = vector.shape_cast %26 : vector<1x32x16xbf16> to vector<32x16xbf16>
    %cst_12 = arith.constant dense<0.000000e+00> : vector<24x16xf32>
    %28 = tpu.matmul %25, %27, %cst_12 {dimension_numbers = #tpu.dot_dimension_numbers<[1], [0], [0], [1], [0, 0, 1, 1], [], []>} : vector<24x32xbf16>, vector<32x16xbf16>, vector<24x16xf32> -> vector<24x16xf32>
    %29 = arith.addf %23, %28 : vector<24x16xf32>
    %c1 = arith.constant 1 : index
    %c0_13 = arith.constant 0 : index
    %30 = vector.load %arg7[%c1, %c0_13] : memref<36x32xf32, #tpu.memory_space<vmem>>, vector<24x32xf32>
    %31 = arith.truncf %30 : vector<24x32xf32> to vector<24x32xbf16>
    %c1_14 = arith.constant 1 : index
    %c0_15 = arith.constant 0 : index
    %c0_16 = arith.constant 0 : index
    %32 = vector.load %arg2[%c1_14, %c0_15, %c0_16] : memref<4x32x16xbf16, #tpu.memory_space<vmem>>, vector<1x32x16xbf16>
    %33 = vector.shape_cast %32 : vector<1x32x16xbf16> to vector<32x16xbf16>
    %cst_17 = arith.constant dense<0.000000e+00> : vector<24x16xf32>
    %34 = tpu.matmul %31, %33, %cst_17 {dimension_numbers = #tpu.dot_dimension_numbers<[1], [0], [0], [1], [0, 0, 1, 1], [], []>} : vector<24x32xbf16>, vector<32x16xbf16>, vector<24x16xf32> -> vector<24x16xf32>
    %35 = arith.addf %29, %34 : vector<24x16xf32>
    %c6 = arith.constant 6 : index
    %c0_18 = arith.constant 0 : index
    %36 = vector.load %arg7[%c6, %c0_18] : memref<36x32xf32, #tpu.memory_space<vmem>>, vector<24x32xf32>
    %37 = arith.truncf %36 : vector<24x32xf32> to vector<24x32xbf16>
    %c2 = arith.constant 2 : index
    %c0_19 = arith.constant 0 : index
    %c0_20 = arith.constant 0 : index
    %38 = vector.load %arg2[%c2, %c0_19, %c0_20] : memref<4x32x16xbf16, #tpu.memory_space<vmem>>, vector<1x32x16xbf16>
    %39 = vector.shape_cast %38 : vector<1x32x16xbf16> to vector<32x16xbf16>
    %cst_21 = arith.constant dense<0.000000e+00> : vector<24x16xf32>
    %40 = tpu.matmul %37, %39, %cst_21 {dimension_numbers = #tpu.dot_dimension_numbers<[1], [0], [0], [1], [0, 0, 1, 1], [], []>} : vector<24x32xbf16>, vector<32x16xbf16>, vector<24x16xf32> -> vector<24x16xf32>
    %41 = arith.addf %35, %40 : vector<24x16xf32>
    %c7 = arith.constant 7 : index
    %c0_22 = arith.constant 0 : index
    %42 = vector.load %arg7[%c7, %c0_22] : memref<36x32xf32, #tpu.memory_space<vmem>>, vector<24x32xf32>
    %43 = arith.truncf %42 : vector<24x32xf32> to vector<24x32xbf16>
    %c3 = arith.constant 3 : index
    %c0_23 = arith.constant 0 : index
    %c0_24 = arith.constant 0 : index
    %44 = vector.load %arg2[%c3, %c0_23, %c0_24] : memref<4x32x16xbf16, #tpu.memory_space<vmem>>, vector<1x32x16xbf16>
    %45 = vector.shape_cast %44 : vector<1x32x16xbf16> to vector<32x16xbf16>
    %cst_25 = arith.constant dense<0.000000e+00> : vector<24x16xf32>
    %46 = tpu.matmul %43, %45, %cst_25 {dimension_numbers = #tpu.dot_dimension_numbers<[1], [0], [0], [1], [0, 0, 1, 1], [], []>} : vector<24x32xbf16>, vector<32x16xbf16>, vector<24x16xf32> -> vector<24x16xf32>
    %47 = arith.addf %41, %46 : vector<24x16xf32>
    %c0_26 = arith.constant 0 : index
    %c0_27 = arith.constant 0 : index
    %48 = vector.load %arg3[%c0_26, %c0_27] : memref<1x16xf32, #tpu.memory_space<vmem>>, vector<1x16xf32>
    %49 = vector.broadcast %48 : vector<1x16xf32> to vector<24x16xf32>
    %50 = arith.addf %47, %49 : vector<24x16xf32>
    %cst_28 = arith.constant 0.000000e+00 : f32
    %51 = vector.broadcast %cst_28 : f32 to vector<24x16xf32>
    %52 = arith.maximumf %50, %51 : vector<24x16xf32>
    %cst_29 = arith.constant 0.000000e+00 : f32
    %53 = vector.shape_cast %18 : vector<24x1xi1> to vector<24x1xi1>
    %54 = vector.broadcast %53 : vector<24x1xi1> to vector<24x16xi1>
    %55 = vector.broadcast %cst_29 : f32 to vector<24x16xf32>
    %56 = arith.select %54, %52, %55 : vector<24x16xi1>, vector<24x16xf32>
    %cst_30 = arith.constant 0.000000e+00 : f32
    %57 = vector.broadcast %cst_30 : f32 to vector<42x16xf32>
    %c0_31 = arith.constant 0 : index
    %c0_32 = arith.constant 0 : index
    %58 = vector.load %arg8[%c0_31, %c0_32] : memref<42x16xf32, #tpu.memory_space<vmem>>, vector<42x16xf32>
    tpu.vector_store %arg8[%c0_31, %c0_32], %57 {strides = array<i32>} : memref<42x16xf32, #tpu.memory_space<vmem>>, vector<42x16xf32>,
    %c7_33 = arith.constant 7 : index
    %c0_34 = arith.constant 0 : index
    %59 = vector.load %arg8[%c7_33, %c0_34] : memref<42x16xf32, #tpu.memory_space<vmem>>, vector<24x16xf32>
    tpu.vector_store %arg8[%c7_33, %c0_34], %56 {strides = array<i32>} : memref<42x16xf32, #tpu.memory_space<vmem>>, vector<24x16xf32>,
    %cst_35 = arith.constant 0.000000e+00 : f32
    %60 = vector.broadcast %cst_35 : f32 to vector<24x16xf32>
    %c0_36 = arith.constant 0 : index
    %c0_37 = arith.constant 0 : index
    %61 = vector.load %arg8[%c0_36, %c0_37] : memref<42x16xf32, #tpu.memory_space<vmem>>, vector<24x16xf32>
    %62 = arith.truncf %61 : vector<24x16xf32> to vector<24x16xbf16>
    %c0_38 = arith.constant 0 : index
    %c0_39 = arith.constant 0 : index
    %c0_40 = arith.constant 0 : index
    %63 = vector.load %arg4[%c0_38, %c0_39, %c0_40] : memref<9x16x16xbf16, #tpu.memory_space<vmem>>, vector<1x16x16xbf16>
    %64 = vector.shape_cast %63 : vector<1x16x16xbf16> to vector<16x16xbf16>
    %cst_41 = arith.constant dense<0.000000e+00> : vector<24x16xf32>
    %65 = tpu.matmul %62, %64, %cst_41 {dimension_numbers = #tpu.dot_dimension_numbers<[1], [0], [0], [1], [0, 0, 1, 1], [], []>} : vector<24x16xbf16>, vector<16x16xbf16>, vector<24x16xf32> -> vector<24x16xf32>
    %66 = arith.addf %60, %65 : vector<24x16xf32>
    %c1_42 = arith.constant 1 : index
    %c0_43 = arith.constant 0 : index
    %67 = vector.load %arg8[%c1_42, %c0_43] : memref<42x16xf32, #tpu.memory_space<vmem>>, vector<24x16xf32>
    %68 = arith.truncf %67 : vector<24x16xf32> to vector<24x16xbf16>
    %c1_44 = arith.constant 1 : index
    %c0_45 = arith.constant 0 : index
    %c0_46 = arith.constant 0 : index
    %69 = vector.load %arg4[%c1_44, %c0_45, %c0_46] : memref<9x16x16xbf16, #tpu.memory_space<vmem>>, vector<1x16x16xbf16>
    %70 = vector.shape_cast %69 : vector<1x16x16xbf16> to vector<16x16xbf16>
    %cst_47 = arith.constant dense<0.000000e+00> : vector<24x16xf32>
    %71 = tpu.matmul %68, %70, %cst_47 {dimension_numbers = #tpu.dot_dimension_numbers<[1], [0], [0], [1], [0, 0, 1, 1], [], []>} : vector<24x16xbf16>, vector<16x16xbf16>, vector<24x16xf32> -> vector<24x16xf32>
    %72 = arith.addf %66, %71 : vector<24x16xf32>
    %c2_48 = arith.constant 2 : index
    %c0_49 = arith.constant 0 : index
    %73 = vector.load %arg8[%c2_48, %c0_49] : memref<42x16xf32, #tpu.memory_space<vmem>>, vector<24x16xf32>
    %74 = arith.truncf %73 : vector<24x16xf32> to vector<24x16xbf16>
    %c2_50 = arith.constant 2 : index
    %c0_51 = arith.constant 0 : index
    %c0_52 = arith.constant 0 : index
    %75 = vector.load %arg4[%c2_50, %c0_51, %c0_52] : memref<9x16x16xbf16, #tpu.memory_space<vmem>>, vector<1x16x16xbf16>
    %76 = vector.shape_cast %75 : vector<1x16x16xbf16> to vector<16x16xbf16>
    %cst_53 = arith.constant dense<0.000000e+00> : vector<24x16xf32>
    %77 = tpu.matmul %74, %76, %cst_53 {dimension_numbers = #tpu.dot_dimension_numbers<[1], [0], [0], [1], [0, 0, 1, 1], [], []>} : vector<24x16xbf16>, vector<16x16xbf16>, vector<24x16xf32> -> vector<24x16xf32>
    %78 = arith.addf %72, %77 : vector<24x16xf32>
    %c6_54 = arith.constant 6 : index
    %c0_55 = arith.constant 0 : index
    %79 = vector.load %arg8[%c6_54, %c0_55] : memref<42x16xf32, #tpu.memory_space<vmem>>, vector<24x16xf32>
    %80 = arith.truncf %79 : vector<24x16xf32> to vector<24x16xbf16>
    %c3_56 = arith.constant 3 : index
    %c0_57 = arith.constant 0 : index
    %c0_58 = arith.constant 0 : index
    %81 = vector.load %arg4[%c3_56, %c0_57, %c0_58] : memref<9x16x16xbf16, #tpu.memory_space<vmem>>, vector<1x16x16xbf16>
    %82 = vector.shape_cast %81 : vector<1x16x16xbf16> to vector<16x16xbf16>
    %cst_59 = arith.constant dense<0.000000e+00> : vector<24x16xf32>
    %83 = tpu.matmul %80, %82, %cst_59 {dimension_numbers = #tpu.dot_dimension_numbers<[1], [0], [0], [1], [0, 0, 1, 1], [], []>} : vector<24x16xbf16>, vector<16x16xbf16>, vector<24x16xf32> -> vector<24x16xf32>
    %84 = arith.addf %78, %83 : vector<24x16xf32>
    %c7_60 = arith.constant 7 : index
    %c0_61 = arith.constant 0 : index
    %85 = vector.load %arg8[%c7_60, %c0_61] : memref<42x16xf32, #tpu.memory_space<vmem>>, vector<24x16xf32>
    %86 = arith.truncf %85 : vector<24x16xf32> to vector<24x16xbf16>
    %c4 = arith.constant 4 : index
    %c0_62 = arith.constant 0 : index
    %c0_63 = arith.constant 0 : index
    %87 = vector.load %arg4[%c4, %c0_62, %c0_63] : memref<9x16x16xbf16, #tpu.memory_space<vmem>>, vector<1x16x16xbf16>
    %88 = vector.shape_cast %87 : vector<1x16x16xbf16> to vector<16x16xbf16>
    %cst_64 = arith.constant dense<0.000000e+00> : vector<24x16xf32>
    %89 = tpu.matmul %86, %88, %cst_64 {dimension_numbers = #tpu.dot_dimension_numbers<[1], [0], [0], [1], [0, 0, 1, 1], [], []>} : vector<24x16xbf16>, vector<16x16xbf16>, vector<24x16xf32> -> vector<24x16xf32>
    %90 = arith.addf %84, %89 : vector<24x16xf32>
    %c8 = arith.constant 8 : index
    %c0_65 = arith.constant 0 : index
    %91 = vector.load %arg8[%c8, %c0_65] : memref<42x16xf32, #tpu.memory_space<vmem>>, vector<24x16xf32>
    %92 = arith.truncf %91 : vector<24x16xf32> to vector<24x16xbf16>
    %c5 = arith.constant 5 : index
    %c0_66 = arith.constant 0 : index
    %c0_67 = arith.constant 0 : index
    %93 = vector.load %arg4[%c5, %c0_66, %c0_67] : memref<9x16x16xbf16, #tpu.memory_space<vmem>>, vector<1x16x16xbf16>
    %94 = vector.shape_cast %93 : vector<1x16x16xbf16> to vector<16x16xbf16>
    %cst_68 = arith.constant dense<0.000000e+00> : vector<24x16xf32>
    %95 = tpu.matmul %92, %94, %cst_68 {dimension_numbers = #tpu.dot_dimension_numbers<[1], [0], [0], [1], [0, 0, 1, 1], [], []>} : vector<24x16xbf16>, vector<16x16xbf16>, vector<24x16xf32> -> vector<24x16xf32>
    %96 = arith.addf %90, %95 : vector<24x16xf32>
    %c12 = arith.constant 12 : index
    %c0_69 = arith.constant 0 : index
    %97 = vector.load %arg8[%c12, %c0_69] : memref<42x16xf32, #tpu.memory_space<vmem>>, vector<24x16xf32>
    %98 = arith.truncf %97 : vector<24x16xf32> to vector<24x16xbf16>
    %c6_70 = arith.constant 6 : index
    %c0_71 = arith.constant 0 : index
    %c0_72 = arith.constant 0 : index
    %99 = vector.load %arg4[%c6_70, %c0_71, %c0_72] : memref<9x16x16xbf16, #tpu.memory_space<vmem>>, vector<1x16x16xbf16>
    %100 = vector.shape_cast %99 : vector<1x16x16xbf16> to vector<16x16xbf16>
    %cst_73 = arith.constant dense<0.000000e+00> : vector<24x16xf32>
    %101 = tpu.matmul %98, %100, %cst_73 {dimension_numbers = #tpu.dot_dimension_numbers<[1], [0], [0], [1], [0, 0, 1, 1], [], []>} : vector<24x16xbf16>, vector<16x16xbf16>, vector<24x16xf32> -> vector<24x16xf32>
    %102 = arith.addf %96, %101 : vector<24x16xf32>
    %c13 = arith.constant 13 : index
    %c0_74 = arith.constant 0 : index
    %103 = vector.load %arg8[%c13, %c0_74] : memref<42x16xf32, #tpu.memory_space<vmem>>, vector<24x16xf32>
    %104 = arith.truncf %103 : vector<24x16xf32> to vector<24x16xbf16>
    %c7_75 = arith.constant 7 : index
    %c0_76 = arith.constant 0 : index
    %c0_77 = arith.constant 0 : index
    %105 = vector.load %arg4[%c7_75, %c0_76, %c0_77] : memref<9x16x16xbf16, #tpu.memory_space<vmem>>, vector<1x16x16xbf16>
    %106 = vector.shape_cast %105 : vector<1x16x16xbf16> to vector<16x16xbf16>
    %cst_78 = arith.constant dense<0.000000e+00> : vector<24x16xf32>
    %107 = tpu.matmul %104, %106, %cst_78 {dimension_numbers = #tpu.dot_dimension_numbers<[1], [0], [0], [1], [0, 0, 1, 1], [], []>} : vector<24x16xbf16>, vector<16x16xbf16>, vector<24x16xf32> -> vector<24x16xf32>
    %108 = arith.addf %102, %107 : vector<24x16xf32>
    %c14 = arith.constant 14 : index
    %c0_79 = arith.constant 0 : index
    %109 = vector.load %arg8[%c14, %c0_79] : memref<42x16xf32, #tpu.memory_space<vmem>>, vector<24x16xf32>
    %110 = arith.truncf %109 : vector<24x16xf32> to vector<24x16xbf16>
    %c8_80 = arith.constant 8 : index
    %c0_81 = arith.constant 0 : index
    %c0_82 = arith.constant 0 : index
    %111 = vector.load %arg4[%c8_80, %c0_81, %c0_82] : memref<9x16x16xbf16, #tpu.memory_space<vmem>>, vector<1x16x16xbf16>
    %112 = vector.shape_cast %111 : vector<1x16x16xbf16> to vector<16x16xbf16>
    %cst_83 = arith.constant dense<0.000000e+00> : vector<24x16xf32>
    %113 = tpu.matmul %110, %112, %cst_83 {dimension_numbers = #tpu.dot_dimension_numbers<[1], [0], [0], [1], [0, 0, 1, 1], [], []>} : vector<24x16xbf16>, vector<16x16xbf16>, vector<24x16xf32> -> vector<24x16xf32>
    %114 = arith.addf %108, %113 : vector<24x16xf32>
    %c0_84 = arith.constant 0 : index
    %c0_85 = arith.constant 0 : index
    %115 = vector.load %arg5[%c0_84, %c0_85] : memref<1x16xf32, #tpu.memory_space<vmem>>, vector<1x16xf32>
    %116 = vector.broadcast %115 : vector<1x16xf32> to vector<24x16xf32>
    %117 = arith.addf %114, %116 : vector<24x16xf32>
    %cst_86 = arith.constant 0.000000e+00 : f32
    %118 = vector.broadcast %cst_86 : f32 to vector<24x16xf32>
    %119 = arith.maximumf %117, %118 : vector<24x16xf32>
    %cst_87 = arith.constant 0.000000e+00 : f32
    %120 = vector.shape_cast %18 : vector<24x1xi1> to vector<24x1xi1>
    %121 = vector.broadcast %120 : vector<24x1xi1> to vector<24x16xi1>
    %122 = vector.broadcast %cst_87 : f32 to vector<24x16xf32>
    %123 = arith.select %121, %119, %122 : vector<24x16xi1>, vector<24x16xf32>
    %124 = arith.truncf %123 : vector<24x16xf32> to vector<24x16xbf16>
    %c0_88 = arith.constant 0 : index
    %c0_89 = arith.constant 0 : index
    %c0_90 = arith.constant 0 : index
    %125 = vector.load %arg6[%c0_88, %c0_89, %c0_90] : memref<1x24x16xbf16, #tpu.memory_space<vmem>>, vector<1x24x16xbf16>
    %126 = vector.shape_cast %125 : vector<1x24x16xbf16> to vector<24x16xbf16>
    %127 = vector.shape_cast %124 : vector<24x16xbf16> to vector<1x24x16xbf16>
    tpu.vector_store %arg6[%c0_88, %c0_89, %c0_90], %127 {strides = array<i32>} : memref<1x24x16xbf16, #tpu.memory_space<vmem>>, vector<1x24x16xbf16>,
    return
  }
  func.func @transform_0(%arg0: i32) -> (i32, i32, i32) {
    %c0_i32 = arith.constant 0 : i32
    %c0_i32_0 = arith.constant 0 : i32
    %c0_i32_1 = arith.constant 0 : i32
    return %arg0, %c0_i32, %c0_i32_0 : i32, i32, i32
  }
  func.func @transform_1(%arg0: i32) -> (i32, i32, i32) {
    %c0_i32 = arith.constant 0 : i32
    %c0_i32_0 = arith.constant 0 : i32
    %c0_i32_1 = arith.constant 0 : i32
    %c0_i32_2 = arith.constant 0 : i32
    return %c0_i32, %c0_i32_0, %c0_i32_1 : i32, i32, i32
  }
  func.func @transform_2(%arg0: i32) -> (i32, i32) {
    %c0_i32 = arith.constant 0 : i32
    %c0_i32_0 = arith.constant 0 : i32
    %c0_i32_1 = arith.constant 0 : i32
    return %c0_i32, %c0_i32_0 : i32, i32
  }
  func.func @transform_3(%arg0: i32) -> (i32, i32, i32) {
    %c0_i32 = arith.constant 0 : i32
    %c0_i32_0 = arith.constant 0 : i32
    %c0_i32_1 = arith.constant 0 : i32
    %c0_i32_2 = arith.constant 0 : i32
    return %c0_i32, %c0_i32_0, %c0_i32_1 : i32, i32, i32
  }
  func.func @transform_4(%arg0: i32) -> (i32, i32) {
    %c0_i32 = arith.constant 0 : i32
    %c0_i32_0 = arith.constant 0 : i32
    %c0_i32_1 = arith.constant 0 : i32
    return %c0_i32, %c0_i32_0 : i32, i32
  }
  func.func @transform_5(%arg0: i32) -> (i32, i32, i32) {
    %c0_i32 = arith.constant 0 : i32
    %c0_i32_0 = arith.constant 0 : i32
    %c0_i32_1 = arith.constant 0 : i32
    return %arg0, %c0_i32, %c0_i32_0 : i32, i32, i32
  }
}

module attributes {stable_mosaic.version = 11 : i64} {
  func.func @_conv_block_kernel(%arg0: i32, %arg1: memref<1x16x64xbf16, #tpu.memory_space<vmem>>, %arg2: memref<4x64x32xbf16, #tpu.memory_space<vmem>>, %arg3: memref<1x32xf32, #tpu.memory_space<vmem>>, %arg4: memref<9x32x32xbf16, #tpu.memory_space<vmem>>, %arg5: memref<1x32xf32, #tpu.memory_space<vmem>>, %arg6: memref<1x8x32xbf16, #tpu.memory_space<vmem>>, %arg7: memref<16x64xf32, #tpu.memory_space<vmem>>, %arg8: memref<20x32xf32, #tpu.memory_space<vmem>>) attributes {dimension_semantics = [#tpu.dimension_semantics<parallel>], iteration_bounds = array<i64: 2>, scalar_prefetch = 0 : i64, scratch_operands = 2 : i64, tpu.core_type = #tpu.core_type<tc>, window_params = [{transform_indices = @transform_0, window_bounds = array<i64: 1, 16, 64>}, {pipeline_mode = #tpu.pipeline_mode<synchronous>, transform_indices = @transform_1, window_bounds = array<i64: 4, 64, 32>}, {pipeline_mode = #tpu.pipeline_mode<synchronous>, transform_indices = @transform_2, window_bounds = array<i64: 1, 32>}, {pipeline_mode = #tpu.pipeline_mode<synchronous>, transform_indices = @transform_3, window_bounds = array<i64: 9, 32, 32>}, {pipeline_mode = #tpu.pipeline_mode<synchronous>, transform_indices = @transform_4, window_bounds = array<i64: 1, 32>}, {transform_indices = @transform_5, window_bounds = array<i64: 1, 8, 32>}]} {
    %0 = tpu.iota {dimensions = array<i32: 0>} : vector<8x1xi32>
    %c4_i32 = arith.constant 4 : i32
    %c0_i32 = arith.constant 0 : i32
    %1 = arith.cmpi eq, %c4_i32, %c0_i32 : i32
    %c1_i32 = arith.constant 1 : i32
    %2 = arith.select %1, %c1_i32, %c4_i32 : i32
    %3 = vector.broadcast %2 : i32 to vector<8x1xi32>
    %4 = arith.remsi %0, %3 : vector<8x1xi32>
    %c0_i32_0 = arith.constant 0 : i32
    %5 = vector.broadcast %c0_i32_0 : i32 to vector<8x1xi32>
    %6 = arith.cmpi ne, %4, %5 : vector<8x1xi32>
    %c0_i32_1 = arith.constant 0 : i32
    %7 = vector.broadcast %c0_i32_1 : i32 to vector<8x1xi32>
    %8 = arith.cmpi slt, %4, %7 : vector<8x1xi32>
    %c0_i32_2 = arith.constant 0 : i32
    %9 = arith.cmpi slt, %2, %c0_i32_2 : i32
    %10 = vector.broadcast %9 : i1 to vector<8x1xi1>
    %11 = vector.broadcast %10 : vector<8x1xi1> to vector<8x1xi1>
    %12 = arith.xori %8, %11 : vector<8x1xi1>
    %13 = arith.andi %12, %6 : vector<8x1xi1>
    %14 = vector.broadcast %2 : i32 to vector<8x1xi32>
    %15 = arith.addi %4, %14 : vector<8x1xi32>
    %16 = arith.select %13, %15, %4 : vector<8x1xi1>, vector<8x1xi32>
    %c2_i32 = arith.constant 2 : i32
    %17 = vector.broadcast %c2_i32 : i32 to vector<8x1xi32>
    %18 = arith.cmpi slt, %16, %17 : vector<8x1xi32>
    %c0 = arith.constant 0 : index
    %c0_3 = arith.constant 0 : index
    %c0_4 = arith.constant 0 : index
    %19 = vector.load %arg1[%c0, %c0_3, %c0_4] : memref<1x16x64xbf16, #tpu.memory_space<vmem>>, vector<1x16x64xbf16>
    %20 = vector.shape_cast %19 : vector<1x16x64xbf16> to vector<16x64xbf16>
    %21 = arith.extf %20 : vector<16x64xbf16> to vector<16x64xf32>
    %c0_5 = arith.constant 0 : index
    %c0_6 = arith.constant 0 : index
    %22 = vector.load %arg7[%c0_5, %c0_6] : memref<16x64xf32, #tpu.memory_space<vmem>>, vector<16x64xf32>
    tpu.vector_store %arg7[%c0_5, %c0_6], %21 {strides = array<i32>} : memref<16x64xf32, #tpu.memory_space<vmem>>, vector<16x64xf32>,
    %cst = arith.constant 0.000000e+00 : f32
    %23 = vector.broadcast %cst : f32 to vector<8x32xf32>
    %c0_7 = arith.constant 0 : index
    %c0_8 = arith.constant 0 : index
    %24 = vector.load %arg7[%c0_7, %c0_8] : memref<16x64xf32, #tpu.memory_space<vmem>>, vector<8x64xf32>
    %25 = arith.truncf %24 : vector<8x64xf32> to vector<8x64xbf16>
    %c0_9 = arith.constant 0 : index
    %c0_10 = arith.constant 0 : index
    %c0_11 = arith.constant 0 : index
    %26 = vector.load %arg2[%c0_9, %c0_10, %c0_11] : memref<4x64x32xbf16, #tpu.memory_space<vmem>>, vector<1x64x32xbf16>
    %27 = vector.shape_cast %26 : vector<1x64x32xbf16> to vector<64x32xbf16>
    %cst_12 = arith.constant dense<0.000000e+00> : vector<8x32xf32>
    %28 = tpu.matmul %25, %27, %cst_12 {dimension_numbers = #tpu.dot_dimension_numbers<[1], [0], [0], [1], [0, 0, 1, 1], [], []>} : vector<8x64xbf16>, vector<64x32xbf16>, vector<8x32xf32> -> vector<8x32xf32>
    %29 = arith.addf %23, %28 : vector<8x32xf32>
    %c1 = arith.constant 1 : index
    %c0_13 = arith.constant 0 : index
    %30 = vector.load %arg7[%c1, %c0_13] : memref<16x64xf32, #tpu.memory_space<vmem>>, vector<8x64xf32>
    %31 = arith.truncf %30 : vector<8x64xf32> to vector<8x64xbf16>
    %c1_14 = arith.constant 1 : index
    %c0_15 = arith.constant 0 : index
    %c0_16 = arith.constant 0 : index
    %32 = vector.load %arg2[%c1_14, %c0_15, %c0_16] : memref<4x64x32xbf16, #tpu.memory_space<vmem>>, vector<1x64x32xbf16>
    %33 = vector.shape_cast %32 : vector<1x64x32xbf16> to vector<64x32xbf16>
    %cst_17 = arith.constant dense<0.000000e+00> : vector<8x32xf32>
    %34 = tpu.matmul %31, %33, %cst_17 {dimension_numbers = #tpu.dot_dimension_numbers<[1], [0], [0], [1], [0, 0, 1, 1], [], []>} : vector<8x64xbf16>, vector<64x32xbf16>, vector<8x32xf32> -> vector<8x32xf32>
    %35 = arith.addf %29, %34 : vector<8x32xf32>
    %c4 = arith.constant 4 : index
    %c0_18 = arith.constant 0 : index
    %36 = vector.load %arg7[%c4, %c0_18] : memref<16x64xf32, #tpu.memory_space<vmem>>, vector<8x64xf32>
    %37 = arith.truncf %36 : vector<8x64xf32> to vector<8x64xbf16>
    %c2 = arith.constant 2 : index
    %c0_19 = arith.constant 0 : index
    %c0_20 = arith.constant 0 : index
    %38 = vector.load %arg2[%c2, %c0_19, %c0_20] : memref<4x64x32xbf16, #tpu.memory_space<vmem>>, vector<1x64x32xbf16>
    %39 = vector.shape_cast %38 : vector<1x64x32xbf16> to vector<64x32xbf16>
    %cst_21 = arith.constant dense<0.000000e+00> : vector<8x32xf32>
    %40 = tpu.matmul %37, %39, %cst_21 {dimension_numbers = #tpu.dot_dimension_numbers<[1], [0], [0], [1], [0, 0, 1, 1], [], []>} : vector<8x64xbf16>, vector<64x32xbf16>, vector<8x32xf32> -> vector<8x32xf32>
    %41 = arith.addf %35, %40 : vector<8x32xf32>
    %c5 = arith.constant 5 : index
    %c0_22 = arith.constant 0 : index
    %42 = vector.load %arg7[%c5, %c0_22] : memref<16x64xf32, #tpu.memory_space<vmem>>, vector<8x64xf32>
    %43 = arith.truncf %42 : vector<8x64xf32> to vector<8x64xbf16>
    %c3 = arith.constant 3 : index
    %c0_23 = arith.constant 0 : index
    %c0_24 = arith.constant 0 : index
    %44 = vector.load %arg2[%c3, %c0_23, %c0_24] : memref<4x64x32xbf16, #tpu.memory_space<vmem>>, vector<1x64x32xbf16>
    %45 = vector.shape_cast %44 : vector<1x64x32xbf16> to vector<64x32xbf16>
    %cst_25 = arith.constant dense<0.000000e+00> : vector<8x32xf32>
    %46 = tpu.matmul %43, %45, %cst_25 {dimension_numbers = #tpu.dot_dimension_numbers<[1], [0], [0], [1], [0, 0, 1, 1], [], []>} : vector<8x64xbf16>, vector<64x32xbf16>, vector<8x32xf32> -> vector<8x32xf32>
    %47 = arith.addf %41, %46 : vector<8x32xf32>
    %c0_26 = arith.constant 0 : index
    %c0_27 = arith.constant 0 : index
    %48 = vector.load %arg3[%c0_26, %c0_27] : memref<1x32xf32, #tpu.memory_space<vmem>>, vector<1x32xf32>
    %49 = vector.broadcast %48 : vector<1x32xf32> to vector<8x32xf32>
    %50 = arith.addf %47, %49 : vector<8x32xf32>
    %cst_28 = arith.constant 0.000000e+00 : f32
    %51 = vector.broadcast %cst_28 : f32 to vector<8x32xf32>
    %52 = arith.maximumf %50, %51 : vector<8x32xf32>
    %cst_29 = arith.constant 0.000000e+00 : f32
    %53 = vector.shape_cast %18 : vector<8x1xi1> to vector<8x1xi1>
    %54 = vector.broadcast %53 : vector<8x1xi1> to vector<8x32xi1>
    %55 = vector.broadcast %cst_29 : f32 to vector<8x32xf32>
    %56 = arith.select %54, %52, %55 : vector<8x32xi1>, vector<8x32xf32>
    %cst_30 = arith.constant 0.000000e+00 : f32
    %57 = vector.broadcast %cst_30 : f32 to vector<20x32xf32>
    %c0_31 = arith.constant 0 : index
    %c0_32 = arith.constant 0 : index
    %58 = vector.load %arg8[%c0_31, %c0_32] : memref<20x32xf32, #tpu.memory_space<vmem>>, vector<20x32xf32>
    tpu.vector_store %arg8[%c0_31, %c0_32], %57 {strides = array<i32>} : memref<20x32xf32, #tpu.memory_space<vmem>>, vector<20x32xf32>,
    %c5_33 = arith.constant 5 : index
    %c0_34 = arith.constant 0 : index
    %59 = vector.load %arg8[%c5_33, %c0_34] : memref<20x32xf32, #tpu.memory_space<vmem>>, vector<8x32xf32>
    tpu.vector_store %arg8[%c5_33, %c0_34], %56 {strides = array<i32>} : memref<20x32xf32, #tpu.memory_space<vmem>>, vector<8x32xf32>,
    %cst_35 = arith.constant 0.000000e+00 : f32
    %60 = vector.broadcast %cst_35 : f32 to vector<8x32xf32>
    %c0_36 = arith.constant 0 : index
    %c0_37 = arith.constant 0 : index
    %61 = vector.load %arg8[%c0_36, %c0_37] : memref<20x32xf32, #tpu.memory_space<vmem>>, vector<8x32xf32>
    %62 = arith.truncf %61 : vector<8x32xf32> to vector<8x32xbf16>
    %c0_38 = arith.constant 0 : index
    %c0_39 = arith.constant 0 : index
    %c0_40 = arith.constant 0 : index
    %63 = vector.load %arg4[%c0_38, %c0_39, %c0_40] : memref<9x32x32xbf16, #tpu.memory_space<vmem>>, vector<1x32x32xbf16>
    %64 = vector.shape_cast %63 : vector<1x32x32xbf16> to vector<32x32xbf16>
    %cst_41 = arith.constant dense<0.000000e+00> : vector<8x32xf32>
    %65 = tpu.matmul %62, %64, %cst_41 {dimension_numbers = #tpu.dot_dimension_numbers<[1], [0], [0], [1], [0, 0, 1, 1], [], []>} : vector<8x32xbf16>, vector<32x32xbf16>, vector<8x32xf32> -> vector<8x32xf32>
    %66 = arith.addf %60, %65 : vector<8x32xf32>
    %c1_42 = arith.constant 1 : index
    %c0_43 = arith.constant 0 : index
    %67 = vector.load %arg8[%c1_42, %c0_43] : memref<20x32xf32, #tpu.memory_space<vmem>>, vector<8x32xf32>
    %68 = arith.truncf %67 : vector<8x32xf32> to vector<8x32xbf16>
    %c1_44 = arith.constant 1 : index
    %c0_45 = arith.constant 0 : index
    %c0_46 = arith.constant 0 : index
    %69 = vector.load %arg4[%c1_44, %c0_45, %c0_46] : memref<9x32x32xbf16, #tpu.memory_space<vmem>>, vector<1x32x32xbf16>
    %70 = vector.shape_cast %69 : vector<1x32x32xbf16> to vector<32x32xbf16>
    %cst_47 = arith.constant dense<0.000000e+00> : vector<8x32xf32>
    %71 = tpu.matmul %68, %70, %cst_47 {dimension_numbers = #tpu.dot_dimension_numbers<[1], [0], [0], [1], [0, 0, 1, 1], [], []>} : vector<8x32xbf16>, vector<32x32xbf16>, vector<8x32xf32> -> vector<8x32xf32>
    %72 = arith.addf %66, %71 : vector<8x32xf32>
    %c2_48 = arith.constant 2 : index
    %c0_49 = arith.constant 0 : index
    %73 = vector.load %arg8[%c2_48, %c0_49] : memref<20x32xf32, #tpu.memory_space<vmem>>, vector<8x32xf32>
    %74 = arith.truncf %73 : vector<8x32xf32> to vector<8x32xbf16>
    %c2_50 = arith.constant 2 : index
    %c0_51 = arith.constant 0 : index
    %c0_52 = arith.constant 0 : index
    %75 = vector.load %arg4[%c2_50, %c0_51, %c0_52] : memref<9x32x32xbf16, #tpu.memory_space<vmem>>, vector<1x32x32xbf16>
    %76 = vector.shape_cast %75 : vector<1x32x32xbf16> to vector<32x32xbf16>
    %cst_53 = arith.constant dense<0.000000e+00> : vector<8x32xf32>
    %77 = tpu.matmul %74, %76, %cst_53 {dimension_numbers = #tpu.dot_dimension_numbers<[1], [0], [0], [1], [0, 0, 1, 1], [], []>} : vector<8x32xbf16>, vector<32x32xbf16>, vector<8x32xf32> -> vector<8x32xf32>
    %78 = arith.addf %72, %77 : vector<8x32xf32>
    %c4_54 = arith.constant 4 : index
    %c0_55 = arith.constant 0 : index
    %79 = vector.load %arg8[%c4_54, %c0_55] : memref<20x32xf32, #tpu.memory_space<vmem>>, vector<8x32xf32>
    %80 = arith.truncf %79 : vector<8x32xf32> to vector<8x32xbf16>
    %c3_56 = arith.constant 3 : index
    %c0_57 = arith.constant 0 : index
    %c0_58 = arith.constant 0 : index
    %81 = vector.load %arg4[%c3_56, %c0_57, %c0_58] : memref<9x32x32xbf16, #tpu.memory_space<vmem>>, vector<1x32x32xbf16>
    %82 = vector.shape_cast %81 : vector<1x32x32xbf16> to vector<32x32xbf16>
    %cst_59 = arith.constant dense<0.000000e+00> : vector<8x32xf32>
    %83 = tpu.matmul %80, %82, %cst_59 {dimension_numbers = #tpu.dot_dimension_numbers<[1], [0], [0], [1], [0, 0, 1, 1], [], []>} : vector<8x32xbf16>, vector<32x32xbf16>, vector<8x32xf32> -> vector<8x32xf32>
    %84 = arith.addf %78, %83 : vector<8x32xf32>
    %c5_60 = arith.constant 5 : index
    %c0_61 = arith.constant 0 : index
    %85 = vector.load %arg8[%c5_60, %c0_61] : memref<20x32xf32, #tpu.memory_space<vmem>>, vector<8x32xf32>
    %86 = arith.truncf %85 : vector<8x32xf32> to vector<8x32xbf16>
    %c4_62 = arith.constant 4 : index
    %c0_63 = arith.constant 0 : index
    %c0_64 = arith.constant 0 : index
    %87 = vector.load %arg4[%c4_62, %c0_63, %c0_64] : memref<9x32x32xbf16, #tpu.memory_space<vmem>>, vector<1x32x32xbf16>
    %88 = vector.shape_cast %87 : vector<1x32x32xbf16> to vector<32x32xbf16>
    %cst_65 = arith.constant dense<0.000000e+00> : vector<8x32xf32>
    %89 = tpu.matmul %86, %88, %cst_65 {dimension_numbers = #tpu.dot_dimension_numbers<[1], [0], [0], [1], [0, 0, 1, 1], [], []>} : vector<8x32xbf16>, vector<32x32xbf16>, vector<8x32xf32> -> vector<8x32xf32>
    %90 = arith.addf %84, %89 : vector<8x32xf32>
    %c6 = arith.constant 6 : index
    %c0_66 = arith.constant 0 : index
    %91 = vector.load %arg8[%c6, %c0_66] : memref<20x32xf32, #tpu.memory_space<vmem>>, vector<8x32xf32>
    %92 = arith.truncf %91 : vector<8x32xf32> to vector<8x32xbf16>
    %c5_67 = arith.constant 5 : index
    %c0_68 = arith.constant 0 : index
    %c0_69 = arith.constant 0 : index
    %93 = vector.load %arg4[%c5_67, %c0_68, %c0_69] : memref<9x32x32xbf16, #tpu.memory_space<vmem>>, vector<1x32x32xbf16>
    %94 = vector.shape_cast %93 : vector<1x32x32xbf16> to vector<32x32xbf16>
    %cst_70 = arith.constant dense<0.000000e+00> : vector<8x32xf32>
    %95 = tpu.matmul %92, %94, %cst_70 {dimension_numbers = #tpu.dot_dimension_numbers<[1], [0], [0], [1], [0, 0, 1, 1], [], []>} : vector<8x32xbf16>, vector<32x32xbf16>, vector<8x32xf32> -> vector<8x32xf32>
    %96 = arith.addf %90, %95 : vector<8x32xf32>
    %c8 = arith.constant 8 : index
    %c0_71 = arith.constant 0 : index
    %97 = vector.load %arg8[%c8, %c0_71] : memref<20x32xf32, #tpu.memory_space<vmem>>, vector<8x32xf32>
    %98 = arith.truncf %97 : vector<8x32xf32> to vector<8x32xbf16>
    %c6_72 = arith.constant 6 : index
    %c0_73 = arith.constant 0 : index
    %c0_74 = arith.constant 0 : index
    %99 = vector.load %arg4[%c6_72, %c0_73, %c0_74] : memref<9x32x32xbf16, #tpu.memory_space<vmem>>, vector<1x32x32xbf16>
    %100 = vector.shape_cast %99 : vector<1x32x32xbf16> to vector<32x32xbf16>
    %cst_75 = arith.constant dense<0.000000e+00> : vector<8x32xf32>
    %101 = tpu.matmul %98, %100, %cst_75 {dimension_numbers = #tpu.dot_dimension_numbers<[1], [0], [0], [1], [0, 0, 1, 1], [], []>} : vector<8x32xbf16>, vector<32x32xbf16>, vector<8x32xf32> -> vector<8x32xf32>
    %102 = arith.addf %96, %101 : vector<8x32xf32>
    %c9 = arith.constant 9 : index
    %c0_76 = arith.constant 0 : index
    %103 = vector.load %arg8[%c9, %c0_76] : memref<20x32xf32, #tpu.memory_space<vmem>>, vector<8x32xf32>
    %104 = arith.truncf %103 : vector<8x32xf32> to vector<8x32xbf16>
    %c7 = arith.constant 7 : index
    %c0_77 = arith.constant 0 : index
    %c0_78 = arith.constant 0 : index
    %105 = vector.load %arg4[%c7, %c0_77, %c0_78] : memref<9x32x32xbf16, #tpu.memory_space<vmem>>, vector<1x32x32xbf16>
    %106 = vector.shape_cast %105 : vector<1x32x32xbf16> to vector<32x32xbf16>
    %cst_79 = arith.constant dense<0.000000e+00> : vector<8x32xf32>
    %107 = tpu.matmul %104, %106, %cst_79 {dimension_numbers = #tpu.dot_dimension_numbers<[1], [0], [0], [1], [0, 0, 1, 1], [], []>} : vector<8x32xbf16>, vector<32x32xbf16>, vector<8x32xf32> -> vector<8x32xf32>
    %108 = arith.addf %102, %107 : vector<8x32xf32>
    %c10 = arith.constant 10 : index
    %c0_80 = arith.constant 0 : index
    %109 = vector.load %arg8[%c10, %c0_80] : memref<20x32xf32, #tpu.memory_space<vmem>>, vector<8x32xf32>
    %110 = arith.truncf %109 : vector<8x32xf32> to vector<8x32xbf16>
    %c8_81 = arith.constant 8 : index
    %c0_82 = arith.constant 0 : index
    %c0_83 = arith.constant 0 : index
    %111 = vector.load %arg4[%c8_81, %c0_82, %c0_83] : memref<9x32x32xbf16, #tpu.memory_space<vmem>>, vector<1x32x32xbf16>
    %112 = vector.shape_cast %111 : vector<1x32x32xbf16> to vector<32x32xbf16>
    %cst_84 = arith.constant dense<0.000000e+00> : vector<8x32xf32>
    %113 = tpu.matmul %110, %112, %cst_84 {dimension_numbers = #tpu.dot_dimension_numbers<[1], [0], [0], [1], [0, 0, 1, 1], [], []>} : vector<8x32xbf16>, vector<32x32xbf16>, vector<8x32xf32> -> vector<8x32xf32>
    %114 = arith.addf %108, %113 : vector<8x32xf32>
    %c0_85 = arith.constant 0 : index
    %c0_86 = arith.constant 0 : index
    %115 = vector.load %arg5[%c0_85, %c0_86] : memref<1x32xf32, #tpu.memory_space<vmem>>, vector<1x32xf32>
    %116 = vector.broadcast %115 : vector<1x32xf32> to vector<8x32xf32>
    %117 = arith.addf %114, %116 : vector<8x32xf32>
    %cst_87 = arith.constant 0.000000e+00 : f32
    %118 = vector.broadcast %cst_87 : f32 to vector<8x32xf32>
    %119 = arith.maximumf %117, %118 : vector<8x32xf32>
    %cst_88 = arith.constant 0.000000e+00 : f32
    %120 = vector.shape_cast %18 : vector<8x1xi1> to vector<8x1xi1>
    %121 = vector.broadcast %120 : vector<8x1xi1> to vector<8x32xi1>
    %122 = vector.broadcast %cst_88 : f32 to vector<8x32xf32>
    %123 = arith.select %121, %119, %122 : vector<8x32xi1>, vector<8x32xf32>
    %124 = arith.truncf %123 : vector<8x32xf32> to vector<8x32xbf16>
    %c0_89 = arith.constant 0 : index
    %c0_90 = arith.constant 0 : index
    %c0_91 = arith.constant 0 : index
    %125 = vector.load %arg6[%c0_89, %c0_90, %c0_91] : memref<1x8x32xbf16, #tpu.memory_space<vmem>>, vector<1x8x32xbf16>
    %126 = vector.shape_cast %125 : vector<1x8x32xbf16> to vector<8x32xbf16>
    %127 = vector.shape_cast %124 : vector<8x32xbf16> to vector<1x8x32xbf16>
    tpu.vector_store %arg6[%c0_89, %c0_90, %c0_91], %127 {strides = array<i32>} : memref<1x8x32xbf16, #tpu.memory_space<vmem>>, vector<1x8x32xbf16>,
    return
  }
  func.func @transform_0(%arg0: i32) -> (i32, i32, i32) {
    %c0_i32 = arith.constant 0 : i32
    %c0_i32_0 = arith.constant 0 : i32
    %c0_i32_1 = arith.constant 0 : i32
    return %arg0, %c0_i32, %c0_i32_0 : i32, i32, i32
  }
  func.func @transform_1(%arg0: i32) -> (i32, i32, i32) {
    %c0_i32 = arith.constant 0 : i32
    %c0_i32_0 = arith.constant 0 : i32
    %c0_i32_1 = arith.constant 0 : i32
    %c0_i32_2 = arith.constant 0 : i32
    return %c0_i32, %c0_i32_0, %c0_i32_1 : i32, i32, i32
  }
  func.func @transform_2(%arg0: i32) -> (i32, i32) {
    %c0_i32 = arith.constant 0 : i32
    %c0_i32_0 = arith.constant 0 : i32
    %c0_i32_1 = arith.constant 0 : i32
    return %c0_i32, %c0_i32_0 : i32, i32
  }
  func.func @transform_3(%arg0: i32) -> (i32, i32, i32) {
    %c0_i32 = arith.constant 0 : i32
    %c0_i32_0 = arith.constant 0 : i32
    %c0_i32_1 = arith.constant 0 : i32
    %c0_i32_2 = arith.constant 0 : i32
    return %c0_i32, %c0_i32_0, %c0_i32_1 : i32, i32, i32
  }
  func.func @transform_4(%arg0: i32) -> (i32, i32) {
    %c0_i32 = arith.constant 0 : i32
    %c0_i32_0 = arith.constant 0 : i32
    %c0_i32_1 = arith.constant 0 : i32
    return %c0_i32, %c0_i32_0 : i32, i32
  }
  func.func @transform_5(%arg0: i32) -> (i32, i32, i32) {
    %c0_i32 = arith.constant 0 : i32
    %c0_i32_0 = arith.constant 0 : i32
    %c0_i32_1 = arith.constant 0 : i32
    return %arg0, %c0_i32, %c0_i32_0 : i32, i32, i32
  }
}

module attributes {stable_mosaic.version = 11 : i64} {
  func.func @_mm_kernel(%arg0: i32, %arg1: memref<16x32xbf16, #tpu.memory_space<vmem>>, %arg2: memref<16x32xbf16, #tpu.memory_space<vmem>>, %arg3: memref<32x64xbf16, #tpu.memory_space<vmem>>, %arg4: memref<1x64xf32, #tpu.memory_space<vmem>>, %arg5: memref<16x64xbf16, #tpu.memory_space<vmem>>) attributes {dimension_semantics = [#tpu.dimension_semantics<parallel>], iteration_bounds = array<i64: 1>, scalar_prefetch = 0 : i64, scratch_operands = 0 : i64, tpu.core_type = #tpu.core_type<tc>, window_params = [{transform_indices = @transform_0, window_bounds = array<i64: 16, 32>}, {transform_indices = @transform_1, window_bounds = array<i64: 16, 32>}, {pipeline_mode = #tpu.pipeline_mode<synchronous>, transform_indices = @transform_2, window_bounds = array<i64: 32, 64>}, {pipeline_mode = #tpu.pipeline_mode<synchronous>, transform_indices = @transform_3, window_bounds = array<i64: 1, 64>}, {transform_indices = @transform_4, window_bounds = array<i64: 16, 64>}]} {
    %c0 = arith.constant 0 : index
    %c0_0 = arith.constant 0 : index
    %0 = vector.load %arg1[%c0, %c0_0] : memref<16x32xbf16, #tpu.memory_space<vmem>>, vector<16x32xbf16>
    %c0_1 = arith.constant 0 : index
    %c0_2 = arith.constant 0 : index
    %1 = vector.load %arg2[%c0_1, %c0_2] : memref<16x32xbf16, #tpu.memory_space<vmem>>, vector<16x32xbf16>
    %2 = arith.addf %0, %1 : vector<16x32xbf16>
    %c0_3 = arith.constant 0 : index
    %c0_4 = arith.constant 0 : index
    %3 = vector.load %arg3[%c0_3, %c0_4] : memref<32x64xbf16, #tpu.memory_space<vmem>>, vector<32x64xbf16>
    %cst = arith.constant dense<0.000000e+00> : vector<16x64xf32>
    %4 = tpu.matmul %2, %3, %cst {dimension_numbers = #tpu.dot_dimension_numbers<[1], [0], [0], [1], [0, 0, 1, 1], [], []>} : vector<16x32xbf16>, vector<32x64xbf16>, vector<16x64xf32> -> vector<16x64xf32>
    %c0_5 = arith.constant 0 : index
    %c0_6 = arith.constant 0 : index
    %5 = vector.load %arg4[%c0_5, %c0_6] : memref<1x64xf32, #tpu.memory_space<vmem>>, vector<1x64xf32>
    %6 = vector.broadcast %5 : vector<1x64xf32> to vector<16x64xf32>
    %7 = arith.addf %4, %6 : vector<16x64xf32>
    %cst_7 = arith.constant 0.000000e+00 : f32
    %8 = vector.broadcast %cst_7 : f32 to vector<16x64xf32>
    %9 = arith.maximumf %7, %8 : vector<16x64xf32>
    %10 = arith.truncf %9 : vector<16x64xf32> to vector<16x64xbf16>
    %c0_8 = arith.constant 0 : index
    %c0_9 = arith.constant 0 : index
    %11 = vector.load %arg5[%c0_8, %c0_9] : memref<16x64xbf16, #tpu.memory_space<vmem>>, vector<16x64xbf16>
    tpu.vector_store %arg5[%c0_8, %c0_9], %10 {strides = array<i32>} : memref<16x64xbf16, #tpu.memory_space<vmem>>, vector<16x64xbf16>,
    return
  }
  func.func @transform_0(%arg0: i32) -> (i32, i32) {
    %c0_i32 = arith.constant 0 : i32
    %c0_i32_0 = arith.constant 0 : i32
    return %arg0, %c0_i32 : i32, i32
  }
  func.func @transform_1(%arg0: i32) -> (i32, i32) {
    %c0_i32 = arith.constant 0 : i32
    %c0_i32_0 = arith.constant 0 : i32
    return %arg0, %c0_i32 : i32, i32
  }
  func.func @transform_2(%arg0: i32) -> (i32, i32) {
    %c0_i32 = arith.constant 0 : i32
    %c0_i32_0 = arith.constant 0 : i32
    %c0_i32_1 = arith.constant 0 : i32
    return %c0_i32, %c0_i32_0 : i32, i32
  }
  func.func @transform_3(%arg0: i32) -> (i32, i32) {
    %c0_i32 = arith.constant 0 : i32
    %c0_i32_0 = arith.constant 0 : i32
    %c0_i32_1 = arith.constant 0 : i32
    return %c0_i32, %c0_i32_0 : i32, i32
  }
  func.func @transform_4(%arg0: i32) -> (i32, i32) {
    %c0_i32 = arith.constant 0 : i32
    %c0_i32_0 = arith.constant 0 : i32
    return %arg0, %c0_i32 : i32, i32
  }
}

module attributes {stable_mosaic.version = 11 : i64} {
  func.func @_conv_block_kernel(%arg0: i32, %arg1: memref<1x8x32xbf16, #tpu.memory_space<vmem>>, %arg2: memref<9x32x32xbf16, #tpu.memory_space<vmem>>, %arg3: memref<1x32xf32, #tpu.memory_space<vmem>>, %arg4: memref<9x32x32xbf16, #tpu.memory_space<vmem>>, %arg5: memref<1x32xf32, #tpu.memory_space<vmem>>, %arg6: memref<1x1x32xf32, #tpu.memory_space<vmem>>, %arg7: memref<1x8x32xbf16, #tpu.memory_space<vmem>>, %arg8: memref<20x32xf32, #tpu.memory_space<vmem>>, %arg9: memref<20x32xf32, #tpu.memory_space<vmem>>) attributes {dimension_semantics = [#tpu.dimension_semantics<parallel>], iteration_bounds = array<i64: 2>, scalar_prefetch = 0 : i64, scratch_operands = 2 : i64, tpu.core_type = #tpu.core_type<tc>, window_params = [{transform_indices = @transform_0, window_bounds = array<i64: 1, 8, 32>}, {pipeline_mode = #tpu.pipeline_mode<synchronous>, transform_indices = @transform_1, window_bounds = array<i64: 9, 32, 32>}, {pipeline_mode = #tpu.pipeline_mode<synchronous>, transform_indices = @transform_2, window_bounds = array<i64: 1, 32>}, {pipeline_mode = #tpu.pipeline_mode<synchronous>, transform_indices = @transform_3, window_bounds = array<i64: 9, 32, 32>}, {pipeline_mode = #tpu.pipeline_mode<synchronous>, transform_indices = @transform_4, window_bounds = array<i64: 1, 32>}, {transform_indices = @transform_5, window_bounds = array<i64: 1, 1, 32>}, {transform_indices = @transform_6, window_bounds = array<i64: 1, 8, 32>}]} {
    %0 = tpu.iota {dimensions = array<i32: 0>} : vector<8x1xi32>
    %c4_i32 = arith.constant 4 : i32
    %c0_i32 = arith.constant 0 : i32
    %1 = arith.cmpi eq, %c4_i32, %c0_i32 : i32
    %c1_i32 = arith.constant 1 : i32
    %2 = arith.select %1, %c1_i32, %c4_i32 : i32
    %3 = vector.broadcast %2 : i32 to vector<8x1xi32>
    %4 = arith.remsi %0, %3 : vector<8x1xi32>
    %c0_i32_0 = arith.constant 0 : i32
    %5 = vector.broadcast %c0_i32_0 : i32 to vector<8x1xi32>
    %6 = arith.cmpi ne, %4, %5 : vector<8x1xi32>
    %c0_i32_1 = arith.constant 0 : i32
    %7 = vector.broadcast %c0_i32_1 : i32 to vector<8x1xi32>
    %8 = arith.cmpi slt, %4, %7 : vector<8x1xi32>
    %c0_i32_2 = arith.constant 0 : i32
    %9 = arith.cmpi slt, %2, %c0_i32_2 : i32
    %10 = vector.broadcast %9 : i1 to vector<8x1xi1>
    %11 = vector.broadcast %10 : vector<8x1xi1> to vector<8x1xi1>
    %12 = arith.xori %8, %11 : vector<8x1xi1>
    %13 = arith.andi %12, %6 : vector<8x1xi1>
    %14 = vector.broadcast %2 : i32 to vector<8x1xi32>
    %15 = arith.addi %4, %14 : vector<8x1xi32>
    %16 = arith.select %13, %15, %4 : vector<8x1xi1>, vector<8x1xi32>
    %c2_i32 = arith.constant 2 : i32
    %17 = vector.broadcast %c2_i32 : i32 to vector<8x1xi32>
    %18 = arith.cmpi slt, %16, %17 : vector<8x1xi32>
    %cst = arith.constant 0.000000e+00 : f32
    %19 = vector.broadcast %cst : f32 to vector<20x32xf32>
    %c0 = arith.constant 0 : index
    %c0_3 = arith.constant 0 : index
    %20 = vector.load %arg8[%c0, %c0_3] : memref<20x32xf32, #tpu.memory_space<vmem>>, vector<20x32xf32>
    tpu.vector_store %arg8[%c0, %c0_3], %19 {strides = array<i32>} : memref<20x32xf32, #tpu.memory_space<vmem>>, vector<20x32xf32>,
    %c0_4 = arith.constant 0 : index
    %c0_5 = arith.constant 0 : index
    %c0_6 = arith.constant 0 : index
    %21 = vector.load %arg1[%c0_4, %c0_5, %c0_6] : memref<1x8x32xbf16, #tpu.memory_space<vmem>>, vector<1x8x32xbf16>
    %22 = vector.shape_cast %21 : vector<1x8x32xbf16> to vector<8x32xbf16>
    %23 = arith.extf %22 : vector<8x32xbf16> to vector<8x32xf32>
    %c5 = arith.constant 5 : index
    %c0_7 = arith.constant 0 : index
    %24 = vector.load %arg8[%c5, %c0_7] : memref<20x32xf32, #tpu.memory_space<vmem>>, vector<8x32xf32>
    tpu.vector_store %arg8[%c5, %c0_7], %23 {strides = array<i32>} : memref<20x32xf32, #tpu.memory_space<vmem>>, vector<8x32xf32>,
    %cst_8 = arith.constant 0.000000e+00 : f32
    %25 = vector.broadcast %cst_8 : f32 to vector<8x32xf32>
    %c0_9 = arith.constant 0 : index
    %c0_10 = arith.constant 0 : index
    %26 = vector.load %arg8[%c0_9, %c0_10] : memref<20x32xf32, #tpu.memory_space<vmem>>, vector<8x32xf32>
    %27 = arith.truncf %26 : vector<8x32xf32> to vector<8x32xbf16>
    %c0_11 = arith.constant 0 : index
    %c0_12 = arith.constant 0 : index
    %c0_13 = arith.constant 0 : index
    %28 = vector.load %arg2[%c0_11, %c0_12, %c0_13] : memref<9x32x32xbf16, #tpu.memory_space<vmem>>, vector<1x32x32xbf16>
    %29 = vector.shape_cast %28 : vector<1x32x32xbf16> to vector<32x32xbf16>
    %cst_14 = arith.constant dense<0.000000e+00> : vector<8x32xf32>
    %30 = tpu.matmul %27, %29, %cst_14 {dimension_numbers = #tpu.dot_dimension_numbers<[1], [0], [0], [1], [0, 0, 1, 1], [], []>} : vector<8x32xbf16>, vector<32x32xbf16>, vector<8x32xf32> -> vector<8x32xf32>
    %31 = arith.addf %25, %30 : vector<8x32xf32>
    %c1 = arith.constant 1 : index
    %c0_15 = arith.constant 0 : index
    %32 = vector.load %arg8[%c1, %c0_15] : memref<20x32xf32, #tpu.memory_space<vmem>>, vector<8x32xf32>
    %33 = arith.truncf %32 : vector<8x32xf32> to vector<8x32xbf16>
    %c1_16 = arith.constant 1 : index
    %c0_17 = arith.constant 0 : index
    %c0_18 = arith.constant 0 : index
    %34 = vector.load %arg2[%c1_16, %c0_17, %c0_18] : memref<9x32x32xbf16, #tpu.memory_space<vmem>>, vector<1x32x32xbf16>
    %35 = vector.shape_cast %34 : vector<1x32x32xbf16> to vector<32x32xbf16>
    %cst_19 = arith.constant dense<0.000000e+00> : vector<8x32xf32>
    %36 = tpu.matmul %33, %35, %cst_19 {dimension_numbers = #tpu.dot_dimension_numbers<[1], [0], [0], [1], [0, 0, 1, 1], [], []>} : vector<8x32xbf16>, vector<32x32xbf16>, vector<8x32xf32> -> vector<8x32xf32>
    %37 = arith.addf %31, %36 : vector<8x32xf32>
    %c2 = arith.constant 2 : index
    %c0_20 = arith.constant 0 : index
    %38 = vector.load %arg8[%c2, %c0_20] : memref<20x32xf32, #tpu.memory_space<vmem>>, vector<8x32xf32>
    %39 = arith.truncf %38 : vector<8x32xf32> to vector<8x32xbf16>
    %c2_21 = arith.constant 2 : index
    %c0_22 = arith.constant 0 : index
    %c0_23 = arith.constant 0 : index
    %40 = vector.load %arg2[%c2_21, %c0_22, %c0_23] : memref<9x32x32xbf16, #tpu.memory_space<vmem>>, vector<1x32x32xbf16>
    %41 = vector.shape_cast %40 : vector<1x32x32xbf16> to vector<32x32xbf16>
    %cst_24 = arith.constant dense<0.000000e+00> : vector<8x32xf32>
    %42 = tpu.matmul %39, %41, %cst_24 {dimension_numbers = #tpu.dot_dimension_numbers<[1], [0], [0], [1], [0, 0, 1, 1], [], []>} : vector<8x32xbf16>, vector<32x32xbf16>, vector<8x32xf32> -> vector<8x32xf32>
    %43 = arith.addf %37, %42 : vector<8x32xf32>
    %c4 = arith.constant 4 : index
    %c0_25 = arith.constant 0 : index
    %44 = vector.load %arg8[%c4, %c0_25] : memref<20x32xf32, #tpu.memory_space<vmem>>, vector<8x32xf32>
    %45 = arith.truncf %44 : vector<8x32xf32> to vector<8x32xbf16>
    %c3 = arith.constant 3 : index
    %c0_26 = arith.constant 0 : index
    %c0_27 = arith.constant 0 : index
    %46 = vector.load %arg2[%c3, %c0_26, %c0_27] : memref<9x32x32xbf16, #tpu.memory_space<vmem>>, vector<1x32x32xbf16>
    %47 = vector.shape_cast %46 : vector<1x32x32xbf16> to vector<32x32xbf16>
    %cst_28 = arith.constant dense<0.000000e+00> : vector<8x32xf32>
    %48 = tpu.matmul %45, %47, %cst_28 {dimension_numbers = #tpu.dot_dimension_numbers<[1], [0], [0], [1], [0, 0, 1, 1], [], []>} : vector<8x32xbf16>, vector<32x32xbf16>, vector<8x32xf32> -> vector<8x32xf32>
    %49 = arith.addf %43, %48 : vector<8x32xf32>
    %c5_29 = arith.constant 5 : index
    %c0_30 = arith.constant 0 : index
    %50 = vector.load %arg8[%c5_29, %c0_30] : memref<20x32xf32, #tpu.memory_space<vmem>>, vector<8x32xf32>
    %51 = arith.truncf %50 : vector<8x32xf32> to vector<8x32xbf16>
    %c4_31 = arith.constant 4 : index
    %c0_32 = arith.constant 0 : index
    %c0_33 = arith.constant 0 : index
    %52 = vector.load %arg2[%c4_31, %c0_32, %c0_33] : memref<9x32x32xbf16, #tpu.memory_space<vmem>>, vector<1x32x32xbf16>
    %53 = vector.shape_cast %52 : vector<1x32x32xbf16> to vector<32x32xbf16>
    %cst_34 = arith.constant dense<0.000000e+00> : vector<8x32xf32>
    %54 = tpu.matmul %51, %53, %cst_34 {dimension_numbers = #tpu.dot_dimension_numbers<[1], [0], [0], [1], [0, 0, 1, 1], [], []>} : vector<8x32xbf16>, vector<32x32xbf16>, vector<8x32xf32> -> vector<8x32xf32>
    %55 = arith.addf %49, %54 : vector<8x32xf32>
    %c6 = arith.constant 6 : index
    %c0_35 = arith.constant 0 : index
    %56 = vector.load %arg8[%c6, %c0_35] : memref<20x32xf32, #tpu.memory_space<vmem>>, vector<8x32xf32>
    %57 = arith.truncf %56 : vector<8x32xf32> to vector<8x32xbf16>
    %c5_36 = arith.constant 5 : index
    %c0_37 = arith.constant 0 : index
    %c0_38 = arith.constant 0 : index
    %58 = vector.load %arg2[%c5_36, %c0_37, %c0_38] : memref<9x32x32xbf16, #tpu.memory_space<vmem>>, vector<1x32x32xbf16>
    %59 = vector.shape_cast %58 : vector<1x32x32xbf16> to vector<32x32xbf16>
    %cst_39 = arith.constant dense<0.000000e+00> : vector<8x32xf32>
    %60 = tpu.matmul %57, %59, %cst_39 {dimension_numbers = #tpu.dot_dimension_numbers<[1], [0], [0], [1], [0, 0, 1, 1], [], []>} : vector<8x32xbf16>, vector<32x32xbf16>, vector<8x32xf32> -> vector<8x32xf32>
    %61 = arith.addf %55, %60 : vector<8x32xf32>
    %c8 = arith.constant 8 : index
    %c0_40 = arith.constant 0 : index
    %62 = vector.load %arg8[%c8, %c0_40] : memref<20x32xf32, #tpu.memory_space<vmem>>, vector<8x32xf32>
    %63 = arith.truncf %62 : vector<8x32xf32> to vector<8x32xbf16>
    %c6_41 = arith.constant 6 : index
    %c0_42 = arith.constant 0 : index
    %c0_43 = arith.constant 0 : index
    %64 = vector.load %arg2[%c6_41, %c0_42, %c0_43] : memref<9x32x32xbf16, #tpu.memory_space<vmem>>, vector<1x32x32xbf16>
    %65 = vector.shape_cast %64 : vector<1x32x32xbf16> to vector<32x32xbf16>
    %cst_44 = arith.constant dense<0.000000e+00> : vector<8x32xf32>
    %66 = tpu.matmul %63, %65, %cst_44 {dimension_numbers = #tpu.dot_dimension_numbers<[1], [0], [0], [1], [0, 0, 1, 1], [], []>} : vector<8x32xbf16>, vector<32x32xbf16>, vector<8x32xf32> -> vector<8x32xf32>
    %67 = arith.addf %61, %66 : vector<8x32xf32>
    %c9 = arith.constant 9 : index
    %c0_45 = arith.constant 0 : index
    %68 = vector.load %arg8[%c9, %c0_45] : memref<20x32xf32, #tpu.memory_space<vmem>>, vector<8x32xf32>
    %69 = arith.truncf %68 : vector<8x32xf32> to vector<8x32xbf16>
    %c7 = arith.constant 7 : index
    %c0_46 = arith.constant 0 : index
    %c0_47 = arith.constant 0 : index
    %70 = vector.load %arg2[%c7, %c0_46, %c0_47] : memref<9x32x32xbf16, #tpu.memory_space<vmem>>, vector<1x32x32xbf16>
    %71 = vector.shape_cast %70 : vector<1x32x32xbf16> to vector<32x32xbf16>
    %cst_48 = arith.constant dense<0.000000e+00> : vector<8x32xf32>
    %72 = tpu.matmul %69, %71, %cst_48 {dimension_numbers = #tpu.dot_dimension_numbers<[1], [0], [0], [1], [0, 0, 1, 1], [], []>} : vector<8x32xbf16>, vector<32x32xbf16>, vector<8x32xf32> -> vector<8x32xf32>
    %73 = arith.addf %67, %72 : vector<8x32xf32>
    %c10 = arith.constant 10 : index
    %c0_49 = arith.constant 0 : index
    %74 = vector.load %arg8[%c10, %c0_49] : memref<20x32xf32, #tpu.memory_space<vmem>>, vector<8x32xf32>
    %75 = arith.truncf %74 : vector<8x32xf32> to vector<8x32xbf16>
    %c8_50 = arith.constant 8 : index
    %c0_51 = arith.constant 0 : index
    %c0_52 = arith.constant 0 : index
    %76 = vector.load %arg2[%c8_50, %c0_51, %c0_52] : memref<9x32x32xbf16, #tpu.memory_space<vmem>>, vector<1x32x32xbf16>
    %77 = vector.shape_cast %76 : vector<1x32x32xbf16> to vector<32x32xbf16>
    %cst_53 = arith.constant dense<0.000000e+00> : vector<8x32xf32>
    %78 = tpu.matmul %75, %77, %cst_53 {dimension_numbers = #tpu.dot_dimension_numbers<[1], [0], [0], [1], [0, 0, 1, 1], [], []>} : vector<8x32xbf16>, vector<32x32xbf16>, vector<8x32xf32> -> vector<8x32xf32>
    %79 = arith.addf %73, %78 : vector<8x32xf32>
    %c0_54 = arith.constant 0 : index
    %c0_55 = arith.constant 0 : index
    %80 = vector.load %arg3[%c0_54, %c0_55] : memref<1x32xf32, #tpu.memory_space<vmem>>, vector<1x32xf32>
    %81 = vector.broadcast %80 : vector<1x32xf32> to vector<8x32xf32>
    %82 = arith.addf %79, %81 : vector<8x32xf32>
    %cst_56 = arith.constant 0.000000e+00 : f32
    %83 = vector.broadcast %cst_56 : f32 to vector<8x32xf32>
    %84 = arith.maximumf %82, %83 : vector<8x32xf32>
    %cst_57 = arith.constant 0.000000e+00 : f32
    %85 = vector.shape_cast %18 : vector<8x1xi1> to vector<8x1xi1>
    %86 = vector.broadcast %85 : vector<8x1xi1> to vector<8x32xi1>
    %87 = vector.broadcast %cst_57 : f32 to vector<8x32xf32>
    %88 = arith.select %86, %84, %87 : vector<8x32xi1>, vector<8x32xf32>
    %cst_58 = arith.constant 0.000000e+00 : f32
    %89 = vector.broadcast %cst_58 : f32 to vector<20x32xf32>
    %c0_59 = arith.constant 0 : index
    %c0_60 = arith.constant 0 : index
    %90 = vector.load %arg9[%c0_59, %c0_60] : memref<20x32xf32, #tpu.memory_space<vmem>>, vector<20x32xf32>
    tpu.vector_store %arg9[%c0_59, %c0_60], %89 {strides = array<i32>} : memref<20x32xf32, #tpu.memory_space<vmem>>, vector<20x32xf32>,
    %c5_61 = arith.constant 5 : index
    %c0_62 = arith.constant 0 : index
    %91 = vector.load %arg9[%c5_61, %c0_62] : memref<20x32xf32, #tpu.memory_space<vmem>>, vector<8x32xf32>
    tpu.vector_store %arg9[%c5_61, %c0_62], %88 {strides = array<i32>} : memref<20x32xf32, #tpu.memory_space<vmem>>, vector<8x32xf32>,
    %cst_63 = arith.constant 0.000000e+00 : f32
    %92 = vector.broadcast %cst_63 : f32 to vector<8x32xf32>
    %c0_64 = arith.constant 0 : index
    %c0_65 = arith.constant 0 : index
    %93 = vector.load %arg9[%c0_64, %c0_65] : memref<20x32xf32, #tpu.memory_space<vmem>>, vector<8x32xf32>
    %94 = arith.truncf %93 : vector<8x32xf32> to vector<8x32xbf16>
    %c0_66 = arith.constant 0 : index
    %c0_67 = arith.constant 0 : index
    %c0_68 = arith.constant 0 : index
    %95 = vector.load %arg4[%c0_66, %c0_67, %c0_68] : memref<9x32x32xbf16, #tpu.memory_space<vmem>>, vector<1x32x32xbf16>
    %96 = vector.shape_cast %95 : vector<1x32x32xbf16> to vector<32x32xbf16>
    %cst_69 = arith.constant dense<0.000000e+00> : vector<8x32xf32>
    %97 = tpu.matmul %94, %96, %cst_69 {dimension_numbers = #tpu.dot_dimension_numbers<[1], [0], [0], [1], [0, 0, 1, 1], [], []>} : vector<8x32xbf16>, vector<32x32xbf16>, vector<8x32xf32> -> vector<8x32xf32>
    %98 = arith.addf %92, %97 : vector<8x32xf32>
    %c1_70 = arith.constant 1 : index
    %c0_71 = arith.constant 0 : index
    %99 = vector.load %arg9[%c1_70, %c0_71] : memref<20x32xf32, #tpu.memory_space<vmem>>, vector<8x32xf32>
    %100 = arith.truncf %99 : vector<8x32xf32> to vector<8x32xbf16>
    %c1_72 = arith.constant 1 : index
    %c0_73 = arith.constant 0 : index
    %c0_74 = arith.constant 0 : index
    %101 = vector.load %arg4[%c1_72, %c0_73, %c0_74] : memref<9x32x32xbf16, #tpu.memory_space<vmem>>, vector<1x32x32xbf16>
    %102 = vector.shape_cast %101 : vector<1x32x32xbf16> to vector<32x32xbf16>
    %cst_75 = arith.constant dense<0.000000e+00> : vector<8x32xf32>
    %103 = tpu.matmul %100, %102, %cst_75 {dimension_numbers = #tpu.dot_dimension_numbers<[1], [0], [0], [1], [0, 0, 1, 1], [], []>} : vector<8x32xbf16>, vector<32x32xbf16>, vector<8x32xf32> -> vector<8x32xf32>
    %104 = arith.addf %98, %103 : vector<8x32xf32>
    %c2_76 = arith.constant 2 : index
    %c0_77 = arith.constant 0 : index
    %105 = vector.load %arg9[%c2_76, %c0_77] : memref<20x32xf32, #tpu.memory_space<vmem>>, vector<8x32xf32>
    %106 = arith.truncf %105 : vector<8x32xf32> to vector<8x32xbf16>
    %c2_78 = arith.constant 2 : index
    %c0_79 = arith.constant 0 : index
    %c0_80 = arith.constant 0 : index
    %107 = vector.load %arg4[%c2_78, %c0_79, %c0_80] : memref<9x32x32xbf16, #tpu.memory_space<vmem>>, vector<1x32x32xbf16>
    %108 = vector.shape_cast %107 : vector<1x32x32xbf16> to vector<32x32xbf16>
    %cst_81 = arith.constant dense<0.000000e+00> : vector<8x32xf32>
    %109 = tpu.matmul %106, %108, %cst_81 {dimension_numbers = #tpu.dot_dimension_numbers<[1], [0], [0], [1], [0, 0, 1, 1], [], []>} : vector<8x32xbf16>, vector<32x32xbf16>, vector<8x32xf32> -> vector<8x32xf32>
    %110 = arith.addf %104, %109 : vector<8x32xf32>
    %c4_82 = arith.constant 4 : index
    %c0_83 = arith.constant 0 : index
    %111 = vector.load %arg9[%c4_82, %c0_83] : memref<20x32xf32, #tpu.memory_space<vmem>>, vector<8x32xf32>
    %112 = arith.truncf %111 : vector<8x32xf32> to vector<8x32xbf16>
    %c3_84 = arith.constant 3 : index
    %c0_85 = arith.constant 0 : index
    %c0_86 = arith.constant 0 : index
    %113 = vector.load %arg4[%c3_84, %c0_85, %c0_86] : memref<9x32x32xbf16, #tpu.memory_space<vmem>>, vector<1x32x32xbf16>
    %114 = vector.shape_cast %113 : vector<1x32x32xbf16> to vector<32x32xbf16>
    %cst_87 = arith.constant dense<0.000000e+00> : vector<8x32xf32>
    %115 = tpu.matmul %112, %114, %cst_87 {dimension_numbers = #tpu.dot_dimension_numbers<[1], [0], [0], [1], [0, 0, 1, 1], [], []>} : vector<8x32xbf16>, vector<32x32xbf16>, vector<8x32xf32> -> vector<8x32xf32>
    %116 = arith.addf %110, %115 : vector<8x32xf32>
    %c5_88 = arith.constant 5 : index
    %c0_89 = arith.constant 0 : index
    %117 = vector.load %arg9[%c5_88, %c0_89] : memref<20x32xf32, #tpu.memory_space<vmem>>, vector<8x32xf32>
    %118 = arith.truncf %117 : vector<8x32xf32> to vector<8x32xbf16>
    %c4_90 = arith.constant 4 : index
    %c0_91 = arith.constant 0 : index
    %c0_92 = arith.constant 0 : index
    %119 = vector.load %arg4[%c4_90, %c0_91, %c0_92] : memref<9x32x32xbf16, #tpu.memory_space<vmem>>, vector<1x32x32xbf16>
    %120 = vector.shape_cast %119 : vector<1x32x32xbf16> to vector<32x32xbf16>
    %cst_93 = arith.constant dense<0.000000e+00> : vector<8x32xf32>
    %121 = tpu.matmul %118, %120, %cst_93 {dimension_numbers = #tpu.dot_dimension_numbers<[1], [0], [0], [1], [0, 0, 1, 1], [], []>} : vector<8x32xbf16>, vector<32x32xbf16>, vector<8x32xf32> -> vector<8x32xf32>
    %122 = arith.addf %116, %121 : vector<8x32xf32>
    %c6_94 = arith.constant 6 : index
    %c0_95 = arith.constant 0 : index
    %123 = vector.load %arg9[%c6_94, %c0_95] : memref<20x32xf32, #tpu.memory_space<vmem>>, vector<8x32xf32>
    %124 = arith.truncf %123 : vector<8x32xf32> to vector<8x32xbf16>
    %c5_96 = arith.constant 5 : index
    %c0_97 = arith.constant 0 : index
    %c0_98 = arith.constant 0 : index
    %125 = vector.load %arg4[%c5_96, %c0_97, %c0_98] : memref<9x32x32xbf16, #tpu.memory_space<vmem>>, vector<1x32x32xbf16>
    %126 = vector.shape_cast %125 : vector<1x32x32xbf16> to vector<32x32xbf16>
    %cst_99 = arith.constant dense<0.000000e+00> : vector<8x32xf32>
    %127 = tpu.matmul %124, %126, %cst_99 {dimension_numbers = #tpu.dot_dimension_numbers<[1], [0], [0], [1], [0, 0, 1, 1], [], []>} : vector<8x32xbf16>, vector<32x32xbf16>, vector<8x32xf32> -> vector<8x32xf32>
    %128 = arith.addf %122, %127 : vector<8x32xf32>
    %c8_100 = arith.constant 8 : index
    %c0_101 = arith.constant 0 : index
    %129 = vector.load %arg9[%c8_100, %c0_101] : memref<20x32xf32, #tpu.memory_space<vmem>>, vector<8x32xf32>
    %130 = arith.truncf %129 : vector<8x32xf32> to vector<8x32xbf16>
    %c6_102 = arith.constant 6 : index
    %c0_103 = arith.constant 0 : index
    %c0_104 = arith.constant 0 : index
    %131 = vector.load %arg4[%c6_102, %c0_103, %c0_104] : memref<9x32x32xbf16, #tpu.memory_space<vmem>>, vector<1x32x32xbf16>
    %132 = vector.shape_cast %131 : vector<1x32x32xbf16> to vector<32x32xbf16>
    %cst_105 = arith.constant dense<0.000000e+00> : vector<8x32xf32>
    %133 = tpu.matmul %130, %132, %cst_105 {dimension_numbers = #tpu.dot_dimension_numbers<[1], [0], [0], [1], [0, 0, 1, 1], [], []>} : vector<8x32xbf16>, vector<32x32xbf16>, vector<8x32xf32> -> vector<8x32xf32>
    %134 = arith.addf %128, %133 : vector<8x32xf32>
    %c9_106 = arith.constant 9 : index
    %c0_107 = arith.constant 0 : index
    %135 = vector.load %arg9[%c9_106, %c0_107] : memref<20x32xf32, #tpu.memory_space<vmem>>, vector<8x32xf32>
    %136 = arith.truncf %135 : vector<8x32xf32> to vector<8x32xbf16>
    %c7_108 = arith.constant 7 : index
    %c0_109 = arith.constant 0 : index
    %c0_110 = arith.constant 0 : index
    %137 = vector.load %arg4[%c7_108, %c0_109, %c0_110] : memref<9x32x32xbf16, #tpu.memory_space<vmem>>, vector<1x32x32xbf16>
    %138 = vector.shape_cast %137 : vector<1x32x32xbf16> to vector<32x32xbf16>
    %cst_111 = arith.constant dense<0.000000e+00> : vector<8x32xf32>
    %139 = tpu.matmul %136, %138, %cst_111 {dimension_numbers = #tpu.dot_dimension_numbers<[1], [0], [0], [1], [0, 0, 1, 1], [], []>} : vector<8x32xbf16>, vector<32x32xbf16>, vector<8x32xf32> -> vector<8x32xf32>
    %140 = arith.addf %134, %139 : vector<8x32xf32>
    %c10_112 = arith.constant 10 : index
    %c0_113 = arith.constant 0 : index
    %141 = vector.load %arg9[%c10_112, %c0_113] : memref<20x32xf32, #tpu.memory_space<vmem>>, vector<8x32xf32>
    %142 = arith.truncf %141 : vector<8x32xf32> to vector<8x32xbf16>
    %c8_114 = arith.constant 8 : index
    %c0_115 = arith.constant 0 : index
    %c0_116 = arith.constant 0 : index
    %143 = vector.load %arg4[%c8_114, %c0_115, %c0_116] : memref<9x32x32xbf16, #tpu.memory_space<vmem>>, vector<1x32x32xbf16>
    %144 = vector.shape_cast %143 : vector<1x32x32xbf16> to vector<32x32xbf16>
    %cst_117 = arith.constant dense<0.000000e+00> : vector<8x32xf32>
    %145 = tpu.matmul %142, %144, %cst_117 {dimension_numbers = #tpu.dot_dimension_numbers<[1], [0], [0], [1], [0, 0, 1, 1], [], []>} : vector<8x32xbf16>, vector<32x32xbf16>, vector<8x32xf32> -> vector<8x32xf32>
    %146 = arith.addf %140, %145 : vector<8x32xf32>
    %c0_118 = arith.constant 0 : index
    %c0_119 = arith.constant 0 : index
    %147 = vector.load %arg5[%c0_118, %c0_119] : memref<1x32xf32, #tpu.memory_space<vmem>>, vector<1x32xf32>
    %148 = vector.broadcast %147 : vector<1x32xf32> to vector<8x32xf32>
    %149 = arith.addf %146, %148 : vector<8x32xf32>
    %cst_120 = arith.constant 0.000000e+00 : f32
    %150 = vector.broadcast %cst_120 : f32 to vector<8x32xf32>
    %151 = arith.maximumf %149, %150 : vector<8x32xf32>
    %c0_121 = arith.constant 0 : index
    %c0_122 = arith.constant 0 : index
    %c0_123 = arith.constant 0 : index
    %152 = vector.load %arg6[%c0_121, %c0_122, %c0_123] : memref<1x1x32xf32, #tpu.memory_space<vmem>>, vector<1x1x32xf32>
    %153 = vector.shape_cast %152 : vector<1x1x32xf32> to vector<1x32xf32>
    %154 = vector.broadcast %153 : vector<1x32xf32> to vector<8x32xf32>
    %155 = arith.addf %151, %154 : vector<8x32xf32>
    %cst_124 = arith.constant 0.000000e+00 : f32
    %156 = vector.shape_cast %18 : vector<8x1xi1> to vector<8x1xi1>
    %157 = vector.broadcast %156 : vector<8x1xi1> to vector<8x32xi1>
    %158 = vector.broadcast %cst_124 : f32 to vector<8x32xf32>
    %159 = arith.select %157, %155, %158 : vector<8x32xi1>, vector<8x32xf32>
    %160 = arith.truncf %159 : vector<8x32xf32> to vector<8x32xbf16>
    %c0_125 = arith.constant 0 : index
    %c0_126 = arith.constant 0 : index
    %c0_127 = arith.constant 0 : index
    %161 = vector.load %arg7[%c0_125, %c0_126, %c0_127] : memref<1x8x32xbf16, #tpu.memory_space<vmem>>, vector<1x8x32xbf16>
    %162 = vector.shape_cast %161 : vector<1x8x32xbf16> to vector<8x32xbf16>
    %163 = vector.shape_cast %160 : vector<8x32xbf16> to vector<1x8x32xbf16>
    tpu.vector_store %arg7[%c0_125, %c0_126, %c0_127], %163 {strides = array<i32>} : memref<1x8x32xbf16, #tpu.memory_space<vmem>>, vector<1x8x32xbf16>,
    return
  }
  func.func @transform_0(%arg0: i32) -> (i32, i32, i32) {
    %c0_i32 = arith.constant 0 : i32
    %c0_i32_0 = arith.constant 0 : i32
    %c0_i32_1 = arith.constant 0 : i32
    return %arg0, %c0_i32, %c0_i32_0 : i32, i32, i32
  }
  func.func @transform_1(%arg0: i32) -> (i32, i32, i32) {
    %c0_i32 = arith.constant 0 : i32
    %c0_i32_0 = arith.constant 0 : i32
    %c0_i32_1 = arith.constant 0 : i32
    %c0_i32_2 = arith.constant 0 : i32
    return %c0_i32, %c0_i32_0, %c0_i32_1 : i32, i32, i32
  }
  func.func @transform_2(%arg0: i32) -> (i32, i32) {
    %c0_i32 = arith.constant 0 : i32
    %c0_i32_0 = arith.constant 0 : i32
    %c0_i32_1 = arith.constant 0 : i32
    return %c0_i32, %c0_i32_0 : i32, i32
  }
  func.func @transform_3(%arg0: i32) -> (i32, i32, i32) {
    %c0_i32 = arith.constant 0 : i32
    %c0_i32_0 = arith.constant 0 : i32
    %c0_i32_1 = arith.constant 0 : i32
    %c0_i32_2 = arith.constant 0 : i32
    return %c0_i32, %c0_i32_0, %c0_i32_1 : i32, i32, i32
  }
  func.func @transform_4(%arg0: i32) -> (i32, i32) {
    %c0_i32 = arith.constant 0 : i32
    %c0_i32_0 = arith.constant 0 : i32
    %c0_i32_1 = arith.constant 0 : i32
    return %c0_i32, %c0_i32_0 : i32, i32
  }
  func.func @transform_5(%arg0: i32) -> (i32, i32, i32) {
    %c0_i32 = arith.constant 0 : i32
    %c0_i32_0 = arith.constant 0 : i32
    %c0_i32_1 = arith.constant 0 : i32
    return %arg0, %c0_i32, %c0_i32_0 : i32, i32, i32
  }
  func.func @transform_6(%arg0: i32) -> (i32, i32, i32) {
    %c0_i32 = arith.constant 0 : i32
    %c0_i32_0 = arith.constant 0 : i32
    %c0_i32_1 = arith.constant 0 : i32
    return %arg0, %c0_i32, %c0_i32_0 : i32, i32, i32
  }
}

module attributes {stable_mosaic.version = 11 : i64} {
  func.func @_mm_kernel(%arg0: i32, %arg1: memref<48x16xbf16, #tpu.memory_space<vmem>>, %arg2: memref<48x16xbf16, #tpu.memory_space<vmem>>, %arg3: memref<16x32xbf16, #tpu.memory_space<vmem>>, %arg4: memref<1x32xf32, #tpu.memory_space<vmem>>, %arg5: memref<48x32xbf16, #tpu.memory_space<vmem>>) attributes {dimension_semantics = [#tpu.dimension_semantics<parallel>], iteration_bounds = array<i64: 1>, scalar_prefetch = 0 : i64, scratch_operands = 0 : i64, tpu.core_type = #tpu.core_type<tc>, window_params = [{transform_indices = @transform_0, window_bounds = array<i64: 48, 16>}, {transform_indices = @transform_1, window_bounds = array<i64: 48, 16>}, {pipeline_mode = #tpu.pipeline_mode<synchronous>, transform_indices = @transform_2, window_bounds = array<i64: 16, 32>}, {pipeline_mode = #tpu.pipeline_mode<synchronous>, transform_indices = @transform_3, window_bounds = array<i64: 1, 32>}, {transform_indices = @transform_4, window_bounds = array<i64: 48, 32>}]} {
    %c0 = arith.constant 0 : index
    %c0_0 = arith.constant 0 : index
    %0 = vector.load %arg1[%c0, %c0_0] : memref<48x16xbf16, #tpu.memory_space<vmem>>, vector<48x16xbf16>
    %c0_1 = arith.constant 0 : index
    %c0_2 = arith.constant 0 : index
    %1 = vector.load %arg2[%c0_1, %c0_2] : memref<48x16xbf16, #tpu.memory_space<vmem>>, vector<48x16xbf16>
    %2 = arith.addf %0, %1 : vector<48x16xbf16>
    %c0_3 = arith.constant 0 : index
    %c0_4 = arith.constant 0 : index
    %3 = vector.load %arg3[%c0_3, %c0_4] : memref<16x32xbf16, #tpu.memory_space<vmem>>, vector<16x32xbf16>
    %cst = arith.constant dense<0.000000e+00> : vector<48x32xf32>
    %4 = tpu.matmul %2, %3, %cst {dimension_numbers = #tpu.dot_dimension_numbers<[1], [0], [0], [1], [0, 0, 1, 1], [], []>} : vector<48x16xbf16>, vector<16x32xbf16>, vector<48x32xf32> -> vector<48x32xf32>
    %c0_5 = arith.constant 0 : index
    %c0_6 = arith.constant 0 : index
    %5 = vector.load %arg4[%c0_5, %c0_6] : memref<1x32xf32, #tpu.memory_space<vmem>>, vector<1x32xf32>
    %6 = vector.broadcast %5 : vector<1x32xf32> to vector<48x32xf32>
    %7 = arith.addf %4, %6 : vector<48x32xf32>
    %cst_7 = arith.constant 0.000000e+00 : f32
    %8 = vector.broadcast %cst_7 : f32 to vector<48x32xf32>
    %9 = arith.maximumf %7, %8 : vector<48x32xf32>
    %10 = arith.truncf %9 : vector<48x32xf32> to vector<48x32xbf16>
    %c0_8 = arith.constant 0 : index
    %c0_9 = arith.constant 0 : index
    %11 = vector.load %arg5[%c0_8, %c0_9] : memref<48x32xbf16, #tpu.memory_space<vmem>>, vector<48x32xbf16>
    tpu.vector_store %arg5[%c0_8, %c0_9], %10 {strides = array<i32>} : memref<48x32xbf16, #tpu.memory_space<vmem>>, vector<48x32xbf16>,
    return
  }
  func.func @transform_0(%arg0: i32) -> (i32, i32) {
    %c0_i32 = arith.constant 0 : i32
    %c0_i32_0 = arith.constant 0 : i32
    return %arg0, %c0_i32 : i32, i32
  }
  func.func @transform_1(%arg0: i32) -> (i32, i32) {
    %c0_i32 = arith.constant 0 : i32
    %c0_i32_0 = arith.constant 0 : i32
    return %arg0, %c0_i32 : i32, i32
  }
  func.func @transform_2(%arg0: i32) -> (i32, i32) {
    %c0_i32 = arith.constant 0 : i32
    %c0_i32_0 = arith.constant 0 : i32
    %c0_i32_1 = arith.constant 0 : i32
    return %c0_i32, %c0_i32_0 : i32, i32
  }
  func.func @transform_3(%arg0: i32) -> (i32, i32) {
    %c0_i32 = arith.constant 0 : i32
    %c0_i32_0 = arith.constant 0 : i32
    %c0_i32_1 = arith.constant 0 : i32
    return %c0_i32, %c0_i32_0 : i32, i32
  }
  func.func @transform_4(%arg0: i32) -> (i32, i32) {
    %c0_i32 = arith.constant 0 : i32
    %c0_i32_0 = arith.constant 0 : i32
    return %arg0, %c0_i32 : i32, i32
  }
}

module attributes {stable_mosaic.version = 11 : i64} {
  func.func @_mm_kernel(%arg0: i32, %arg1: memref<160x8xbf16, #tpu.memory_space<vmem>>, %arg2: memref<160x8xbf16, #tpu.memory_space<vmem>>, %arg3: memref<8x12xbf16, #tpu.memory_space<vmem>>, %arg4: memref<1x12xf32, #tpu.memory_space<vmem>>, %arg5: memref<12x12xbf16, #tpu.memory_space<vmem>>, %arg6: memref<1x12xf32, #tpu.memory_space<vmem>>, %arg7: memref<160x12xf32, #tpu.memory_space<vmem>>) attributes {dimension_semantics = [#tpu.dimension_semantics<parallel>], iteration_bounds = array<i64: 1>, scalar_prefetch = 0 : i64, scratch_operands = 0 : i64, tpu.core_type = #tpu.core_type<tc>, window_params = [{transform_indices = @transform_0, window_bounds = array<i64: 160, 8>}, {transform_indices = @transform_1, window_bounds = array<i64: 160, 8>}, {pipeline_mode = #tpu.pipeline_mode<synchronous>, transform_indices = @transform_2, window_bounds = array<i64: 8, 12>}, {pipeline_mode = #tpu.pipeline_mode<synchronous>, transform_indices = @transform_3, window_bounds = array<i64: 1, 12>}, {pipeline_mode = #tpu.pipeline_mode<synchronous>, transform_indices = @transform_4, window_bounds = array<i64: 12, 12>}, {pipeline_mode = #tpu.pipeline_mode<synchronous>, transform_indices = @transform_5, window_bounds = array<i64: 1, 12>}, {transform_indices = @transform_6, window_bounds = array<i64: 160, 12>}]} {
    %c0 = arith.constant 0 : index
    %c0_0 = arith.constant 0 : index
    %0 = vector.load %arg1[%c0, %c0_0] : memref<160x8xbf16, #tpu.memory_space<vmem>>, vector<160x8xbf16>
    %c0_1 = arith.constant 0 : index
    %c0_2 = arith.constant 0 : index
    %1 = vector.load %arg2[%c0_1, %c0_2] : memref<160x8xbf16, #tpu.memory_space<vmem>>, vector<160x8xbf16>
    %2 = arith.addf %0, %1 : vector<160x8xbf16>
    %c0_3 = arith.constant 0 : index
    %c0_4 = arith.constant 0 : index
    %3 = vector.load %arg3[%c0_3, %c0_4] : memref<8x12xbf16, #tpu.memory_space<vmem>>, vector<8x12xbf16>
    %cst = arith.constant dense<0.000000e+00> : vector<160x12xf32>
    %4 = tpu.matmul %2, %3, %cst {dimension_numbers = #tpu.dot_dimension_numbers<[1], [0], [0], [1], [0, 0, 1, 1], [], []>} : vector<160x8xbf16>, vector<8x12xbf16>, vector<160x12xf32> -> vector<160x12xf32>
    %c0_5 = arith.constant 0 : index
    %c0_6 = arith.constant 0 : index
    %5 = vector.load %arg4[%c0_5, %c0_6] : memref<1x12xf32, #tpu.memory_space<vmem>>, vector<1x12xf32>
    %6 = vector.broadcast %5 : vector<1x12xf32> to vector<160x12xf32>
    %7 = arith.addf %4, %6 : vector<160x12xf32>
    %cst_7 = arith.constant 0.000000e+00 : f32
    %8 = vector.broadcast %cst_7 : f32 to vector<160x12xf32>
    %9 = arith.maximumf %7, %8 : vector<160x12xf32>
    %10 = arith.truncf %9 : vector<160x12xf32> to vector<160x12xbf16>
    %c0_8 = arith.constant 0 : index
    %c0_9 = arith.constant 0 : index
    %11 = vector.load %arg5[%c0_8, %c0_9] : memref<12x12xbf16, #tpu.memory_space<vmem>>, vector<12x12xbf16>
    %cst_10 = arith.constant dense<0.000000e+00> : vector<160x12xf32>
    %12 = tpu.matmul %10, %11, %cst_10 {dimension_numbers = #tpu.dot_dimension_numbers<[1], [0], [0], [1], [0, 0, 1, 1], [], []>} : vector<160x12xbf16>, vector<12x12xbf16>, vector<160x12xf32> -> vector<160x12xf32>
    %c0_11 = arith.constant 0 : index
    %c0_12 = arith.constant 0 : index
    %13 = vector.load %arg6[%c0_11, %c0_12] : memref<1x12xf32, #tpu.memory_space<vmem>>, vector<1x12xf32>
    %14 = vector.broadcast %13 : vector<1x12xf32> to vector<160x12xf32>
    %15 = arith.addf %12, %14 : vector<160x12xf32>
    %c0_13 = arith.constant 0 : index
    %c0_14 = arith.constant 0 : index
    %16 = vector.load %arg7[%c0_13, %c0_14] : memref<160x12xf32, #tpu.memory_space<vmem>>, vector<160x12xf32>
    tpu.vector_store %arg7[%c0_13, %c0_14], %15 {strides = array<i32>} : memref<160x12xf32, #tpu.memory_space<vmem>>, vector<160x12xf32>,
    return
  }
  func.func @transform_0(%arg0: i32) -> (i32, i32) {
    %c0_i32 = arith.constant 0 : i32
    %c0_i32_0 = arith.constant 0 : i32
    return %arg0, %c0_i32 : i32, i32
  }
  func.func @transform_1(%arg0: i32) -> (i32, i32) {
    %c0_i32 = arith.constant 0 : i32
    %c0_i32_0 = arith.constant 0 : i32
    return %arg0, %c0_i32 : i32, i32
  }
  func.func @transform_2(%arg0: i32) -> (i32, i32) {
    %c0_i32 = arith.constant 0 : i32
    %c0_i32_0 = arith.constant 0 : i32
    %c0_i32_1 = arith.constant 0 : i32
    return %c0_i32, %c0_i32_0 : i32, i32
  }
  func.func @transform_3(%arg0: i32) -> (i32, i32) {
    %c0_i32 = arith.constant 0 : i32
    %c0_i32_0 = arith.constant 0 : i32
    %c0_i32_1 = arith.constant 0 : i32
    return %c0_i32, %c0_i32_0 : i32, i32
  }
  func.func @transform_4(%arg0: i32) -> (i32, i32) {
    %c0_i32 = arith.constant 0 : i32
    %c0_i32_0 = arith.constant 0 : i32
    %c0_i32_1 = arith.constant 0 : i32
    return %c0_i32, %c0_i32_0 : i32, i32
  }
  func.func @transform_5(%arg0: i32) -> (i32, i32) {
    %c0_i32 = arith.constant 0 : i32
    %c0_i32_0 = arith.constant 0 : i32
    %c0_i32_1 = arith.constant 0 : i32
    return %c0_i32, %c0_i32_0 : i32, i32
  }
  func.func @transform_6(%arg0: i32) -> (i32, i32) {
    %c0_i32 = arith.constant 0 : i32
    %c0_i32_0 = arith.constant 0 : i32
    return %arg0, %c0_i32 : i32, i32
  }
}

</mosaic_0001>

<llo_original>
// kernel: denoiser_forward.10
$region0: #{denoiser_forward.10}
  #allocation0 [shape = 'u32[]', space=smem, size = 0x4, offset = 0x4, fixed_abs, tag = 'smem constant byte address 0x4 - core index']
  #allocation1 [shape = 'u32[144,128]{1,0:T(1,128)}', space=vmem, size = 0x12000, scoped, tag = 'internal scratch']
  %s0 = inlined_call_operand.vmem [shape: bf16[2,32], index: 0, kind: input, shape index: {}]
  %s1 = inlined_call_operand.vmem [shape: bf16[32,32], index: 1, kind: input, shape index: {}]
  %s2 = inlined_call_operand.vmem [shape: f32[1,32], index: 2, kind: input, shape index: {}]
  %s3 = inlined_call_operand.vmem [shape: f32[2,32], index: 3, kind: output, shape index: {}]
  %s4 = sld [smem:[#allocation0]]
  $region22: #{denoiser_forward.10} parent=0
    _
  %s6 = ssub.s32 1, %s4
  %s7 = scalar_select 0, %s6, %s4
  // Predicated region
  $region2: #{denoiser_forward.10} parent=0 // pred_check
    _
  $region3: #{denoiser_forward.10} parent=0 // pred_check_branch
    %9 = sbr.rel (0) target = $region5
  $region4: #{denoiser_forward.10} parent=0 // pred_region
    _
  $region5: #{denoiser_forward.10} parent=0 // pred_fallthru
    _
  // Predicated region
  $region6: #{denoiser_forward.10} parent=0 // pred_check
    _
  $region7: #{denoiser_forward.10} parent=0 // pred_check_branch
    %11 = sbr.rel (0) target = $region9
  $region8: #{denoiser_forward.10} parent=0 // pred_region
    _
  $region9: #{denoiser_forward.10} parent=0 // pred_fallthru
    _
  // Predicated region
  $region10: #{denoiser_forward.10} parent=0 // pred_check
    _
  $region11: #{denoiser_forward.10} parent=0 // pred_check_branch
    %13 = sbr.rel (0) target = $region13
  $region12: #{denoiser_forward.10} parent=0 // pred_region
    _
  $region13: #{denoiser_forward.10} parent=0 // pred_fallthru
    _
  %v15 = vld [vmem:[%s0] sm:$0x1]
  %v16 = vld [vmem:[%s1] sm:$0xf]
  %v17 = vld [vmem:[%s1 + $0x4] sm:$0xf]
  %v18 = vld [vmem:[%s1 + $0x8] sm:$0xf]
  %v19 = vld [vmem:[%s1 + $0xc] sm:$0xf]
  %v20 = vld [vmem:[%s2] sm:$0x1]
  %v22 = vlaneseq
  %v23 = vshrl.u32 %v22, 7
  %v24 = vsub.s32 0, %v23
  %v25 = vrot.slane %v20, %v24
  %v31 = vunpack.c.l.b16 %v16
  %v32 = vunpack.c.l.b16 %v17
  %v33 = vunpack.c.l.b16 %v18
  %v34 = vunpack.c.l.b16 %v19
  %v35 = vpack.c.b16 %v32, %v31
  %v36 = vpack.c.b16 %v34, %v33
  %vm39 = vcmask 261120
  %v41 = vsel %vm39, %v15, 0
  %43 = vmatprep.subr.bf16.mxu0 0
  %44 = vmatpush1.bf16.msra.mxu0 0
  %45 = vmatprep.subr.bf16.mxu0 0
  %46 = vmatpush1.bf16.msra.mxu0 0
  %47 = vmatprep.subr.bf16.mxu0 0
  %48 = vmatpush1.bf16.msra.mxu0 0
  %49 = vmatprep.subr.bf16.mxu0 0
  %50 = vmatpush1.bf16.msra.mxu0 0
  %51 = vmatprep.subr.bf16.mxu0 0
  %52 = vmatpush1.bf16.msra.mxu0 0
  %53 = vmatprep.subr.bf16.mxu0 0
  %54 = vmatpush1.bf16.msra.mxu0 0
  %55 = vmatprep.subr.bf16.mxu0 0
  %56 = vmatpush1.bf16.msra.mxu0 %v36
  %57 = vmatprep.subr.bf16.mxu0 0
  %58 = vmatpush1.bf16.msra.mxu0 %v35
  %59 = vmatprep.subr.bf16.mxu0 0
  %60 = vmatpush2.bf16.msra.mxu0 0
  %61 = vmatprep.subr.bf16.mxu0 0
  %62 = vmatpush2.bf16.msra.mxu0 0
  %63 = vmatprep.subr.bf16.mxu0 0
  %64 = vmatpush2.bf16.msra.mxu0 0
  %65 = vmatprep.subr.bf16.mxu0 0
  %66 = vmatpush2.bf16.msra.mxu0 0
  %67 = vmatprep.subr.bf16.mxu0 0
  %68 = vmatpush2.bf16.msra.mxu0 0
  %69 = vmatprep.subr.bf16.mxu0 0
  %70 = vmatpush2.bf16.msra.mxu0 0
  %71 = vmatprep.subr.bf16.mxu0 0
  %72 = vmatpush2.bf16.msra.mxu0 0
  %73 = vmatprep.subr.bf16.mxu0 0
  %74 = vmatpush2.bf16.msra.mxu0 0
  %75 = vmatprep.mubr.bf16.mxu0 0
  %76 = vmatmul.mubr.bf16.gmra.mxu0 %v41
  %v77 = vpop.f32.mrf.mxu0
  %v78 = vadd.f32 %v25, %v77
  %v79 = vpop.f32.mrf.mxu0
  %v80 = vpop.f32.mrf.mxu0
  %v81 = vpop.f32.mrf.mxu0
  %82 = vdwg.mxu0
  %vm83 = vcmask 254976
  %84 = vst.msk [vmem:[%s3] sm:$0x3] %vm83, %v78
  // Predicated region
  $region14: #{denoiser_forward.10} parent=0 // pred_check
    _
  $region15: #{denoiser_forward.10} parent=0 // pred_check_branch
    %86 = sbr.rel (0) target = $region17
  $region16: #{denoiser_forward.10} parent=0 // pred_region
    _
  $region17: #{denoiser_forward.10} parent=0 // pred_fallthru
    _
  // Predicated region
  $region18: #{denoiser_forward.10} parent=0 // pred_check
    _
  $region19: #{denoiser_forward.10} parent=0 // pred_check_branch
    %88 = sbr.rel (0) target = $region21
  $region20: #{denoiser_forward.10} parent=0 // pred_region
    _
  $region21: #{denoiser_forward.10} parent=0 // pred_fallthru
    _

// kernel: denoiser_forward.9
$region0: #{denoiser_forward.9}
  #allocation0 [shape = 'u32[]', space=smem, size = 0x4, offset = 0x4, fixed_abs, tag = 'smem constant byte address 0x4 - core index']
  #allocation1 [shape = 'u32[144,128]{1,0:T(1,128)}', space=vmem, size = 0x12000, scoped, tag = 'internal scratch']
  %s0 = inlined_call_operand.vmem [shape: bf16[2,32], index: 0, kind: input, shape index: {}]
  %s1 = inlined_call_operand.vmem [shape: bf16[32,32], index: 1, kind: input, shape index: {}]
  %s2 = inlined_call_operand.vmem [shape: f32[1,32], index: 2, kind: input, shape index: {}]
  %s3 = inlined_call_operand.vmem [shape: bf16[2,32], index: 3, kind: output, shape index: {}]
  %s4 = sld [smem:[#allocation0]]
  $region22: #{denoiser_forward.9} parent=0
    _
  %s6 = ssub.s32 1, %s4
  %s7 = scalar_select 0, %s6, %s4
  // Predicated region
  $region2: #{denoiser_forward.9} parent=0 // pred_check
    _
  $region3: #{denoiser_forward.9} parent=0 // pred_check_branch
    %9 = sbr.rel (0) target = $region5
  $region4: #{denoiser_forward.9} parent=0 // pred_region
    _
  $region5: #{denoiser_forward.9} parent=0 // pred_fallthru
    _
  // Predicated region
  $region6: #{denoiser_forward.9} parent=0 // pred_check
    _
  $region7: #{denoiser_forward.9} parent=0 // pred_check_branch
    %11 = sbr.rel (0) target = $region9
  $region8: #{denoiser_forward.9} parent=0 // pred_region
    _
  $region9: #{denoiser_forward.9} parent=0 // pred_fallthru
    _
  // Predicated region
  $region10: #{denoiser_forward.9} parent=0 // pred_check
    _
  $region11: #{denoiser_forward.9} parent=0 // pred_check_branch
    %13 = sbr.rel (0) target = $region13
  $region12: #{denoiser_forward.9} parent=0 // pred_region
    _
  $region13: #{denoiser_forward.9} parent=0 // pred_fallthru
    _
  %v15 = vld [vmem:[%s0] sm:$0x1]
  %v16 = vld [vmem:[%s1] sm:$0xf]
  %v17 = vld [vmem:[%s1 + $0x4] sm:$0xf]
  %v18 = vld [vmem:[%s1 + $0x8] sm:$0xf]
  %v19 = vld [vmem:[%s1 + $0xc] sm:$0xf]
  %v20 = vld [vmem:[%s2] sm:$0x1]
  %v22 = vlaneseq
  %v23 = vshrl.u32 %v22, 7
  %v24 = vsub.s32 0, %v23
  %v25 = vrot.slane %v20, %v24
  %v31 = vunpack.c.l.b16 %v16
  %v32 = vunpack.c.l.b16 %v17
  %v33 = vunpack.c.l.b16 %v18
  %v34 = vunpack.c.l.b16 %v19
  %v35 = vpack.c.b16 %v32, %v31
  %v36 = vpack.c.b16 %v34, %v33
  %vm39 = vcmask 261120
  %v41 = vsel %vm39, %v15, 0
  %43 = vmatprep.subr.bf16.mxu0 0
  %44 = vmatpush1.bf16.msra.mxu0 0
  %45 = vmatprep.subr.bf16.mxu0 0
  %46 = vmatpush1.bf16.msra.mxu0 0
  %47 = vmatprep.subr.bf16.mxu0 0
  %48 = vmatpush1.bf16.msra.mxu0 0
  %49 = vmatprep.subr.bf16.mxu0 0
  %50 = vmatpush1.bf16.msra.mxu0 0
  %51 = vmatprep.subr.bf16.mxu0 0
  %52 = vmatpush1.bf16.msra.mxu0 0
  %53 = vmatprep.subr.bf16.mxu0 0
  %54 = vmatpush1.bf16.msra.mxu0 0
  %55 = vmatprep.subr.bf16.mxu0 0
  %56 = vmatpush1.bf16.msra.mxu0 %v36
  %57 = vmatprep.subr.bf16.mxu0 0
  %58 = vmatpush1.bf16.msra.mxu0 %v35
  %59 = vmatprep.subr.bf16.mxu0 0
  %60 = vmatpush2.bf16.msra.mxu0 0
  %61 = vmatprep.subr.bf16.mxu0 0
  %62 = vmatpush2.bf16.msra.mxu0 0
  %63 = vmatprep.subr.bf16.mxu0 0
  %64 = vmatpush2.bf16.msra.mxu0 0
  %65 = vmatprep.subr.bf16.mxu0 0
  %66 = vmatpush2.bf16.msra.mxu0 0
  %67 = vmatprep.subr.bf16.mxu0 0
  %68 = vmatpush2.bf16.msra.mxu0 0
  %69 = vmatprep.subr.bf16.mxu0 0
  %70 = vmatpush2.bf16.msra.mxu0 0
  %71 = vmatprep.subr.bf16.mxu0 0
  %72 = vmatpush2.bf16.msra.mxu0 0
  %73 = vmatprep.subr.bf16.mxu0 0
  %74 = vmatpush2.bf16.msra.mxu0 0
  %75 = vmatprep.mubr.bf16.mxu0 0
  %76 = vmatmul.mubr.bf16.gmra.mxu0 %v41
  %v77 = vpop.f32.mrf.mxu0
  %v78 = vadd.f32 %v25, %v77
  %v79 = vpop.f32.mrf.mxu0
  %v80 = vpop.f32.mrf.mxu0
  %v81 = vpop.f32.mrf.mxu0
  %82 = vdwg.mxu0
  %v83 = vsub.f32 0.0, %v78
  %v84 = vmul.f32 %v83, 1.442695
  %v85 = vpow.pop %v84
  %v86 = vadd.f32 %v85, 1.0
  %v87 = vrcp.pop %v86
  %v88 = vmul.f32 %v78, %v87
  %v89 = vpack.c.bf16 %v88, %v88
  %vm90 = vcmask 253952
  %91 = vst.msk [vmem:[%s3] sm:$0x1] %vm90, %v89
  // Predicated region
  $region14: #{denoiser_forward.9} parent=0 // pred_check
    _
  $region15: #{denoiser_forward.9} parent=0 // pred_check_branch
    %93 = sbr.rel (0) target = $region17
  $region16: #{denoiser_forward.9} parent=0 // pred_region
    _
  $region17: #{denoiser_forward.9} parent=0 // pred_fallthru
    _
  // Predicated region
  $region18: #{denoiser_forward.9} parent=0 // pred_check
    _
  $region19: #{denoiser_forward.9} parent=0 // pred_check_branch
    %95 = sbr.rel (0) target = $region21
  $region20: #{denoiser_forward.9} parent=0 // pred_region
    _
  $region21: #{denoiser_forward.9} parent=0 // pred_fallthru
    _

// kernel: denoiser_forward.11
$region0: #{denoiser_forward.11}
  #allocation0 [shape = 'u32[]', space=smem, size = 0x4, offset = 0x4, fixed_abs, tag = 'smem constant byte address 0x4 - core index']
  #allocation1 [shape = 'u32[144,128]{1,0:T(1,128)}', space=vmem, size = 0x12000, scoped, tag = 'internal scratch']
  #allocation2 [shape = 'f32[100,12]{1,0:T(8,128)}', space=vmem, size = 0xd000, scoped, tag = 'scratch operand']
  #allocation3 [shape = 'f32[110,8]{1,0:T(8,128)}', space=vmem, size = 0xe000, scoped, tag = 'scratch operand']
  %s0 = inlined_call_operand.vmem [shape: bf16[2,100,12], index: 0, kind: input, shape index: {}]
  %s1 = inlined_call_operand.vmem [shape: bf16[4,12,8], index: 1, kind: input, shape index: {}]
  %s2 = inlined_call_operand.vmem [shape: f32[1,8], index: 2, kind: input, shape index: {}]
  %s3 = inlined_call_operand.vmem [shape: bf16[9,8,8], index: 3, kind: input, shape index: {}]
  %s4 = inlined_call_operand.vmem [shape: f32[1,8], index: 4, kind: input, shape index: {}]
  %s5 = inlined_call_operand.vmem [shape: bf16[2,80,8], index: 5, kind: output, shape index: {}]
  %s6 = sld [smem:[#allocation0]]
  $region53: #{denoiser_forward.11} parent=0
    _
  %s8 = ssub.s32 1, %s6
  %s9 = scalar_select 0, %s8, %s6
  loop: start=0, step=1, limit=4
  $region2: #{denoiser_forward.11} parent=0 // loop_pre_header
    _
  $region3: #{denoiser_forward.11} parent=0 // loop_header
    %s11 = sphi 0, %s15
    %p12 = scmp.ge.s32.totalorder %s11, 4
    %s21 = sphi 0, %s23
    %s24 = sphi 0, %s21
    %s25 = sphi 0, %s24
    %s41 = sphi 0, %s25
    %s45 = sphi 0, %s45
    %s47 = sphi 0, %s45
    %s48 = sphi 0, %s47
    %s62 = sphi 0, %s48
    %s66 = sphi 0, %s66
    %s68 = sphi 0, %s66
    %s69 = sphi 0, %s68
    %s83 = sphi 0, %s69
    %s87 = sphi 0, %s87
    %s89 = sphi 0, %s87
    %s90 = sphi 0, %s89
    %s104 = sphi 0, %s90
    %s108 = sphi 0, %s108
    %s110 = sphi 0, %s108
    %s111 = sphi 0, %s110
    %s125 = sphi 0, %s111
    %s131 = sphi 0, %s133
    %s134 = sphi 0, %s131
    %s135 = sphi 0, %s134
    %s151 = sphi 0, %s135
  $region4: #{denoiser_forward.11} parent=0 // loop_header_branch
    %14 = sbr.rel (%p12) target = $region8
  $region5: #{denoiser_forward.11} parent=0 // loop_body
    %s16 = ssub.s32 %s11, 1
    %s17 = ssub.s32 %s11, 2
    %s18 = sadd.s32 %s11, 1
    %s19 = ssub.s32 %s11, %s18
    %p20 = scmp.eq.s32.totalorder %s19, 0
    %s22 = sadd.s32 %s21, 1
    %s23 = scalar_select %p20, %s21, %s22
    %p26 = pneg %p20
    %p27 = scmp.eq.s32.totalorder %s11, 1
    %p28 = por %p26, %p27
    %p29 = scmp.ne.s32.totalorder %s21, %s24
    %p30 = scmp.eq.s32.totalorder %s11, 0
    %p31 = por %p29, %p30
    %p32 = scmp.ne.s32.totalorder %s21, %s24
    %p33 = scmp.eq.s32.totalorder %s16, 1
    %p34 = por %p32, %p33
    %p35 = scmp.ne.s32.totalorder %s24, %s25
    %p36 = scmp.eq.s32.totalorder %s16, 0
    %p37 = por %p35, %p36
    %p38 = scmp.ne.s32.totalorder %s24, %s25
    %p39 = scmp.eq.s32.totalorder %s17, 1
    %p40 = por %p38, %p39
    %p42 = scmp.ne.s32.totalorder %s25, %s41
    %p43 = scmp.eq.s32.totalorder %s17, 0
    %p44 = por %p42, %p43
    %s46 = sadd.s32 %s45, 1
    %p49 = scmp.eq.s32.totalorder %s11, 1
    %p50 = scmp.ne.s32.totalorder %s45, %s47
    %p51 = scmp.eq.s32.totalorder %s11, 0
    %p52 = por %p50, %p51
    %p53 = scmp.ne.s32.totalorder %s45, %s47
    %p54 = scmp.eq.s32.totalorder %s16, 1
    %p55 = por %p53, %p54
    %p56 = scmp.ne.s32.totalorder %s47, %s48
    %p57 = scmp.eq.s32.totalorder %s16, 0
    %p58 = por %p56, %p57
    %p59 = scmp.ne.s32.totalorder %s47, %s48
    %p60 = scmp.eq.s32.totalorder %s17, 1
    %p61 = por %p59, %p60
    %p63 = scmp.ne.s32.totalorder %s48, %s62
    %p64 = scmp.eq.s32.totalorder %s17, 0
    %p65 = por %p63, %p64
    %s67 = sadd.s32 %s66, 1
    %p70 = scmp.eq.s32.totalorder %s11, 1
    %p71 = scmp.ne.s32.totalorder %s66, %s68
    %p72 = scmp.eq.s32.totalorder %s11, 0
    %p73 = por %p71, %p72
    %p74 = scmp.ne.s32.totalorder %s66, %s68
    %p75 = scmp.eq.s32.totalorder %s16, 1
    %p76 = por %p74, %p75
    %p77 = scmp.ne.s32.totalorder %s68, %s69
    %p78 = scmp.eq.s32.totalorder %s16, 0
    %p79 = por %p77, %p78
    %p80 = scmp.ne.s32.totalorder %s68, %s69
    %p81 = scmp.eq.s32.totalorder %s17, 1
    %p82 = por %p80, %p81
    %p84 = scmp.ne.s32.totalorder %s69, %s83
    %p85 = scmp.eq.s32.totalorder %s17, 0
    %p86 = por %p84, %p85
    %s88 = sadd.s32 %s87, 1
    %p91 = scmp.eq.s32.totalorder %s11, 1
    %p92 = scmp.ne.s32.totalorder %s87, %s89
    %p93 = scmp.eq.s32.totalorder %s11, 0
    %p94 = por %p92, %p93
    %p95 = scmp.ne.s32.totalorder %s87, %s89
    %p96 = scmp.eq.s32.totalorder %s16, 1
    %p97 = por %p95, %p96
    %p98 = scmp.ne.s32.totalorder %s89, %s90
    %p99 = scmp.eq.s32.totalorder %s16, 0
    %p100 = por %p98, %p99
    %p101 = scmp.ne.s32.totalorder %s89, %s90
    %p102 = scmp.eq.s32.totalorder %s17, 1
    %p103 = por %p101, %p102
    %p105 = scmp.ne.s32.totalorder %s90, %s104
    %p106 = scmp.eq.s32.totalorder %s17, 0
    %p107 = por %p105, %p106
    %s109 = sadd.s32 %s108, 1
    %p112 = scmp.eq.s32.totalorder %s11, 1
    %p113 = scmp.ne.s32.totalorder %s108, %s110
    %p114 = scmp.eq.s32.totalorder %s11, 0
    %p115 = por %p113, %p114
    %p116 = scmp.ne.s32.totalorder %s108, %s110
    %p117 = scmp.eq.s32.totalorder %s16, 1
    %p118 = por %p116, %p117
    %p119 = scmp.ne.s32.totalorder %s110, %s111
    %p120 = scmp.eq.s32.totalorder %s16, 0
    %p121 = por %p119, %p120
    %p122 = scmp.ne.s32.totalorder %s110, %s111
    %p123 = scmp.eq.s32.totalorder %s17, 1
    %p124 = por %p122, %p123
    %p126 = scmp.ne.s32.totalorder %s111, %s125
    %p127 = scmp.eq.s32.totalorder %s17, 0
    %p128 = por %p126, %p127
    %s129 = ssub.s32 %s11, %s18
    %p130 = scmp.eq.s32.totalorder %s129, 0
    %s132 = sadd.s32 %s131, 1
    %s133 = scalar_select %p130, %s131, %s132
    %p136 = pneg %p130
    %p137 = scmp.eq.s32.totalorder %s11, 1
    %p138 = por %p136, %p137
    %p139 = scmp.ne.s32.totalorder %s131, %s134
    %p140 = scmp.eq.s32.totalorder %s11, 0
    %p141 = por %p139, %p140
    %p142 = scmp.ne.s32.totalorder %s131, %s134
    %p143 = scmp.eq.s32.totalorder %s16, 1
    %p144 = por %p142, %p143
    %p145 = scmp.ne.s32.totalorder %s134, %s135
    %p146 = scmp.eq.s32.totalorder %s16, 0
    %p147 = por %p145, %p146
    %p148 = scmp.ne.s32.totalorder %s134, %s135
    %p149 = scmp.eq.s32.totalorder %s17, 1
    %p150 = por %p148, %p149
    %p152 = scmp.ne.s32.totalorder %s135, %s151
    %p153 = scmp.eq.s32.totalorder %s17, 0
    %p154 = por %p152, %p153
    %p155 = scmp.le.s32.totalorder 1, %s11
    %p156 = scmp.lt.s32.totalorder %s11, 3
    %p157 = pnand %p155, %p156
    %p158 = pneg %p157
    // Predicated region
    $region9: #{denoiser_forward.11} parent=5 // pred_check
      _
    $region10: #{denoiser_forward.11} parent=5 // pred_check_branch
      %160 = sbr.rel (%p157) target = $region12
    $region11: #{denoiser_forward.11} parent=5 // pred_region
      %s161 = ssub.s32 %s11, 1
      // Predicated region
      $region13: #{denoiser_forward.11} parent=11 // pred_check
        %p162 = pneg %p58
      $region14: #{denoiser_forward.11} parent=11 // pred_check_branch
        %164 = sbr.rel (%p162) target = $region16
      $region15: #{denoiser_forward.11} parent=11 // pred_region
        _
      $region16: #{denoiser_forward.11} parent=11 // pred_fallthru
        _
      // Predicated region
      $region17: #{denoiser_forward.11} parent=11 // pred_check
        %p165 = pneg %p79
      $region18: #{denoiser_forward.11} parent=11 // pred_check_branch
        %167 = sbr.rel (%p165) target = $region20
      $region19: #{denoiser_forward.11} parent=11 // pred_region
        _
      $region20: #{denoiser_forward.11} parent=11 // pred_fallthru
        _
      // Predicated region
      $region21: #{denoiser_forward.11} parent=11 // pred_check
        %p168 = pneg %p100
      $region22: #{denoiser_forward.11} parent=11 // pred_check_branch
        %170 = sbr.rel (%p168) target = $region24
      $region23: #{denoiser_forward.11} parent=11 // pred_region
        _
      $region24: #{denoiser_forward.11} parent=11 // pred_fallthru
        _
      // Predicated region
      $region25: #{denoiser_forward.11} parent=11 // pred_check
        %p171 = pneg %p121
      $region26: #{denoiser_forward.11} parent=11 // pred_check_branch
        %173 = sbr.rel (%p171) target = $region28
      $region27: #{denoiser_forward.11} parent=11 // pred_region
        _
      $region28: #{denoiser_forward.11} parent=11 // pred_fallthru
        _
    $region12: #{denoiser_forward.11} parent=5 // pred_fallthru
      _
    %p174 = scmp.lt.s32.totalorder %s11, 2
    // Predicated region
    $region29: #{denoiser_forward.11} parent=5 // pred_check
      %p175 = pneg %p174
    $region30: #{denoiser_forward.11} parent=5 // pred_check_branch
      %177 = sbr.rel (%p175) target = $region32
    $region31: #{denoiser_forward.11} parent=5 // pred_region
      // Predicated region
      $region33: #{denoiser_forward.11} parent=31 // pred_check
        %p178 = pneg %p31
      $region34: #{denoiser_forward.11} parent=31 // pred_check_branch
        %180 = sbr.rel (%p178) target = $region36
      $region35: #{denoiser_forward.11} parent=31 // pred_region
        %p181 = scmp.lt.s32.totalorder %s11, 1
        %s182 = scalar_select %p181, %s11, 1
        %s183 = smul.addr %s182, 13
        %s184 = smul.addr %s183, 4
        %s185 = scalar_lea.vmem %s0, %s184
      $region36: #{denoiser_forward.11} parent=31 // pred_fallthru
        _
    $region32: #{denoiser_forward.11} parent=5 // pred_fallthru
      _
    %p186 = scmp.le.s32.totalorder 1, %s11
    %p187 = scmp.lt.s32.totalorder %s11, 3
    %p188 = pnand %p186, %p187
    %p189 = pneg %p188
    // Predicated region
    $region37: #{denoiser_forward.11} parent=5 // pred_check
      _
    $region38: #{denoiser_forward.11} parent=5 // pred_check_branch
      %191 = sbr.rel (%p188) target = $region40
    $region39: #{denoiser_forward.11} parent=5 // pred_region
      %s192 = ssub.s32 %s11, 1
      %p193 = scmp.lt.s32.totalorder %s16, 1
      %s194 = scalar_select %p193, %s16, 1
      %s195 = smul.addr %s194, 13
      %s196 = smul.addr %s195, 4
      %s197 = scalar_lea.vmem %s0, %s196
      %p198 = pneg %p37
      %p199 = pneg %p34
      %p200 = pneg %p58
      %p201 = pneg %p55
      %p202 = pneg %p79
      %p203 = pneg %p76
      %p204 = pneg %p100
      %p205 = pneg %p97
      %p206 = pneg %p121
      %p207 = pneg %p118
      %p208 = pneg %p147
      %p209 = pneg %p144
      %p210 = scmp.lt.s32.totalorder %s16, 1
      %s211 = scalar_select %p210, %s16, 1
      %s212 = smul.addr %s211, 10
      %s213 = smul.addr %s212, 4
      %s214 = scalar_lea.vmem %s5, %s213
      %p215 = scmp.lt.s32.totalorder %s16, 1
      %s216 = scalar_select %p215, %s16, 1
      %s217 = smul.addr %s216, 13
      %s218 = smul.addr %s217, 4
      %s219 = scalar_lea.vmem %s0, %s218
      %p220 = scmp.lt.s32.totalorder %s16, 1
      %s221 = scalar_select %p220, %s16, 1
      %s222 = smul.addr %s221, 10
      %s223 = smul.addr %s222, 4
      %s224 = scalar_lea.vmem %s5, %s223
      %v226 = vlaneseq
      %v227 = vshrl.u32 %v226, 7
      %v228 = vadd.s32 %v227, 8
      %v229 = vadd.s32 %v227, 16
      %v230 = vadd.s32 %v227, 24
      %v231 = vadd.s32 %v227, 32
      %v232 = vadd.s32 %v227, 40
      %v233 = vadd.s32 %v227, 48
      %v234 = vadd.s32 %v227, 56
      %v235 = vadd.s32 %v227, 64
      %v236 = vadd.s32 %v227, 72
      %vm237 = vcmp.lt.s32.totalorder %v227, 0
      %v238 = vsub.s32 0, %v227
      %v239 = vsel %vm237, %v238, %v227
      %v240 = vmul.u32.u64.compose %v239, 3435973837
      %v241 = vextract.low.u32 %v240
      %v242 = vextract.high.u32 %v240
      %v243 = vshrl.u32 %v242, 3
      %v244 = vmul.u32 %v243, 10
      %v245 = vsub.s32 %v239, %v244
      %v246 = vsub.s32 0, %v245
      %v247 = vsel %vm237, %v246, %v245
      %vm248 = vcmp.lt.s32.totalorder %v228, 0
      %v249 = vsub.s32 0, %v228
      %v250 = vsel %vm248, %v249, %v228
      %v251 = vmul.u32.u64.compose %v250, 3435973837
      %v252 = vextract.low.u32 %v251
      %v253 = vextract.high.u32 %v251
      %v254 = vshrl.u32 %v253, 3
      %v255 = vmul.u32 %v254, 10
      %v256 = vsub.s32 %v250, %v255
      %v257 = vsub.s32 0, %v256
      %v258 = vsel %vm248, %v257, %v256
      %vm259 = vcmp.lt.s32.totalorder %v229, 0
      %v260 = vsub.s32 0, %v229
      %v261 = vsel %vm259, %v260, %v229
      %v262 = vmul.u32.u64.compose %v261, 3435973837
      %v263 = vextract.low.u32 %v262
      %v264 = vextract.high.u32 %v262
      %v265 = vshrl.u32 %v264, 3
      %v266 = vmul.u32 %v265, 10
      %v267 = vsub.s32 %v261, %v266
      %v268 = vsub.s32 0, %v267
      %v269 = vsel %vm259, %v268, %v267
      %vm270 = vcmp.lt.s32.totalorder %v230, 0
      %v271 = vsub.s32 0, %v230
      %v272 = vsel %vm270, %v271, %v230
      %v273 = vmul.u32.u64.compose %v272, 3435973837
      %v274 = vextract.low.u32 %v273
      %v275 = vextract.high.u32 %v273
      %v276 = vshrl.u32 %v275, 3
      %v277 = vmul.u32 %v276, 10
      %v278 = vsub.s32 %v272, %v277
      %v279 = vsub.s32 0, %v278
      %v280 = vsel %vm270, %v279, %v278
      %vm281 = vcmp.lt.s32.totalorder %v231, 0
      %v282 = vsub.s32 0, %v231
      %v283 = vsel %vm281, %v282, %v231
      %v284 = vmul.u32.u64.compose %v283, 3435973837
      %v285 = vextract.low.u32 %v284
      %v286 = vextract.high.u32 %v284
      %v287 = vshrl.u32 %v286, 3
      %v288 = vmul.u32 %v287, 10
      %v289 = vsub.s32 %v283, %v288
      %v290 = vsub.s32 0, %v289
      %v291 = vsel %vm281, %v290, %v289
      %vm292 = vcmp.lt.s32.totalorder %v232, 0
      %v293 = vsub.s32 0, %v232
      %v294 = vsel %vm292, %v293, %v232
      %v295 = vmul.u32.u64.compose %v294, 3435973837
      %v296 = vextract.low.u32 %v295
      %v297 = vextract.high.u32 %v295
      %v298 = vshrl.u32 %v297, 3
      %v299 = vmul.u32 %v298, 10
      %v300 = vsub.s32 %v294, %v299
      %v301 = vsub.s32 0, %v300
      %v302 = vsel %vm292, %v301, %v300
      %vm303 = vcmp.lt.s32.totalorder %v233, 0
      %v304 = vsub.s32 0, %v233
      %v305 = vsel %vm303, %v304, %v233
      %v306 = vmul.u32.u64.compose %v305, 3435973837
      %v307 = vextract.low.u32 %v306
      %v308 = vextract.high.u32 %v306
      %v309 = vshrl.u32 %v308, 3
      %v310 = vmul.u32 %v309, 10
      %v311 = vsub.s32 %v305, %v310
      %v312 = vsub.s32 0, %v311
      %v313 = vsel %vm303, %v312, %v311
      %vm314 = vcmp.lt.s32.totalorder %v234, 0
      %v315 = vsub.s32 0, %v234
      %v316 = vsel %vm314, %v315, %v234
      %v317 = vmul.u32.u64.compose %v316, 3435973837
      %v318 = vextract.low.u32 %v317
      %v319 = vextract.high.u32 %v317
      %v320 = vshrl.u32 %v319, 3
      %v321 = vmul.u32 %v320, 10
      %v322 = vsub.s32 %v316, %v321
      %v323 = vsub.s32 0, %v322
      %v324 = vsel %vm314, %v323, %v322
      %vm325 = vcmp.lt.s32.totalorder %v235, 0
      %v326 = vsub.s32 0, %v235
      %v327 = vsel %vm325, %v326, %v235
      %v328 = vmul.u32.u64.compose %v327, 3435973837
      %v329 = vextract.low.u32 %v328
      %v330 = vextract.high.u32 %v328
      %v331 = vshrl.u32 %v330, 3
      %v332 = vmul.u32 %v331, 10
      %v333 = vsub.s32 %v327, %v332
      %v334 = vsub.s32 0, %v333
      %v335 = vsel %vm325, %v334, %v333
      %vm336 = vcmp.lt.s32.totalorder %v236, 0
      %v337 = vsub.s32 0, %v236
      %v338 = vsel %vm336, %v337, %v236
      %v339 = vmul.u32.u64.compose %v338, 3435973837
      %v340 = vextract.low.u32 %v339
      %v341 = vextract.high.u32 %v339
      %v342 = vshrl.u32 %v341, 3
      %v343 = vmul.u32 %v342, 10
      %v344 = vsub.s32 %v338, %v343
      %v345 = vsub.s32 0, %v344
      %v346 = vsel %vm336, %v345, %v344
      %vm347 = vcmp.ne.s32.totalorder %v247, 0
      %vm348 = vcmp.ne.s32.totalorder %v258, 0
      %vm349 = vcmp.ne.s32.totalorder %v269, 0
      %vm350 = vcmp.ne.s32.totalorder %v280, 0
      %vm351 = vcmp.ne.s32.totalorder %v291, 0
      %vm352 = vcmp.ne.s32.totalorder %v302, 0
      %vm353 = vcmp.ne.s32.totalorder %v313, 0
      %vm354 = vcmp.ne.s32.totalorder %v324, 0
      %vm355 = vcmp.ne.s32.totalorder %v335, 0
      %vm356 = vcmp.ne.s32.totalorder %v346, 0
      %vm357 = vcmp.lt.s32.totalorder %v247, 0
      %vm358 = vcmp.lt.s32.totalorder %v258, 0
      %vm359 = vcmp.lt.s32.totalorder %v269, 0
      %vm360 = vcmp.lt.s32.totalorder %v280, 0
      %vm361 = vcmp.lt.s32.totalorder %v291, 0
      %vm362 = vcmp.lt.s32.totalorder %v302, 0
      %vm363 = vcmp.lt.s32.totalorder %v313, 0
      %vm364 = vcmp.lt.s32.totalorder %v324, 0
      %vm365 = vcmp.lt.s32.totalorder %v335, 0
      %vm366 = vcmp.lt.s32.totalorder %v346, 0
      %vm367 = vmand %vm357, %vm347
      %vm368 = vmand %vm358, %vm348
      %vm369 = vmand %vm359, %vm349
      %vm370 = vmand %vm360, %vm350
      %vm371 = vmand %vm361, %vm351
      %vm372 = vmand %vm362, %vm352
      %vm373 = vmand %vm363, %vm353
      %vm374 = vmand %vm364, %vm354
      %vm375 = vmand %vm365, %vm355
      %vm376 = vmand %vm366, %vm356
      %v377 = vadd.s32 %v247, 10
      %v378 = vadd.s32 %v258, 10
      %v379 = vadd.s32 %v269, 10
      %v380 = vadd.s32 %v280, 10
      %v381 = vadd.s32 %v291, 10
      %v382 = vadd.s32 %v302, 10
      %v383 = vadd.s32 %v313, 10
      %v384 = vadd.s32 %v324, 10
      %v385 = vadd.s32 %v335, 10
      %v386 = vadd.s32 %v346, 10
      %v387 = vsel %vm367, %v377, %v247
      %v388 = vsel %vm368, %v378, %v258
      %v389 = vsel %vm369, %v379, %v269
      %v390 = vsel %vm370, %v380, %v280
      %v391 = vsel %vm371, %v381, %v291
      %v392 = vsel %vm372, %v382, %v302
      %v393 = vsel %vm373, %v383, %v313
      %v394 = vsel %vm374, %v384, %v324
      %v395 = vsel %vm375, %v385, %v335
      %v396 = vsel %vm376, %v386, %v346
      %vm397 = vcmp.lt.s32.totalorder %v387, 8
      %vm398 = vcmp.lt.s32.totalorder %v388, 8
      %vm399 = vcmp.lt.s32.totalorder %v389, 8
      %vm400 = vcmp.lt.s32.totalorder %v390, 8
      %vm401 = vcmp.lt.s32.totalorder %v391, 8
      %vm402 = vcmp.lt.s32.totalorder %v392, 8
      %vm403 = vcmp.lt.s32.totalorder %v393, 8
      %vm404 = vcmp.lt.s32.totalorder %v394, 8
      %vm405 = vcmp.lt.s32.totalorder %v395, 8
      %vm406 = vcmp.lt.s32.totalorder %v396, 8
      %v407 = vld [vmem:[%s219] sm:$0xf]
      %v408 = vld [vmem:[%s219 + $0x4] sm:$0xf]
      %v409 = vld [vmem:[%s219 + $0x8] sm:$0xf]
      %v410 = vld [vmem:[%s219 + $0xc] sm:$0xf]
      %v411 = vld [vmem:[%s219 + $0x10] sm:$0xf]
      %v412 = vld [vmem:[%s219 + $0x14] sm:$0xf]
      %v413 = vld [vmem:[%s219 + $0x18] sm:$0xf]
      %v414 = vld [vmem:[%s219 + $0x1c] sm:$0xf]
      %v415 = vld [vmem:[%s219 + $0x20] sm:$0xf]
      %v416 = vld [vmem:[%s219 + $0x24] sm:$0xf]
      %v417 = vld [vmem:[%s219 + $0x28] sm:$0xf]
      %v418 = vld [vmem:[%s219 + $0x2c] sm:$0xf]
      %v419 = vld [vmem:[%s219 + $0x30] sm:$0x3]
      %v420 = vunpack.c.l.bf16 %v407
      %v421 = vunpack.c.l.bf16 %v408
      %v422 = vunpack.c.l.bf16 %v409
      %v423 = vunpack.c.l.bf16 %v410
      %v424 = vunpack.c.l.bf16 %v411
      %v425 = vunpack.c.l.bf16 %v412
      %v426 = vunpack.c.l.bf16 %v413
      %v427 = vunpack.c.l.bf16 %v414
      %v428 = vunpack.c.l.bf16 %v415
      %v429 = vunpack.c.l.bf16 %v416
      %v430 = vunpack.c.l.bf16 %v417
      %v431 = vunpack.c.l.bf16 %v418
      %v432 = vunpack.c.l.bf16 %v419
      %vm433 = vcmask 97280
      %434 = vst.msk [vmem:[#allocation2] sm:$0xff] %vm433, %v420
      %435 = vst.msk [vmem:[#allocation2 + $0x8] sm:$0xff] %vm433, %v421
      %436 = vst.msk [vmem:[#allocation2 + $0x10] sm:$0xff] %vm433, %v422
      %437 = vst.msk [vmem:[#allocation2 + $0x18] sm:$0xff] %vm433, %v423
      %438 = vst.msk [vmem:[#allocation2 + $0x20] sm:$0xff] %vm433, %v424
      %439 = vst.msk [vmem:[#allocation2 + $0x28] sm:$0xff] %vm433, %v425
      %440 = vst.msk [vmem:[#allocation2 + $0x30] sm:$0xff] %vm433, %v426
      %441 = vst.msk [vmem:[#allocation2 + $0x38] sm:$0xff] %vm433, %v427
      %442 = vst.msk [vmem:[#allocation2 + $0x40] sm:$0xff] %vm433, %v428
      %443 = vst.msk [vmem:[#allocation2 + $0x48] sm:$0xff] %vm433, %v429
      %444 = vst.msk [vmem:[#allocation2 + $0x50] sm:$0xff] %vm433, %v430
      %445 = vst.msk [vmem:[#allocation2 + $0x58] sm:$0xff] %vm433, %v431
      %vm446 = vcmask 93184
      %447 = vst.msk [vmem:[#allocation2 + $0x60] sm:$0xf] %vm446, %v432
      %v448 = vld [vmem:[#allocation2] sm:$0xff]
      %v449 = vld [vmem:[#allocation2 + $0x8] sm:$0xff]
      %v450 = vld [vmem:[#allocation2 + $0x10] sm:$0xff]
      %v451 = vld [vmem:[#allocation2 + $0x18] sm:$0xff]
      %v452 = vld [vmem:[#allocation2 + $0x20] sm:$0xff]
      %v453 = vld [vmem:[#allocation2 + $0x28] sm:$0xff]
      %v454 = vld [vmem:[#allocation2 + $0x30] sm:$0xff]
      %v455 = vld [vmem:[#allocation2 + $0x38] sm:$0xff]
      %v456 = vld [vmem:[#allocation2 + $0x40] sm:$0xff]
      %v457 = vld [vmem:[#allocation2 + $0x48] sm:$0xff]
      %v458 = vpack.c.bf16 %v449, %v448
      %v459 = vpack.c.bf16 %v451, %v450
      %v460 = vpack.c.bf16 %v453, %v452
      %v461 = vpack.c.bf16 %v455, %v454
      %v462 = vpack.c.bf16 %v457, %v456
      %v463 = vld [vmem:[%s1] sm:$0xf]
      %v464 = vld [vmem:[%s1 + $0x4] sm:$0x3]
      %v465 = vld [vmem:[#allocation2 + $0x1] sm:$0xff]
      %v466 = vld [vmem:[#allocation2 + $0x9] sm:$0xff]
      %v467 = vld [vmem:[#allocation2 + $0x11] sm:$0xff]
      %v468 = vld [vmem:[#allocation2 + $0x19] sm:$0xff]
      %v469 = vld [vmem:[#allocation2 + $0x21] sm:$0xff]
      %v470 = vld [vmem:[#allocation2 + $0x29] sm:$0xff]
      %v471 = vld [vmem:[#allocation2 + $0x31] sm:$0xff]
      %v472 = vld [vmem:[#allocation2 + $0x39] sm:$0xff]
      %v473 = vld [vmem:[#allocation2 + $0x41] sm:$0xff]
      %v474 = vld [vmem:[#allocation2 + $0x49] sm:$0xff]
      %v475 = vpack.c.bf16 %v466, %v465
      %v476 = vpack.c.bf16 %v468, %v467
      %v477 = vpack.c.bf16 %v470, %v469
      %v478 = vpack.c.bf16 %v472, %v471
      %v479 = vpack.c.bf16 %v474, %v473
      %s480 = scalar_lea.vmem %s1, 8
      %v481 = vld [vmem:[%s480] sm:$0xf]
      %v482 = vld [vmem:[%s480 + $0x4] sm:$0x3]
      %v485 = vunpack.c.l.b16 %v481
      %v486 = vunpack.c.l.b16 %v482
      %v487 = vpack.c.b16 %v486, %v485
      %v489 = vsel %vm433, %v475, 0
      %v492 = vsel %vm433, %v476, 0
      %v495 = vsel %vm433, %v477, 0
      %v498 = vsel %vm433, %v478, 0
      %v501 = vsel %vm433, %v479, 0
      %vm503 = vcmask 1045504
      %v505 = vsel %vm503, %v487, 0
      %507 = vmatprep.subr.bf16.mxu0 0
      %508 = vmatpush1.bf16.msra.mxu0 0
      %509 = vmatprep.subr.bf16.mxu0 0
      %510 = vmatpush1.bf16.msra.mxu0 0
      %511 = vmatprep.subr.bf16.mxu0 0
      %512 = vmatpush1.bf16.msra.mxu0 0
      %513 = vmatprep.subr.bf16.mxu0 0
      %514 = vmatpush1.bf16.msra.mxu0 0
      %515 = vmatprep.subr.bf16.mxu0 0
      %516 = vmatpush1.bf16.msra.mxu0 0
      %517 = vmatprep.subr.bf16.mxu0 0
      %518 = vmatpush1.bf16.msra.mxu0 0
      %519 = vmatprep.subr.bf16.mxu0 0
      %520 = vmatpush1.bf16.msra.mxu0 0
      %521 = vmatprep.subr.bf16.mxu0 0
      %522 = vmatpush1.bf16.msra.mxu0 %v505
      %523 = vmatprep.subr.bf16.mxu0 0
      %524 = vmatpush2.bf16.msra.mxu0 0
      %525 = vmatprep.subr.bf16.mxu0 0
      %526 = vmatpush2.bf16.msra.mxu0 0
      %527 = vmatprep.subr.bf16.mxu0 0
      %528 = vmatpush2.bf16.msra.mxu0 0
      %529 = vmatprep.subr.bf16.mxu0 0
      %530 = vmatpush2.bf16.msra.mxu0 0
      %531 = vmatprep.subr.bf16.mxu0 0
      %532 = vmatpush2.bf16.msra.mxu0 0
      %533 = vmatprep.subr.bf16.mxu0 0
      %534 = vmatpush2.bf16.msra.mxu0 0
      %535 = vmatprep.subr.bf16.mxu0 0
      %536 = vmatpush2.bf16.msra.mxu0 0
      %537 = vmatprep.subr.bf16.mxu0 0
      %538 = vmatpush2.bf16.msra.mxu0 0
      %539 = vmatprep.mubr.bf16.mxu0 0
      %540 = vmatmul.mubr.bf16.gmra.mxu0 %v489
      %v541 = vpop.f32.mrf.mxu0
      %v542 = vadd.f32 0.0, %v541
      %v543 = vpop.f32.mrf.mxu0
      %v544 = vpop.f32.mrf.mxu0
      %v545 = vadd.f32 0.0, %v544
      %v546 = vpop.f32.mrf.mxu0
      %547 = vmatprep.mubr.bf16.mxu0 0
      %548 = vmatmul.mubr.bf16.gmra.mxu0 %v492
      %v549 = vpop.f32.mrf.mxu0
      %v550 = vadd.f32 0.0, %v549
      %v551 = vpop.f32.mrf.mxu0
      %v552 = vpop.f32.mrf.mxu0
      %v553 = vadd.f32 0.0, %v552
      %v554 = vpop.f32.mrf.mxu0
      %555 = vmatprep.mubr.bf16.mxu0 0
      %556 = vmatmul.mubr.bf16.gmra.mxu0 %v495
      %v557 = vpop.f32.mrf.mxu0
      %v558 = vadd.f32 0.0, %v557
      %v559 = vpop.f32.mrf.mxu0
      %v560 = vpop.f32.mrf.mxu0
      %v561 = vadd.f32 0.0, %v560
      %v562 = vpop.f32.mrf.mxu0
      %563 = vmatprep.mubr.bf16.mxu0 0
      %564 = vmatmul.mubr.bf16.gmra.mxu0 %v498
      %v565 = vpop.f32.mrf.mxu0
      %v566 = vadd.f32 0.0, %v565
      %v567 = vpop.f32.mrf.mxu0
      %v568 = vpop.f32.mrf.mxu0
      %v569 = vadd.f32 0.0, %v568
      %v570 = vpop.f32.mrf.mxu0
      %571 = vmatprep.mubr.bf16.mxu0 0
      %572 = vmatmul.mubr.bf16.gmra.mxu0 %v501
      %v573 = vpop.f32.mrf.mxu0
      %v574 = vadd.f32 0.0, %v573
      %v575 = vpop.f32.mrf.mxu0
      %v576 = vpop.f32.mrf.mxu0
      %v577 = vadd.f32 0.0, %v576
      %v578 = vpop.f32.mrf.mxu0
      %579 = vdwg.mxu0
      %v582 = vunpack.c.l.b16 %v463
      %v583 = vunpack.c.l.b16 %v464
      %v584 = vpack.c.b16 %v583, %v582
      %v586 = vsel %vm433, %v458, 0
      %v589 = vsel %vm433, %v459, 0
      %v592 = vsel %vm433, %v460, 0
      %v595 = vsel %vm433, %v461, 0
      %v598 = vsel %vm433, %v462, 0
      %v601 = vsel %vm503, %v584, 0
      %603 = vmatprep.subr.bf16.mxu0 0
      %604 = vmatpush1.bf16.msra.mxu0 0
      %605 = vmatprep.subr.bf16.mxu0 0
      %606 = vmatpush1.bf16.msra.mxu0 0
      %607 = vmatprep.subr.bf16.mxu0 0
      %608 = vmatpush1.bf16.msra.mxu0 0
      %609 = vmatprep.subr.bf16.mxu0 0
      %610 = vmatpush1.bf16.msra.mxu0 0
      %611 = vmatprep.subr.bf16.mxu0 0
      %612 = vmatpush1.bf16.msra.mxu0 0
      %613 = vmatprep.subr.bf16.mxu0 0
      %614 = vmatpush1.bf16.msra.mxu0 0
      %615 = vmatprep.subr.bf16.mxu0 0
      %616 = vmatpush1.bf16.msra.mxu0 0
      %617 = vmatprep.subr.bf16.mxu0 0
      %618 = vmatpush1.bf16.msra.mxu0 %v601
      %619 = vmatprep.subr.bf16.mxu0 0
      %620 = vmatpush2.bf16.msra.mxu0 0
      %621 = vmatprep.subr.bf16.mxu0 0
      %622 = vmatpush2.bf16.msra.mxu0 0
      %623 = vmatprep.subr.bf16.mxu0 0
      %624 = vmatpush2.bf16.msra.mxu0 0
      %625 = vmatprep.subr.bf16.mxu0 0
      %626 = vmatpush2.bf16.msra.mxu0 0
      %627 = vmatprep.subr.bf16.mxu0 0
      %628 = vmatpush2.bf16.msra.mxu0 0
      %629 = vmatprep.subr.bf16.mxu0 0
      %630 = vmatpush2.bf16.msra.mxu0 0
      %631 = vmatprep.subr.bf16.mxu0 0
      %632 = vmatpush2.bf16.msra.mxu0 0
      %633 = vmatprep.subr.bf16.mxu0 0
      %634 = vmatpush2.bf16.msra.mxu0 0
      %635 = vmatprep.mubr.bf16.mxu0 0
      %636 = vmatmul.mubr.bf16.gmra.mxu0 %v586
      %v637 = vpop.f32.mrf.mxu0
      %v638 = vadd.f32 %v542, %v637
      %v639 = vpop.f32.mrf.mxu0
      %v640 = vpop.f32.mrf.mxu0
      %v641 = vadd.f32 %v545, %v640
      %v642 = vpop.f32.mrf.mxu0
      %643 = vmatprep.mubr.bf16.mxu0 0
      %644 = vmatmul.mubr.bf16.gmra.mxu0 %v589
      %v645 = vpop.f32.mrf.mxu0
      %v646 = vadd.f32 %v550, %v645
      %v647 = vpop.f32.mrf.mxu0
      %v648 = vpop.f32.mrf.mxu0
      %v649 = vadd.f32 %v553, %v648
      %v650 = vpop.f32.mrf.mxu0
      %651 = vmatprep.mubr.bf16.mxu0 0
      %652 = vmatmul.mubr.bf16.gmra.mxu0 %v592
      %v653 = vpop.f32.mrf.mxu0
      %v654 = vadd.f32 %v558, %v653
      %v655 = vpop.f32.mrf.mxu0
      %v656 = vpop.f32.mrf.mxu0
      %v657 = vadd.f32 %v561, %v656
      %v658 = vpop.f32.mrf.mxu0
      %659 = vmatprep.mubr.bf16.mxu0 0
      %660 = vmatmul.mubr.bf16.gmra.mxu0 %v595
      %v661 = vpop.f32.mrf.mxu0
      %v662 = vadd.f32 %v566, %v661
      %v663 = vpop.f32.mrf.mxu0
      %v664 = vpop.f32.mrf.mxu0
      %v665 = vadd.f32 %v569, %v664
      %v666 = vpop.f32.mrf.mxu0
      %667 = vmatprep.mubr.bf16.mxu0 0
      %668 = vmatmul.mubr.bf16.gmra.mxu0 %v598
      %v669 = vpop.f32.mrf.mxu0
      %v670 = vadd.f32 %v574, %v669
      %v671 = vpop.f32.mrf.mxu0
      %v672 = vpop.f32.mrf.mxu0
      %v673 = vadd.f32 %v577, %v672
      %v674 = vpop.f32.mrf.mxu0
      %675 = vdwg.mxu0
      %v676 = vld [vmem:[#allocation2 + $0xa] sm:$0xff]
      %v677 = vld [vmem:[#allocation2 + $0x12] sm:$0xff]
      %v678 = vld [vmem:[#allocation2 + $0x1a] sm:$0xff]
      %v679 = vld [vmem:[#allocation2 + $0x22] sm:$0xff]
      %v680 = vld [vmem:[#allocation2 + $0x2a] sm:$0xff]
      %v681 = vld [vmem:[#allocation2 + $0x32] sm:$0xff]
      %v682 = vld [vmem:[#allocation2 + $0x3a] sm:$0xff]
      %v683 = vld [vmem:[#allocation2 + $0x42] sm:$0xff]
      %v684 = vld [vmem:[#allocation2 + $0x4a] sm:$0xff]
      %v685 = vld [vmem:[#allocation2 + $0x52] sm:$0xff]
      %v686 = vpack.c.bf16 %v677, %v676
      %v687 = vpack.c.bf16 %v679, %v678
      %v688 = vpack.c.bf16 %v681, %v680
      %v689 = vpack.c.bf16 %v683, %v682
      %v690 = vpack.c.bf16 %v685, %v684
      %s691 = scalar_lea.vmem %s1, 16
      %v692 = vld [vmem:[%s691] sm:$0xf]
      %v693 = vld [vmem:[%s691 + $0x4] sm:$0x3]
      %v696 = vunpack.c.l.b16 %v692
      %v697 = vunpack.c.l.b16 %v693
      %v698 = vpack.c.b16 %v697, %v696
      %v700 = vsel %vm433, %v686, 0
      %v703 = vsel %vm433, %v687, 0
      %v706 = vsel %vm433, %v688, 0
      %v709 = vsel %vm433, %v689, 0
      %v712 = vsel %vm433, %v690, 0
      %v715 = vsel %vm503, %v698, 0
      %717 = vmatprep.subr.bf16.mxu0 0
      %718 = vmatpush1.bf16.msra.mxu0 0
      %719 = vmatprep.subr.bf16.mxu0 0
      %720 = vmatpush1.bf16.msra.mxu0 0
      %721 = vmatprep.subr.bf16.mxu0 0
      %722 = vmatpush1.bf16.msra.mxu0 0
      %723 = vmatprep.subr.bf16.mxu0 0
      %724 = vmatpush1.bf16.msra.mxu0 0
      %725 = vmatprep.subr.bf16.mxu0 0
      %726 = vmatpush1.bf16.msra.mxu0 0
      %727 = vmatprep.subr.bf16.mxu0 0
      %728 = vmatpush1.bf16.msra.mxu0 0
      %729 = vmatprep.subr.bf16.mxu0 0
      %730 = vmatpush1.bf16.msra.mxu0 0
      %731 = vmatprep.subr.bf16.mxu0 0
      %732 = vmatpush1.bf16.msra.mxu0 %v715
      %733 = vmatprep.subr.bf16.mxu0 0
      %734 = vmatpush2.bf16.msra.mxu0 0
      %735 = vmatprep.subr.bf16.mxu0 0
      %736 = vmatpush2.bf16.msra.mxu0 0
      %737 = vmatprep.subr.bf16.mxu0 0
      %738 = vmatpush2.bf16.msra.mxu0 0
      %739 = vmatprep.subr.bf16.mxu0 0
      %740 = vmatpush2.bf16.msra.mxu0 0
      %741 = vmatprep.subr.bf16.mxu0 0
      %742 = vmatpush2.bf16.msra.mxu0 0
      %743 = vmatprep.subr.bf16.mxu0 0
      %744 = vmatpush2.bf16.msra.mxu0 0
      %745 = vmatprep.subr.bf16.mxu0 0
      %746 = vmatpush2.bf16.msra.mxu0 0
      %747 = vmatprep.subr.bf16.mxu0 0
      %748 = vmatpush2.bf16.msra.mxu0 0
      %749 = vmatprep.mubr.bf16.mxu0 0
      %750 = vmatmul.mubr.bf16.gmra.mxu0 %v700
      %v751 = vpop.f32.mrf.mxu0
      %v752 = vadd.f32 0.0, %v751
      %v753 = vpop.f32.mrf.mxu0
      %v754 = vpop.f32.mrf.mxu0
      %v755 = vadd.f32 0.0, %v754
      %v756 = vpop.f32.mrf.mxu0
      %757 = vmatprep.mubr.bf16.mxu0 0
      %758 = vmatmul.mubr.bf16.gmra.mxu0 %v703
      %v759 = vpop.f32.mrf.mxu0
      %v760 = vadd.f32 0.0, %v759
      %v761 = vpop.f32.mrf.mxu0
      %v762 = vpop.f32.mrf.mxu0
      %v763 = vadd.f32 0.0, %v762
      %v764 = vpop.f32.mrf.mxu0
      %765 = vmatprep.mubr.bf16.mxu0 0
      %766 = vmatmul.mubr.bf16.gmra.mxu0 %v706
      %v767 = vpop.f32.mrf.mxu0
      %v768 = vadd.f32 0.0, %v767
      %v769 = vpop.f32.mrf.mxu0
      %v770 = vpop.f32.mrf.mxu0
      %v771 = vadd.f32 0.0, %v770
      %v772 = vpop.f32.mrf.mxu0
      %773 = vmatprep.mubr.bf16.mxu0 0
      %774 = vmatmul.mubr.bf16.gmra.mxu0 %v709
      %v775 = vpop.f32.mrf.mxu0
      %v776 = vadd.f32 0.0, %v775
      %v777 = vpop.f32.mrf.mxu0
      %v778 = vpop.f32.mrf.mxu0
      %v779 = vadd.f32 0.0, %v778
      %v780 = vpop.f32.mrf.mxu0
      %781 = vmatprep.mubr.bf16.mxu0 0
      %782 = vmatmul.mubr.bf16.gmra.mxu0 %v712
      %v783 = vpop.f32.mrf.mxu0
      %v784 = vadd.f32 0.0, %v783
      %v785 = vpop.f32.mrf.mxu0
      %v786 = vpop.f32.mrf.mxu0
      %v787 = vadd.f32 0.0, %v786
      %v788 = vpop.f32.mrf.mxu0
      %789 = vdwg.mxu0
      %v790 = vadd.f32 %v638, %v752
      %v791 = vadd.f32 %v641, %v755
      %v792 = vadd.f32 %v646, %v760
      %v793 = vadd.f32 %v649, %v763
      %v794 = vadd.f32 %v654, %v768
      %v795 = vadd.f32 %v657, %v771
      %v796 = vadd.f32 %v662, %v776
      %v797 = vadd.f32 %v665, %v779
      %v798 = vadd.f32 %v670, %v784
      %v799 = vadd.f32 %v673, %v787
      %v800 = vld [vmem:[#allocation2 + $0xb] sm:$0xff]
      %v801 = vld [vmem:[#allocation2 + $0x13] sm:$0xff]
      %v802 = vld [vmem:[#allocation2 + $0x1b] sm:$0xff]
      %v803 = vld [vmem:[#allocation2 + $0x23] sm:$0xff]
      %v804 = vld [vmem:[#allocation2 + $0x2b] sm:$0xff]
      %v805 = vld [vmem:[#allocation2 + $0x33] sm:$0xff]
      %v806 = vld [vmem:[#allocation2 + $0x3b] sm:$0xff]
      %v807 = vld [vmem:[#allocation2 + $0x43] sm:$0xff]
      %v808 = vld [vmem:[#allocation2 + $0x4b] sm:$0xff]
      %v809 = vld [vmem:[#allocation2 + $0x53] sm:$0xff]
      %v810 = vpack.c.bf16 %v801, %v800
      %v811 = vpack.c.bf16 %v803, %v802
      %v812 = vpack.c.bf16 %v805, %v804
      %v813 = vpack.c.bf16 %v807, %v806
      %v814 = vpack.c.bf16 %v809, %v808
      %s815 = scalar_lea.vmem %s1, 24
      %v816 = vld [vmem:[%s815] sm:$0xf]
      %v817 = vld [vmem:[%s815 + $0x4] sm:$0x3]
      %v820 = vunpack.c.l.b16 %v816
      %v821 = vunpack.c.l.b16 %v817
      %v822 = vpack.c.b16 %v821, %v820
      %v824 = vsel %vm433, %v810, 0
      %v827 = vsel %vm433, %v811, 0
      %v830 = vsel %vm433, %v812, 0
      %v833 = vsel %vm433, %v813, 0
      %v836 = vsel %vm433, %v814, 0
      %v839 = vsel %vm503, %v822, 0
      %841 = vmatprep.subr.bf16.mxu0 0
      %842 = vmatpush1.bf16.msra.mxu0 0
      %843 = vmatprep.subr.bf16.mxu0 0
      %844 = vmatpush1.bf16.msra.mxu0 0
      %845 = vmatprep.subr.bf16.mxu0 0
      %846 = vmatpush1.bf16.msra.mxu0 0
      %847 = vmatprep.subr.bf16.mxu0 0
      %848 = vmatpush1.bf16.msra.mxu0 0
      %849 = vmatprep.subr.bf16.mxu0 0
      %850 = vmatpush1.bf16.msra.mxu0 0
      %851 = vmatprep.subr.bf16.mxu0 0
      %852 = vmatpush1.bf16.msra.mxu0 0
      %853 = vmatprep.subr.bf16.mxu0 0
      %854 = vmatpush1.bf16.msra.mxu0 0
      %855 = vmatprep.subr.bf16.mxu0 0
      %856 = vmatpush1.bf16.msra.mxu0 %v839
      %857 = vmatprep.subr.bf16.mxu0 0
      %858 = vmatpush2.bf16.msra.mxu0 0
      %859 = vmatprep.subr.bf16.mxu0 0
      %860 = vmatpush2.bf16.msra.mxu0 0
      %861 = vmatprep.subr.bf16.mxu0 0
      %862 = vmatpush2.bf16.msra.mxu0 0
      %863 = vmatprep.subr.bf16.mxu0 0
      %864 = vmatpush2.bf16.msra.mxu0 0
      %865 = vmatprep.subr.bf16.mxu0 0
      %866 = vmatpush2.bf16.msra.mxu0 0
      %867 = vmatprep.subr.bf16.mxu0 0
      %868 = vmatpush2.bf16.msra.mxu0 0
      %869 = vmatprep.subr.bf16.mxu0 0
      %870 = vmatpush2.bf16.msra.mxu0 0
      %871 = vmatprep.subr.bf16.mxu0 0
      %872 = vmatpush2.bf16.msra.mxu0 0
      %873 = vmatprep.mubr.bf16.mxu0 0
      %874 = vmatmul.mubr.bf16.gmra.mxu0 %v824
      %v875 = vpop.f32.mrf.mxu0
      %v876 = vadd.f32 0.0, %v875
      %v877 = vpop.f32.mrf.mxu0
      %v878 = vpop.f32.mrf.mxu0
      %v879 = vadd.f32 0.0, %v878
      %v880 = vpop.f32.mrf.mxu0
      %881 = vmatprep.mubr.bf16.mxu0 0
      %882 = vmatmul.mubr.bf16.gmra.mxu0 %v827
      %v883 = vpop.f32.mrf.mxu0
      %v884 = vadd.f32 0.0, %v883
      %v885 = vpop.f32.mrf.mxu0
      %v886 = vpop.f32.mrf.mxu0
      %v887 = vadd.f32 0.0, %v886
      %v888 = vpop.f32.mrf.mxu0
      %889 = vmatprep.mubr.bf16.mxu0 0
      %890 = vmatmul.mubr.bf16.gmra.mxu0 %v830
      %v891 = vpop.f32.mrf.mxu0
      %v892 = vadd.f32 0.0, %v891
      %v893 = vpop.f32.mrf.mxu0
      %v894 = vpop.f32.mrf.mxu0
      %v895 = vadd.f32 0.0, %v894
      %v896 = vpop.f32.mrf.mxu0
      %897 = vmatprep.mubr.bf16.mxu0 0
      %898 = vmatmul.mubr.bf16.gmra.mxu0 %v833
      %v899 = vpop.f32.mrf.mxu0
      %v900 = vadd.f32 0.0, %v899
      %v901 = vpop.f32.mrf.mxu0
      %v902 = vpop.f32.mrf.mxu0
      %v903 = vadd.f32 0.0, %v902
      %v904 = vpop.f32.mrf.mxu0
      %905 = vmatprep.mubr.bf16.mxu0 0
      %906 = vmatmul.mubr.bf16.gmra.mxu0 %v836
      %v907 = vpop.f32.mrf.mxu0
      %v908 = vadd.f32 0.0, %v907
      %v909 = vpop.f32.mrf.mxu0
      %v910 = vpop.f32.mrf.mxu0
      %v911 = vadd.f32 0.0, %v910
      %v912 = vpop.f32.mrf.mxu0
      %913 = vdwg.mxu0
      %v914 = vadd.f32 %v790, %v876
      %v915 = vadd.f32 %v791, %v879
      %v916 = vadd.f32 %v792, %v884
      %v917 = vadd.f32 %v793, %v887
      %v918 = vadd.f32 %v794, %v892
      %v919 = vadd.f32 %v795, %v895
      %v920 = vadd.f32 %v796, %v900
      %v921 = vadd.f32 %v797, %v903
      %v922 = vadd.f32 %v798, %v908
      %v923 = vadd.f32 %v799, %v911
      %v924 = vld [vmem:[%s2] sm:$0x1]
      %v926 = vlaneseq
      %v927 = vshrl.u32 %v926, 7
      %v928 = vsub.s32 0, %v927
      %v929 = vrot.slane %v924, %v928
      %v931 = vadd.f32 %v914, %v929
      %v932 = vadd.f32 %v915, %v929
      %v933 = vadd.f32 %v916, %v929
      %v934 = vadd.f32 %v917, %v929
      %v935 = vadd.f32 %v918, %v929
      %v936 = vadd.f32 %v919, %v929
      %v937 = vadd.f32 %v920, %v929
      %v938 = vadd.f32 %v921, %v929
      %v939 = vadd.f32 %v922, %v929
      %v940 = vadd.f32 %v923, %v929
      %v941 = vmax.f32 %v931, 0.0
      %v942 = vmax.f32 %v932, 0.0
      %v943 = vmax.f32 %v933, 0.0
      %v944 = vmax.f32 %v934, 0.0
      %v945 = vmax.f32 %v935, 0.0
      %v946 = vmax.f32 %v936, 0.0
      %v947 = vmax.f32 %v937, 0.0
      %v948 = vmax.f32 %v938, 0.0
      %v949 = vmax.f32 %v939, 0.0
      %v950 = vmax.f32 %v940, 0.0
      %v951 = vsel %vm397, 1, 0
      %v952 = vsel %vm398, 1, 0
      %v953 = vsel %vm399, 1, 0
      %v954 = vsel %vm400, 1, 0
      %v955 = vsel %vm401, 1, 0
      %v956 = vsel %vm402, 1, 0
      %v957 = vsel %vm403, 1, 0
      %v958 = vsel %vm404, 1, 0
      %v959 = vsel %vm405, 1, 0
      %v960 = vsel %vm406, 1, 0
      %vm961 = vcmp.eq.s32.totalorder %v951, 1
      %vm962 = vcmp.eq.s32.totalorder %v952, 1
      %vm963 = vcmp.eq.s32.totalorder %v953, 1
      %vm964 = vcmp.eq.s32.totalorder %v954, 1
      %vm965 = vcmp.eq.s32.totalorder %v955, 1
      %vm966 = vcmp.eq.s32.totalorder %v956, 1
      %vm967 = vcmp.eq.s32.totalorder %v957, 1
      %vm968 = vcmp.eq.s32.totalorder %v958, 1
      %vm969 = vcmp.eq.s32.totalorder %v959, 1
      %vm970 = vcmp.eq.s32.totalorder %v960, 1
      %v971 = vsel %vm961, %v941, 0.0
      %v972 = vsel %vm962, %v942, 0.0
      %v973 = vsel %vm963, %v943, 0.0
      %v974 = vsel %vm964, %v944, 0.0
      %v975 = vsel %vm965, %v945, 0.0
      %v976 = vsel %vm966, %v946, 0.0
      %v977 = vsel %vm967, %v947, 0.0
      %v978 = vsel %vm968, %v948, 0.0
      %v979 = vsel %vm969, %v949, 0.0
      %v980 = vsel %vm970, %v950, 0.0
      %vm981 = vcmask 64512
      %982 = vst.msk [vmem:[#allocation3] sm:$0xff] %vm981, 0.0
      %983 = vst.msk [vmem:[#allocation3 + $0x8] sm:$0xff] %vm981, 0.0
      %984 = vst.msk [vmem:[#allocation3 + $0x10] sm:$0xff] %vm981, 0.0
      %985 = vst.msk [vmem:[#allocation3 + $0x18] sm:$0xff] %vm981, 0.0
      %986 = vst.msk [vmem:[#allocation3 + $0x20] sm:$0xff] %vm981, 0.0
      %987 = vst.msk [vmem:[#allocation3 + $0x28] sm:$0xff] %vm981, 0.0
      %988 = vst.msk [vmem:[#allocation3 + $0x30] sm:$0xff] %vm981, 0.0
      %989 = vst.msk [vmem:[#allocation3 + $0x38] sm:$0xff] %vm981, 0.0
      %990 = vst.msk [vmem:[#allocation3 + $0x40] sm:$0xff] %vm981, 0.0
      %991 = vst.msk [vmem:[#allocation3 + $0x48] sm:$0xff] %vm981, 0.0
      %992 = vst.msk [vmem:[#allocation3 + $0x50] sm:$0xff] %vm981, 0.0
      %993 = vst.msk [vmem:[#allocation3 + $0x58] sm:$0xff] %vm981, 0.0
      %994 = vst.msk [vmem:[#allocation3 + $0x60] sm:$0xff] %vm981, 0.0
      %vm995 = vcmask 62464
      %996 = vst.msk [vmem:[#allocation3 + $0x68] sm:$0x3f] %vm995, 0.0
      %997 = vst.msk [vmem:[#allocation3 + $0xb] sm:$0xff] %vm981, %v971
      %998 = vst.msk [vmem:[#allocation3 + $0x13] sm:$0xff] %vm981, %v972
      %999 = vst.msk [vmem:[#allocation3 + $0x1b] sm:$0xff] %vm981, %v973
      %1000 = vst.msk [vmem:[#allocation3 + $0x23] sm:$0xff] %vm981, %v974
      %1001 = vst.msk [vmem:[#allocation3 + $0x2b] sm:$0xff] %vm981, %v975
      %1002 = vst.msk [vmem:[#allocation3 + $0x33] sm:$0xff] %vm981, %v976
      %1003 = vst.msk [vmem:[#allocation3 + $0x3b] sm:$0xff] %vm981, %v977
      %1004 = vst.msk [vmem:[#allocation3 + $0x43] sm:$0xff] %vm981, %v978
      %1005 = vst.msk [vmem:[#allocation3 + $0x4b] sm:$0xff] %vm981, %v979
      %1006 = vst.msk [vmem:[#allocation3 + $0x53] sm:$0xff] %vm981, %v980
      %v1007 = vld [vmem:[#allocation3] sm:$0xff]
      %v1008 = vld [vmem:[#allocation3 + $0x8] sm:$0xff]
      %v1009 = vld [vmem:[#allocation3 + $0x10] sm:$0xff]
      %v1010 = vld [vmem:[#allocation3 + $0x18] sm:$0xff]
      %v1011 = vld [vmem:[#allocation3 + $0x20] sm:$0xff]
      %v1012 = vld [vmem:[#allocation3 + $0x28] sm:$0xff]
      %v1013 = vld [vmem:[#allocation3 + $0x30] sm:$0xff]
      %v1014 = vld [vmem:[#allocation3 + $0x38] sm:$0xff]
      %v1015 = vld [vmem:[#allocation3 + $0x40] sm:$0xff]
      %v1016 = vld [vmem:[#allocation3 + $0x48] sm:$0xff]
      %v1017 = vpack.c.bf16 %v1008, %v1007
      %v1018 = vpack.c.bf16 %v1010, %v1009
      %v1019 = vpack.c.bf16 %v1012, %v1011
      %v1020 = vpack.c.bf16 %v1014, %v1013
      %v1021 = vpack.c.bf16 %v1016, %v1015
      %v1022 = vld [vmem:[%s3] sm:$0xf]
      %v1023 = vld [vmem:[#allocation3 + $0x1] sm:$0xff]
      %v1024 = vld [vmem:[#allocation3 + $0x9] sm:$0xff]
      %v1025 = vld [vmem:[#allocation3 + $0x11] sm:$0xff]
      %v1026 = vld [vmem:[#allocation3 + $0x19] sm:$0xff]
      %v1027 = vld [vmem:[#allocation3 + $0x21] sm:$0xff]
      %v1028 = vld [vmem:[#allocation3 + $0x29] sm:$0xff]
      %v1029 = vld [vmem:[#allocation3 + $0x31] sm:$0xff]
      %v1030 = vld [vmem:[#allocation3 + $0x39] sm:$0xff]
      %v1031 = vld [vmem:[#allocation3 + $0x41] sm:$0xff]
      %v1032 = vld [vmem:[#allocation3 + $0x49] sm:$0xff]
      %v1033 = vpack.c.bf16 %v1024, %v1023
      %v1034 = vpack.c.bf16 %v1026, %v1025
      %v1035 = vpack.c.bf16 %v1028, %v1027
      %v1036 = vpack.c.bf16 %v1030, %v1029
      %v1037 = vpack.c.bf16 %v1032, %v1031
      %s1038 = scalar_lea.vmem %s3, 4
      %v1039 = vld [vmem:[%s1038] sm:$0xf]
      %v1041 = vsel %vm981, %v1033, 0
      %v1044 = vsel %vm981, %v1034, 0
      %v1047 = vsel %vm981, %v1035, 0
      %v1050 = vsel %vm981, %v1036, 0
      %v1053 = vsel %vm981, %v1037, 0
      %vm1055 = vcmask 1043456
      %v1057 = vsel %vm1055, %v1039, 0
      %1059 = vmatprep.subr.bf16.mxu0 0
      %1060 = vmatpush1.bf16.msra.mxu0 0
      %1061 = vmatprep.subr.bf16.mxu0 0
      %1062 = vmatpush1.bf16.msra.mxu0 0
      %1063 = vmatprep.subr.bf16.mxu0 0
      %1064 = vmatpush1.bf16.msra.mxu0 0
      %1065 = vmatprep.subr.bf16.mxu0 0
      %1066 = vmatpush1.bf16.msra.mxu0 0
      %1067 = vmatprep.subr.bf16.mxu0 0
      %1068 = vmatpush1.bf16.msra.mxu0 0
      %1069 = vmatprep.subr.bf16.mxu0 0
      %1070 = vmatpush1.bf16.msra.mxu0 0
      %1071 = vmatprep.subr.bf16.mxu0 0
      %1072 = vmatpush1.bf16.msra.mxu0 0
      %1073 = vmatprep.subr.bf16.mxu0 0
      %1074 = vmatpush1.bf16.msra.mxu0 %v1057
      %1075 = vmatprep.subr.bf16.mxu0 0
      %1076 = vmatpush2.bf16.msra.mxu0 0
      %1077 = vmatprep.subr.bf16.mxu0 0
      %1078 = vmatpush2.bf16.msra.mxu0 0
      %1079 = vmatprep.subr.bf16.mxu0 0
      %1080 = vmatpush2.bf16.msra.mxu0 0
      %1081 = vmatprep.subr.bf16.mxu0 0
      %1082 = vmatpush2.bf16.msra.mxu0 0
      %1083 = vmatprep.subr.bf16.mxu0 0
      %1084 = vmatpush2.bf16.msra.mxu0 0
      %1085 = vmatprep.subr.bf16.mxu0 0
      %1086 = vmatpush2.bf16.msra.mxu0 0
      %1087 = vmatprep.subr.bf16.mxu0 0
      %1088 = vmatpush2.bf16.msra.mxu0 0
      %1089 = vmatprep.subr.bf16.mxu0 0
      %1090 = vmatpush2.bf16.msra.mxu0 0
      %1091 = vmatprep.mubr.bf16.mxu0 0
      %1092 = vmatmul.mubr.bf16.gmra.mxu0 %v1041
      %v1093 = vpop.f32.mrf.mxu0
      %v1094 = vadd.f32 0.0, %v1093
      %v1095 = vpop.f32.mrf.mxu0
      %v1096 = vpop.f32.mrf.mxu0
      %v1097 = vadd.f32 0.0, %v1096
      %v1098 = vpop.f32.mrf.mxu0
      %1099 = vmatprep.mubr.bf16.mxu0 0
      %1100 = vmatmul.mubr.bf16.gmra.mxu0 %v1044
      %v1101 = vpop.f32.mrf.mxu0
      %v1102 = vadd.f32 0.0, %v1101
      %v1103 = vpop.f32.mrf.mxu0
      %v1104 = vpop.f32.mrf.mxu0
      %v1105 = vadd.f32 0.0, %v1104
      %v1106 = vpop.f32.mrf.mxu0
      %1107 = vmatprep.mubr.bf16.mxu0 0
      %1108 = vmatmul.mubr.bf16.gmra.mxu0 %v1047
      %v1109 = vpop.f32.mrf.mxu0
      %v1110 = vadd.f32 0.0, %v1109
      %v1111 = vpop.f32.mrf.mxu0
      %v1112 = vpop.f32.mrf.mxu0
      %v1113 = vadd.f32 0.0, %v1112
      %v1114 = vpop.f32.mrf.mxu0
      %1115 = vmatprep.mubr.bf16.mxu0 0
      %1116 = vmatmul.mubr.bf16.gmra.mxu0 %v1050
      %v1117 = vpop.f32.mrf.mxu0
      %v1118 = vadd.f32 0.0, %v1117
      %v1119 = vpop.f32.mrf.mxu0
      %v1120 = vpop.f32.mrf.mxu0
      %v1121 = vadd.f32 0.0, %v1120
      %v1122 = vpop.f32.mrf.mxu0
      %1123 = vmatprep.mubr.bf16.mxu0 0
      %1124 = vmatmul.mubr.bf16.gmra.mxu0 %v1053
      %v1125 = vpop.f32.mrf.mxu0
      %v1126 = vadd.f32 0.0, %v1125
      %v1127 = vpop.f32.mrf.mxu0
      %v1128 = vpop.f32.mrf.mxu0
      %v1129 = vadd.f32 0.0, %v1128
      %v1130 = vpop.f32.mrf.mxu0
      %1131 = vdwg.mxu0
      %v1133 = vsel %vm981, %v1017, 0
      %v1136 = vsel %vm981, %v1018, 0
      %v1139 = vsel %vm981, %v1019, 0
      %v1142 = vsel %vm981, %v1020, 0
      %v1145 = vsel %vm981, %v1021, 0
      %v1148 = vsel %vm1055, %v1022, 0
      %1150 = vmatprep.subr.bf16.mxu0 0
      %1151 = vmatpush1.bf16.msra.mxu0 0
      %1152 = vmatprep.subr.bf16.mxu0 0
      %1153 = vmatpush1.bf16.msra.mxu0 0
      %1154 = vmatprep.subr.bf16.mxu0 0
      %1155 = vmatpush1.bf16.msra.mxu0 0
      %1156 = vmatprep.subr.bf16.mxu0 0
      %1157 = vmatpush1.bf16.msra.mxu0 0
      %1158 = vmatprep.subr.bf16.mxu0 0
      %1159 = vmatpush1.bf16.msra.mxu0 0
      %1160 = vmatprep.subr.bf16.mxu0 0
      %1161 = vmatpush1.bf16.msra.mxu0 0
      %1162 = vmatprep.subr.bf16.mxu0 0
      %1163 = vmatpush1.bf16.msra.mxu0 0
      %1164 = vmatprep.subr.bf16.mxu0 0
      %1165 = vmatpush1.bf16.msra.mxu0 %v1148
      %1166 = vmatprep.subr.bf16.mxu0 0
      %1167 = vmatpush2.bf16.msra.mxu0 0
      %1168 = vmatprep.subr.bf16.mxu0 0
      %1169 = vmatpush2.bf16.msra.mxu0 0
      %1170 = vmatprep.subr.bf16.mxu0 0
      %1171 = vmatpush2.bf16.msra.mxu0 0
      %1172 = vmatprep.subr.bf16.mxu0 0
      %1173 = vmatpush2.bf16.msra.mxu0 0
      %1174 = vmatprep.subr.bf16.mxu0 0
      %1175 = vmatpush2.bf16.msra.mxu0 0
      %1176 = vmatprep.subr.bf16.mxu0 0
      %1177 = vmatpush2.bf16.msra.mxu0 0
      %1178 = vmatprep.subr.bf16.mxu0 0
      %1179 = vmatpush2.bf16.msra.mxu0 0
      %1180 = vmatprep.subr.bf16.mxu0 0
      %1181 = vmatpush2.bf16.msra.mxu0 0
      %1182 = vmatprep.mubr.bf16.mxu0 0
      %1183 = vmatmul.mubr.bf16.gmra.mxu0 %v1133
      %v1184 = vpop.f32.mrf.mxu0
      %v1185 = vadd.f32 %v1094, %v1184
      %v1186 = vpop.f32.mrf.mxu0
      %v1187 = vpop.f32.mrf.mxu0
      %v1188 = vadd.f32 %v1097, %v1187
      %v1189 = vpop.f32.mrf.mxu0
      %1190 = vmatprep.mubr.bf16.mxu0 0
      %1191 = vmatmul.mubr.bf16.gmra.mxu0 %v1136
      %v1192 = vpop.f32.mrf.mxu0
      %v1193 = vadd.f32 %v1102, %v1192
      %v1194 = vpop.f32.mrf.mxu0
      %v1195 = vpop.f32.mrf.mxu0
      %v1196 = vadd.f32 %v1105, %v1195
      %v1197 = vpop.f32.mrf.mxu0
      %1198 = vmatprep.mubr.bf16.mxu0 0
      %1199 = vmatmul.mubr.bf16.gmra.mxu0 %v1139
      %v1200 = vpop.f32.mrf.mxu0
      %v1201 = vadd.f32 %v1110, %v1200
      %v1202 = vpop.f32.mrf.mxu0
      %v1203 = vpop.f32.mrf.mxu0
      %v1204 = vadd.f32 %v1113, %v1203
      %v1205 = vpop.f32.mrf.mxu0
      %1206 = vmatprep.mubr.bf16.mxu0 0
      %1207 = vmatmul.mubr.bf16.gmra.mxu0 %v1142
      %v1208 = vpop.f32.mrf.mxu0
      %v1209 = vadd.f32 %v1118, %v1208
      %v1210 = vpop.f32.mrf.mxu0
      %v1211 = vpop.f32.mrf.mxu0
      %v1212 = vadd.f32 %v1121, %v1211
      %v1213 = vpop.f32.mrf.mxu0
      %1214 = vmatprep.mubr.bf16.mxu0 0
      %1215 = vmatmul.mubr.bf16.gmra.mxu0 %v1145
      %v1216 = vpop.f32.mrf.mxu0
      %v1217 = vadd.f32 %v1126, %v1216
      %v1218 = vpop.f32.mrf.mxu0
      %v1219 = vpop.f32.mrf.mxu0
      %v1220 = vadd.f32 %v1129, %v1219
      %v1221 = vpop.f32.mrf.mxu0
      %1222 = vdwg.mxu0
      %v1223 = vld [vmem:[#allocation3 + $0x2] sm:$0xff]
      %v1224 = vld [vmem:[#allocation3 + $0xa] sm:$0xff]
      %v1225 = vld [vmem:[#allocation3 + $0x12] sm:$0xff]
      %v1226 = vld [vmem:[#allocation3 + $0x1a] sm:$0xff]
      %v1227 = vld [vmem:[#allocation3 + $0x22] sm:$0xff]
      %v1228 = vld [vmem:[#allocation3 + $0x2a] sm:$0xff]
      %v1229 = vld [vmem:[#allocation3 + $0x32] sm:$0xff]
      %v1230 = vld [vmem:[#allocation3 + $0x3a] sm:$0xff]
      %v1231 = vld [vmem:[#allocation3 + $0x42] sm:$0xff]
      %v1232 = vld [vmem:[#allocation3 + $0x4a] sm:$0xff]
      %v1233 = vpack.c.bf16 %v1224, %v1223
      %v1234 = vpack.c.bf16 %v1226, %v1225
      %v1235 = vpack.c.bf16 %v1228, %v1227
      %v1236 = vpack.c.bf16 %v1230, %v1229
      %v1237 = vpack.c.bf16 %v1232, %v1231
      %s1238 = scalar_lea.vmem %s3, 8
      %v1239 = vld [vmem:[%s1238] sm:$0xf]
      %v1241 = vsel %vm981, %v1233, 0
      %v1244 = vsel %vm981, %v1234, 0
      %v1247 = vsel %vm981, %v1235, 0
      %v1250 = vsel %vm981, %v1236, 0
      %v1253 = vsel %vm981, %v1237, 0
      %v1256 = vsel %vm1055, %v1239, 0
      %1258 = vmatprep.subr.bf16.mxu0 0
      %1259 = vmatpush1.bf16.msra.mxu0 0
      %1260 = vmatprep.subr.bf16.mxu0 0
      %1261 = vmatpush1.bf16.msra.mxu0 0
      %1262 = vmatprep.subr.bf16.mxu0 0
      %1263 = vmatpush1.bf16.msra.mxu0 0
      %1264 = vmatprep.subr.bf16.mxu0 0
      %1265 = vmatpush1.bf16.msra.mxu0 0
      %1266 = vmatprep.subr.bf16.mxu0 0
      %1267 = vmatpush1.bf16.msra.mxu0 0
      %1268 = vmatprep.subr.bf16.mxu0 0
      %1269 = vmatpush1.bf16.msra.mxu0 0
      %1270 = vmatprep.subr.bf16.mxu0 0
      %1271 = vmatpush1.bf16.msra.mxu0 0
      %1272 = vmatprep.subr.bf16.mxu0 0
      %1273 = vmatpush1.bf16.msra.mxu0 %v1256
      %1274 = vmatprep.subr.bf16.mxu0 0
      %1275 = vmatpush2.bf16.msra.mxu0 0
      %1276 = vmatprep.subr.bf16.mxu0 0
      %1277 = vmatpush2.bf16.msra.mxu0 0
      %1278 = vmatprep.subr.bf16.mxu0 0
      %1279 = vmatpush2.bf16.msra.mxu0 0
      %1280 = vmatprep.subr.bf16.mxu0 0
      %1281 = vmatpush2.bf16.msra.mxu0 0
      %1282 = vmatprep.subr.bf16.mxu0 0
      %1283 = vmatpush2.bf16.msra.mxu0 0
      %1284 = vmatprep.subr.bf16.mxu0 0
      %1285 = vmatpush2.bf16.msra.mxu0 0
      %1286 = vmatprep.subr.bf16.mxu0 0
      %1287 = vmatpush2.bf16.msra.mxu0 0
      %1288 = vmatprep.subr.bf16.mxu0 0
      %1289 = vmatpush2.bf16.msra.mxu0 0
      %1290 = vmatprep.mubr.bf16.mxu0 0
      %1291 = vmatmul.mubr.bf16.gmra.mxu0 %v1241
      %v1292 = vpop.f32.mrf.mxu0
      %v1293 = vadd.f32 0.0, %v1292
      %v1294 = vpop.f32.mrf.mxu0
      %v1295 = vpop.f32.mrf.mxu0
      %v1296 = vadd.f32 0.0, %v1295
      %v1297 = vpop.f32.mrf.mxu0
      %1298 = vmatprep.mubr.bf16.mxu0 0
      %1299 = vmatmul.mubr.bf16.gmra.mxu0 %v1244
      %v1300 = vpop.f32.mrf.mxu0
      %v1301 = vadd.f32 0.0, %v1300
      %v1302 = vpop.f32.mrf.mxu0
      %v1303 = vpop.f32.mrf.mxu0
      %v1304 = vadd.f32 0.0, %v1303
      %v1305 = vpop.f32.mrf.mxu0
      %1306 = vmatprep.mubr.bf16.mxu0 0
      %1307 = vmatmul.mubr.bf16.gmra.mxu0 %v1247
      %v1308 = vpop.f32.mrf.mxu0
      %v1309 = vadd.f32 0.0, %v1308
      %v1310 = vpop.f32.mrf.mxu0
      %v1311 = vpop.f32.mrf.mxu0
      %v1312 = vadd.f32 0.0, %v1311
      %v1313 = vpop.f32.mrf.mxu0
      %1314 = vmatprep.mubr.bf16.mxu0 0
      %1315 = vmatmul.mubr.bf16.gmra.mxu0 %v1250
      %v1316 = vpop.f32.mrf.mxu0
      %v1317 = vadd.f32 0.0, %v1316
      %v1318 = vpop.f32.mrf.mxu0
      %v1319 = vpop.f32.mrf.mxu0
      %v1320 = vadd.f32 0.0, %v1319
      %v1321 = vpop.f32.mrf.mxu0
      %1322 = vmatprep.mubr.bf16.mxu0 0
      %1323 = vmatmul.mubr.bf16.gmra.mxu0 %v1253
      %v1324 = vpop.f32.mrf.mxu0
      %v1325 = vadd.f32 0.0, %v1324
      %v1326 = vpop.f32.mrf.mxu0
      %v1327 = vpop.f32.mrf.mxu0
      %v1328 = vadd.f32 0.0, %v1327
      %v1329 = vpop.f32.mrf.mxu0
      %1330 = vdwg.mxu0
      %v1331 = vadd.f32 %v1185, %v1293
      %v1332 = vadd.f32 %v1188, %v1296
      %v1333 = vadd.f32 %v1193, %v1301
      %v1334 = vadd.f32 %v1196, %v1304
      %v1335 = vadd.f32 %v1201, %v1309
      %v1336 = vadd.f32 %v1204, %v1312
      %v1337 = vadd.f32 %v1209, %v1317
      %v1338 = vadd.f32 %v1212, %v1320
      %v1339 = vadd.f32 %v1217, %v1325
      %v1340 = vadd.f32 %v1220, %v1328
      %v1341 = vld [vmem:[#allocation3 + $0xa] sm:$0xff]
      %v1342 = vld [vmem:[#allocation3 + $0x12] sm:$0xff]
      %v1343 = vld [vmem:[#allocation3 + $0x1a] sm:$0xff]
      %v1344 = vld [vmem:[#allocation3 + $0x22] sm:$0xff]
      %v1345 = vld [vmem:[#allocation3 + $0x2a] sm:$0xff]
      %v1346 = vld [vmem:[#allocation3 + $0x32] sm:$0xff]
      %v1347 = vld [vmem:[#allocation3 + $0x3a] sm:$0xff]
      %v1348 = vld [vmem:[#allocation3 + $0x42] sm:$0xff]
      %v1349 = vld [vmem:[#allocation3 + $0x4a] sm:$0xff]
      %v1350 = vld [vmem:[#allocation3 + $0x52] sm:$0xff]
      %v1351 = vpack.c.bf16 %v1342, %v1341
      %v1352 = vpack.c.bf16 %v1344, %v1343
      %v1353 = vpack.c.bf16 %v1346, %v1345
      %v1354 = vpack.c.bf16 %v1348, %v1347
      %v1355 = vpack.c.bf16 %v1350, %v1349
      %s1356 = scalar_lea.vmem %s3, 12
      %v1357 = vld [vmem:[%s1356] sm:$0xf]
      %v1359 = vsel %vm981, %v1351, 0
      %v1362 = vsel %vm981, %v1352, 0
      %v1365 = vsel %vm981, %v1353, 0
      %v1368 = vsel %vm981, %v1354, 0
      %v1371 = vsel %vm981, %v1355, 0
      %v1374 = vsel %vm1055, %v1357, 0
      %1376 = vmatprep.subr.bf16.mxu0 0
      %1377 = vmatpush1.bf16.msra.mxu0 0
      %1378 = vmatprep.subr.bf16.mxu0 0
      %1379 = vmatpush1.bf16.msra.mxu0 0
      %1380 = vmatprep.subr.bf16.mxu0 0
      %1381 = vmatpush1.bf16.msra.mxu0 0
      %1382 = vmatprep.subr.bf16.mxu0 0
      %1383 = vmatpush1.bf16.msra.mxu0 0
      %1384 = vmatprep.subr.bf16.mxu0 0
      %1385 = vmatpush1.bf16.msra.mxu0 0
      %1386 = vmatprep.subr.bf16.mxu0 0
      %1387 = vmatpush1.bf16.msra.mxu0 0
      %1388 = vmatprep.subr.bf16.mxu0 0
      %1389 = vmatpush1.bf16.msra.mxu0 0
      %1390 = vmatprep.subr.bf16.mxu0 0
      %1391 = vmatpush1.bf16.msra.mxu0 %v1374
      %1392 = vmatprep.subr.bf16.mxu0 0
      %1393 = vmatpush2.bf16.msra.mxu0 0
      %1394 = vmatprep.subr.bf16.mxu0 0
      %1395 = vmatpush2.bf16.msra.mxu0 0
      %1396 = vmatprep.subr.bf16.mxu0 0
      %1397 = vmatpush2.bf16.msra.mxu0 0
      %1398 = vmatprep.subr.bf16.mxu0 0
      %1399 = vmatpush2.bf16.msra.mxu0 0
      %1400 = vmatprep.subr.bf16.mxu0 0
      %1401 = vmatpush2.bf16.msra.mxu0 0
      %1402 = vmatprep.subr.bf16.mxu0 0
      %1403 = vmatpush2.bf16.msra.mxu0 0
      %1404 = vmatprep.subr.bf16.mxu0 0
      %1405 = vmatpush2.bf16.msra.mxu0 0
      %1406 = vmatprep.subr.bf16.mxu0 0
      %1407 = vmatpush2.bf16.msra.mxu0 0
      %1408 = vmatprep.mubr.bf16.mxu0 0
      %1409 = vmatmul.mubr.bf16.gmra.mxu0 %v1359
      %v1410 = vpop.f32.mrf.mxu0
      %v1411 = vadd.f32 0.0, %v1410
      %v1412 = vpop.f32.mrf.mxu0
      %v1413 = vpop.f32.mrf.mxu0
      %v1414 = vadd.f32 0.0, %v1413
      %v1415 = vpop.f32.mrf.mxu0
      %1416 = vmatprep.mubr.bf16.mxu0 0
      %1417 = vmatmul.mubr.bf16.gmra.mxu0 %v1362
      %v1418 = vpop.f32.mrf.mxu0
      %v1419 = vadd.f32 0.0, %v1418
      %v1420 = vpop.f32.mrf.mxu0
      %v1421 = vpop.f32.mrf.mxu0
      %v1422 = vadd.f32 0.0, %v1421
      %v1423 = vpop.f32.mrf.mxu0
      %1424 = vmatprep.mubr.bf16.mxu0 0
      %1425 = vmatmul.mubr.bf16.gmra.mxu0 %v1365
      %v1426 = vpop.f32.mrf.mxu0
      %v1427 = vadd.f32 0.0, %v1426
      %v1428 = vpop.f32.mrf.mxu0
      %v1429 = vpop.f32.mrf.mxu0
      %v1430 = vadd.f32 0.0, %v1429
      %v1431 = vpop.f32.mrf.mxu0
      %1432 = vmatprep.mubr.bf16.mxu0 0
      %1433 = vmatmul.mubr.bf16.gmra.mxu0 %v1368
      %v1434 = vpop.f32.mrf.mxu0
      %v1435 = vadd.f32 0.0, %v1434
      %v1436 = vpop.f32.mrf.mxu0
      %v1437 = vpop.f32.mrf.mxu0
      %v1438 = vadd.f32 0.0, %v1437
      %v1439 = vpop.f32.mrf.mxu0
      %1440 = vmatprep.mubr.bf16.mxu0 0
      %1441 = vmatmul.mubr.bf16.gmra.mxu0 %v1371
      %v1442 = vpop.f32.mrf.mxu0
      %v1443 = vadd.f32 0.0, %v1442
      %v1444 = vpop.f32.mrf.mxu0
      %v1445 = vpop.f32.mrf.mxu0
      %v1446 = vadd.f32 0.0, %v1445
      %v1447 = vpop.f32.mrf.mxu0
      %1448 = vdwg.mxu0
      %v1449 = vadd.f32 %v1331, %v1411
      %v1450 = vadd.f32 %v1332, %v1414
      %v1451 = vadd.f32 %v1333, %v1419
      %v1452 = vadd.f32 %v1334, %v1422
      %v1453 = vadd.f32 %v1335, %v1427
      %v1454 = vadd.f32 %v1336, %v1430
      %v1455 = vadd.f32 %v1337, %v1435
      %v1456 = vadd.f32 %v1338, %v1438
      %v1457 = vadd.f32 %v1339, %v1443
      %v1458 = vadd.f32 %v1340, %v1446
      %v1459 = vld [vmem:[#allocation3 + $0xb] sm:$0xff]
      %v1460 = vld [vmem:[#allocation3 + $0x13] sm:$0xff]
      %v1461 = vld [vmem:[#allocation3 + $0x1b] sm:$0xff]
      %v1462 = vld [vmem:[#allocation3 + $0x23] sm:$0xff]
      %v1463 = vld [vmem:[#allocation3 + $0x2b] sm:$0xff]
      %v1464 = vld [vmem:[#allocation3 + $0x33] sm:$0xff]
      %v1465 = vld [vmem:[#allocation3 + $0x3b] sm:$0xff]
      %v1466 = vld [vmem:[#allocation3 + $0x43] sm:$0xff]
      %v1467 = vld [vmem:[#allocation3 + $0x4b] sm:$0xff]
      %v1468 = vld [vmem:[#allocation3 + $0x53] sm:$0xff]
      %v1469 = vpack.c.bf16 %v1460, %v1459
      %v1470 = vpack.c.bf16 %v1462, %v1461
      %v1471 = vpack.c.bf16 %v1464, %v1463
      %v1472 = vpack.c.bf16 %v1466, %v1465
      %v1473 = vpack.c.bf16 %v1468, %v1467
      %s1474 = scalar_lea.vmem %s3, 16
      %v1475 = vld [vmem:[%s1474] sm:$0xf]
      %v1477 = vsel %vm981, %v1469, 0
      %v1480 = vsel %vm981, %v1470, 0
      %v1483 = vsel %vm981, %v1471, 0
      %v1486 = vsel %vm981, %v1472, 0
      %v1489 = vsel %vm981, %v1473, 0
      %v1492 = vsel %vm1055, %v1475, 0
      %1494 = vmatprep.subr.bf16.mxu0 0
      %1495 = vmatpush1.bf16.msra.mxu0 0
      %1496 = vmatprep.subr.bf16.mxu0 0
      %1497 = vmatpush1.bf16.msra.mxu0 0
      %1498 = vmatprep.subr.bf16.mxu0 0
      %1499 = vmatpush1.bf16.msra.mxu0 0
      %1500 = vmatprep.subr.bf16.mxu0 0
      %1501 = vmatpush1.bf16.msra.mxu0 0
      %1502 = vmatprep.subr.bf16.mxu0 0
      %1503 = vmatpush1.bf16.msra.mxu0 0
      %1504 = vmatprep.subr.bf16.mxu0 0
      %1505 = vmatpush1.bf16.msra.mxu0 0
      %1506 = vmatprep.subr.bf16.mxu0 0
      %1507 = vmatpush1.bf16.msra.mxu0 0
      %1508 = vmatprep.subr.bf16.mxu0 0
      %1509 = vmatpush1.bf16.msra.mxu0 %v1492
      %1510 = vmatprep.subr.bf16.mxu0 0
      %1511 = vmatpush2.bf16.msra.mxu0 0
      %1512 = vmatprep.subr.bf16.mxu0 0
      %1513 = vmatpush2.bf16.msra.mxu0 0
      %1514 = vmatprep.subr.bf16.mxu0 0
      %1515 = vmatpush2.bf16.msra.mxu0 0
      %1516 = vmatprep.subr.bf16.mxu0 0
      %1517 = vmatpush2.bf16.msra.mxu0 0
      %1518 = vmatprep.subr.bf16.mxu0 0
      %1519 = vmatpush2.bf16.msra.mxu0 0
      %1520 = vmatprep.subr.bf16.mxu0 0
      %1521 = vmatpush2.bf16.msra.mxu0 0
      %1522 = vmatprep.subr.bf16.mxu0 0
      %1523 = vmatpush2.bf16.msra.mxu0 0
      %1524 = vmatprep.subr.bf16.mxu0 0
      %1525 = vmatpush2.bf16.msra.mxu0 0
      %1526 = vmatprep.mubr.bf16.mxu0 0
      %1527 = vmatmul.mubr.bf16.gmra.mxu0 %v1477
      %v1528 = vpop.f32.mrf.mxu0
      %v1529 = vadd.f32 0.0, %v1528
      %v1530 = vpop.f32.mrf.mxu0
      %v1531 = vpop.f32.mrf.mxu0
      %v1532 = vadd.f32 0.0, %v1531
      %v1533 = vpop.f32.mrf.mxu0
      %1534 = vmatprep.mubr.bf16.mxu0 0
      %1535 = vmatmul.mubr.bf16.gmra.mxu0 %v1480
      %v1536 = vpop.f32.mrf.mxu0
      %v1537 = vadd.f32 0.0, %v1536
      %v1538 = vpop.f32.mrf.mxu0
      %v1539 = vpop.f32.mrf.mxu0
      %v1540 = vadd.f32 0.0, %v1539
      %v1541 = vpop.f32.mrf.mxu0
      %1542 = vmatprep.mubr.bf16.mxu0 0
      %1543 = vmatmul.mubr.bf16.gmra.mxu0 %v1483
      %v1544 = vpop.f32.mrf.mxu0
      %v1545 = vadd.f32 0.0, %v1544
      %v1546 = vpop.f32.mrf.mxu0
      %v1547 = vpop.f32.mrf.mxu0
      %v1548 = vadd.f32 0.0, %v1547
      %v1549 = vpop.f32.mrf.mxu0
      %1550 = vmatprep.mubr.bf16.mxu0 0
      %1551 = vmatmul.mubr.bf16.gmra.mxu0 %v1486
      %v1552 = vpop.f32.mrf.mxu0
      %v1553 = vadd.f32 0.0, %v1552
      %v1554 = vpop.f32.mrf.mxu0
      %v1555 = vpop.f32.mrf.mxu0
      %v1556 = vadd.f32 0.0, %v1555
      %v1557 = vpop.f32.mrf.mxu0
      %1558 = vmatprep.mubr.bf16.mxu0 0
      %1559 = vmatmul.mubr.bf16.gmra.mxu0 %v1489
      %v1560 = vpop.f32.mrf.mxu0
      %v1561 = vadd.f32 0.0, %v1560
      %v1562 = vpop.f32.mrf.mxu0
      %v1563 = vpop.f32.mrf.mxu0
      %v1564 = vadd.f32 0.0, %v1563
      %v1565 = vpop.f32.mrf.mxu0
      %1566 = vdwg.mxu0
      %v1567 = vadd.f32 %v1449, %v1529
      %v1568 = vadd.f32 %v1450, %v1532
      %v1569 = vadd.f32 %v1451, %v1537
      %v1570 = vadd.f32 %v1452, %v1540
      %v1571 = vadd.f32 %v1453, %v1545
      %v1572 = vadd.f32 %v1454, %v1548
      %v1573 = vadd.f32 %v1455, %v1553
      %v1574 = vadd.f32 %v1456, %v1556
      %v1575 = vadd.f32 %v1457, %v1561
      %v1576 = vadd.f32 %v1458, %v1564
      %v1577 = vld [vmem:[#allocation3 + $0xc] sm:$0xff]
      %v1578 = vld [vmem:[#allocation3 + $0x14] sm:$0xff]
      %v1579 = vld [vmem:[#allocation3 + $0x1c] sm:$0xff]
      %v1580 = vld [vmem:[#allocation3 + $0x24] sm:$0xff]
      %v1581 = vld [vmem:[#allocation3 + $0x2c] sm:$0xff]
      %v1582 = vld [vmem:[#allocation3 + $0x34] sm:$0xff]
      %v1583 = vld [vmem:[#allocation3 + $0x3c] sm:$0xff]
      %v1584 = vld [vmem:[#allocation3 + $0x44] sm:$0xff]
      %v1585 = vld [vmem:[#allocation3 + $0x4c] sm:$0xff]
      %v1586 = vld [vmem:[#allocation3 + $0x54] sm:$0xff]
      %v1587 = vpack.c.bf16 %v1578, %v1577
      %v1588 = vpack.c.bf16 %v1580, %v1579
      %v1589 = vpack.c.bf16 %v1582, %v1581
      %v1590 = vpack.c.bf16 %v1584, %v1583
      %v1591 = vpack.c.bf16 %v1586, %v1585
      %s1592 = scalar_lea.vmem %s3, 20
      %v1593 = vld [vmem:[%s1592] sm:$0xf]
      %v1595 = vsel %vm981, %v1587, 0
      %v1598 = vsel %vm981, %v1588, 0
      %v1601 = vsel %vm981, %v1589, 0
      %v1604 = vsel %vm981, %v1590, 0
      %v1607 = vsel %vm981, %v1591, 0
      %v1610 = vsel %vm1055, %v1593, 0
      %1612 = vmatprep.subr.bf16.mxu0 0
      %1613 = vmatpush1.bf16.msra.mxu0 0
      %1614 = vmatprep.subr.bf16.mxu0 0
      %1615 = vmatpush1.bf16.msra.mxu0 0
      %1616 = vmatprep.subr.bf16.mxu0 0
      %1617 = vmatpush1.bf16.msra.mxu0 0
      %1618 = vmatprep.subr.bf16.mxu0 0
      %1619 = vmatpush1.bf16.msra.mxu0 0
      %1620 = vmatprep.subr.bf16.mxu0 0
      %1621 = vmatpush1.bf16.msra.mxu0 0
      %1622 = vmatprep.subr.bf16.mxu0 0
      %1623 = vmatpush1.bf16.msra.mxu0 0
      %1624 = vmatprep.subr.bf16.mxu0 0
      %1625 = vmatpush1.bf16.msra.mxu0 0
      %1626 = vmatprep.subr.bf16.mxu0 0
      %1627 = vmatpush1.bf16.msra.mxu0 %v1610
      %1628 = vmatprep.subr.bf16.mxu0 0
      %1629 = vmatpush2.bf16.msra.mxu0 0
      %1630 = vmatprep.subr.bf16.mxu0 0
      %1631 = vmatpush2.bf16.msra.mxu0 0
      %1632 = vmatprep.subr.bf16.mxu0 0
      %1633 = vmatpush2.bf16.msra.mxu0 0
      %1634 = vmatprep.subr.bf16.mxu0 0
      %1635 = vmatpush2.bf16.msra.mxu0 0
      %1636 = vmatprep.subr.bf16.mxu0 0
      %1637 = vmatpush2.bf16.msra.mxu0 0
      %1638 = vmatprep.subr.bf16.mxu0 0
      %1639 = vmatpush2.bf16.msra.mxu0 0
      %1640 = vmatprep.subr.bf16.mxu0 0
      %1641 = vmatpush2.bf16.msra.mxu0 0
      %1642 = vmatprep.subr.bf16.mxu0 0
      %1643 = vmatpush2.bf16.msra.mxu0 0
      %1644 = vmatprep.mubr.bf16.mxu0 0
      %1645 = vmatmul.mubr.bf16.gmra.mxu0 %v1595
      %v1646 = vpop.f32.mrf.mxu0
      %v1647 = vadd.f32 0.0, %v1646
      %v1648 = vpop.f32.mrf.mxu0
      %v1649 = vpop.f32.mrf.mxu0
      %v1650 = vadd.f32 0.0, %v1649
      %v1651 = vpop.f32.mrf.mxu0
      %1652 = vmatprep.mubr.bf16.mxu0 0
      %1653 = vmatmul.mubr.bf16.gmra.mxu0 %v1598
      %v1654 = vpop.f32.mrf.mxu0
      %v1655 = vadd.f32 0.0, %v1654
      %v1656 = vpop.f32.mrf.mxu0
      %v1657 = vpop.f32.mrf.mxu0
      %v1658 = vadd.f32 0.0, %v1657
      %v1659 = vpop.f32.mrf.mxu0
      %1660 = vmatprep.mubr.bf16.mxu0 0
      %1661 = vmatmul.mubr.bf16.gmra.mxu0 %v1601
      %v1662 = vpop.f32.mrf.mxu0
      %v1663 = vadd.f32 0.0, %v1662
      %v1664 = vpop.f32.mrf.mxu0
      %v1665 = vpop.f32.mrf.mxu0
      %v1666 = vadd.f32 0.0, %v1665
      %v1667 = vpop.f32.mrf.mxu0
      %1668 = vmatprep.mubr.bf16.mxu0 0
      %1669 = vmatmul.mubr.bf16.gmra.mxu0 %v1604
      %v1670 = vpop.f32.mrf.mxu0
      %v1671 = vadd.f32 0.0, %v1670
      %v1672 = vpop.f32.mrf.mxu0
      %v1673 = vpop.f32.mrf.mxu0
      %v1674 = vadd.f32 0.0, %v1673
      %v1675 = vpop.f32.mrf.mxu0
      %1676 = vmatprep.mubr.bf16.mxu0 0
      %1677 = vmatmul.mubr.bf16.gmra.mxu0 %v1607
      %v1678 = vpop.f32.mrf.mxu0
      %v1679 = vadd.f32 0.0, %v1678
      %v1680 = vpop.f32.mrf.mxu0
      %v1681 = vpop.f32.mrf.mxu0
      %v1682 = vadd.f32 0.0, %v1681
      %v1683 = vpop.f32.mrf.mxu0
      %1684 = vdwg.mxu0
      %v1685 = vadd.f32 %v1567, %v1647
      %v1686 = vadd.f32 %v1568, %v1650
      %v1687 = vadd.f32 %v1569, %v1655
      %v1688 = vadd.f32 %v1570, %v1658
      %v1689 = vadd.f32 %v1571, %v1663
      %v1690 = vadd.f32 %v1572, %v1666
      %v1691 = vadd.f32 %v1573, %v1671
      %v1692 = vadd.f32 %v1574, %v1674
      %v1693 = vadd.f32 %v1575, %v1679
      %v1694 = vadd.f32 %v1576, %v1682
      %v1695 = vld [vmem:[#allocation3 + $0x14] sm:$0xff]
      %v1696 = vld [vmem:[#allocation3 + $0x1c] sm:$0xff]
      %v1697 = vld [vmem:[#allocation3 + $0x24] sm:$0xff]
      %v1698 = vld [vmem:[#allocation3 + $0x2c] sm:$0xff]
      %v1699 = vld [vmem:[#allocation3 + $0x34] sm:$0xff]
      %v1700 = vld [vmem:[#allocation3 + $0x3c] sm:$0xff]
      %v1701 = vld [vmem:[#allocation3 + $0x44] sm:$0xff]
      %v1702 = vld [vmem:[#allocation3 + $0x4c] sm:$0xff]
      %v1703 = vld [vmem:[#allocation3 + $0x54] sm:$0xff]
      %v1704 = vld [vmem:[#allocation3 + $0x5c] sm:$0xff]
      %v1705 = vpack.c.bf16 %v1696, %v1695
      %v1706 = vpack.c.bf16 %v1698, %v1697
      %v1707 = vpack.c.bf16 %v1700, %v1699
      %v1708 = vpack.c.bf16 %v1702, %v1701
      %v1709 = vpack.c.bf16 %v1704, %v1703
      %s1710 = scalar_lea.vmem %s3, 24
      %v1711 = vld [vmem:[%s1710] sm:$0xf]
      %v1713 = vsel %vm981, %v1705, 0
      %v1716 = vsel %vm981, %v1706, 0
      %v1719 = vsel %vm981, %v1707, 0
      %v1722 = vsel %vm981, %v1708, 0
      %v1725 = vsel %vm981, %v1709, 0
      %v1728 = vsel %vm1055, %v1711, 0
      %1730 = vmatprep.subr.bf16.mxu0 0
      %1731 = vmatpush1.bf16.msra.mxu0 0
      %1732 = vmatprep.subr.bf16.mxu0 0
      %1733 = vmatpush1.bf16.msra.mxu0 0
      %1734 = vmatprep.subr.bf16.mxu0 0
      %1735 = vmatpush1.bf16.msra.mxu0 0
      %1736 = vmatprep.subr.bf16.mxu0 0
      %1737 = vmatpush1.bf16.msra.mxu0 0
      %1738 = vmatprep.subr.bf16.mxu0 0
      %1739 = vmatpush1.bf16.msra.mxu0 0
      %1740 = vmatprep.subr.bf16.mxu0 0
      %1741 = vmatpush1.bf16.msra.mxu0 0
      %1742 = vmatprep.subr.bf16.mxu0 0
      %1743 = vmatpush1.bf16.msra.mxu0 0
      %1744 = vmatprep.subr.bf16.mxu0 0
      %1745 = vmatpush1.bf16.msra.mxu0 %v1728
      %1746 = vmatprep.subr.bf16.mxu0 0
      %1747 = vmatpush2.bf16.msra.mxu0 0
      %1748 = vmatprep.subr.bf16.mxu0 0
      %1749 = vmatpush2.bf16.msra.mxu0 0
      %1750 = vmatprep.subr.bf16.mxu0 0
      %1751 = vmatpush2.bf16.msra.mxu0 0
      %1752 = vmatprep.subr.bf16.mxu0 0
      %1753 = vmatpush2.bf16.msra.mxu0 0
      %1754 = vmatprep.subr.bf16.mxu0 0
      %1755 = vmatpush2.bf16.msra.mxu0 0
      %1756 = vmatprep.subr.bf16.mxu0 0
      %1757 = vmatpush2.bf16.msra.mxu0 0
      %1758 = vmatprep.subr.bf16.mxu0 0
      %1759 = vmatpush2.bf16.msra.mxu0 0
      %1760 = vmatprep.subr.bf16.mxu0 0
      %1761 = vmatpush2.bf16.msra.mxu0 0
      %1762 = vmatprep.mubr.bf16.mxu0 0
      %1763 = vmatmul.mubr.bf16.gmra.mxu0 %v1713
      %v1764 = vpop.f32.mrf.mxu0
      %v1765 = vadd.f32 0.0, %v1764
      %v1766 = vpop.f32.mrf.mxu0
      %v1767 = vpop.f32.mrf.mxu0
      %v1768 = vadd.f32 0.0, %v1767
      %v1769 = vpop.f32.mrf.mxu0
      %1770 = vmatprep.mubr.bf16.mxu0 0
      %1771 = vmatmul.mubr.bf16.gmra.mxu0 %v1716
      %v1772 = vpop.f32.mrf.mxu0
      %v1773 = vadd.f32 0.0, %v1772
      %v1774 = vpop.f32.mrf.mxu0
      %v1775 = vpop.f32.mrf.mxu0
      %v1776 = vadd.f32 0.0, %v1775
      %v1777 = vpop.f32.mrf.mxu0
      %1778 = vmatprep.mubr.bf16.mxu0 0
      %1779 = vmatmul.mubr.bf16.gmra.mxu0 %v1719
      %v1780 = vpop.f32.mrf.mxu0
      %v1781 = vadd.f32 0.0, %v1780
      %v1782 = vpop.f32.mrf.mxu0
      %v1783 = vpop.f32.mrf.mxu0
      %v1784 = vadd.f32 0.0, %v1783
      %v1785 = vpop.f32.mrf.mxu0
      %1786 = vmatprep.mubr.bf16.mxu0 0
      %1787 = vmatmul.mubr.bf16.gmra.mxu0 %v1722
      %v1788 = vpop.f32.mrf.mxu0
      %v1789 = vadd.f32 0.0, %v1788
      %v1790 = vpop.f32.mrf.mxu0
      %v1791 = vpop.f32.mrf.mxu0
      %v1792 = vadd.f32 0.0, %v1791
      %v1793 = vpop.f32.mrf.mxu0
      %1794 = vmatprep.mubr.bf16.mxu0 0
      %1795 = vmatmul.mubr.bf16.gmra.mxu0 %v1725
      %v1796 = vpop.f32.mrf.mxu0
      %v1797 = vadd.f32 0.0, %v1796
      %v1798 = vpop.f32.mrf.mxu0
      %v1799 = vpop.f32.mrf.mxu0
      %v1800 = vadd.f32 0.0, %v1799
      %v1801 = vpop.f32.mrf.mxu0
      %1802 = vdwg.mxu0
      %v1803 = vadd.f32 %v1685, %v1765
      %v1804 = vadd.f32 %v1686, %v1768
      %v1805 = vadd.f32 %v1687, %v1773
      %v1806 = vadd.f32 %v1688, %v1776
      %v1807 = vadd.f32 %v1689, %v1781
      %v1808 = vadd.f32 %v1690, %v1784
      %v1809 = vadd.f32 %v1691, %v1789
      %v1810 = vadd.f32 %v1692, %v1792
      %v1811 = vadd.f32 %v1693, %v1797
      %v1812 = vadd.f32 %v1694, %v1800
      %v1813 = vld [vmem:[#allocation3 + $0x15] sm:$0xff]
      %v1814 = vld [vmem:[#allocation3 + $0x1d] sm:$0xff]
      %v1815 = vld [vmem:[#allocation3 + $0x25] sm:$0xff]
      %v1816 = vld [vmem:[#allocation3 + $0x2d] sm:$0xff]
      %v1817 = vld [vmem:[#allocation3 + $0x35] sm:$0xff]
      %v1818 = vld [vmem:[#allocation3 + $0x3d] sm:$0xff]
      %v1819 = vld [vmem:[#allocation3 + $0x45] sm:$0xff]
      %v1820 = vld [vmem:[#allocation3 + $0x4d] sm:$0xff]
      %v1821 = vld [vmem:[#allocation3 + $0x55] sm:$0xff]
      %v1822 = vld [vmem:[#allocation3 + $0x5d] sm:$0xff]
      %v1823 = vpack.c.bf16 %v1814, %v1813
      %v1824 = vpack.c.bf16 %v1816, %v1815
      %v1825 = vpack.c.bf16 %v1818, %v1817
      %v1826 = vpack.c.bf16 %v1820, %v1819
      %v1827 = vpack.c.bf16 %v1822, %v1821
      %s1828 = scalar_lea.vmem %s3, 28
      %v1829 = vld [vmem:[%s1828] sm:$0xf]
      %v1831 = vsel %vm981, %v1823, 0
      %v1834 = vsel %vm981, %v1824, 0
      %v1837 = vsel %vm981, %v1825, 0
      %v1840 = vsel %vm981, %v1826, 0
      %v1843 = vsel %vm981, %v1827, 0
      %v1846 = vsel %vm1055, %v1829, 0
      %1848 = vmatprep.subr.bf16.mxu0 0
      %1849 = vmatpush1.bf16.msra.mxu0 0
      %1850 = vmatprep.subr.bf16.mxu0 0
      %1851 = vmatpush1.bf16.msra.mxu0 0
      %1852 = vmatprep.subr.bf16.mxu0 0
      %1853 = vmatpush1.bf16.msra.mxu0 0
      %1854 = vmatprep.subr.bf16.mxu0 0
      %1855 = vmatpush1.bf16.msra.mxu0 0
      %1856 = vmatprep.subr.bf16.mxu0 0
      %1857 = vmatpush1.bf16.msra.mxu0 0
      %1858 = vmatprep.subr.bf16.mxu0 0
      %1859 = vmatpush1.bf16.msra.mxu0 0
      %1860 = vmatprep.subr.bf16.mxu0 0
      %1861 = vmatpush1.bf16.msra.mxu0 0
      %1862 = vmatprep.subr.bf16.mxu0 0
      %1863 = vmatpush1.bf16.msra.mxu0 %v1846
      %1864 = vmatprep.subr.bf16.mxu0 0
      %1865 = vmatpush2.bf16.msra.mxu0 0
      %1866 = vmatprep.subr.bf16.mxu0 0
      %1867 = vmatpush2.bf16.msra.mxu0 0
      %1868 = vmatprep.subr.bf16.mxu0 0
      %1869 = vmatpush2.bf16.msra.mxu0 0
      %1870 = vmatprep.subr.bf16.mxu0 0
      %1871 = vmatpush2.bf16.msra.mxu0 0
      %1872 = vmatprep.subr.bf16.mxu0 0
      %1873 = vmatpush2.bf16.msra.mxu0 0
      %1874 = vmatprep.subr.bf16.mxu0 0
      %1875 = vmatpush2.bf16.msra.mxu0 0
      %1876 = vmatprep.subr.bf16.mxu0 0
      %1877 = vmatpush2.bf16.msra.mxu0 0
      %1878 = vmatprep.subr.bf16.mxu0 0
      %1879 = vmatpush2.bf16.msra.mxu0 0
      %1880 = vmatprep.mubr.bf16.mxu0 0
      %1881 = vmatmul.mubr.bf16.gmra.mxu0 %v1831
      %v1882 = vpop.f32.mrf.mxu0
      %v1883 = vadd.f32 0.0, %v1882
      %v1884 = vpop.f32.mrf.mxu0
      %v1885 = vpop.f32.mrf.mxu0
      %v1886 = vadd.f32 0.0, %v1885
      %v1887 = vpop.f32.mrf.mxu0
      %1888 = vmatprep.mubr.bf16.mxu0 0
      %1889 = vmatmul.mubr.bf16.gmra.mxu0 %v1834
      %v1890 = vpop.f32.mrf.mxu0
      %v1891 = vadd.f32 0.0, %v1890
      %v1892 = vpop.f32.mrf.mxu0
      %v1893 = vpop.f32.mrf.mxu0
      %v1894 = vadd.f32 0.0, %v1893
      %v1895 = vpop.f32.mrf.mxu0
      %1896 = vmatprep.mubr.bf16.mxu0 0
      %1897 = vmatmul.mubr.bf16.gmra.mxu0 %v1837
      %v1898 = vpop.f32.mrf.mxu0
      %v1899 = vadd.f32 0.0, %v1898
      %v1900 = vpop.f32.mrf.mxu0
      %v1901 = vpop.f32.mrf.mxu0
      %v1902 = vadd.f32 0.0, %v1901
      %v1903 = vpop.f32.mrf.mxu0
      %1904 = vmatprep.mubr.bf16.mxu0 0
      %1905 = vmatmul.mubr.bf16.gmra.mxu0 %v1840
      %v1906 = vpop.f32.mrf.mxu0
      %v1907 = vadd.f32 0.0, %v1906
      %v1908 = vpop.f32.mrf.mxu0
      %v1909 = vpop.f32.mrf.mxu0
      %v1910 = vadd.f32 0.0, %v1909
      %v1911 = vpop.f32.mrf.mxu0
      %1912 = vmatprep.mubr.bf16.mxu0 0
      %1913 = vmatmul.mubr.bf16.gmra.mxu0 %v1843
      %v1914 = vpop.f32.mrf.mxu0
      %v1915 = vadd.f32 0.0, %v1914
      %v1916 = vpop.f32.mrf.mxu0
      %v1917 = vpop.f32.mrf.mxu0
      %v1918 = vadd.f32 0.0, %v1917
      %v1919 = vpop.f32.mrf.mxu0
      %1920 = vdwg.mxu0
      %v1921 = vadd.f32 %v1803, %v1883
      %v1922 = vadd.f32 %v1804, %v1886
      %v1923 = vadd.f32 %v1805, %v1891
      %v1924 = vadd.f32 %v1806, %v1894
      %v1925 = vadd.f32 %v1807, %v1899
      %v1926 = vadd.f32 %v1808, %v1902
      %v1927 = vadd.f32 %v1809, %v1907
      %v1928 = vadd.f32 %v1810, %v1910
      %v1929 = vadd.f32 %v1811, %v1915
      %v1930 = vadd.f32 %v1812, %v1918
      %v1931 = vld [vmem:[#allocation3 + $0x16] sm:$0xff]
      %v1932 = vld [vmem:[#allocation3 + $0x1e] sm:$0xff]
      %v1933 = vld [vmem:[#allocation3 + $0x26] sm:$0xff]
      %v1934 = vld [vmem:[#allocation3 + $0x2e] sm:$0xff]
      %v1935 = vld [vmem:[#allocation3 + $0x36] sm:$0xff]
      %v1936 = vld [vmem:[#allocation3 + $0x3e] sm:$0xff]
      %v1937 = vld [vmem:[#allocation3 + $0x46] sm:$0xff]
      %v1938 = vld [vmem:[#allocation3 + $0x4e] sm:$0xff]
      %v1939 = vld [vmem:[#allocation3 + $0x56] sm:$0xff]
      %v1940 = vld [vmem:[#allocation3 + $0x5e] sm:$0xff]
      %v1941 = vpack.c.bf16 %v1932, %v1931
      %v1942 = vpack.c.bf16 %v1934, %v1933
      %v1943 = vpack.c.bf16 %v1936, %v1935
      %v1944 = vpack.c.bf16 %v1938, %v1937
      %v1945 = vpack.c.bf16 %v1940, %v1939
      %s1946 = scalar_lea.vmem %s3, 32
      %v1947 = vld [vmem:[%s1946] sm:$0xf]
      %v1949 = vsel %vm981, %v1941, 0
      %v1952 = vsel %vm981, %v1942, 0
      %v1955 = vsel %vm981, %v1943, 0
      %v1958 = vsel %vm981, %v1944, 0
      %v1961 = vsel %vm981, %v1945, 0
      %v1964 = vsel %vm1055, %v1947, 0
      %1966 = vmatprep.subr.bf16.mxu0 0
      %1967 = vmatpush1.bf16.msra.mxu0 0
      %1968 = vmatprep.subr.bf16.mxu0 0
      %1969 = vmatpush1.bf16.msra.mxu0 0
      %1970 = vmatprep.subr.bf16.mxu0 0
      %1971 = vmatpush1.bf16.msra.mxu0 0
      %1972 = vmatprep.subr.bf16.mxu0 0
      %1973 = vmatpush1.bf16.msra.mxu0 0
      %1974 = vmatprep.subr.bf16.mxu0 0
      %1975 = vmatpush1.bf16.msra.mxu0 0
      %1976 = vmatprep.subr.bf16.mxu0 0
      %1977 = vmatpush1.bf16.msra.mxu0 0
      %1978 = vmatprep.subr.bf16.mxu0 0
      %1979 = vmatpush1.bf16.msra.mxu0 0
      %1980 = vmatprep.subr.bf16.mxu0 0
      %1981 = vmatpush1.bf16.msra.mxu0 %v1964
      %1982 = vmatprep.subr.bf16.mxu0 0
      %1983 = vmatpush2.bf16.msra.mxu0 0
      %1984 = vmatprep.subr.bf16.mxu0 0
      %1985 = vmatpush2.bf16.msra.mxu0 0
      %1986 = vmatprep.subr.bf16.mxu0 0
      %1987 = vmatpush2.bf16.msra.mxu0 0
      %1988 = vmatprep.subr.bf16.mxu0 0
      %1989 = vmatpush2.bf16.msra.mxu0 0
      %1990 = vmatprep.subr.bf16.mxu0 0
      %1991 = vmatpush2.bf16.msra.mxu0 0
      %1992 = vmatprep.subr.bf16.mxu0 0
      %1993 = vmatpush2.bf16.msra.mxu0 0
      %1994 = vmatprep.subr.bf16.mxu0 0
      %1995 = vmatpush2.bf16.msra.mxu0 0
      %1996 = vmatprep.subr.bf16.mxu0 0
      %1997 = vmatpush2.bf16.msra.mxu0 0
      %1998 = vmatprep.mubr.bf16.mxu0 0
      %1999 = vmatmul.mubr.bf16.gmra.mxu0 %v1949
      %v2000 = vpop.f32.mrf.mxu0
      %v2001 = vadd.f32 0.0, %v2000
      %v2002 = vpop.f32.mrf.mxu0
      %v2003 = vpop.f32.mrf.mxu0
      %v2004 = vadd.f32 0.0, %v2003
      %v2005 = vpop.f32.mrf.mxu0
      %2006 = vmatprep.mubr.bf16.mxu0 0
      %2007 = vmatmul.mubr.bf16.gmra.mxu0 %v1952
      %v2008 = vpop.f32.mrf.mxu0
      %v2009 = vadd.f32 0.0, %v2008
      %v2010 = vpop.f32.mrf.mxu0
      %v2011 = vpop.f32.mrf.mxu0
      %v2012 = vadd.f32 0.0, %v2011
      %v2013 = vpop.f32.mrf.mxu0
      %2014 = vmatprep.mubr.bf16.mxu0 0
      %2015 = vmatmul.mubr.bf16.gmra.mxu0 %v1955
      %v2016 = vpop.f32.mrf.mxu0
      %v2017 = vadd.f32 0.0, %v2016
      %v2018 = vpop.f32.mrf.mxu0
      %v2019 = vpop.f32.mrf.mxu0
      %v2020 = vadd.f32 0.0, %v2019
      %v2021 = vpop.f32.mrf.mxu0
      %2022 = vmatprep.mubr.bf16.mxu0 0
      %2023 = vmatmul.mubr.bf16.gmra.mxu0 %v1958
      %v2024 = vpop.f32.mrf.mxu0
      %v2025 = vadd.f32 0.0, %v2024
      %v2026 = vpop.f32.mrf.mxu0
      %v2027 = vpop.f32.mrf.mxu0
      %v2028 = vadd.f32 0.0, %v2027
      %v2029 = vpop.f32.mrf.mxu0
      %2030 = vmatprep.mubr.bf16.mxu0 0
      %2031 = vmatmul.mubr.bf16.gmra.mxu0 %v1961
      %v2032 = vpop.f32.mrf.mxu0
      %v2033 = vadd.f32 0.0, %v2032
      %v2034 = vpop.f32.mrf.mxu0
      %v2035 = vpop.f32.mrf.mxu0
      %v2036 = vadd.f32 0.0, %v2035
      %v2037 = vpop.f32.mrf.mxu0
      %2038 = vdwg.mxu0
      %v2039 = vadd.f32 %v1921, %v2001
      %v2040 = vadd.f32 %v1922, %v2004
      %v2041 = vadd.f32 %v1923, %v2009
      %v2042 = vadd.f32 %v1924, %v2012
      %v2043 = vadd.f32 %v1925, %v2017
      %v2044 = vadd.f32 %v1926, %v2020
      %v2045 = vadd.f32 %v1927, %v2025
      %v2046 = vadd.f32 %v1928, %v2028
      %v2047 = vadd.f32 %v1929, %v2033
      %v2048 = vadd.f32 %v1930, %v2036
      %v2049 = vld [vmem:[%s4] sm:$0x1]
      %v2051 = vlaneseq
      %v2052 = vshrl.u32 %v2051, 7
      %v2053 = vsub.s32 0, %v2052
      %v2054 = vrot.slane %v2049, %v2053
      %v2056 = vadd.f32 %v2039, %v2054
      %v2057 = vadd.f32 %v2040, %v2054
      %v2058 = vadd.f32 %v2041, %v2054
      %v2059 = vadd.f32 %v2042, %v2054
      %v2060 = vadd.f32 %v2043, %v2054
      %v2061 = vadd.f32 %v2044, %v2054
      %v2062 = vadd.f32 %v2045, %v2054
      %v2063 = vadd.f32 %v2046, %v2054
      %v2064 = vadd.f32 %v2047, %v2054
      %v2065 = vadd.f32 %v2048, %v2054
      %v2066 = vmax.f32 %v2056, 0.0
      %v2067 = vmax.f32 %v2057, 0.0
      %v2068 = vmax.f32 %v2058, 0.0
      %v2069 = vmax.f32 %v2059, 0.0
      %v2070 = vmax.f32 %v2060, 0.0
      %v2071 = vmax.f32 %v2061, 0.0
      %v2072 = vmax.f32 %v2062, 0.0
      %v2073 = vmax.f32 %v2063, 0.0
      %v2074 = vmax.f32 %v2064, 0.0
      %v2075 = vmax.f32 %v2065, 0.0
      %v2076 = vsel %vm961, %v2066, 0.0
      %v2077 = vsel %vm962, %v2067, 0.0
      %v2078 = vsel %vm963, %v2068, 0.0
      %v2079 = vsel %vm964, %v2069, 0.0
      %v2080 = vsel %vm965, %v2070, 0.0
      %v2081 = vsel %vm966, %v2071, 0.0
      %v2082 = vsel %vm967, %v2072, 0.0
      %v2083 = vsel %vm968, %v2073, 0.0
      %v2084 = vsel %vm969, %v2074, 0.0
      %v2085 = vsel %vm970, %v2075, 0.0
      %v2086 = vpack.c.bf16 %v2077, %v2076
      %v2087 = vpack.c.bf16 %v2079, %v2078
      %v2088 = vpack.c.bf16 %v2081, %v2080
      %v2089 = vpack.c.bf16 %v2083, %v2082
      %v2090 = vpack.c.bf16 %v2085, %v2084
      %v2096 = vunpack.c.l.b16 %v2086
      %v2097 = vunpack.c.h.b16 %v2086
      %v2098 = vunpack.c.l.b16 %v2087
      %v2099 = vunpack.c.h.b16 %v2087
      %v2100 = vunpack.c.l.b16 %v2088
      %v2101 = vunpack.c.h.b16 %v2088
      %v2102 = vunpack.c.l.b16 %v2089
      %v2103 = vunpack.c.h.b16 %v2089
      %v2104 = vunpack.c.l.b16 %v2090
      %v2105 = vunpack.c.h.b16 %v2090
      %v2106 = vpack.c.b16 %v2096, %v2096
      %v2107 = vpack.c.b16 %v2097, %v2097
      %v2108 = vpack.c.b16 %v2098, %v2098
      %v2109 = vpack.c.b16 %v2099, %v2099
      %v2110 = vpack.c.b16 %v2100, %v2100
      %v2111 = vpack.c.b16 %v2101, %v2101
      %v2112 = vpack.c.b16 %v2102, %v2102
      %v2113 = vpack.c.b16 %v2103, %v2103
      %v2114 = vpack.c.b16 %v2104, %v2104
      %v2115 = vpack.c.b16 %v2105, %v2105
      %vm2126 = vcmask 60416
      %2127 = vst.msk [vmem:[%s224] sm:$0xf] %vm2126, %v2106
      %2128 = vst.msk [vmem:[%s224 + $0x4] sm:$0xf] %vm2126, %v2107
      %2129 = vst.msk [vmem:[%s224 + $0x8] sm:$0xf] %vm2126, %v2108
      %2130 = vst.msk [vmem:[%s224 + $0xc] sm:$0xf] %vm2126, %v2109
      %2131 = vst.msk [vmem:[%s224 + $0x10] sm:$0xf] %vm2126, %v2110
      %2132 = vst.msk [vmem:[%s224 + $0x14] sm:$0xf] %vm2126, %v2111
      %2133 = vst.msk [vmem:[%s224 + $0x18] sm:$0xf] %vm2126, %v2112
      %2134 = vst.msk [vmem:[%s224 + $0x1c] sm:$0xf] %vm2126, %v2113
      %2135 = vst.msk [vmem:[%s224 + $0x20] sm:$0xf] %vm2126, %v2114
      %2136 = vst.msk [vmem:[%s224 + $0x24] sm:$0xf] %vm2126, %v2115
      %p2137 = scmp.lt.s32.totalorder %s16, 1
      %s2138 = scalar_select %p2137, %s16, 1
      %s2139 = smul.addr %s2138, 10
      %s2140 = smul.addr %s2139, 4
      %s2141 = scalar_lea.vmem %s5, %s2140
      // Predicated region
      $region41: #{denoiser_forward.11} parent=39 // pred_check
        %p2142 = pneg %p144
      $region42: #{denoiser_forward.11} parent=39 // pred_check_branch
        %2144 = sbr.rel (%p2142) target = $region44
      $region43: #{denoiser_forward.11} parent=39 // pred_region
        _
      $region44: #{denoiser_forward.11} parent=39 // pred_fallthru
        _
    $region40: #{denoiser_forward.11} parent=5 // pred_fallthru
      _
    %p2145 = scmp.le.s32.totalorder 2, %s11
    // Predicated region
    $region45: #{denoiser_forward.11} parent=5 // pred_check
      %p2146 = pneg %p2145
    $region46: #{denoiser_forward.11} parent=5 // pred_check_branch
      %2148 = sbr.rel (%p2146) target = $region48
    $region47: #{denoiser_forward.11} parent=5 // pred_region
      %s2149 = ssub.s32 %s11, 2
      // Predicated region
      $region49: #{denoiser_forward.11} parent=47 // pred_check
        %p2150 = pneg %p150
      $region50: #{denoiser_forward.11} parent=47 // pred_check_branch
        %2152 = sbr.rel (%p2150) target = $region52
      $region51: #{denoiser_forward.11} parent=47 // pred_region
        %p2153 = scmp.lt.s32.totalorder %s17, 1
        %s2154 = scalar_select %p2153, %s17, 1
        %s2155 = smul.addr %s2154, 10
        %s2156 = smul.addr %s2155, 4
        %s2157 = scalar_lea.vmem %s5, %s2156
      $region52: #{denoiser_forward.11} parent=47 // pred_fallthru
        _
    $region48: #{denoiser_forward.11} parent=5 // pred_fallthru
      _
  $region6: #{denoiser_forward.11} parent=0 // loop_footer
    %s15 = sadd.s32 1, %s11
  $region7: #{denoiser_forward.11} parent=0 // loop_footer_branch
    %10 = sbr.rel target = $region3
  $region8: #{denoiser_forward.11} parent=0 // loop_exit
    _

// kernel: denoiser_forward.12
$region0: #{denoiser_forward.12}
  #allocation0 [shape = 'u32[]', space=smem, size = 0x4, offset = 0x4, fixed_abs, tag = 'smem constant byte address 0x4 - core index']
  #allocation1 [shape = 'u32[144,128]{1,0:T(1,128)}', space=vmem, size = 0x12000, scoped, tag = 'internal scratch']
  #allocation2 [shape = 'f32[36,32]{1,0:T(8,128)}', space=vmem, size = 0x5000, scoped, tag = 'scratch operand']
  #allocation3 [shape = 'f32[42,16]{1,0:T(8,128)}', space=vmem, size = 0x6000, scoped, tag = 'scratch operand']
  %s0 = inlined_call_operand.vmem [shape: bf16[2,36,32], index: 0, kind: input, shape index: {}]
  %s1 = inlined_call_operand.vmem [shape: bf16[4,32,16], index: 1, kind: input, shape index: {}]
  %s2 = inlined_call_operand.vmem [shape: f32[1,16], index: 2, kind: input, shape index: {}]
  %s3 = inlined_call_operand.vmem [shape: bf16[9,16,16], index: 3, kind: input, shape index: {}]
  %s4 = inlined_call_operand.vmem [shape: f32[1,16], index: 4, kind: input, shape index: {}]
  %s5 = inlined_call_operand.vmem [shape: bf16[2,24,16], index: 5, kind: output, shape index: {}]
  %s6 = sld [smem:[#allocation0]]
  $region53: #{denoiser_forward.12} parent=0
    _
  %s8 = ssub.s32 1, %s6
  %s9 = scalar_select 0, %s8, %s6
  loop: start=0, step=1, limit=4
  $region2: #{denoiser_forward.12} parent=0 // loop_pre_header
    _
  $region3: #{denoiser_forward.12} parent=0 // loop_header
    %s11 = sphi 0, %s15
    %p12 = scmp.ge.s32.totalorder %s11, 4
    %s21 = sphi 0, %s23
    %s24 = sphi 0, %s21
    %s25 = sphi 0, %s24
    %s41 = sphi 0, %s25
    %s45 = sphi 0, %s45
    %s47 = sphi 0, %s45
    %s48 = sphi 0, %s47
    %s62 = sphi 0, %s48
    %s66 = sphi 0, %s66
    %s68 = sphi 0, %s66
    %s69 = sphi 0, %s68
    %s83 = sphi 0, %s69
    %s87 = sphi 0, %s87
    %s89 = sphi 0, %s87
    %s90 = sphi 0, %s89
    %s104 = sphi 0, %s90
    %s108 = sphi 0, %s108
    %s110 = sphi 0, %s108
    %s111 = sphi 0, %s110
    %s125 = sphi 0, %s111
    %s131 = sphi 0, %s133
    %s134 = sphi 0, %s131
    %s135 = sphi 0, %s134
    %s151 = sphi 0, %s135
  $region4: #{denoiser_forward.12} parent=0 // loop_header_branch
    %14 = sbr.rel (%p12) target = $region8
  $region5: #{denoiser_forward.12} parent=0 // loop_body
    %s16 = ssub.s32 %s11, 1
    %s17 = ssub.s32 %s11, 2
    %s18 = sadd.s32 %s11, 1
    %s19 = ssub.s32 %s11, %s18
    %p20 = scmp.eq.s32.totalorder %s19, 0
    %s22 = sadd.s32 %s21, 1
    %s23 = scalar_select %p20, %s21, %s22
    %p26 = pneg %p20
    %p27 = scmp.eq.s32.totalorder %s11, 1
    %p28 = por %p26, %p27
    %p29 = scmp.ne.s32.totalorder %s21, %s24
    %p30 = scmp.eq.s32.totalorder %s11, 0
    %p31 = por %p29, %p30
    %p32 = scmp.ne.s32.totalorder %s21, %s24
    %p33 = scmp.eq.s32.totalorder %s16, 1
    %p34 = por %p32, %p33
    %p35 = scmp.ne.s32.totalorder %s24, %s25
    %p36 = scmp.eq.s32.totalorder %s16, 0
    %p37 = por %p35, %p36
    %p38 = scmp.ne.s32.totalorder %s24, %s25
    %p39 = scmp.eq.s32.totalorder %s17, 1
    %p40 = por %p38, %p39
    %p42 = scmp.ne.s32.totalorder %s25, %s41
    %p43 = scmp.eq.s32.totalorder %s17, 0
    %p44 = por %p42, %p43
    %s46 = sadd.s32 %s45, 1
    %p49 = scmp.eq.s32.totalorder %s11, 1
    %p50 = scmp.ne.s32.totalorder %s45, %s47
    %p51 = scmp.eq.s32.totalorder %s11, 0
    %p52 = por %p50, %p51
    %p53 = scmp.ne.s32.totalorder %s45, %s47
    %p54 = scmp.eq.s32.totalorder %s16, 1
    %p55 = por %p53, %p54
    %p56 = scmp.ne.s32.totalorder %s47, %s48
    %p57 = scmp.eq.s32.totalorder %s16, 0
    %p58 = por %p56, %p57
    %p59 = scmp.ne.s32.totalorder %s47, %s48
    %p60 = scmp.eq.s32.totalorder %s17, 1
    %p61 = por %p59, %p60
    %p63 = scmp.ne.s32.totalorder %s48, %s62
    %p64 = scmp.eq.s32.totalorder %s17, 0
    %p65 = por %p63, %p64
    %s67 = sadd.s32 %s66, 1
    %p70 = scmp.eq.s32.totalorder %s11, 1
    %p71 = scmp.ne.s32.totalorder %s66, %s68
    %p72 = scmp.eq.s32.totalorder %s11, 0
    %p73 = por %p71, %p72
    %p74 = scmp.ne.s32.totalorder %s66, %s68
    %p75 = scmp.eq.s32.totalorder %s16, 1
    %p76 = por %p74, %p75
    %p77 = scmp.ne.s32.totalorder %s68, %s69
    %p78 = scmp.eq.s32.totalorder %s16, 0
    %p79 = por %p77, %p78
    %p80 = scmp.ne.s32.totalorder %s68, %s69
    %p81 = scmp.eq.s32.totalorder %s17, 1
    %p82 = por %p80, %p81
    %p84 = scmp.ne.s32.totalorder %s69, %s83
    %p85 = scmp.eq.s32.totalorder %s17, 0
    %p86 = por %p84, %p85
    %s88 = sadd.s32 %s87, 1
    %p91 = scmp.eq.s32.totalorder %s11, 1
    %p92 = scmp.ne.s32.totalorder %s87, %s89
    %p93 = scmp.eq.s32.totalorder %s11, 0
    %p94 = por %p92, %p93
    %p95 = scmp.ne.s32.totalorder %s87, %s89
    %p96 = scmp.eq.s32.totalorder %s16, 1
    %p97 = por %p95, %p96
    %p98 = scmp.ne.s32.totalorder %s89, %s90
    %p99 = scmp.eq.s32.totalorder %s16, 0
    %p100 = por %p98, %p99
    %p101 = scmp.ne.s32.totalorder %s89, %s90
    %p102 = scmp.eq.s32.totalorder %s17, 1
    %p103 = por %p101, %p102
    %p105 = scmp.ne.s32.totalorder %s90, %s104
    %p106 = scmp.eq.s32.totalorder %s17, 0
    %p107 = por %p105, %p106
    %s109 = sadd.s32 %s108, 1
    %p112 = scmp.eq.s32.totalorder %s11, 1
    %p113 = scmp.ne.s32.totalorder %s108, %s110
    %p114 = scmp.eq.s32.totalorder %s11, 0
    %p115 = por %p113, %p114
    %p116 = scmp.ne.s32.totalorder %s108, %s110
    %p117 = scmp.eq.s32.totalorder %s16, 1
    %p118 = por %p116, %p117
    %p119 = scmp.ne.s32.totalorder %s110, %s111
    %p120 = scmp.eq.s32.totalorder %s16, 0
    %p121 = por %p119, %p120
    %p122 = scmp.ne.s32.totalorder %s110, %s111
    %p123 = scmp.eq.s32.totalorder %s17, 1
    %p124 = por %p122, %p123
    %p126 = scmp.ne.s32.totalorder %s111, %s125
    %p127 = scmp.eq.s32.totalorder %s17, 0
    %p128 = por %p126, %p127
    %s129 = ssub.s32 %s11, %s18
    %p130 = scmp.eq.s32.totalorder %s129, 0
    %s132 = sadd.s32 %s131, 1
    %s133 = scalar_select %p130, %s131, %s132
    %p136 = pneg %p130
    %p137 = scmp.eq.s32.totalorder %s11, 1
    %p138 = por %p136, %p137
    %p139 = scmp.ne.s32.totalorder %s131, %s134
    %p140 = scmp.eq.s32.totalorder %s11, 0
    %p141 = por %p139, %p140
    %p142 = scmp.ne.s32.totalorder %s131, %s134
    %p143 = scmp.eq.s32.totalorder %s16, 1
    %p144 = por %p142, %p143
    %p145 = scmp.ne.s32.totalorder %s134, %s135
    %p146 = scmp.eq.s32.totalorder %s16, 0
    %p147 = por %p145, %p146
    %p148 = scmp.ne.s32.totalorder %s134, %s135
    %p149 = scmp.eq.s32.totalorder %s17, 1
    %p150 = por %p148, %p149
    %p152 = scmp.ne.s32.totalorder %s135, %s151
    %p153 = scmp.eq.s32.totalorder %s17, 0
    %p154 = por %p152, %p153
    %p155 = scmp.le.s32.totalorder 1, %s11
    %p156 = scmp.lt.s32.totalorder %s11, 3
    %p157 = pnand %p155, %p156
    %p158 = pneg %p157
    // Predicated region
    $region9: #{denoiser_forward.12} parent=5 // pred_check
      _
    $region10: #{denoiser_forward.12} parent=5 // pred_check_branch
      %160 = sbr.rel (%p157) target = $region12
    $region11: #{denoiser_forward.12} parent=5 // pred_region
      %s161 = ssub.s32 %s11, 1
      // Predicated region
      $region13: #{denoiser_forward.12} parent=11 // pred_check
        %p162 = pneg %p58
      $region14: #{denoiser_forward.12} parent=11 // pred_check_branch
        %164 = sbr.rel (%p162) target = $region16
      $region15: #{denoiser_forward.12} parent=11 // pred_region
        _
      $region16: #{denoiser_forward.12} parent=11 // pred_fallthru
        _
      // Predicated region
      $region17: #{denoiser_forward.12} parent=11 // pred_check
        %p165 = pneg %p79
      $region18: #{denoiser_forward.12} parent=11 // pred_check_branch
        %167 = sbr.rel (%p165) target = $region20
      $region19: #{denoiser_forward.12} parent=11 // pred_region
        _
      $region20: #{denoiser_forward.12} parent=11 // pred_fallthru
        _
      // Predicated region
      $region21: #{denoiser_forward.12} parent=11 // pred_check
        %p168 = pneg %p100
      $region22: #{denoiser_forward.12} parent=11 // pred_check_branch
        %170 = sbr.rel (%p168) target = $region24
      $region23: #{denoiser_forward.12} parent=11 // pred_region
        _
      $region24: #{denoiser_forward.12} parent=11 // pred_fallthru
        _
      // Predicated region
      $region25: #{denoiser_forward.12} parent=11 // pred_check
        %p171 = pneg %p121
      $region26: #{denoiser_forward.12} parent=11 // pred_check_branch
        %173 = sbr.rel (%p171) target = $region28
      $region27: #{denoiser_forward.12} parent=11 // pred_region
        _
      $region28: #{denoiser_forward.12} parent=11 // pred_fallthru
        _
    $region12: #{denoiser_forward.12} parent=5 // pred_fallthru
      _
    %p174 = scmp.lt.s32.totalorder %s11, 2
    // Predicated region
    $region29: #{denoiser_forward.12} parent=5 // pred_check
      %p175 = pneg %p174
    $region30: #{denoiser_forward.12} parent=5 // pred_check_branch
      %177 = sbr.rel (%p175) target = $region32
    $region31: #{denoiser_forward.12} parent=5 // pred_region
      // Predicated region
      $region33: #{denoiser_forward.12} parent=31 // pred_check
        %p178 = pneg %p31
      $region34: #{denoiser_forward.12} parent=31 // pred_check_branch
        %180 = sbr.rel (%p178) target = $region36
      $region35: #{denoiser_forward.12} parent=31 // pred_region
        %p181 = scmp.lt.s32.totalorder %s11, 1
        %s182 = scalar_select %p181, %s11, 1
        %s183 = smul.addr %s182, 5
        %s184 = smul.addr %s183, 4
        %s185 = scalar_lea.vmem %s0, %s184
      $region36: #{denoiser_forward.12} parent=31 // pred_fallthru
        _
    $region32: #{denoiser_forward.12} parent=5 // pred_fallthru
      _
    %p186 = scmp.le.s32.totalorder 1, %s11
    %p187 = scmp.lt.s32.totalorder %s11, 3
    %p188 = pnand %p186, %p187
    %p189 = pneg %p188
    // Predicated region
    $region37: #{denoiser_forward.12} parent=5 // pred_check
      _
    $region38: #{denoiser_forward.12} parent=5 // pred_check_branch
      %191 = sbr.rel (%p188) target = $region40
    $region39: #{denoiser_forward.12} parent=5 // pred_region
      %s192 = ssub.s32 %s11, 1
      %p193 = scmp.lt.s32.totalorder %s16, 1
      %s194 = scalar_select %p193, %s16, 1
      %s195 = smul.addr %s194, 5
      %s196 = smul.addr %s195, 4
      %s197 = scalar_lea.vmem %s0, %s196
      %p198 = pneg %p37
      %p199 = pneg %p34
      %p200 = pneg %p58
      %p201 = pneg %p55
      %p202 = pneg %p79
      %p203 = pneg %p76
      %p204 = pneg %p100
      %p205 = pneg %p97
      %p206 = pneg %p121
      %p207 = pneg %p118
      %p208 = pneg %p147
      %p209 = pneg %p144
      %p210 = scmp.lt.s32.totalorder %s16, 1
      %s211 = scalar_select %p210, %s16, 1
      %s212 = smul.addr %s211, 3
      %s213 = smul.addr %s212, 4
      %s214 = scalar_lea.vmem %s5, %s213
      %p215 = scmp.lt.s32.totalorder %s16, 1
      %s216 = scalar_select %p215, %s16, 1
      %s217 = smul.addr %s216, 5
      %s218 = smul.addr %s217, 4
      %s219 = scalar_lea.vmem %s0, %s218
      %p220 = scmp.lt.s32.totalorder %s16, 1
      %s221 = scalar_select %p220, %s16, 1
      %s222 = smul.addr %s221, 3
      %s223 = smul.addr %s222, 4
      %s224 = scalar_lea.vmem %s5, %s223
      %v226 = vlaneseq
      %v227 = vshrl.u32 %v226, 7
      %v228 = vadd.s32 %v227, 8
      %v229 = vadd.s32 %v227, 16
      %vm230 = vcmp.lt.s32.totalorder %v227, 0
      %v231 = vsub.s32 0, %v227
      %v232 = vsel %vm230, %v231, %v227
      %v233 = vmul.u32.u64.compose %v232, 2863311531
      %v234 = vextract.low.u32 %v233
      %v235 = vextract.high.u32 %v233
      %v236 = vshrl.u32 %v235, 2
      %v237 = vmul.u32 %v236, 6
      %v238 = vsub.s32 %v232, %v237
      %v239 = vsub.s32 0, %v238
      %v240 = vsel %vm230, %v239, %v238
      %vm241 = vcmp.lt.s32.totalorder %v228, 0
      %v242 = vsub.s32 0, %v228
      %v243 = vsel %vm241, %v242, %v228
      %v244 = vmul.u32.u64.compose %v243, 2863311531
      %v245 = vextract.low.u32 %v244
      %v246 = vextract.high.u32 %v244
      %v247 = vshrl.u32 %v246, 2
      %v248 = vmul.u32 %v247, 6
      %v249 = vsub.s32 %v243, %v248
      %v250 = vsub.s32 0, %v249
      %v251 = vsel %vm241, %v250, %v249
      %vm252 = vcmp.lt.s32.totalorder %v229, 0
      %v253 = vsub.s32 0, %v229
      %v254 = vsel %vm252, %v253, %v229
      %v255 = vmul.u32.u64.compose %v254, 2863311531
      %v256 = vextract.low.u32 %v255
      %v257 = vextract.high.u32 %v255
      %v258 = vshrl.u32 %v257, 2
      %v259 = vmul.u32 %v258, 6
      %v260 = vsub.s32 %v254, %v259
      %v261 = vsub.s32 0, %v260
      %v262 = vsel %vm252, %v261, %v260
      %vm263 = vcmp.ne.s32.totalorder %v240, 0
      %vm264 = vcmp.ne.s32.totalorder %v251, 0
      %vm265 = vcmp.ne.s32.totalorder %v262, 0
      %vm266 = vcmp.lt.s32.totalorder %v240, 0
      %vm267 = vcmp.lt.s32.totalorder %v251, 0
      %vm268 = vcmp.lt.s32.totalorder %v262, 0
      %vm269 = vmand %vm266, %vm263
      %vm270 = vmand %vm267, %vm264
      %vm271 = vmand %vm268, %vm265
      %v272 = vadd.s32 %v240, 6
      %v273 = vadd.s32 %v251, 6
      %v274 = vadd.s32 %v262, 6
      %v275 = vsel %vm269, %v272, %v240
      %v276 = vsel %vm270, %v273, %v251
      %v277 = vsel %vm271, %v274, %v262
      %vm278 = vcmp.lt.s32.totalorder %v275, 4
      %vm279 = vcmp.lt.s32.totalorder %v276, 4
      %vm280 = vcmp.lt.s32.totalorder %v277, 4
      %v281 = vld [vmem:[%s219] sm:$0xf]
      %v282 = vld [vmem:[%s219 + $0x4] sm:$0xf]
      %v283 = vld [vmem:[%s219 + $0x8] sm:$0xf]
      %v284 = vld [vmem:[%s219 + $0xc] sm:$0xf]
      %v285 = vld [vmem:[%s219 + $0x10] sm:$0x3]
      %v286 = vunpack.c.l.bf16 %v281
      %v287 = vunpack.c.l.bf16 %v282
      %v288 = vunpack.c.l.bf16 %v283
      %v289 = vunpack.c.l.bf16 %v284
      %v290 = vunpack.c.l.bf16 %v285
      %vm291 = vcmask 261120
      %292 = vst.msk [vmem:[#allocation2] sm:$0xff] %vm291, %v286
      %293 = vst.msk [vmem:[#allocation2 + $0x8] sm:$0xff] %vm291, %v287
      %294 = vst.msk [vmem:[#allocation2 + $0x10] sm:$0xff] %vm291, %v288
      %295 = vst.msk [vmem:[#allocation2 + $0x18] sm:$0xff] %vm291, %v289
      %vm296 = vcmask 257024
      %297 = vst.msk [vmem:[#allocation2 + $0x20] sm:$0xf] %vm296, %v290
      %v298 = vld [vmem:[#allocation2] sm:$0xff]
      %v299 = vld [vmem:[#allocation2 + $0x8] sm:$0xff]
      %v300 = vld [vmem:[#allocation2 + $0x10] sm:$0xff]
      %v301 = vpack.c.bf16 %v299, %v298
      %v302 = vpack.c.bf16 %v300, %v300
      %v303 = vld [vmem:[%s1] sm:$0xf]
      %v304 = vld [vmem:[%s1 + $0x4] sm:$0xf]
      %v305 = vld [vmem:[%s1 + $0x8] sm:$0xf]
      %v306 = vld [vmem:[%s1 + $0xc] sm:$0xf]
      %v307 = vld [vmem:[#allocation2 + $0x1] sm:$0xff]
      %v308 = vld [vmem:[#allocation2 + $0x9] sm:$0xff]
      %v309 = vld [vmem:[#allocation2 + $0x11] sm:$0xff]
      %v310 = vpack.c.bf16 %v308, %v307
      %v311 = vpack.c.bf16 %v309, %v309
      %s312 = scalar_lea.vmem %s1, 16
      %v313 = vld [vmem:[%s312] sm:$0xf]
      %v314 = vld [vmem:[%s312 + $0x4] sm:$0xf]
      %v315 = vld [vmem:[%s312 + $0x8] sm:$0xf]
      %v316 = vld [vmem:[%s312 + $0xc] sm:$0xf]
      %v321 = vunpack.c.l.b16 %v313
      %v322 = vunpack.c.l.b16 %v314
      %v323 = vunpack.c.l.b16 %v315
      %v324 = vunpack.c.l.b16 %v316
      %v325 = vpack.c.b16 %v322, %v321
      %v326 = vpack.c.b16 %v324, %v323
      %v330 = vsel %vm291, %v310, 0
      %v333 = vsel %vm291, %v311, 0
      %335 = vmatprep.subr.bf16.mxu0 0
      %336 = vmatpush1.bf16.msra.mxu0 0
      %337 = vmatprep.subr.bf16.mxu0 0
      %338 = vmatpush1.bf16.msra.mxu0 0
      %339 = vmatprep.subr.bf16.mxu0 0
      %340 = vmatpush1.bf16.msra.mxu0 0
      %341 = vmatprep.subr.bf16.mxu0 0
      %342 = vmatpush1.bf16.msra.mxu0 0
      %343 = vmatprep.subr.bf16.mxu0 0
      %344 = vmatpush1.bf16.msra.mxu0 0
      %345 = vmatprep.subr.bf16.mxu0 0
      %346 = vmatpush1.bf16.msra.mxu0 0
      %347 = vmatprep.subr.bf16.mxu0 0
      %348 = vmatpush1.bf16.msra.mxu0 %v326
      %349 = vmatprep.subr.bf16.mxu0 0
      %350 = vmatpush1.bf16.msra.mxu0 %v325
      %351 = vmatprep.subr.bf16.mxu0 0
      %352 = vmatpush2.bf16.msra.mxu0 0
      %353 = vmatprep.subr.bf16.mxu0 0
      %354 = vmatpush2.bf16.msra.mxu0 0
      %355 = vmatprep.subr.bf16.mxu0 0
      %356 = vmatpush2.bf16.msra.mxu0 0
      %357 = vmatprep.subr.bf16.mxu0 0
      %358 = vmatpush2.bf16.msra.mxu0 0
      %359 = vmatprep.subr.bf16.mxu0 0
      %360 = vmatpush2.bf16.msra.mxu0 0
      %361 = vmatprep.subr.bf16.mxu0 0
      %362 = vmatpush2.bf16.msra.mxu0 0
      %363 = vmatprep.subr.bf16.mxu0 0
      %364 = vmatpush2.bf16.msra.mxu0 0
      %365 = vmatprep.subr.bf16.mxu0 0
      %366 = vmatpush2.bf16.msra.mxu0 0
      %367 = vmatprep.mubr.bf16.mxu0 0
      %368 = vmatmul.mubr.bf16.gmra.mxu0 %v330
      %v369 = vpop.f32.mrf.mxu0
      %v370 = vadd.f32 0.0, %v369
      %v371 = vpop.f32.mrf.mxu0
      %v372 = vpop.f32.mrf.mxu0
      %v373 = vadd.f32 0.0, %v372
      %v374 = vpop.f32.mrf.mxu0
      %375 = vmatprep.mubr.bf16.mxu0 0
      %376 = vmatmul.mubr.bf16.gmra.mxu0 %v333
      %v377 = vpop.f32.mrf.mxu0
      %v378 = vadd.f32 0.0, %v377
      %v379 = vpop.f32.mrf.mxu0
      %v380 = vpop.f32.mrf.mxu0
      %v381 = vpop.f32.mrf.mxu0
      %382 = vdwg.mxu0
      %v387 = vunpack.c.l.b16 %v303
      %v388 = vunpack.c.l.b16 %v304
      %v389 = vunpack.c.l.b16 %v305
      %v390 = vunpack.c.l.b16 %v306
      %v391 = vpack.c.b16 %v388, %v387
      %v392 = vpack.c.b16 %v390, %v389
      %v396 = vsel %vm291, %v301, 0
      %v399 = vsel %vm291, %v302, 0
      %401 = vmatprep.subr.bf16.mxu0 0
      %402 = vmatpush1.bf16.msra.mxu0 0
      %403 = vmatprep.subr.bf16.mxu0 0
      %404 = vmatpush1.bf16.msra.mxu0 0
      %405 = vmatprep.subr.bf16.mxu0 0
      %406 = vmatpush1.bf16.msra.mxu0 0
      %407 = vmatprep.subr.bf16.mxu0 0
      %408 = vmatpush1.bf16.msra.mxu0 0
      %409 = vmatprep.subr.bf16.mxu0 0
      %410 = vmatpush1.bf16.msra.mxu0 0
      %411 = vmatprep.subr.bf16.mxu0 0
      %412 = vmatpush1.bf16.msra.mxu0 0
      %413 = vmatprep.subr.bf16.mxu0 0
      %414 = vmatpush1.bf16.msra.mxu0 %v392
      %415 = vmatprep.subr.bf16.mxu0 0
      %416 = vmatpush1.bf16.msra.mxu0 %v391
      %417 = vmatprep.subr.bf16.mxu0 0
      %418 = vmatpush2.bf16.msra.mxu0 0
      %419 = vmatprep.subr.bf16.mxu0 0
      %420 = vmatpush2.bf16.msra.mxu0 0
      %421 = vmatprep.subr.bf16.mxu0 0
      %422 = vmatpush2.bf16.msra.mxu0 0
      %423 = vmatprep.subr.bf16.mxu0 0
      %424 = vmatpush2.bf16.msra.mxu0 0
      %425 = vmatprep.subr.bf16.mxu0 0
      %426 = vmatpush2.bf16.msra.mxu0 0
      %427 = vmatprep.subr.bf16.mxu0 0
      %428 = vmatpush2.bf16.msra.mxu0 0
      %429 = vmatprep.subr.bf16.mxu0 0
      %430 = vmatpush2.bf16.msra.mxu0 0
      %431 = vmatprep.subr.bf16.mxu0 0
      %432 = vmatpush2.bf16.msra.mxu0 0
      %433 = vmatprep.mubr.bf16.mxu0 0
      %434 = vmatmul.mubr.bf16.gmra.mxu0 %v396
      %v435 = vpop.f32.mrf.mxu0
      %v436 = vadd.f32 %v370, %v435
      %v437 = vpop.f32.mrf.mxu0
      %v438 = vpop.f32.mrf.mxu0
      %v439 = vadd.f32 %v373, %v438
      %v440 = vpop.f32.mrf.mxu0
      %441 = vmatprep.mubr.bf16.mxu0 0
      %442 = vmatmul.mubr.bf16.gmra.mxu0 %v399
      %v443 = vpop.f32.mrf.mxu0
      %v444 = vadd.f32 %v378, %v443
      %v445 = vpop.f32.mrf.mxu0
      %v446 = vpop.f32.mrf.mxu0
      %v447 = vpop.f32.mrf.mxu0
      %448 = vdwg.mxu0
      %v449 = vld [vmem:[#allocation2 + $0x6] sm:$0xff]
      %v450 = vld [vmem:[#allocation2 + $0xe] sm:$0xff]
      %v451 = vld [vmem:[#allocation2 + $0x16] sm:$0xff]
      %v452 = vpack.c.bf16 %v450, %v449
      %v453 = vpack.c.bf16 %v451, %v451
      %s454 = scalar_lea.vmem %s1, 32
      %v455 = vld [vmem:[%s454] sm:$0xf]
      %v456 = vld [vmem:[%s454 + $0x4] sm:$0xf]
      %v457 = vld [vmem:[%s454 + $0x8] sm:$0xf]
      %v458 = vld [vmem:[%s454 + $0xc] sm:$0xf]
      %v463 = vunpack.c.l.b16 %v455
      %v464 = vunpack.c.l.b16 %v456
      %v465 = vunpack.c.l.b16 %v457
      %v466 = vunpack.c.l.b16 %v458
      %v467 = vpack.c.b16 %v464, %v463
      %v468 = vpack.c.b16 %v466, %v465
      %v472 = vsel %vm291, %v452, 0
      %v475 = vsel %vm291, %v453, 0
      %477 = vmatprep.subr.bf16.mxu0 0
      %478 = vmatpush1.bf16.msra.mxu0 0
      %479 = vmatprep.subr.bf16.mxu0 0
      %480 = vmatpush1.bf16.msra.mxu0 0
      %481 = vmatprep.subr.bf16.mxu0 0
      %482 = vmatpush1.bf16.msra.mxu0 0
      %483 = vmatprep.subr.bf16.mxu0 0
      %484 = vmatpush1.bf16.msra.mxu0 0
      %485 = vmatprep.subr.bf16.mxu0 0
      %486 = vmatpush1.bf16.msra.mxu0 0
      %487 = vmatprep.subr.bf16.mxu0 0
      %488 = vmatpush1.bf16.msra.mxu0 0
      %489 = vmatprep.subr.bf16.mxu0 0
      %490 = vmatpush1.bf16.msra.mxu0 %v468
      %491 = vmatprep.subr.bf16.mxu0 0
      %492 = vmatpush1.bf16.msra.mxu0 %v467
      %493 = vmatprep.subr.bf16.mxu0 0
      %494 = vmatpush2.bf16.msra.mxu0 0
      %495 = vmatprep.subr.bf16.mxu0 0
      %496 = vmatpush2.bf16.msra.mxu0 0
      %497 = vmatprep.subr.bf16.mxu0 0
      %498 = vmatpush2.bf16.msra.mxu0 0
      %499 = vmatprep.subr.bf16.mxu0 0
      %500 = vmatpush2.bf16.msra.mxu0 0
      %501 = vmatprep.subr.bf16.mxu0 0
      %502 = vmatpush2.bf16.msra.mxu0 0
      %503 = vmatprep.subr.bf16.mxu0 0
      %504 = vmatpush2.bf16.msra.mxu0 0
      %505 = vmatprep.subr.bf16.mxu0 0
      %506 = vmatpush2.bf16.msra.mxu0 0
      %507 = vmatprep.subr.bf16.mxu0 0
      %508 = vmatpush2.bf16.msra.mxu0 0
      %509 = vmatprep.mubr.bf16.mxu0 0
      %510 = vmatmul.mubr.bf16.gmra.mxu0 %v472
      %v511 = vpop.f32.mrf.mxu0
      %v512 = vadd.f32 0.0, %v511
      %v513 = vpop.f32.mrf.mxu0
      %v514 = vpop.f32.mrf.mxu0
      %v515 = vadd.f32 0.0, %v514
      %v516 = vpop.f32.mrf.mxu0
      %517 = vmatprep.mubr.bf16.mxu0 0
      %518 = vmatmul.mubr.bf16.gmra.mxu0 %v475
      %v519 = vpop.f32.mrf.mxu0
      %v520 = vadd.f32 0.0, %v519
      %v521 = vpop.f32.mrf.mxu0
      %v522 = vpop.f32.mrf.mxu0
      %v523 = vpop.f32.mrf.mxu0
      %524 = vdwg.mxu0
      %v525 = vadd.f32 %v436, %v512
      %v526 = vadd.f32 %v439, %v515
      %v527 = vadd.f32 %v444, %v520
      %v528 = vld [vmem:[#allocation2 + $0x7] sm:$0xff]
      %v529 = vld [vmem:[#allocation2 + $0xf] sm:$0xff]
      %v530 = vld [vmem:[#allocation2 + $0x17] sm:$0xff]
      %v531 = vpack.c.bf16 %v529, %v528
      %v532 = vpack.c.bf16 %v530, %v530
      %s533 = scalar_lea.vmem %s1, 48
      %v534 = vld [vmem:[%s533] sm:$0xf]
      %v535 = vld [vmem:[%s533 + $0x4] sm:$0xf]
      %v536 = vld [vmem:[%s533 + $0x8] sm:$0xf]
      %v537 = vld [vmem:[%s533 + $0xc] sm:$0xf]
      %v542 = vunpack.c.l.b16 %v534
      %v543 = vunpack.c.l.b16 %v535
      %v544 = vunpack.c.l.b16 %v536
      %v545 = vunpack.c.l.b16 %v537
      %v546 = vpack.c.b16 %v543, %v542
      %v547 = vpack.c.b16 %v545, %v544
      %v551 = vsel %vm291, %v531, 0
      %v554 = vsel %vm291, %v532, 0
      %556 = vmatprep.subr.bf16.mxu0 0
      %557 = vmatpush1.bf16.msra.mxu0 0
      %558 = vmatprep.subr.bf16.mxu0 0
      %559 = vmatpush1.bf16.msra.mxu0 0
      %560 = vmatprep.subr.bf16.mxu0 0
      %561 = vmatpush1.bf16.msra.mxu0 0
      %562 = vmatprep.subr.bf16.mxu0 0
      %563 = vmatpush1.bf16.msra.mxu0 0
      %564 = vmatprep.subr.bf16.mxu0 0
      %565 = vmatpush1.bf16.msra.mxu0 0
      %566 = vmatprep.subr.bf16.mxu0 0
      %567 = vmatpush1.bf16.msra.mxu0 0
      %568 = vmatprep.subr.bf16.mxu0 0
      %569 = vmatpush1.bf16.msra.mxu0 %v547
      %570 = vmatprep.subr.bf16.mxu0 0
      %571 = vmatpush1.bf16.msra.mxu0 %v546
      %572 = vmatprep.subr.bf16.mxu0 0
      %573 = vmatpush2.bf16.msra.mxu0 0
      %574 = vmatprep.subr.bf16.mxu0 0
      %575 = vmatpush2.bf16.msra.mxu0 0
      %576 = vmatprep.subr.bf16.mxu0 0
      %577 = vmatpush2.bf16.msra.mxu0 0
      %578 = vmatprep.subr.bf16.mxu0 0
      %579 = vmatpush2.bf16.msra.mxu0 0
      %580 = vmatprep.subr.bf16.mxu0 0
      %581 = vmatpush2.bf16.msra.mxu0 0
      %582 = vmatprep.subr.bf16.mxu0 0
      %583 = vmatpush2.bf16.msra.mxu0 0
      %584 = vmatprep.subr.bf16.mxu0 0
      %585 = vmatpush2.bf16.msra.mxu0 0
      %586 = vmatprep.subr.bf16.mxu0 0
      %587 = vmatpush2.bf16.msra.mxu0 0
      %588 = vmatprep.mubr.bf16.mxu0 0
      %589 = vmatmul.mubr.bf16.gmra.mxu0 %v551
      %v590 = vpop.f32.mrf.mxu0
      %v591 = vadd.f32 0.0, %v590
      %v592 = vpop.f32.mrf.mxu0
      %v593 = vpop.f32.mrf.mxu0
      %v594 = vadd.f32 0.0, %v593
      %v595 = vpop.f32.mrf.mxu0
      %596 = vmatprep.mubr.bf16.mxu0 0
      %597 = vmatmul.mubr.bf16.gmra.mxu0 %v554
      %v598 = vpop.f32.mrf.mxu0
      %v599 = vadd.f32 0.0, %v598
      %v600 = vpop.f32.mrf.mxu0
      %v601 = vpop.f32.mrf.mxu0
      %v602 = vpop.f32.mrf.mxu0
      %603 = vdwg.mxu0
      %v604 = vadd.f32 %v525, %v591
      %v605 = vadd.f32 %v526, %v594
      %v606 = vadd.f32 %v527, %v599
      %v607 = vld [vmem:[%s2] sm:$0x1]
      %v609 = vlaneseq
      %v610 = vshrl.u32 %v609, 7
      %v611 = vsub.s32 0, %v610
      %v612 = vrot.slane %v607, %v611
      %v614 = vadd.f32 %v604, %v612
      %v615 = vadd.f32 %v605, %v612
      %v616 = vadd.f32 %v606, %v612
      %v617 = vmax.f32 %v614, 0.0
      %v618 = vmax.f32 %v615, 0.0
      %v619 = vmax.f32 %v616, 0.0
      %v620 = vsel %vm278, 1, 0
      %v621 = vsel %vm279, 1, 0
      %v622 = vsel %vm280, 1, 0
      %vm623 = vcmp.eq.s32.totalorder %v620, 1
      %vm624 = vcmp.eq.s32.totalorder %v621, 1
      %vm625 = vcmp.eq.s32.totalorder %v622, 1
      %v626 = vsel %vm623, %v617, 0.0
      %v627 = vsel %vm624, %v618, 0.0
      %v628 = vsel %vm625, %v619, 0.0
      %vm629 = vcmask 130048
      %630 = vst.msk [vmem:[#allocation3] sm:$0xff] %vm629, 0.0
      %631 = vst.msk [vmem:[#allocation3 + $0x8] sm:$0xff] %vm629, 0.0
      %632 = vst.msk [vmem:[#allocation3 + $0x10] sm:$0xff] %vm629, 0.0
      %633 = vst.msk [vmem:[#allocation3 + $0x18] sm:$0xff] %vm629, 0.0
      %634 = vst.msk [vmem:[#allocation3 + $0x20] sm:$0xff] %vm629, 0.0
      %vm635 = vcmask 123904
      %636 = vst.msk [vmem:[#allocation3 + $0x28] sm:$0x3] %vm635, 0.0
      %637 = vst.msk [vmem:[#allocation3 + $0x7] sm:$0xff] %vm629, %v626
      %638 = vst.msk [vmem:[#allocation3 + $0xf] sm:$0xff] %vm629, %v627
      %639 = vst.msk [vmem:[#allocation3 + $0x17] sm:$0xff] %vm629, %v628
      %v640 = vld [vmem:[#allocation3] sm:$0xff]
      %v641 = vld [vmem:[#allocation3 + $0x8] sm:$0xff]
      %v642 = vld [vmem:[#allocation3 + $0x10] sm:$0xff]
      %v643 = vpack.c.bf16 %v641, %v640
      %v644 = vpack.c.bf16 %v642, %v642
      %v645 = vld [vmem:[%s3] sm:$0xf]
      %v646 = vld [vmem:[%s3 + $0x4] sm:$0xf]
      %v647 = vld [vmem:[#allocation3 + $0x1] sm:$0xff]
      %v648 = vld [vmem:[#allocation3 + $0x9] sm:$0xff]
      %v649 = vld [vmem:[#allocation3 + $0x11] sm:$0xff]
      %v650 = vpack.c.bf16 %v648, %v647
      %v651 = vpack.c.bf16 %v649, %v649
      %s652 = scalar_lea.vmem %s3, 8
      %v653 = vld [vmem:[%s652] sm:$0xf]
      %v654 = vld [vmem:[%s652 + $0x4] sm:$0xf]
      %v657 = vunpack.c.l.b16 %v653
      %v658 = vunpack.c.l.b16 %v654
      %v659 = vpack.c.b16 %v658, %v657
      %v662 = vsel %vm629, %v650, 0
      %v665 = vsel %vm629, %v651, 0
      %667 = vmatprep.subr.bf16.mxu0 0
      %668 = vmatpush1.bf16.msra.mxu0 0
      %669 = vmatprep.subr.bf16.mxu0 0
      %670 = vmatpush1.bf16.msra.mxu0 0
      %671 = vmatprep.subr.bf16.mxu0 0
      %672 = vmatpush1.bf16.msra.mxu0 0
      %673 = vmatprep.subr.bf16.mxu0 0
      %674 = vmatpush1.bf16.msra.mxu0 0
      %675 = vmatprep.subr.bf16.mxu0 0
      %676 = vmatpush1.bf16.msra.mxu0 0
      %677 = vmatprep.subr.bf16.mxu0 0
      %678 = vmatpush1.bf16.msra.mxu0 0
      %679 = vmatprep.subr.bf16.mxu0 0
      %680 = vmatpush1.bf16.msra.mxu0 0
      %681 = vmatprep.subr.bf16.mxu0 0
      %682 = vmatpush1.bf16.msra.mxu0 %v659
      %683 = vmatprep.subr.bf16.mxu0 0
      %684 = vmatpush2.bf16.msra.mxu0 0
      %685 = vmatprep.subr.bf16.mxu0 0
      %686 = vmatpush2.bf16.msra.mxu0 0
      %687 = vmatprep.subr.bf16.mxu0 0
      %688 = vmatpush2.bf16.msra.mxu0 0
      %689 = vmatprep.subr.bf16.mxu0 0
      %690 = vmatpush2.bf16.msra.mxu0 0
      %691 = vmatprep.subr.bf16.mxu0 0
      %692 = vmatpush2.bf16.msra.mxu0 0
      %693 = vmatprep.subr.bf16.mxu0 0
      %694 = vmatpush2.bf16.msra.mxu0 0
      %695 = vmatprep.subr.bf16.mxu0 0
      %696 = vmatpush2.bf16.msra.mxu0 0
      %697 = vmatprep.subr.bf16.mxu0 0
      %698 = vmatpush2.bf16.msra.mxu0 0
      %699 = vmatprep.mubr.bf16.mxu0 0
      %700 = vmatmul.mubr.bf16.gmra.mxu0 %v662
      %v701 = vpop.f32.mrf.mxu0
      %v702 = vadd.f32 0.0, %v701
      %v703 = vpop.f32.mrf.mxu0
      %v704 = vpop.f32.mrf.mxu0
      %v705 = vadd.f32 0.0, %v704
      %v706 = vpop.f32.mrf.mxu0
      %707 = vmatprep.mubr.bf16.mxu0 0
      %708 = vmatmul.mubr.bf16.gmra.mxu0 %v665
      %v709 = vpop.f32.mrf.mxu0
      %v710 = vadd.f32 0.0, %v709
      %v711 = vpop.f32.mrf.mxu0
      %v712 = vpop.f32.mrf.mxu0
      %v713 = vpop.f32.mrf.mxu0
      %714 = vdwg.mxu0
      %v717 = vunpack.c.l.b16 %v645
      %v718 = vunpack.c.l.b16 %v646
      %v719 = vpack.c.b16 %v718, %v717
      %v722 = vsel %vm629, %v643, 0
      %v725 = vsel %vm629, %v644, 0
      %727 = vmatprep.subr.bf16.mxu0 0
      %728 = vmatpush1.bf16.msra.mxu0 0
      %729 = vmatprep.subr.bf16.mxu0 0
      %730 = vmatpush1.bf16.msra.mxu0 0
      %731 = vmatprep.subr.bf16.mxu0 0
      %732 = vmatpush1.bf16.msra.mxu0 0
      %733 = vmatprep.subr.bf16.mxu0 0
      %734 = vmatpush1.bf16.msra.mxu0 0
      %735 = vmatprep.subr.bf16.mxu0 0
      %736 = vmatpush1.bf16.msra.mxu0 0
      %737 = vmatprep.subr.bf16.mxu0 0
      %738 = vmatpush1.bf16.msra.mxu0 0
      %739 = vmatprep.subr.bf16.mxu0 0
      %740 = vmatpush1.bf16.msra.mxu0 0
      %741 = vmatprep.subr.bf16.mxu0 0
      %742 = vmatpush1.bf16.msra.mxu0 %v719
      %743 = vmatprep.subr.bf16.mxu0 0
      %744 = vmatpush2.bf16.msra.mxu0 0
      %745 = vmatprep.subr.bf16.mxu0 0
      %746 = vmatpush2.bf16.msra.mxu0 0
      %747 = vmatprep.subr.bf16.mxu0 0
      %748 = vmatpush2.bf16.msra.mxu0 0
      %749 = vmatprep.subr.bf16.mxu0 0
      %750 = vmatpush2.bf16.msra.mxu0 0
      %751 = vmatprep.subr.bf16.mxu0 0
      %752 = vmatpush2.bf16.msra.mxu0 0
      %753 = vmatprep.subr.bf16.mxu0 0
      %754 = vmatpush2.bf16.msra.mxu0 0
      %755 = vmatprep.subr.bf16.mxu0 0
      %756 = vmatpush2.bf16.msra.mxu0 0
      %757 = vmatprep.subr.bf16.mxu0 0
      %758 = vmatpush2.bf16.msra.mxu0 0
      %759 = vmatprep.mubr.bf16.mxu0 0
      %760 = vmatmul.mubr.bf16.gmra.mxu0 %v722
      %v761 = vpop.f32.mrf.mxu0
      %v762 = vadd.f32 %v702, %v761
      %v763 = vpop.f32.mrf.mxu0
      %v764 = vpop.f32.mrf.mxu0
      %v765 = vadd.f32 %v705, %v764
      %v766 = vpop.f32.mrf.mxu0
      %767 = vmatprep.mubr.bf16.mxu0 0
      %768 = vmatmul.mubr.bf16.gmra.mxu0 %v725
      %v769 = vpop.f32.mrf.mxu0
      %v770 = vadd.f32 %v710, %v769
      %v771 = vpop.f32.mrf.mxu0
      %v772 = vpop.f32.mrf.mxu0
      %v773 = vpop.f32.mrf.mxu0
      %774 = vdwg.mxu0
      %v775 = vld [vmem:[#allocation3 + $0x2] sm:$0xff]
      %v776 = vld [vmem:[#allocation3 + $0xa] sm:$0xff]
      %v777 = vld [vmem:[#allocation3 + $0x12] sm:$0xff]
      %v778 = vpack.c.bf16 %v776, %v775
      %v779 = vpack.c.bf16 %v777, %v777
      %s780 = scalar_lea.vmem %s3, 16
      %v781 = vld [vmem:[%s780] sm:$0xf]
      %v782 = vld [vmem:[%s780 + $0x4] sm:$0xf]
      %v785 = vunpack.c.l.b16 %v781
      %v786 = vunpack.c.l.b16 %v782
      %v787 = vpack.c.b16 %v786, %v785
      %v790 = vsel %vm629, %v778, 0
      %v793 = vsel %vm629, %v779, 0
      %795 = vmatprep.subr.bf16.mxu0 0
      %796 = vmatpush1.bf16.msra.mxu0 0
      %797 = vmatprep.subr.bf16.mxu0 0
      %798 = vmatpush1.bf16.msra.mxu0 0
      %799 = vmatprep.subr.bf16.mxu0 0
      %800 = vmatpush1.bf16.msra.mxu0 0
      %801 = vmatprep.subr.bf16.mxu0 0
      %802 = vmatpush1.bf16.msra.mxu0 0
      %803 = vmatprep.subr.bf16.mxu0 0
      %804 = vmatpush1.bf16.msra.mxu0 0
      %805 = vmatprep.subr.bf16.mxu0 0
      %806 = vmatpush1.bf16.msra.mxu0 0
      %807 = vmatprep.subr.bf16.mxu0 0
      %808 = vmatpush1.bf16.msra.mxu0 0
      %809 = vmatprep.subr.bf16.mxu0 0
      %810 = vmatpush1.bf16.msra.mxu0 %v787
      %811 = vmatprep.subr.bf16.mxu0 0
      %812 = vmatpush2.bf16.msra.mxu0 0
      %813 = vmatprep.subr.bf16.mxu0 0
      %814 = vmatpush2.bf16.msra.mxu0 0
      %815 = vmatprep.subr.bf16.mxu0 0
      %816 = vmatpush2.bf16.msra.mxu0 0
      %817 = vmatprep.subr.bf16.mxu0 0
      %818 = vmatpush2.bf16.msra.mxu0 0
      %819 = vmatprep.subr.bf16.mxu0 0
      %820 = vmatpush2.bf16.msra.mxu0 0
      %821 = vmatprep.subr.bf16.mxu0 0
      %822 = vmatpush2.bf16.msra.mxu0 0
      %823 = vmatprep.subr.bf16.mxu0 0
      %824 = vmatpush2.bf16.msra.mxu0 0
      %825 = vmatprep.subr.bf16.mxu0 0
      %826 = vmatpush2.bf16.msra.mxu0 0
      %827 = vmatprep.mubr.bf16.mxu0 0
      %828 = vmatmul.mubr.bf16.gmra.mxu0 %v790
      %v829 = vpop.f32.mrf.mxu0
      %v830 = vadd.f32 0.0, %v829
      %v831 = vpop.f32.mrf.mxu0
      %v832 = vpop.f32.mrf.mxu0
      %v833 = vadd.f32 0.0, %v832
      %v834 = vpop.f32.mrf.mxu0
      %835 = vmatprep.mubr.bf16.mxu0 0
      %836 = vmatmul.mubr.bf16.gmra.mxu0 %v793
      %v837 = vpop.f32.mrf.mxu0
      %v838 = vadd.f32 0.0, %v837
      %v839 = vpop.f32.mrf.mxu0
      %v840 = vpop.f32.mrf.mxu0
      %v841 = vpop.f32.mrf.mxu0
      %842 = vdwg.mxu0
      %v843 = vadd.f32 %v762, %v830
      %v844 = vadd.f32 %v765, %v833
      %v845 = vadd.f32 %v770, %v838
      %v846 = vld [vmem:[#allocation3 + $0x6] sm:$0xff]
      %v847 = vld [vmem:[#allocation3 + $0xe] sm:$0xff]
      %v848 = vld [vmem:[#allocation3 + $0x16] sm:$0xff]
      %v849 = vpack.c.bf16 %v847, %v846
      %v850 = vpack.c.bf16 %v848, %v848
      %s851 = scalar_lea.vmem %s3, 24
      %v852 = vld [vmem:[%s851] sm:$0xf]
      %v853 = vld [vmem:[%s851 + $0x4] sm:$0xf]
      %v856 = vunpack.c.l.b16 %v852
      %v857 = vunpack.c.l.b16 %v853
      %v858 = vpack.c.b16 %v857, %v856
      %v861 = vsel %vm629, %v849, 0
      %v864 = vsel %vm629, %v850, 0
      %866 = vmatprep.subr.bf16.mxu0 0
      %867 = vmatpush1.bf16.msra.mxu0 0
      %868 = vmatprep.subr.bf16.mxu0 0
      %869 = vmatpush1.bf16.msra.mxu0 0
      %870 = vmatprep.subr.bf16.mxu0 0
      %871 = vmatpush1.bf16.msra.mxu0 0
      %872 = vmatprep.subr.bf16.mxu0 0
      %873 = vmatpush1.bf16.msra.mxu0 0
      %874 = vmatprep.subr.bf16.mxu0 0
      %875 = vmatpush1.bf16.msra.mxu0 0
      %876 = vmatprep.subr.bf16.mxu0 0
      %877 = vmatpush1.bf16.msra.mxu0 0
      %878 = vmatprep.subr.bf16.mxu0 0
      %879 = vmatpush1.bf16.msra.mxu0 0
      %880 = vmatprep.subr.bf16.mxu0 0
      %881 = vmatpush1.bf16.msra.mxu0 %v858
      %882 = vmatprep.subr.bf16.mxu0 0
      %883 = vmatpush2.bf16.msra.mxu0 0
      %884 = vmatprep.subr.bf16.mxu0 0
      %885 = vmatpush2.bf16.msra.mxu0 0
      %886 = vmatprep.subr.bf16.mxu0 0
      %887 = vmatpush2.bf16.msra.mxu0 0
      %888 = vmatprep.subr.bf16.mxu0 0
      %889 = vmatpush2.bf16.msra.mxu0 0
      %890 = vmatprep.subr.bf16.mxu0 0
      %891 = vmatpush2.bf16.msra.mxu0 0
      %892 = vmatprep.subr.bf16.mxu0 0
      %893 = vmatpush2.bf16.msra.mxu0 0
      %894 = vmatprep.subr.bf16.mxu0 0
      %895 = vmatpush2.bf16.msra.mxu0 0
      %896 = vmatprep.subr.bf16.mxu0 0
      %897 = vmatpush2.bf16.msra.mxu0 0
      %898 = vmatprep.mubr.bf16.mxu0 0
      %899 = vmatmul.mubr.bf16.gmra.mxu0 %v861
      %v900 = vpop.f32.mrf.mxu0
      %v901 = vadd.f32 0.0, %v900
      %v902 = vpop.f32.mrf.mxu0
      %v903 = vpop.f32.mrf.mxu0
      %v904 = vadd.f32 0.0, %v903
      %v905 = vpop.f32.mrf.mxu0
      %906 = vmatprep.mubr.bf16.mxu0 0
      %907 = vmatmul.mubr.bf16.gmra.mxu0 %v864
      %v908 = vpop.f32.mrf.mxu0
      %v909 = vadd.f32 0.0, %v908
      %v910 = vpop.f32.mrf.mxu0
      %v911 = vpop.f32.mrf.mxu0
      %v912 = vpop.f32.mrf.mxu0
      %913 = vdwg.mxu0
      %v914 = vadd.f32 %v843, %v901
      %v915 = vadd.f32 %v844, %v904
      %v916 = vadd.f32 %v845, %v909
      %v917 = vld [vmem:[#allocation3 + $0x7] sm:$0xff]
      %v918 = vld [vmem:[#allocation3 + $0xf] sm:$0xff]
      %v919 = vld [vmem:[#allocation3 + $0x17] sm:$0xff]
      %v920 = vpack.c.bf16 %v918, %v917
      %v921 = vpack.c.bf16 %v919, %v919
      %s922 = scalar_lea.vmem %s3, 32
      %v923 = vld [vmem:[%s922] sm:$0xf]
      %v924 = vld [vmem:[%s922 + $0x4] sm:$0xf]
      %v927 = vunpack.c.l.b16 %v923
      %v928 = vunpack.c.l.b16 %v924
      %v929 = vpack.c.b16 %v928, %v927
      %v932 = vsel %vm629, %v920, 0
      %v935 = vsel %vm629, %v921, 0
      %937 = vmatprep.subr.bf16.mxu0 0
      %938 = vmatpush1.bf16.msra.mxu0 0
      %939 = vmatprep.subr.bf16.mxu0 0
      %940 = vmatpush1.bf16.msra.mxu0 0
      %941 = vmatprep.subr.bf16.mxu0 0
      %942 = vmatpush1.bf16.msra.mxu0 0
      %943 = vmatprep.subr.bf16.mxu0 0
      %944 = vmatpush1.bf16.msra.mxu0 0
      %945 = vmatprep.subr.bf16.mxu0 0
      %946 = vmatpush1.bf16.msra.mxu0 0
      %947 = vmatprep.subr.bf16.mxu0 0
      %948 = vmatpush1.bf16.msra.mxu0 0
      %949 = vmatprep.subr.bf16.mxu0 0
      %950 = vmatpush1.bf16.msra.mxu0 0
      %951 = vmatprep.subr.bf16.mxu0 0
      %952 = vmatpush1.bf16.msra.mxu0 %v929
      %953 = vmatprep.subr.bf16.mxu0 0
      %954 = vmatpush2.bf16.msra.mxu0 0
      %955 = vmatprep.subr.bf16.mxu0 0
      %956 = vmatpush2.bf16.msra.mxu0 0
      %957 = vmatprep.subr.bf16.mxu0 0
      %958 = vmatpush2.bf16.msra.mxu0 0
      %959 = vmatprep.subr.bf16.mxu0 0
      %960 = vmatpush2.bf16.msra.mxu0 0
      %961 = vmatprep.subr.bf16.mxu0 0
      %962 = vmatpush2.bf16.msra.mxu0 0
      %963 = vmatprep.subr.bf16.mxu0 0
      %964 = vmatpush2.bf16.msra.mxu0 0
      %965 = vmatprep.subr.bf16.mxu0 0
      %966 = vmatpush2.bf16.msra.mxu0 0
      %967 = vmatprep.subr.bf16.mxu0 0
      %968 = vmatpush2.bf16.msra.mxu0 0
      %969 = vmatprep.mubr.bf16.mxu0 0
      %970 = vmatmul.mubr.bf16.gmra.mxu0 %v932
      %v971 = vpop.f32.mrf.mxu0
      %v972 = vadd.f32 0.0, %v971
      %v973 = vpop.f32.mrf.mxu0
      %v974 = vpop.f32.mrf.mxu0
      %v975 = vadd.f32 0.0, %v974
      %v976 = vpop.f32.mrf.mxu0
      %977 = vmatprep.mubr.bf16.mxu0 0
      %978 = vmatmul.mubr.bf16.gmra.mxu0 %v935
      %v979 = vpop.f32.mrf.mxu0
      %v980 = vadd.f32 0.0, %v979
      %v981 = vpop.f32.mrf.mxu0
      %v982 = vpop.f32.mrf.mxu0
      %v983 = vpop.f32.mrf.mxu0
      %984 = vdwg.mxu0
      %v985 = vadd.f32 %v914, %v972
      %v986 = vadd.f32 %v915, %v975
      %v987 = vadd.f32 %v916, %v980
      %v988 = vld [vmem:[#allocation3 + $0x8] sm:$0xff]
      %v989 = vld [vmem:[#allocation3 + $0x10] sm:$0xff]
      %v990 = vld [vmem:[#allocation3 + $0x18] sm:$0xff]
      %v991 = vpack.c.bf16 %v989, %v988
      %v992 = vpack.c.bf16 %v990, %v990
      %s993 = scalar_lea.vmem %s3, 40
      %v994 = vld [vmem:[%s993] sm:$0xf]
      %v995 = vld [vmem:[%s993 + $0x4] sm:$0xf]
      %v998 = vunpack.c.l.b16 %v994
      %v999 = vunpack.c.l.b16 %v995
      %v1000 = vpack.c.b16 %v999, %v998
      %v1003 = vsel %vm629, %v991, 0
      %v1006 = vsel %vm629, %v992, 0
      %1008 = vmatprep.subr.bf16.mxu0 0
      %1009 = vmatpush1.bf16.msra.mxu0 0
      %1010 = vmatprep.subr.bf16.mxu0 0
      %1011 = vmatpush1.bf16.msra.mxu0 0
      %1012 = vmatprep.subr.bf16.mxu0 0
      %1013 = vmatpush1.bf16.msra.mxu0 0
      %1014 = vmatprep.subr.bf16.mxu0 0
      %1015 = vmatpush1.bf16.msra.mxu0 0
      %1016 = vmatprep.subr.bf16.mxu0 0
      %1017 = vmatpush1.bf16.msra.mxu0 0
      %1018 = vmatprep.subr.bf16.mxu0 0
      %1019 = vmatpush1.bf16.msra.mxu0 0
      %1020 = vmatprep.subr.bf16.mxu0 0
      %1021 = vmatpush1.bf16.msra.mxu0 0
      %1022 = vmatprep.subr.bf16.mxu0 0
      %1023 = vmatpush1.bf16.msra.mxu0 %v1000
      %1024 = vmatprep.subr.bf16.mxu0 0
      %1025 = vmatpush2.bf16.msra.mxu0 0
      %1026 = vmatprep.subr.bf16.mxu0 0
      %1027 = vmatpush2.bf16.msra.mxu0 0
      %1028 = vmatprep.subr.bf16.mxu0 0
      %1029 = vmatpush2.bf16.msra.mxu0 0
      %1030 = vmatprep.subr.bf16.mxu0 0
      %1031 = vmatpush2.bf16.msra.mxu0 0
      %1032 = vmatprep.subr.bf16.mxu0 0
      %1033 = vmatpush2.bf16.msra.mxu0 0
      %1034 = vmatprep.subr.bf16.mxu0 0
      %1035 = vmatpush2.bf16.msra.mxu0 0
      %1036 = vmatprep.subr.bf16.mxu0 0
      %1037 = vmatpush2.bf16.msra.mxu0 0
      %1038 = vmatprep.subr.bf16.mxu0 0
      %1039 = vmatpush2.bf16.msra.mxu0 0
      %1040 = vmatprep.mubr.bf16.mxu0 0
      %1041 = vmatmul.mubr.bf16.gmra.mxu0 %v1003
      %v1042 = vpop.f32.mrf.mxu0
      %v1043 = vadd.f32 0.0, %v1042
      %v1044 = vpop.f32.mrf.mxu0
      %v1045 = vpop.f32.mrf.mxu0
      %v1046 = vadd.f32 0.0, %v1045
      %v1047 = vpop.f32.mrf.mxu0
      %1048 = vmatprep.mubr.bf16.mxu0 0
      %1049 = vmatmul.mubr.bf16.gmra.mxu0 %v1006
      %v1050 = vpop.f32.mrf.mxu0
      %v1051 = vadd.f32 0.0, %v1050
      %v1052 = vpop.f32.mrf.mxu0
      %v1053 = vpop.f32.mrf.mxu0
      %v1054 = vpop.f32.mrf.mxu0
      %1055 = vdwg.mxu0
      %v1056 = vadd.f32 %v985, %v1043
      %v1057 = vadd.f32 %v986, %v1046
      %v1058 = vadd.f32 %v987, %v1051
      %v1059 = vld [vmem:[#allocation3 + $0xc] sm:$0xff]
      %v1060 = vld [vmem:[#allocation3 + $0x14] sm:$0xff]
      %v1061 = vld [vmem:[#allocation3 + $0x1c] sm:$0xff]
      %v1062 = vpack.c.bf16 %v1060, %v1059
      %v1063 = vpack.c.bf16 %v1061, %v1061
      %s1064 = scalar_lea.vmem %s3, 48
      %v1065 = vld [vmem:[%s1064] sm:$0xf]
      %v1066 = vld [vmem:[%s1064 + $0x4] sm:$0xf]
      %v1069 = vunpack.c.l.b16 %v1065
      %v1070 = vunpack.c.l.b16 %v1066
      %v1071 = vpack.c.b16 %v1070, %v1069
      %v1074 = vsel %vm629, %v1062, 0
      %v1077 = vsel %vm629, %v1063, 0
      %1079 = vmatprep.subr.bf16.mxu0 0
      %1080 = vmatpush1.bf16.msra.mxu0 0
      %1081 = vmatprep.subr.bf16.mxu0 0
      %1082 = vmatpush1.bf16.msra.mxu0 0
      %1083 = vmatprep.subr.bf16.mxu0 0
      %1084 = vmatpush1.bf16.msra.mxu0 0
      %1085 = vmatprep.subr.bf16.mxu0 0
      %1086 = vmatpush1.bf16.msra.mxu0 0
      %1087 = vmatprep.subr.bf16.mxu0 0
      %1088 = vmatpush1.bf16.msra.mxu0 0
      %1089 = vmatprep.subr.bf16.mxu0 0
      %1090 = vmatpush1.bf16.msra.mxu0 0
      %1091 = vmatprep.subr.bf16.mxu0 0
      %1092 = vmatpush1.bf16.msra.mxu0 0
      %1093 = vmatprep.subr.bf16.mxu0 0
      %1094 = vmatpush1.bf16.msra.mxu0 %v1071
      %1095 = vmatprep.subr.bf16.mxu0 0
      %1096 = vmatpush2.bf16.msra.mxu0 0
      %1097 = vmatprep.subr.bf16.mxu0 0
      %1098 = vmatpush2.bf16.msra.mxu0 0
      %1099 = vmatprep.subr.bf16.mxu0 0
      %1100 = vmatpush2.bf16.msra.mxu0 0
      %1101 = vmatprep.subr.bf16.mxu0 0
      %1102 = vmatpush2.bf16.msra.mxu0 0
      %1103 = vmatprep.subr.bf16.mxu0 0
      %1104 = vmatpush2.bf16.msra.mxu0 0
      %1105 = vmatprep.subr.bf16.mxu0 0
      %1106 = vmatpush2.bf16.msra.mxu0 0
      %1107 = vmatprep.subr.bf16.mxu0 0
      %1108 = vmatpush2.bf16.msra.mxu0 0
      %1109 = vmatprep.subr.bf16.mxu0 0
      %1110 = vmatpush2.bf16.msra.mxu0 0
      %1111 = vmatprep.mubr.bf16.mxu0 0
      %1112 = vmatmul.mubr.bf16.gmra.mxu0 %v1074
      %v1113 = vpop.f32.mrf.mxu0
      %v1114 = vadd.f32 0.0, %v1113
      %v1115 = vpop.f32.mrf.mxu0
      %v1116 = vpop.f32.mrf.mxu0
      %v1117 = vadd.f32 0.0, %v1116
      %v1118 = vpop.f32.mrf.mxu0
      %1119 = vmatprep.mubr.bf16.mxu0 0
      %1120 = vmatmul.mubr.bf16.gmra.mxu0 %v1077
      %v1121 = vpop.f32.mrf.mxu0
      %v1122 = vadd.f32 0.0, %v1121
      %v1123 = vpop.f32.mrf.mxu0
      %v1124 = vpop.f32.mrf.mxu0
      %v1125 = vpop.f32.mrf.mxu0
      %1126 = vdwg.mxu0
      %v1127 = vadd.f32 %v1056, %v1114
      %v1128 = vadd.f32 %v1057, %v1117
      %v1129 = vadd.f32 %v1058, %v1122
      %v1130 = vld [vmem:[#allocation3 + $0xd] sm:$0xff]
      %v1131 = vld [vmem:[#allocation3 + $0x15] sm:$0xff]
      %v1132 = vld [vmem:[#allocation3 + $0x1d] sm:$0xff]
      %v1133 = vpack.c.bf16 %v1131, %v1130
      %v1134 = vpack.c.bf16 %v1132, %v1132
      %s1135 = scalar_lea.vmem %s3, 56
      %v1136 = vld [vmem:[%s1135] sm:$0xf]
      %v1137 = vld [vmem:[%s1135 + $0x4] sm:$0xf]
      %v1140 = vunpack.c.l.b16 %v1136
      %v1141 = vunpack.c.l.b16 %v1137
      %v1142 = vpack.c.b16 %v1141, %v1140
      %v1145 = vsel %vm629, %v1133, 0
      %v1148 = vsel %vm629, %v1134, 0
      %1150 = vmatprep.subr.bf16.mxu0 0
      %1151 = vmatpush1.bf16.msra.mxu0 0
      %1152 = vmatprep.subr.bf16.mxu0 0
      %1153 = vmatpush1.bf16.msra.mxu0 0
      %1154 = vmatprep.subr.bf16.mxu0 0
      %1155 = vmatpush1.bf16.msra.mxu0 0
      %1156 = vmatprep.subr.bf16.mxu0 0
      %1157 = vmatpush1.bf16.msra.mxu0 0
      %1158 = vmatprep.subr.bf16.mxu0 0
      %1159 = vmatpush1.bf16.msra.mxu0 0
      %1160 = vmatprep.subr.bf16.mxu0 0
      %1161 = vmatpush1.bf16.msra.mxu0 0
      %1162 = vmatprep.subr.bf16.mxu0 0
      %1163 = vmatpush1.bf16.msra.mxu0 0
      %1164 = vmatprep.subr.bf16.mxu0 0
      %1165 = vmatpush1.bf16.msra.mxu0 %v1142
      %1166 = vmatprep.subr.bf16.mxu0 0
      %1167 = vmatpush2.bf16.msra.mxu0 0
      %1168 = vmatprep.subr.bf16.mxu0 0
      %1169 = vmatpush2.bf16.msra.mxu0 0
      %1170 = vmatprep.subr.bf16.mxu0 0
      %1171 = vmatpush2.bf16.msra.mxu0 0
      %1172 = vmatprep.subr.bf16.mxu0 0
      %1173 = vmatpush2.bf16.msra.mxu0 0
      %1174 = vmatprep.subr.bf16.mxu0 0
      %1175 = vmatpush2.bf16.msra.mxu0 0
      %1176 = vmatprep.subr.bf16.mxu0 0
      %1177 = vmatpush2.bf16.msra.mxu0 0
      %1178 = vmatprep.subr.bf16.mxu0 0
      %1179 = vmatpush2.bf16.msra.mxu0 0
      %1180 = vmatprep.subr.bf16.mxu0 0
      %1181 = vmatpush2.bf16.msra.mxu0 0
      %1182 = vmatprep.mubr.bf16.mxu0 0
      %1183 = vmatmul.mubr.bf16.gmra.mxu0 %v1145
      %v1184 = vpop.f32.mrf.mxu0
      %v1185 = vadd.f32 0.0, %v1184
      %v1186 = vpop.f32.mrf.mxu0
      %v1187 = vpop.f32.mrf.mxu0
      %v1188 = vadd.f32 0.0, %v1187
      %v1189 = vpop.f32.mrf.mxu0
      %1190 = vmatprep.mubr.bf16.mxu0 0
      %1191 = vmatmul.mubr.bf16.gmra.mxu0 %v1148
      %v1192 = vpop.f32.mrf.mxu0
      %v1193 = vadd.f32 0.0, %v1192
      %v1194 = vpop.f32.mrf.mxu0
      %v1195 = vpop.f32.mrf.mxu0
      %v1196 = vpop.f32.mrf.mxu0
      %1197 = vdwg.mxu0
      %v1198 = vadd.f32 %v1127, %v1185
      %v1199 = vadd.f32 %v1128, %v1188
      %v1200 = vadd.f32 %v1129, %v1193
      %v1201 = vld [vmem:[#allocation3 + $0xe] sm:$0xff]
      %v1202 = vld [vmem:[#allocation3 + $0x16] sm:$0xff]
      %v1203 = vld [vmem:[#allocation3 + $0x1e] sm:$0xff]
      %v1204 = vpack.c.bf16 %v1202, %v1201
      %v1205 = vpack.c.bf16 %v1203, %v1203
      %s1206 = scalar_lea.vmem %s3, 64
      %v1207 = vld [vmem:[%s1206] sm:$0xf]
      %v1208 = vld [vmem:[%s1206 + $0x4] sm:$0xf]
      %v1211 = vunpack.c.l.b16 %v1207
      %v1212 = vunpack.c.l.b16 %v1208
      %v1213 = vpack.c.b16 %v1212, %v1211
      %v1216 = vsel %vm629, %v1204, 0
      %v1219 = vsel %vm629, %v1205, 0
      %1221 = vmatprep.subr.bf16.mxu0 0
      %1222 = vmatpush1.bf16.msra.mxu0 0
      %1223 = vmatprep.subr.bf16.mxu0 0
      %1224 = vmatpush1.bf16.msra.mxu0 0
      %1225 = vmatprep.subr.bf16.mxu0 0
      %1226 = vmatpush1.bf16.msra.mxu0 0
      %1227 = vmatprep.subr.bf16.mxu0 0
      %1228 = vmatpush1.bf16.msra.mxu0 0
      %1229 = vmatprep.subr.bf16.mxu0 0
      %1230 = vmatpush1.bf16.msra.mxu0 0
      %1231 = vmatprep.subr.bf16.mxu0 0
      %1232 = vmatpush1.bf16.msra.mxu0 0
      %1233 = vmatprep.subr.bf16.mxu0 0
      %1234 = vmatpush1.bf16.msra.mxu0 0
      %1235 = vmatprep.subr.bf16.mxu0 0
      %1236 = vmatpush1.bf16.msra.mxu0 %v1213
      %1237 = vmatprep.subr.bf16.mxu0 0
      %1238 = vmatpush2.bf16.msra.mxu0 0
      %1239 = vmatprep.subr.bf16.mxu0 0
      %1240 = vmatpush2.bf16.msra.mxu0 0
      %1241 = vmatprep.subr.bf16.mxu0 0
      %1242 = vmatpush2.bf16.msra.mxu0 0
      %1243 = vmatprep.subr.bf16.mxu0 0
      %1244 = vmatpush2.bf16.msra.mxu0 0
      %1245 = vmatprep.subr.bf16.mxu0 0
      %1246 = vmatpush2.bf16.msra.mxu0 0
      %1247 = vmatprep.subr.bf16.mxu0 0
      %1248 = vmatpush2.bf16.msra.mxu0 0
      %1249 = vmatprep.subr.bf16.mxu0 0
      %1250 = vmatpush2.bf16.msra.mxu0 0
      %1251 = vmatprep.subr.bf16.mxu0 0
      %1252 = vmatpush2.bf16.msra.mxu0 0
      %1253 = vmatprep.mubr.bf16.mxu0 0
      %1254 = vmatmul.mubr.bf16.gmra.mxu0 %v1216
      %v1255 = vpop.f32.mrf.mxu0
      %v1256 = vadd.f32 0.0, %v1255
      %v1257 = vpop.f32.mrf.mxu0
      %v1258 = vpop.f32.mrf.mxu0
      %v1259 = vadd.f32 0.0, %v1258
      %v1260 = vpop.f32.mrf.mxu0
      %1261 = vmatprep.mubr.bf16.mxu0 0
      %1262 = vmatmul.mubr.bf16.gmra.mxu0 %v1219
      %v1263 = vpop.f32.mrf.mxu0
      %v1264 = vadd.f32 0.0, %v1263
      %v1265 = vpop.f32.mrf.mxu0
      %v1266 = vpop.f32.mrf.mxu0
      %v1267 = vpop.f32.mrf.mxu0
      %1268 = vdwg.mxu0
      %v1269 = vadd.f32 %v1198, %v1256
      %v1270 = vadd.f32 %v1199, %v1259
      %v1271 = vadd.f32 %v1200, %v1264
      %v1272 = vld [vmem:[%s4] sm:$0x1]
      %v1274 = vlaneseq
      %v1275 = vshrl.u32 %v1274, 7
      %v1276 = vsub.s32 0, %v1275
      %v1277 = vrot.slane %v1272, %v1276
      %v1279 = vadd.f32 %v1269, %v1277
      %v1280 = vadd.f32 %v1270, %v1277
      %v1281 = vadd.f32 %v1271, %v1277
      %v1282 = vmax.f32 %v1279, 0.0
      %v1283 = vmax.f32 %v1280, 0.0
      %v1284 = vmax.f32 %v1281, 0.0
      %v1285 = vsel %vm623, %v1282, 0.0
      %v1286 = vsel %vm624, %v1283, 0.0
      %v1287 = vsel %vm625, %v1284, 0.0
      %v1288 = vpack.c.bf16 %v1286, %v1285
      %v1289 = vpack.c.bf16 %v1287, %v1287
      %v1292 = vunpack.c.l.b16 %v1288
      %v1293 = vunpack.c.h.b16 %v1288
      %v1294 = vunpack.c.l.b16 %v1289
      %v1295 = vpack.c.b16 %v1292, %v1292
      %v1296 = vpack.c.b16 %v1293, %v1293
      %v1297 = vpack.c.b16 %v1294, %v1294
      %vm1301 = vcmask 125952
      %1302 = vst.msk [vmem:[%s224] sm:$0xf] %vm1301, %v1295
      %1303 = vst.msk [vmem:[%s224 + $0x4] sm:$0xf] %vm1301, %v1296
      %1304 = vst.msk [vmem:[%s224 + $0x8] sm:$0xf] %vm1301, %v1297
      %p1305 = scmp.lt.s32.totalorder %s16, 1
      %s1306 = scalar_select %p1305, %s16, 1
      %s1307 = smul.addr %s1306, 3
      %s1308 = smul.addr %s1307, 4
      %s1309 = scalar_lea.vmem %s5, %s1308
      // Predicated region
      $region41: #{denoiser_forward.12} parent=39 // pred_check
        %p1310 = pneg %p144
      $region42: #{denoiser_forward.12} parent=39 // pred_check_branch
        %1312 = sbr.rel (%p1310) target = $region44
      $region43: #{denoiser_forward.12} parent=39 // pred_region
        _
      $region44: #{denoiser_forward.12} parent=39 // pred_fallthru
        _
    $region40: #{denoiser_forward.12} parent=5 // pred_fallthru
      _
    %p1313 = scmp.le.s32.totalorder 2, %s11
    // Predicated region
    $region45: #{denoiser_forward.12} parent=5 // pred_check
      %p1314 = pneg %p1313
    $region46: #{denoiser_forward.12} parent=5 // pred_check_branch
      %1316 = sbr.rel (%p1314) target = $region48
    $region47: #{denoiser_forward.12} parent=5 // pred_region
      %s1317 = ssub.s32 %s11, 2
      // Predicated region
      $region49: #{denoiser_forward.12} parent=47 // pred_check
        %p1318 = pneg %p150
      $region50: #{denoiser_forward.12} parent=47 // pred_check_branch
        %1320 = sbr.rel (%p1318) target = $region52
      $region51: #{denoiser_forward.12} parent=47 // pred_region
        %p1321 = scmp.lt.s32.totalorder %s17, 1
        %s1322 = scalar_select %p1321, %s17, 1
        %s1323 = smul.addr %s1322, 3
        %s1324 = smul.addr %s1323, 4
        %s1325 = scalar_lea.vmem %s5, %s1324
      $region52: #{denoiser_forward.12} parent=47 // pred_fallthru
        _
    $region48: #{denoiser_forward.12} parent=5 // pred_fallthru
      _
  $region6: #{denoiser_forward.12} parent=0 // loop_footer
    %s15 = sadd.s32 1, %s11
  $region7: #{denoiser_forward.12} parent=0 // loop_footer_branch
    %10 = sbr.rel target = $region3
  $region8: #{denoiser_forward.12} parent=0 // loop_exit
    _

// kernel: denoiser_forward.15
$region0: #{denoiser_forward.15}
  #allocation0 [shape = 'u32[]', space=smem, size = 0x4, offset = 0x4, fixed_abs, tag = 'smem constant byte address 0x4 - core index']
  #allocation1 [shape = 'u32[144,128]{1,0:T(1,128)}', space=vmem, size = 0x12000, scoped, tag = 'internal scratch']
  %s0 = inlined_call_operand.vmem [shape: bf16[16,32], index: 0, kind: input, shape index: {}]
  %s1 = inlined_call_operand.vmem [shape: bf16[16,32], index: 1, kind: input, shape index: {}]
  %s2 = inlined_call_operand.vmem [shape: bf16[32,64], index: 2, kind: input, shape index: {}]
  %s3 = inlined_call_operand.vmem [shape: f32[1,64], index: 3, kind: input, shape index: {}]
  %s4 = inlined_call_operand.vmem [shape: bf16[16,64], index: 4, kind: output, shape index: {}]
  %s5 = sld [smem:[#allocation0]]
  $region26: #{denoiser_forward.15} parent=0
    _
  %s7 = ssub.s32 1, %s5
  %s8 = scalar_select 0, %s7, %s5
  // Predicated region
  $region2: #{denoiser_forward.15} parent=0 // pred_check
    _
  $region3: #{denoiser_forward.15} parent=0 // pred_check_branch
    %10 = sbr.rel (0) target = $region5
  $region4: #{denoiser_forward.15} parent=0 // pred_region
    _
  $region5: #{denoiser_forward.15} parent=0 // pred_fallthru
    _
  // Predicated region
  $region6: #{denoiser_forward.15} parent=0 // pred_check
    _
  $region7: #{denoiser_forward.15} parent=0 // pred_check_branch
    %12 = sbr.rel (0) target = $region9
  $region8: #{denoiser_forward.15} parent=0 // pred_region
    _
  $region9: #{denoiser_forward.15} parent=0 // pred_fallthru
    _
  // Predicated region
  $region10: #{denoiser_forward.15} parent=0 // pred_check
    _
  $region11: #{denoiser_forward.15} parent=0 // pred_check_branch
    %14 = sbr.rel (0) target = $region13
  $region12: #{denoiser_forward.15} parent=0 // pred_region
    _
  $region13: #{denoiser_forward.15} parent=0 // pred_fallthru
    _
  // Predicated region
  $region14: #{denoiser_forward.15} parent=0 // pred_check
    _
  $region15: #{denoiser_forward.15} parent=0 // pred_check_branch
    %16 = sbr.rel (0) target = $region17
  $region16: #{denoiser_forward.15} parent=0 // pred_region
    _
  $region17: #{denoiser_forward.15} parent=0 // pred_fallthru
    _
  %v18 = vld [vmem:[%s0] sm:$0xf]
  %v19 = vld [vmem:[%s0 + $0x4] sm:$0xf]
  %v20 = vld [vmem:[%s1] sm:$0xf]
  %v21 = vld [vmem:[%s1 + $0x4] sm:$0xf]
  %v22 = vadd.bf16 %v18, %v20
  %v23 = vadd.bf16 %v19, %v21
  %v24 = vld [vmem:[%s2] sm:$0xf]
  %v25 = vld [vmem:[%s2 + $0x4] sm:$0xf]
  %v26 = vld [vmem:[%s2 + $0x8] sm:$0xf]
  %v27 = vld [vmem:[%s2 + $0xc] sm:$0xf]
  %v28 = vld [vmem:[%s3] sm:$0x1]
  %v30 = vlaneseq
  %v31 = vshrl.u32 %v30, 7
  %v32 = vsub.s32 0, %v31
  %v33 = vrot.slane %v28, %v32
  %v37 = vunpack.c.l.b16 %v22
  %v38 = vunpack.c.l.b16 %v23
  %v39 = vpack.c.b16 %v38, %v37
  %v44 = vunpack.c.l.b16 %v24
  %v45 = vunpack.c.l.b16 %v25
  %v46 = vunpack.c.l.b16 %v26
  %v47 = vunpack.c.l.b16 %v27
  %v48 = vpack.c.b16 %v45, %v44
  %v49 = vpack.c.b16 %v47, %v46
  %vm52 = vcmask 261120
  %v54 = vsel %vm52, %v39, 0
  %56 = vmatprep.subr.bf16.mxu0 0
  %57 = vmatpush1.bf16.msra.mxu0 0
  %58 = vmatprep.subr.bf16.mxu0 0
  %59 = vmatpush1.bf16.msra.mxu0 0
  %60 = vmatprep.subr.bf16.mxu0 0
  %61 = vmatpush1.bf16.msra.mxu0 0
  %62 = vmatprep.subr.bf16.mxu0 0
  %63 = vmatpush1.bf16.msra.mxu0 0
  %64 = vmatprep.subr.bf16.mxu0 0
  %65 = vmatpush1.bf16.msra.mxu0 0
  %66 = vmatprep.subr.bf16.mxu0 0
  %67 = vmatpush1.bf16.msra.mxu0 0
  %68 = vmatprep.subr.bf16.mxu0 0
  %69 = vmatpush1.bf16.msra.mxu0 %v49
  %70 = vmatprep.subr.bf16.mxu0 0
  %71 = vmatpush1.bf16.msra.mxu0 %v48
  %72 = vmatprep.subr.bf16.mxu0 0
  %73 = vmatpush2.bf16.msra.mxu0 0
  %74 = vmatprep.subr.bf16.mxu0 0
  %75 = vmatpush2.bf16.msra.mxu0 0
  %76 = vmatprep.subr.bf16.mxu0 0
  %77 = vmatpush2.bf16.msra.mxu0 0
  %78 = vmatprep.subr.bf16.mxu0 0
  %79 = vmatpush2.bf16.msra.mxu0 0
  %80 = vmatprep.subr.bf16.mxu0 0
  %81 = vmatpush2.bf16.msra.mxu0 0
  %82 = vmatprep.subr.bf16.mxu0 0
  %83 = vmatpush2.bf16.msra.mxu0 0
  %84 = vmatprep.subr.bf16.mxu0 0
  %85 = vmatpush2.bf16.msra.mxu0 0
  %86 = vmatprep.subr.bf16.mxu0 0
  %87 = vmatpush2.bf16.msra.mxu0 0
  %88 = vmatprep.mubr.bf16.mxu0 0
  %89 = vmatmul.mubr.bf16.gmra.mxu0 %v54
  %v90 = vpop.f32.mrf.mxu0
  %v91 = vadd.f32 %v33, %v90
  %v92 = vpop.f32.mrf.mxu0
  %v93 = vpop.f32.mrf.mxu0
  %v94 = vadd.f32 %v33, %v93
  %v95 = vpop.f32.mrf.mxu0
  %96 = vdwg.mxu0
  %v97 = vmax.f32 %v91, 0.0
  %v98 = vmax.f32 %v94, 0.0
  %v99 = vpack.c.bf16 %v98, %v97
  %v101 = vunpack.c.l.b16 %v99
  %v102 = vunpack.c.h.b16 %v99
  %v103 = vpack.c.b16 %v101, %v101
  %v104 = vpack.c.b16 %v102, %v102
  %vm107 = vcmask 519168
  %108 = vst.msk [vmem:[%s4] sm:$0xf] %vm107, %v103
  %109 = vst.msk [vmem:[%s4 + $0x4] sm:$0xf] %vm107, %v104
  // Predicated region
  $region18: #{denoiser_forward.15} parent=0 // pred_check
    _
  $region19: #{denoiser_forward.15} parent=0 // pred_check_branch
    %111 = sbr.rel (0) target = $region21
  $region20: #{denoiser_forward.15} parent=0 // pred_region
    _
  $region21: #{denoiser_forward.15} parent=0 // pred_fallthru
    _
  // Predicated region
  $region22: #{denoiser_forward.15} parent=0 // pred_check
    _
  $region23: #{denoiser_forward.15} parent=0 // pred_check_branch
    %113 = sbr.rel (0) target = $region25
  $region24: #{denoiser_forward.15} parent=0 // pred_region
    _
  $region25: #{denoiser_forward.15} parent=0 // pred_fallthru
    _

// kernel: denoiser_forward.13
$region0: #{denoiser_forward.13}
  #allocation0 [shape = 'u32[]', space=smem, size = 0x4, offset = 0x4, fixed_abs, tag = 'smem constant byte address 0x4 - core index']
  #allocation1 [shape = 'u32[144,128]{1,0:T(1,128)}', space=vmem, size = 0x12000, scoped, tag = 'internal scratch']
  #allocation2 [shape = 'f32[16,64]{1,0:T(8,128)}', space=vmem, size = 0x2000, scoped, tag = 'scratch operand']
  #allocation3 [shape = 'f32[20,32]{1,0:T(8,128)}', space=vmem, size = 0x3000, scoped, tag = 'scratch operand']
  %s0 = inlined_call_operand.vmem [shape: bf16[2,16,64], index: 0, kind: input, shape index: {}]
  %s1 = inlined_call_operand.vmem [shape: bf16[4,64,32], index: 1, kind: input, shape index: {}]
  %s2 = inlined_call_operand.vmem [shape: f32[1,32], index: 2, kind: input, shape index: {}]
  %s3 = inlined_call_operand.vmem [shape: bf16[9,32,32], index: 3, kind: input, shape index: {}]
  %s4 = inlined_call_operand.vmem [shape: f32[1,32], index: 4, kind: input, shape index: {}]
  %s5 = inlined_call_operand.vmem [shape: bf16[2,8,32], index: 5, kind: output, shape index: {}]
  %s6 = sld [smem:[#allocation0]]
  $region53: #{denoiser_forward.13} parent=0
    _
  %s8 = ssub.s32 1, %s6
  %s9 = scalar_select 0, %s8, %s6
  loop: start=0, step=1, limit=4
  $region2: #{denoiser_forward.13} parent=0 // loop_pre_header
    _
  $region3: #{denoiser_forward.13} parent=0 // loop_header
    %s11 = sphi 0, %s15
    %p12 = scmp.ge.s32.totalorder %s11, 4
    %s21 = sphi 0, %s23
    %s24 = sphi 0, %s21
    %s25 = sphi 0, %s24
    %s41 = sphi 0, %s25
    %s45 = sphi 0, %s45
    %s47 = sphi 0, %s45
    %s48 = sphi 0, %s47
    %s62 = sphi 0, %s48
    %s66 = sphi 0, %s66
    %s68 = sphi 0, %s66
    %s69 = sphi 0, %s68
    %s83 = sphi 0, %s69
    %s87 = sphi 0, %s87
    %s89 = sphi 0, %s87
    %s90 = sphi 0, %s89
    %s104 = sphi 0, %s90
    %s108 = sphi 0, %s108
    %s110 = sphi 0, %s108
    %s111 = sphi 0, %s110
    %s125 = sphi 0, %s111
    %s131 = sphi 0, %s133
    %s134 = sphi 0, %s131
    %s135 = sphi 0, %s134
    %s151 = sphi 0, %s135
  $region4: #{denoiser_forward.13} parent=0 // loop_header_branch
    %14 = sbr.rel (%p12) target = $region8
  $region5: #{denoiser_forward.13} parent=0 // loop_body
    %s16 = ssub.s32 %s11, 1
    %s17 = ssub.s32 %s11, 2
    %s18 = sadd.s32 %s11, 1
    %s19 = ssub.s32 %s11, %s18
    %p20 = scmp.eq.s32.totalorder %s19, 0
    %s22 = sadd.s32 %s21, 1
    %s23 = scalar_select %p20, %s21, %s22
    %p26 = pneg %p20
    %p27 = scmp.eq.s32.totalorder %s11, 1
    %p28 = por %p26, %p27
    %p29 = scmp.ne.s32.totalorder %s21, %s24
    %p30 = scmp.eq.s32.totalorder %s11, 0
    %p31 = por %p29, %p30
    %p32 = scmp.ne.s32.totalorder %s21, %s24
    %p33 = scmp.eq.s32.totalorder %s16, 1
    %p34 = por %p32, %p33
    %p35 = scmp.ne.s32.totalorder %s24, %s25
    %p36 = scmp.eq.s32.totalorder %s16, 0
    %p37 = por %p35, %p36
    %p38 = scmp.ne.s32.totalorder %s24, %s25
    %p39 = scmp.eq.s32.totalorder %s17, 1
    %p40 = por %p38, %p39
    %p42 = scmp.ne.s32.totalorder %s25, %s41
    %p43 = scmp.eq.s32.totalorder %s17, 0
    %p44 = por %p42, %p43
    %s46 = sadd.s32 %s45, 1
    %p49 = scmp.eq.s32.totalorder %s11, 1
    %p50 = scmp.ne.s32.totalorder %s45, %s47
    %p51 = scmp.eq.s32.totalorder %s11, 0
    %p52 = por %p50, %p51
    %p53 = scmp.ne.s32.totalorder %s45, %s47
    %p54 = scmp.eq.s32.totalorder %s16, 1
    %p55 = por %p53, %p54
    %p56 = scmp.ne.s32.totalorder %s47, %s48
    %p57 = scmp.eq.s32.totalorder %s16, 0
    %p58 = por %p56, %p57
    %p59 = scmp.ne.s32.totalorder %s47, %s48
    %p60 = scmp.eq.s32.totalorder %s17, 1
    %p61 = por %p59, %p60
    %p63 = scmp.ne.s32.totalorder %s48, %s62
    %p64 = scmp.eq.s32.totalorder %s17, 0
    %p65 = por %p63, %p64
    %s67 = sadd.s32 %s66, 1
    %p70 = scmp.eq.s32.totalorder %s11, 1
    %p71 = scmp.ne.s32.totalorder %s66, %s68
    %p72 = scmp.eq.s32.totalorder %s11, 0
    %p73 = por %p71, %p72
    %p74 = scmp.ne.s32.totalorder %s66, %s68
    %p75 = scmp.eq.s32.totalorder %s16, 1
    %p76 = por %p74, %p75
    %p77 = scmp.ne.s32.totalorder %s68, %s69
    %p78 = scmp.eq.s32.totalorder %s16, 0
    %p79 = por %p77, %p78
    %p80 = scmp.ne.s32.totalorder %s68, %s69
    %p81 = scmp.eq.s32.totalorder %s17, 1
    %p82 = por %p80, %p81
    %p84 = scmp.ne.s32.totalorder %s69, %s83
    %p85 = scmp.eq.s32.totalorder %s17, 0
    %p86 = por %p84, %p85
    %s88 = sadd.s32 %s87, 1
    %p91 = scmp.eq.s32.totalorder %s11, 1
    %p92 = scmp.ne.s32.totalorder %s87, %s89
    %p93 = scmp.eq.s32.totalorder %s11, 0
    %p94 = por %p92, %p93
    %p95 = scmp.ne.s32.totalorder %s87, %s89
    %p96 = scmp.eq.s32.totalorder %s16, 1
    %p97 = por %p95, %p96
    %p98 = scmp.ne.s32.totalorder %s89, %s90
    %p99 = scmp.eq.s32.totalorder %s16, 0
    %p100 = por %p98, %p99
    %p101 = scmp.ne.s32.totalorder %s89, %s90
    %p102 = scmp.eq.s32.totalorder %s17, 1
    %p103 = por %p101, %p102
    %p105 = scmp.ne.s32.totalorder %s90, %s104
    %p106 = scmp.eq.s32.totalorder %s17, 0
    %p107 = por %p105, %p106
    %s109 = sadd.s32 %s108, 1
    %p112 = scmp.eq.s32.totalorder %s11, 1
    %p113 = scmp.ne.s32.totalorder %s108, %s110
    %p114 = scmp.eq.s32.totalorder %s11, 0
    %p115 = por %p113, %p114
    %p116 = scmp.ne.s32.totalorder %s108, %s110
    %p117 = scmp.eq.s32.totalorder %s16, 1
    %p118 = por %p116, %p117
    %p119 = scmp.ne.s32.totalorder %s110, %s111
    %p120 = scmp.eq.s32.totalorder %s16, 0
    %p121 = por %p119, %p120
    %p122 = scmp.ne.s32.totalorder %s110, %s111
    %p123 = scmp.eq.s32.totalorder %s17, 1
    %p124 = por %p122, %p123
    %p126 = scmp.ne.s32.totalorder %s111, %s125
    %p127 = scmp.eq.s32.totalorder %s17, 0
    %p128 = por %p126, %p127
    %s129 = ssub.s32 %s11, %s18
    %p130 = scmp.eq.s32.totalorder %s129, 0
    %s132 = sadd.s32 %s131, 1
    %s133 = scalar_select %p130, %s131, %s132
    %p136 = pneg %p130
    %p137 = scmp.eq.s32.totalorder %s11, 1
    %p138 = por %p136, %p137
    %p139 = scmp.ne.s32.totalorder %s131, %s134
    %p140 = scmp.eq.s32.totalorder %s11, 0
    %p141 = por %p139, %p140
    %p142 = scmp.ne.s32.totalorder %s131, %s134
    %p143 = scmp.eq.s32.totalorder %s16, 1
    %p144 = por %p142, %p143
    %p145 = scmp.ne.s32.totalorder %s134, %s135
    %p146 = scmp.eq.s32.totalorder %s16, 0
    %p147 = por %p145, %p146
    %p148 = scmp.ne.s32.totalorder %s134, %s135
    %p149 = scmp.eq.s32.totalorder %s17, 1
    %p150 = por %p148, %p149
    %p152 = scmp.ne.s32.totalorder %s135, %s151
    %p153 = scmp.eq.s32.totalorder %s17, 0
    %p154 = por %p152, %p153
    %p155 = scmp.le.s32.totalorder 1, %s11
    %p156 = scmp.lt.s32.totalorder %s11, 3
    %p157 = pnand %p155, %p156
    %p158 = pneg %p157
    // Predicated region
    $region9: #{denoiser_forward.13} parent=5 // pred_check
      _
    $region10: #{denoiser_forward.13} parent=5 // pred_check_branch
      %160 = sbr.rel (%p157) target = $region12
    $region11: #{denoiser_forward.13} parent=5 // pred_region
      %s161 = ssub.s32 %s11, 1
      // Predicated region
      $region13: #{denoiser_forward.13} parent=11 // pred_check
        %p162 = pneg %p58
      $region14: #{denoiser_forward.13} parent=11 // pred_check_branch
        %164 = sbr.rel (%p162) target = $region16
      $region15: #{denoiser_forward.13} parent=11 // pred_region
        _
      $region16: #{denoiser_forward.13} parent=11 // pred_fallthru
        _
      // Predicated region
      $region17: #{denoiser_forward.13} parent=11 // pred_check
        %p165 = pneg %p79
      $region18: #{denoiser_forward.13} parent=11 // pred_check_branch
        %167 = sbr.rel (%p165) target = $region20
      $region19: #{denoiser_forward.13} parent=11 // pred_region
        _
      $region20: #{denoiser_forward.13} parent=11 // pred_fallthru
        _
      // Predicated region
      $region21: #{denoiser_forward.13} parent=11 // pred_check
        %p168 = pneg %p100
      $region22: #{denoiser_forward.13} parent=11 // pred_check_branch
        %170 = sbr.rel (%p168) target = $region24
      $region23: #{denoiser_forward.13} parent=11 // pred_region
        _
      $region24: #{denoiser_forward.13} parent=11 // pred_fallthru
        _
      // Predicated region
      $region25: #{denoiser_forward.13} parent=11 // pred_check
        %p171 = pneg %p121
      $region26: #{denoiser_forward.13} parent=11 // pred_check_branch
        %173 = sbr.rel (%p171) target = $region28
      $region27: #{denoiser_forward.13} parent=11 // pred_region
        _
      $region28: #{denoiser_forward.13} parent=11 // pred_fallthru
        _
    $region12: #{denoiser_forward.13} parent=5 // pred_fallthru
      _
    %p174 = scmp.lt.s32.totalorder %s11, 2
    // Predicated region
    $region29: #{denoiser_forward.13} parent=5 // pred_check
      %p175 = pneg %p174
    $region30: #{denoiser_forward.13} parent=5 // pred_check_branch
      %177 = sbr.rel (%p175) target = $region32
    $region31: #{denoiser_forward.13} parent=5 // pred_region
      // Predicated region
      $region33: #{denoiser_forward.13} parent=31 // pred_check
        %p178 = pneg %p31
      $region34: #{denoiser_forward.13} parent=31 // pred_check_branch
        %180 = sbr.rel (%p178) target = $region36
      $region35: #{denoiser_forward.13} parent=31 // pred_region
        %p181 = scmp.lt.s32.totalorder %s11, 1
        %s182 = scalar_select %p181, %s11, 1
        %s183 = smul.addr %s182, 2
        %s184 = smul.addr %s183, 4
        %s185 = scalar_lea.vmem %s0, %s184
      $region36: #{denoiser_forward.13} parent=31 // pred_fallthru
        _
    $region32: #{denoiser_forward.13} parent=5 // pred_fallthru
      _
    %p186 = scmp.le.s32.totalorder 1, %s11
    %p187 = scmp.lt.s32.totalorder %s11, 3
    %p188 = pnand %p186, %p187
    %p189 = pneg %p188
    // Predicated region
    $region37: #{denoiser_forward.13} parent=5 // pred_check
      _
    $region38: #{denoiser_forward.13} parent=5 // pred_check_branch
      %191 = sbr.rel (%p188) target = $region40
    $region39: #{denoiser_forward.13} parent=5 // pred_region
      %s192 = ssub.s32 %s11, 1
      %p193 = scmp.lt.s32.totalorder %s16, 1
      %s194 = scalar_select %p193, %s16, 1
      %s195 = smul.addr %s194, 2
      %s196 = smul.addr %s195, 4
      %s197 = scalar_lea.vmem %s0, %s196
      %p198 = pneg %p37
      %p199 = pneg %p34
      %p200 = pneg %p58
      %p201 = pneg %p55
      %p202 = pneg %p79
      %p203 = pneg %p76
      %p204 = pneg %p100
      %p205 = pneg %p97
      %p206 = pneg %p121
      %p207 = pneg %p118
      %p208 = pneg %p147
      %p209 = pneg %p144
      %p210 = scmp.lt.s32.totalorder %s16, 1
      %s211 = scalar_select %p210, %s16, 1
      %s212 = smul.addr %s211, 4
      %s213 = scalar_lea.vmem %s5, %s212
      %p214 = scmp.lt.s32.totalorder %s16, 1
      %s215 = scalar_select %p214, %s16, 1
      %s216 = smul.addr %s215, 2
      %s217 = smul.addr %s216, 4
      %s218 = scalar_lea.vmem %s0, %s217
      %p219 = scmp.lt.s32.totalorder %s16, 1
      %s220 = scalar_select %p219, %s16, 1
      %s221 = smul.addr %s220, 4
      %s222 = scalar_lea.vmem %s5, %s221
      %v224 = vlaneseq
      %v225 = vshrl.u32 %v224, 7
      %vm226 = vcmp.lt.s32.totalorder %v225, 0
      %v227 = vsub.s32 0, %v225
      %v228 = vsel %vm226, %v227, %v225
      %v229 = vshrl.u32 %v228, 2
      %v230 = vand.u32 %v228, 3
      %v231 = vsub.s32 0, %v230
      %v232 = vsel %vm226, %v231, %v230
      %vm233 = vcmp.ne.s32.totalorder %v232, 0
      %vm234 = vcmp.lt.s32.totalorder %v232, 0
      %vm235 = vmand %vm234, %vm233
      %v236 = vadd.s32 %v232, 4
      %v237 = vsel %vm235, %v236, %v232
      %vm238 = vcmp.lt.s32.totalorder %v237, 2
      %v239 = vld [vmem:[%s218] sm:$0xf]
      %v240 = vld [vmem:[%s218 + $0x4] sm:$0xf]
      %v241 = vunpack.c.l.bf16 %v239
      %v242 = vunpack.c.l.bf16 %v240
      %vm243 = vcmask 523264
      %244 = vst.msk [vmem:[#allocation2] sm:$0xff] %vm243, %v241
      %245 = vst.msk [vmem:[#allocation2 + $0x8] sm:$0xff] %vm243, %v242
      %v246 = vld [vmem:[#allocation2] sm:$0xff]
      %v247 = vpack.c.bf16 %v246, %v246
      %v248 = vld [vmem:[%s1] sm:$0xf]
      %v249 = vld [vmem:[%s1 + $0x4] sm:$0xf]
      %v250 = vld [vmem:[%s1 + $0x8] sm:$0xf]
      %v251 = vld [vmem:[%s1 + $0xc] sm:$0xf]
      %v252 = vld [vmem:[%s1 + $0x10] sm:$0xf]
      %v253 = vld [vmem:[%s1 + $0x14] sm:$0xf]
      %v254 = vld [vmem:[%s1 + $0x18] sm:$0xf]
      %v255 = vld [vmem:[%s1 + $0x1c] sm:$0xf]
      %v256 = vld [vmem:[#allocation2 + $0x1] sm:$0xff]
      %v257 = vpack.c.bf16 %v256, %v256
      %s258 = scalar_lea.vmem %s1, 32
      %v259 = vld [vmem:[%s258] sm:$0xf]
      %v260 = vld [vmem:[%s258 + $0x4] sm:$0xf]
      %v261 = vld [vmem:[%s258 + $0x8] sm:$0xf]
      %v262 = vld [vmem:[%s258 + $0xc] sm:$0xf]
      %v263 = vld [vmem:[%s258 + $0x10] sm:$0xf]
      %v264 = vld [vmem:[%s258 + $0x14] sm:$0xf]
      %v265 = vld [vmem:[%s258 + $0x18] sm:$0xf]
      %v266 = vld [vmem:[%s258 + $0x1c] sm:$0xf]
      %v275 = vunpack.c.l.b16 %v259
      %v276 = vunpack.c.l.b16 %v260
      %v277 = vunpack.c.l.b16 %v261
      %v278 = vunpack.c.l.b16 %v262
      %v279 = vunpack.c.l.b16 %v263
      %v280 = vunpack.c.l.b16 %v264
      %v281 = vunpack.c.l.b16 %v265
      %v282 = vunpack.c.l.b16 %v266
      %v283 = vpack.c.b16 %v276, %v275
      %v284 = vpack.c.b16 %v278, %v277
      %v285 = vpack.c.b16 %v280, %v279
      %v286 = vpack.c.b16 %v282, %v281
      %v292 = vsel %vm243, %v257, 0
      %294 = vmatprep.subr.bf16.mxu0 0
      %295 = vmatpush1.bf16.msra.mxu0 0
      %296 = vmatprep.subr.bf16.mxu0 0
      %297 = vmatpush1.bf16.msra.mxu0 0
      %298 = vmatprep.subr.bf16.mxu0 0
      %299 = vmatpush1.bf16.msra.mxu0 0
      %300 = vmatprep.subr.bf16.mxu0 0
      %301 = vmatpush1.bf16.msra.mxu0 0
      %302 = vmatprep.subr.bf16.mxu0 0
      %303 = vmatpush1.bf16.msra.mxu0 %v286
      %304 = vmatprep.subr.bf16.mxu0 0
      %305 = vmatpush1.bf16.msra.mxu0 %v285
      %306 = vmatprep.subr.bf16.mxu0 0
      %307 = vmatpush1.bf16.msra.mxu0 %v284
      %308 = vmatprep.subr.bf16.mxu0 0
      %309 = vmatpush1.bf16.msra.mxu0 %v283
      %310 = vmatprep.subr.bf16.mxu0 0
      %311 = vmatpush2.bf16.msra.mxu0 0
      %312 = vmatprep.subr.bf16.mxu0 0
      %313 = vmatpush2.bf16.msra.mxu0 0
      %314 = vmatprep.subr.bf16.mxu0 0
      %315 = vmatpush2.bf16.msra.mxu0 0
      %316 = vmatprep.subr.bf16.mxu0 0
      %317 = vmatpush2.bf16.msra.mxu0 0
      %318 = vmatprep.subr.bf16.mxu0 0
      %319 = vmatpush2.bf16.msra.mxu0 0
      %320 = vmatprep.subr.bf16.mxu0 0
      %321 = vmatpush2.bf16.msra.mxu0 0
      %322 = vmatprep.subr.bf16.mxu0 0
      %323 = vmatpush2.bf16.msra.mxu0 0
      %324 = vmatprep.subr.bf16.mxu0 0
      %325 = vmatpush2.bf16.msra.mxu0 0
      %326 = vmatprep.mubr.bf16.mxu0 0
      %327 = vmatmul.mubr.bf16.gmra.mxu0 %v292
      %v328 = vpop.f32.mrf.mxu0
      %v329 = vadd.f32 0.0, %v328
      %v330 = vpop.f32.mrf.mxu0
      %v331 = vpop.f32.mrf.mxu0
      %v332 = vpop.f32.mrf.mxu0
      %333 = vdwg.mxu0
      %v342 = vunpack.c.l.b16 %v248
      %v343 = vunpack.c.l.b16 %v249
      %v344 = vunpack.c.l.b16 %v250
      %v345 = vunpack.c.l.b16 %v251
      %v346 = vunpack.c.l.b16 %v252
      %v347 = vunpack.c.l.b16 %v253
      %v348 = vunpack.c.l.b16 %v254
      %v349 = vunpack.c.l.b16 %v255
      %v350 = vpack.c.b16 %v343, %v342
      %v351 = vpack.c.b16 %v345, %v344
      %v352 = vpack.c.b16 %v347, %v346
      %v353 = vpack.c.b16 %v349, %v348
      %v359 = vsel %vm243, %v247, 0
      %361 = vmatprep.subr.bf16.mxu0 0
      %362 = vmatpush1.bf16.msra.mxu0 0
      %363 = vmatprep.subr.bf16.mxu0 0
      %364 = vmatpush1.bf16.msra.mxu0 0
      %365 = vmatprep.subr.bf16.mxu0 0
      %366 = vmatpush1.bf16.msra.mxu0 0
      %367 = vmatprep.subr.bf16.mxu0 0
      %368 = vmatpush1.bf16.msra.mxu0 0
      %369 = vmatprep.subr.bf16.mxu0 0
      %370 = vmatpush1.bf16.msra.mxu0 %v353
      %371 = vmatprep.subr.bf16.mxu0 0
      %372 = vmatpush1.bf16.msra.mxu0 %v352
      %373 = vmatprep.subr.bf16.mxu0 0
      %374 = vmatpush1.bf16.msra.mxu0 %v351
      %375 = vmatprep.subr.bf16.mxu0 0
      %376 = vmatpush1.bf16.msra.mxu0 %v350
      %377 = vmatprep.subr.bf16.mxu0 0
      %378 = vmatpush2.bf16.msra.mxu0 0
      %379 = vmatprep.subr.bf16.mxu0 0
      %380 = vmatpush2.bf16.msra.mxu0 0
      %381 = vmatprep.subr.bf16.mxu0 0
      %382 = vmatpush2.bf16.msra.mxu0 0
      %383 = vmatprep.subr.bf16.mxu0 0
      %384 = vmatpush2.bf16.msra.mxu0 0
      %385 = vmatprep.subr.bf16.mxu0 0
      %386 = vmatpush2.bf16.msra.mxu0 0
      %387 = vmatprep.subr.bf16.mxu0 0
      %388 = vmatpush2.bf16.msra.mxu0 0
      %389 = vmatprep.subr.bf16.mxu0 0
      %390 = vmatpush2.bf16.msra.mxu0 0
      %391 = vmatprep.subr.bf16.mxu0 0
      %392 = vmatpush2.bf16.msra.mxu0 0
      %393 = vmatprep.mubr.bf16.mxu0 0
      %394 = vmatmul.mubr.bf16.gmra.mxu0 %v359
      %v395 = vpop.f32.mrf.mxu0
      %v396 = vadd.f32 %v329, %v395
      %v397 = vpop.f32.mrf.mxu0
      %v398 = vpop.f32.mrf.mxu0
      %v399 = vpop.f32.mrf.mxu0
      %400 = vdwg.mxu0
      %v401 = vld [vmem:[#allocation2 + $0x4] sm:$0xff]
      %v402 = vpack.c.bf16 %v401, %v401
      %s403 = scalar_lea.vmem %s1, 64
      %v404 = vld [vmem:[%s403] sm:$0xf]
      %v405 = vld [vmem:[%s403 + $0x4] sm:$0xf]
      %v406 = vld [vmem:[%s403 + $0x8] sm:$0xf]
      %v407 = vld [vmem:[%s403 + $0xc] sm:$0xf]
      %v408 = vld [vmem:[%s403 + $0x10] sm:$0xf]
      %v409 = vld [vmem:[%s403 + $0x14] sm:$0xf]
      %v410 = vld [vmem:[%s403 + $0x18] sm:$0xf]
      %v411 = vld [vmem:[%s403 + $0x1c] sm:$0xf]
      %v420 = vunpack.c.l.b16 %v404
      %v421 = vunpack.c.l.b16 %v405
      %v422 = vunpack.c.l.b16 %v406
      %v423 = vunpack.c.l.b16 %v407
      %v424 = vunpack.c.l.b16 %v408
      %v425 = vunpack.c.l.b16 %v409
      %v426 = vunpack.c.l.b16 %v410
      %v427 = vunpack.c.l.b16 %v411
      %v428 = vpack.c.b16 %v421, %v420
      %v429 = vpack.c.b16 %v423, %v422
      %v430 = vpack.c.b16 %v425, %v424
      %v431 = vpack.c.b16 %v427, %v426
      %v437 = vsel %vm243, %v402, 0
      %439 = vmatprep.subr.bf16.mxu0 0
      %440 = vmatpush1.bf16.msra.mxu0 0
      %441 = vmatprep.subr.bf16.mxu0 0
      %442 = vmatpush1.bf16.msra.mxu0 0
      %443 = vmatprep.subr.bf16.mxu0 0
      %444 = vmatpush1.bf16.msra.mxu0 0
      %445 = vmatprep.subr.bf16.mxu0 0
      %446 = vmatpush1.bf16.msra.mxu0 0
      %447 = vmatprep.subr.bf16.mxu0 0
      %448 = vmatpush1.bf16.msra.mxu0 %v431
      %449 = vmatprep.subr.bf16.mxu0 0
      %450 = vmatpush1.bf16.msra.mxu0 %v430
      %451 = vmatprep.subr.bf16.mxu0 0
      %452 = vmatpush1.bf16.msra.mxu0 %v429
      %453 = vmatprep.subr.bf16.mxu0 0
      %454 = vmatpush1.bf16.msra.mxu0 %v428
      %455 = vmatprep.subr.bf16.mxu0 0
      %456 = vmatpush2.bf16.msra.mxu0 0
      %457 = vmatprep.subr.bf16.mxu0 0
      %458 = vmatpush2.bf16.msra.mxu0 0
      %459 = vmatprep.subr.bf16.mxu0 0
      %460 = vmatpush2.bf16.msra.mxu0 0
      %461 = vmatprep.subr.bf16.mxu0 0
      %462 = vmatpush2.bf16.msra.mxu0 0
      %463 = vmatprep.subr.bf16.mxu0 0
      %464 = vmatpush2.bf16.msra.mxu0 0
      %465 = vmatprep.subr.bf16.mxu0 0
      %466 = vmatpush2.bf16.msra.mxu0 0
      %467 = vmatprep.subr.bf16.mxu0 0
      %468 = vmatpush2.bf16.msra.mxu0 0
      %469 = vmatprep.subr.bf16.mxu0 0
      %470 = vmatpush2.bf16.msra.mxu0 0
      %471 = vmatprep.mubr.bf16.mxu0 0
      %472 = vmatmul.mubr.bf16.gmra.mxu0 %v437
      %v473 = vpop.f32.mrf.mxu0
      %v474 = vadd.f32 0.0, %v473
      %v475 = vpop.f32.mrf.mxu0
      %v476 = vpop.f32.mrf.mxu0
      %v477 = vpop.f32.mrf.mxu0
      %478 = vdwg.mxu0
      %v479 = vadd.f32 %v396, %v474
      %v480 = vld [vmem:[#allocation2 + $0x5] sm:$0xff]
      %v481 = vpack.c.bf16 %v480, %v480
      %s482 = scalar_lea.vmem %s1, 96
      %v483 = vld [vmem:[%s482] sm:$0xf]
      %v484 = vld [vmem:[%s482 + $0x4] sm:$0xf]
      %v485 = vld [vmem:[%s482 + $0x8] sm:$0xf]
      %v486 = vld [vmem:[%s482 + $0xc] sm:$0xf]
      %v487 = vld [vmem:[%s482 + $0x10] sm:$0xf]
      %v488 = vld [vmem:[%s482 + $0x14] sm:$0xf]
      %v489 = vld [vmem:[%s482 + $0x18] sm:$0xf]
      %v490 = vld [vmem:[%s482 + $0x1c] sm:$0xf]
      %v499 = vunpack.c.l.b16 %v483
      %v500 = vunpack.c.l.b16 %v484
      %v501 = vunpack.c.l.b16 %v485
      %v502 = vunpack.c.l.b16 %v486
      %v503 = vunpack.c.l.b16 %v487
      %v504 = vunpack.c.l.b16 %v488
      %v505 = vunpack.c.l.b16 %v489
      %v506 = vunpack.c.l.b16 %v490
      %v507 = vpack.c.b16 %v500, %v499
      %v508 = vpack.c.b16 %v502, %v501
      %v509 = vpack.c.b16 %v504, %v503
      %v510 = vpack.c.b16 %v506, %v505
      %v516 = vsel %vm243, %v481, 0
      %518 = vmatprep.subr.bf16.mxu0 0
      %519 = vmatpush1.bf16.msra.mxu0 0
      %520 = vmatprep.subr.bf16.mxu0 0
      %521 = vmatpush1.bf16.msra.mxu0 0
      %522 = vmatprep.subr.bf16.mxu0 0
      %523 = vmatpush1.bf16.msra.mxu0 0
      %524 = vmatprep.subr.bf16.mxu0 0
      %525 = vmatpush1.bf16.msra.mxu0 0
      %526 = vmatprep.subr.bf16.mxu0 0
      %527 = vmatpush1.bf16.msra.mxu0 %v510
      %528 = vmatprep.subr.bf16.mxu0 0
      %529 = vmatpush1.bf16.msra.mxu0 %v509
      %530 = vmatprep.subr.bf16.mxu0 0
      %531 = vmatpush1.bf16.msra.mxu0 %v508
      %532 = vmatprep.subr.bf16.mxu0 0
      %533 = vmatpush1.bf16.msra.mxu0 %v507
      %534 = vmatprep.subr.bf16.mxu0 0
      %535 = vmatpush2.bf16.msra.mxu0 0
      %536 = vmatprep.subr.bf16.mxu0 0
      %537 = vmatpush2.bf16.msra.mxu0 0
      %538 = vmatprep.subr.bf16.mxu0 0
      %539 = vmatpush2.bf16.msra.mxu0 0
      %540 = vmatprep.subr.bf16.mxu0 0
      %541 = vmatpush2.bf16.msra.mxu0 0
      %542 = vmatprep.subr.bf16.mxu0 0
      %543 = vmatpush2.bf16.msra.mxu0 0
      %544 = vmatprep.subr.bf16.mxu0 0
      %545 = vmatpush2.bf16.msra.mxu0 0
      %546 = vmatprep.subr.bf16.mxu0 0
      %547 = vmatpush2.bf16.msra.mxu0 0
      %548 = vmatprep.subr.bf16.mxu0 0
      %549 = vmatpush2.bf16.msra.mxu0 0
      %550 = vmatprep.mubr.bf16.mxu0 0
      %551 = vmatmul.mubr.bf16.gmra.mxu0 %v516
      %v552 = vpop.f32.mrf.mxu0
      %v553 = vadd.f32 0.0, %v552
      %v554 = vpop.f32.mrf.mxu0
      %v555 = vpop.f32.mrf.mxu0
      %v556 = vpop.f32.mrf.mxu0
      %557 = vdwg.mxu0
      %v558 = vadd.f32 %v479, %v553
      %v559 = vld [vmem:[%s2] sm:$0x1]
      %v561 = vlaneseq
      %v562 = vshrl.u32 %v561, 7
      %v563 = vsub.s32 0, %v562
      %v564 = vrot.slane %v559, %v563
      %v566 = vadd.f32 %v558, %v564
      %v567 = vmax.f32 %v566, 0.0
      %v568 = vsel %vm238, 1, 0
      %vm569 = vcmp.eq.s32.totalorder %v568, 1
      %v570 = vsel %vm569, %v567, 0.0
      %vm571 = vcmask 261120
      %572 = vst.msk [vmem:[#allocation3] sm:$0xff] %vm571, 0.0
      %573 = vst.msk [vmem:[#allocation3 + $0x8] sm:$0xff] %vm571, 0.0
      %vm574 = vcmask 257024
      %575 = vst.msk [vmem:[#allocation3 + $0x10] sm:$0xf] %vm574, 0.0
      %576 = vst.msk [vmem:[#allocation3 + $0x5] sm:$0xff] %vm571, %v570
      %v577 = vld [vmem:[#allocation3] sm:$0xff]
      %v578 = vpack.c.bf16 %v577, %v577
      %v579 = vld [vmem:[%s3] sm:$0xf]
      %v580 = vld [vmem:[%s3 + $0x4] sm:$0xf]
      %v581 = vld [vmem:[%s3 + $0x8] sm:$0xf]
      %v582 = vld [vmem:[%s3 + $0xc] sm:$0xf]
      %v583 = vld [vmem:[#allocation3 + $0x1] sm:$0xff]
      %v584 = vpack.c.bf16 %v583, %v583
      %s585 = scalar_lea.vmem %s3, 16
      %v586 = vld [vmem:[%s585] sm:$0xf]
      %v587 = vld [vmem:[%s585 + $0x4] sm:$0xf]
      %v588 = vld [vmem:[%s585 + $0x8] sm:$0xf]
      %v589 = vld [vmem:[%s585 + $0xc] sm:$0xf]
      %v594 = vunpack.c.l.b16 %v586
      %v595 = vunpack.c.l.b16 %v587
      %v596 = vunpack.c.l.b16 %v588
      %v597 = vunpack.c.l.b16 %v589
      %v598 = vpack.c.b16 %v595, %v594
      %v599 = vpack.c.b16 %v597, %v596
      %v603 = vsel %vm571, %v584, 0
      %605 = vmatprep.subr.bf16.mxu0 0
      %606 = vmatpush1.bf16.msra.mxu0 0
      %607 = vmatprep.subr.bf16.mxu0 0
      %608 = vmatpush1.bf16.msra.mxu0 0
      %609 = vmatprep.subr.bf16.mxu0 0
      %610 = vmatpush1.bf16.msra.mxu0 0
      %611 = vmatprep.subr.bf16.mxu0 0
      %612 = vmatpush1.bf16.msra.mxu0 0
      %613 = vmatprep.subr.bf16.mxu0 0
      %614 = vmatpush1.bf16.msra.mxu0 0
      %615 = vmatprep.subr.bf16.mxu0 0
      %616 = vmatpush1.bf16.msra.mxu0 0
      %617 = vmatprep.subr.bf16.mxu0 0
      %618 = vmatpush1.bf16.msra.mxu0 %v599
      %619 = vmatprep.subr.bf16.mxu0 0
      %620 = vmatpush1.bf16.msra.mxu0 %v598
      %621 = vmatprep.subr.bf16.mxu0 0
      %622 = vmatpush2.bf16.msra.mxu0 0
      %623 = vmatprep.subr.bf16.mxu0 0
      %624 = vmatpush2.bf16.msra.mxu0 0
      %625 = vmatprep.subr.bf16.mxu0 0
      %626 = vmatpush2.bf16.msra.mxu0 0
      %627 = vmatprep.subr.bf16.mxu0 0
      %628 = vmatpush2.bf16.msra.mxu0 0
      %629 = vmatprep.subr.bf16.mxu0 0
      %630 = vmatpush2.bf16.msra.mxu0 0
      %631 = vmatprep.subr.bf16.mxu0 0
      %632 = vmatpush2.bf16.msra.mxu0 0
      %633 = vmatprep.subr.bf16.mxu0 0
      %634 = vmatpush2.bf16.msra.mxu0 0
      %635 = vmatprep.subr.bf16.mxu0 0
      %636 = vmatpush2.bf16.msra.mxu0 0
      %637 = vmatprep.mubr.bf16.mxu0 0
      %638 = vmatmul.mubr.bf16.gmra.mxu0 %v603
      %v639 = vpop.f32.mrf.mxu0
      %v640 = vadd.f32 0.0, %v639
      %v641 = vpop.f32.mrf.mxu0
      %v642 = vpop.f32.mrf.mxu0
      %v643 = vpop.f32.mrf.mxu0
      %644 = vdwg.mxu0
      %v649 = vunpack.c.l.b16 %v579
      %v650 = vunpack.c.l.b16 %v580
      %v651 = vunpack.c.l.b16 %v581
      %v652 = vunpack.c.l.b16 %v582
      %v653 = vpack.c.b16 %v650, %v649
      %v654 = vpack.c.b16 %v652, %v651
      %v658 = vsel %vm571, %v578, 0
      %660 = vmatprep.subr.bf16.mxu0 0
      %661 = vmatpush1.bf16.msra.mxu0 0
      %662 = vmatprep.subr.bf16.mxu0 0
      %663 = vmatpush1.bf16.msra.mxu0 0
      %664 = vmatprep.subr.bf16.mxu0 0
      %665 = vmatpush1.bf16.msra.mxu0 0
      %666 = vmatprep.subr.bf16.mxu0 0
      %667 = vmatpush1.bf16.msra.mxu0 0
      %668 = vmatprep.subr.bf16.mxu0 0
      %669 = vmatpush1.bf16.msra.mxu0 0
      %670 = vmatprep.subr.bf16.mxu0 0
      %671 = vmatpush1.bf16.msra.mxu0 0
      %672 = vmatprep.subr.bf16.mxu0 0
      %673 = vmatpush1.bf16.msra.mxu0 %v654
      %674 = vmatprep.subr.bf16.mxu0 0
      %675 = vmatpush1.bf16.msra.mxu0 %v653
      %676 = vmatprep.subr.bf16.mxu0 0
      %677 = vmatpush2.bf16.msra.mxu0 0
      %678 = vmatprep.subr.bf16.mxu0 0
      %679 = vmatpush2.bf16.msra.mxu0 0
      %680 = vmatprep.subr.bf16.mxu0 0
      %681 = vmatpush2.bf16.msra.mxu0 0
      %682 = vmatprep.subr.bf16.mxu0 0
      %683 = vmatpush2.bf16.msra.mxu0 0
      %684 = vmatprep.subr.bf16.mxu0 0
      %685 = vmatpush2.bf16.msra.mxu0 0
      %686 = vmatprep.subr.bf16.mxu0 0
      %687 = vmatpush2.bf16.msra.mxu0 0
      %688 = vmatprep.subr.bf16.mxu0 0
      %689 = vmatpush2.bf16.msra.mxu0 0
      %690 = vmatprep.subr.bf16.mxu0 0
      %691 = vmatpush2.bf16.msra.mxu0 0
      %692 = vmatprep.mubr.bf16.mxu0 0
      %693 = vmatmul.mubr.bf16.gmra.mxu0 %v658
      %v694 = vpop.f32.mrf.mxu0
      %v695 = vadd.f32 %v640, %v694
      %v696 = vpop.f32.mrf.mxu0
      %v697 = vpop.f32.mrf.mxu0
      %v698 = vpop.f32.mrf.mxu0
      %699 = vdwg.mxu0
      %v700 = vld [vmem:[#allocation3 + $0x2] sm:$0xff]
      %v701 = vpack.c.bf16 %v700, %v700
      %s702 = scalar_lea.vmem %s3, 32
      %v703 = vld [vmem:[%s702] sm:$0xf]
      %v704 = vld [vmem:[%s702 + $0x4] sm:$0xf]
      %v705 = vld [vmem:[%s702 + $0x8] sm:$0xf]
      %v706 = vld [vmem:[%s702 + $0xc] sm:$0xf]
      %v711 = vunpack.c.l.b16 %v703
      %v712 = vunpack.c.l.b16 %v704
      %v713 = vunpack.c.l.b16 %v705
      %v714 = vunpack.c.l.b16 %v706
      %v715 = vpack.c.b16 %v712, %v711
      %v716 = vpack.c.b16 %v714, %v713
      %v720 = vsel %vm571, %v701, 0
      %722 = vmatprep.subr.bf16.mxu0 0
      %723 = vmatpush1.bf16.msra.mxu0 0
      %724 = vmatprep.subr.bf16.mxu0 0
      %725 = vmatpush1.bf16.msra.mxu0 0
      %726 = vmatprep.subr.bf16.mxu0 0
      %727 = vmatpush1.bf16.msra.mxu0 0
      %728 = vmatprep.subr.bf16.mxu0 0
      %729 = vmatpush1.bf16.msra.mxu0 0
      %730 = vmatprep.subr.bf16.mxu0 0
      %731 = vmatpush1.bf16.msra.mxu0 0
      %732 = vmatprep.subr.bf16.mxu0 0
      %733 = vmatpush1.bf16.msra.mxu0 0
      %734 = vmatprep.subr.bf16.mxu0 0
      %735 = vmatpush1.bf16.msra.mxu0 %v716
      %736 = vmatprep.subr.bf16.mxu0 0
      %737 = vmatpush1.bf16.msra.mxu0 %v715
      %738 = vmatprep.subr.bf16.mxu0 0
      %739 = vmatpush2.bf16.msra.mxu0 0
      %740 = vmatprep.subr.bf16.mxu0 0
      %741 = vmatpush2.bf16.msra.mxu0 0
      %742 = vmatprep.subr.bf16.mxu0 0
      %743 = vmatpush2.bf16.msra.mxu0 0
      %744 = vmatprep.subr.bf16.mxu0 0
      %745 = vmatpush2.bf16.msra.mxu0 0
      %746 = vmatprep.subr.bf16.mxu0 0
      %747 = vmatpush2.bf16.msra.mxu0 0
      %748 = vmatprep.subr.bf16.mxu0 0
      %749 = vmatpush2.bf16.msra.mxu0 0
      %750 = vmatprep.subr.bf16.mxu0 0
      %751 = vmatpush2.bf16.msra.mxu0 0
      %752 = vmatprep.subr.bf16.mxu0 0
      %753 = vmatpush2.bf16.msra.mxu0 0
      %754 = vmatprep.mubr.bf16.mxu0 0
      %755 = vmatmul.mubr.bf16.gmra.mxu0 %v720
      %v756 = vpop.f32.mrf.mxu0
      %v757 = vadd.f32 0.0, %v756
      %v758 = vpop.f32.mrf.mxu0
      %v759 = vpop.f32.mrf.mxu0
      %v760 = vpop.f32.mrf.mxu0
      %761 = vdwg.mxu0
      %v762 = vadd.f32 %v695, %v757
      %v763 = vld [vmem:[#allocation3 + $0x4] sm:$0xff]
      %v764 = vpack.c.bf16 %v763, %v763
      %s765 = scalar_lea.vmem %s3, 48
      %v766 = vld [vmem:[%s765] sm:$0xf]
      %v767 = vld [vmem:[%s765 + $0x4] sm:$0xf]
      %v768 = vld [vmem:[%s765 + $0x8] sm:$0xf]
      %v769 = vld [vmem:[%s765 + $0xc] sm:$0xf]
      %v774 = vunpack.c.l.b16 %v766
      %v775 = vunpack.c.l.b16 %v767
      %v776 = vunpack.c.l.b16 %v768
      %v777 = vunpack.c.l.b16 %v769
      %v778 = vpack.c.b16 %v775, %v774
      %v779 = vpack.c.b16 %v777, %v776
      %v783 = vsel %vm571, %v764, 0
      %785 = vmatprep.subr.bf16.mxu0 0
      %786 = vmatpush1.bf16.msra.mxu0 0
      %787 = vmatprep.subr.bf16.mxu0 0
      %788 = vmatpush1.bf16.msra.mxu0 0
      %789 = vmatprep.subr.bf16.mxu0 0
      %790 = vmatpush1.bf16.msra.mxu0 0
      %791 = vmatprep.subr.bf16.mxu0 0
      %792 = vmatpush1.bf16.msra.mxu0 0
      %793 = vmatprep.subr.bf16.mxu0 0
      %794 = vmatpush1.bf16.msra.mxu0 0
      %795 = vmatprep.subr.bf16.mxu0 0
      %796 = vmatpush1.bf16.msra.mxu0 0
      %797 = vmatprep.subr.bf16.mxu0 0
      %798 = vmatpush1.bf16.msra.mxu0 %v779
      %799 = vmatprep.subr.bf16.mxu0 0
      %800 = vmatpush1.bf16.msra.mxu0 %v778
      %801 = vmatprep.subr.bf16.mxu0 0
      %802 = vmatpush2.bf16.msra.mxu0 0
      %803 = vmatprep.subr.bf16.mxu0 0
      %804 = vmatpush2.bf16.msra.mxu0 0
      %805 = vmatprep.subr.bf16.mxu0 0
      %806 = vmatpush2.bf16.msra.mxu0 0
      %807 = vmatprep.subr.bf16.mxu0 0
      %808 = vmatpush2.bf16.msra.mxu0 0
      %809 = vmatprep.subr.bf16.mxu0 0
      %810 = vmatpush2.bf16.msra.mxu0 0
      %811 = vmatprep.subr.bf16.mxu0 0
      %812 = vmatpush2.bf16.msra.mxu0 0
      %813 = vmatprep.subr.bf16.mxu0 0
      %814 = vmatpush2.bf16.msra.mxu0 0
      %815 = vmatprep.subr.bf16.mxu0 0
      %816 = vmatpush2.bf16.msra.mxu0 0
      %817 = vmatprep.mubr.bf16.mxu0 0
      %818 = vmatmul.mubr.bf16.gmra.mxu0 %v783
      %v819 = vpop.f32.mrf.mxu0
      %v820 = vadd.f32 0.0, %v819
      %v821 = vpop.f32.mrf.mxu0
      %v822 = vpop.f32.mrf.mxu0
      %v823 = vpop.f32.mrf.mxu0
      %824 = vdwg.mxu0
      %v825 = vadd.f32 %v762, %v820
      %v826 = vld [vmem:[#allocation3 + $0x5] sm:$0xff]
      %v827 = vpack.c.bf16 %v826, %v826
      %s828 = scalar_lea.vmem %s3, 64
      %v829 = vld [vmem:[%s828] sm:$0xf]
      %v830 = vld [vmem:[%s828 + $0x4] sm:$0xf]
      %v831 = vld [vmem:[%s828 + $0x8] sm:$0xf]
      %v832 = vld [vmem:[%s828 + $0xc] sm:$0xf]
      %v837 = vunpack.c.l.b16 %v829
      %v838 = vunpack.c.l.b16 %v830
      %v839 = vunpack.c.l.b16 %v831
      %v840 = vunpack.c.l.b16 %v832
      %v841 = vpack.c.b16 %v838, %v837
      %v842 = vpack.c.b16 %v840, %v839
      %v846 = vsel %vm571, %v827, 0
      %848 = vmatprep.subr.bf16.mxu0 0
      %849 = vmatpush1.bf16.msra.mxu0 0
      %850 = vmatprep.subr.bf16.mxu0 0
      %851 = vmatpush1.bf16.msra.mxu0 0
      %852 = vmatprep.subr.bf16.mxu0 0
      %853 = vmatpush1.bf16.msra.mxu0 0
      %854 = vmatprep.subr.bf16.mxu0 0
      %855 = vmatpush1.bf16.msra.mxu0 0
      %856 = vmatprep.subr.bf16.mxu0 0
      %857 = vmatpush1.bf16.msra.mxu0 0
      %858 = vmatprep.subr.bf16.mxu0 0
      %859 = vmatpush1.bf16.msra.mxu0 0
      %860 = vmatprep.subr.bf16.mxu0 0
      %861 = vmatpush1.bf16.msra.mxu0 %v842
      %862 = vmatprep.subr.bf16.mxu0 0
      %863 = vmatpush1.bf16.msra.mxu0 %v841
      %864 = vmatprep.subr.bf16.mxu0 0
      %865 = vmatpush2.bf16.msra.mxu0 0
      %866 = vmatprep.subr.bf16.mxu0 0
      %867 = vmatpush2.bf16.msra.mxu0 0
      %868 = vmatprep.subr.bf16.mxu0 0
      %869 = vmatpush2.bf16.msra.mxu0 0
      %870 = vmatprep.subr.bf16.mxu0 0
      %871 = vmatpush2.bf16.msra.mxu0 0
      %872 = vmatprep.subr.bf16.mxu0 0
      %873 = vmatpush2.bf16.msra.mxu0 0
      %874 = vmatprep.subr.bf16.mxu0 0
      %875 = vmatpush2.bf16.msra.mxu0 0
      %876 = vmatprep.subr.bf16.mxu0 0
      %877 = vmatpush2.bf16.msra.mxu0 0
      %878 = vmatprep.subr.bf16.mxu0 0
      %879 = vmatpush2.bf16.msra.mxu0 0
      %880 = vmatprep.mubr.bf16.mxu0 0
      %881 = vmatmul.mubr.bf16.gmra.mxu0 %v846
      %v882 = vpop.f32.mrf.mxu0
      %v883 = vadd.f32 0.0, %v882
      %v884 = vpop.f32.mrf.mxu0
      %v885 = vpop.f32.mrf.mxu0
      %v886 = vpop.f32.mrf.mxu0
      %887 = vdwg.mxu0
      %v888 = vadd.f32 %v825, %v883
      %v889 = vld [vmem:[#allocation3 + $0x6] sm:$0xff]
      %v890 = vpack.c.bf16 %v889, %v889
      %s891 = scalar_lea.vmem %s3, 80
      %v892 = vld [vmem:[%s891] sm:$0xf]
      %v893 = vld [vmem:[%s891 + $0x4] sm:$0xf]
      %v894 = vld [vmem:[%s891 + $0x8] sm:$0xf]
      %v895 = vld [vmem:[%s891 + $0xc] sm:$0xf]
      %v900 = vunpack.c.l.b16 %v892
      %v901 = vunpack.c.l.b16 %v893
      %v902 = vunpack.c.l.b16 %v894
      %v903 = vunpack.c.l.b16 %v895
      %v904 = vpack.c.b16 %v901, %v900
      %v905 = vpack.c.b16 %v903, %v902
      %v909 = vsel %vm571, %v890, 0
      %911 = vmatprep.subr.bf16.mxu0 0
      %912 = vmatpush1.bf16.msra.mxu0 0
      %913 = vmatprep.subr.bf16.mxu0 0
      %914 = vmatpush1.bf16.msra.mxu0 0
      %915 = vmatprep.subr.bf16.mxu0 0
      %916 = vmatpush1.bf16.msra.mxu0 0
      %917 = vmatprep.subr.bf16.mxu0 0
      %918 = vmatpush1.bf16.msra.mxu0 0
      %919 = vmatprep.subr.bf16.mxu0 0
      %920 = vmatpush1.bf16.msra.mxu0 0
      %921 = vmatprep.subr.bf16.mxu0 0
      %922 = vmatpush1.bf16.msra.mxu0 0
      %923 = vmatprep.subr.bf16.mxu0 0
      %924 = vmatpush1.bf16.msra.mxu0 %v905
      %925 = vmatprep.subr.bf16.mxu0 0
      %926 = vmatpush1.bf16.msra.mxu0 %v904
      %927 = vmatprep.subr.bf16.mxu0 0
      %928 = vmatpush2.bf16.msra.mxu0 0
      %929 = vmatprep.subr.bf16.mxu0 0
      %930 = vmatpush2.bf16.msra.mxu0 0
      %931 = vmatprep.subr.bf16.mxu0 0
      %932 = vmatpush2.bf16.msra.mxu0 0
      %933 = vmatprep.subr.bf16.mxu0 0
      %934 = vmatpush2.bf16.msra.mxu0 0
      %935 = vmatprep.subr.bf16.mxu0 0
      %936 = vmatpush2.bf16.msra.mxu0 0
      %937 = vmatprep.subr.bf16.mxu0 0
      %938 = vmatpush2.bf16.msra.mxu0 0
      %939 = vmatprep.subr.bf16.mxu0 0
      %940 = vmatpush2.bf16.msra.mxu0 0
      %941 = vmatprep.subr.bf16.mxu0 0
      %942 = vmatpush2.bf16.msra.mxu0 0
      %943 = vmatprep.mubr.bf16.mxu0 0
      %944 = vmatmul.mubr.bf16.gmra.mxu0 %v909
      %v945 = vpop.f32.mrf.mxu0
      %v946 = vadd.f32 0.0, %v945
      %v947 = vpop.f32.mrf.mxu0
      %v948 = vpop.f32.mrf.mxu0
      %v949 = vpop.f32.mrf.mxu0
      %950 = vdwg.mxu0
      %v951 = vadd.f32 %v888, %v946
      %v952 = vld [vmem:[#allocation3 + $0x8] sm:$0xff]
      %v953 = vpack.c.bf16 %v952, %v952
      %s954 = scalar_lea.vmem %s3, 96
      %v955 = vld [vmem:[%s954] sm:$0xf]
      %v956 = vld [vmem:[%s954 + $0x4] sm:$0xf]
      %v957 = vld [vmem:[%s954 + $0x8] sm:$0xf]
      %v958 = vld [vmem:[%s954 + $0xc] sm:$0xf]
      %v963 = vunpack.c.l.b16 %v955
      %v964 = vunpack.c.l.b16 %v956
      %v965 = vunpack.c.l.b16 %v957
      %v966 = vunpack.c.l.b16 %v958
      %v967 = vpack.c.b16 %v964, %v963
      %v968 = vpack.c.b16 %v966, %v965
      %v972 = vsel %vm571, %v953, 0
      %974 = vmatprep.subr.bf16.mxu0 0
      %975 = vmatpush1.bf16.msra.mxu0 0
      %976 = vmatprep.subr.bf16.mxu0 0
      %977 = vmatpush1.bf16.msra.mxu0 0
      %978 = vmatprep.subr.bf16.mxu0 0
      %979 = vmatpush1.bf16.msra.mxu0 0
      %980 = vmatprep.subr.bf16.mxu0 0
      %981 = vmatpush1.bf16.msra.mxu0 0
      %982 = vmatprep.subr.bf16.mxu0 0
      %983 = vmatpush1.bf16.msra.mxu0 0
      %984 = vmatprep.subr.bf16.mxu0 0
      %985 = vmatpush1.bf16.msra.mxu0 0
      %986 = vmatprep.subr.bf16.mxu0 0
      %987 = vmatpush1.bf16.msra.mxu0 %v968
      %988 = vmatprep.subr.bf16.mxu0 0
      %989 = vmatpush1.bf16.msra.mxu0 %v967
      %990 = vmatprep.subr.bf16.mxu0 0
      %991 = vmatpush2.bf16.msra.mxu0 0
      %992 = vmatprep.subr.bf16.mxu0 0
      %993 = vmatpush2.bf16.msra.mxu0 0
      %994 = vmatprep.subr.bf16.mxu0 0
      %995 = vmatpush2.bf16.msra.mxu0 0
      %996 = vmatprep.subr.bf16.mxu0 0
      %997 = vmatpush2.bf16.msra.mxu0 0
      %998 = vmatprep.subr.bf16.mxu0 0
      %999 = vmatpush2.bf16.msra.mxu0 0
      %1000 = vmatprep.subr.bf16.mxu0 0
      %1001 = vmatpush2.bf16.msra.mxu0 0
      %1002 = vmatprep.subr.bf16.mxu0 0
      %1003 = vmatpush2.bf16.msra.mxu0 0
      %1004 = vmatprep.subr.bf16.mxu0 0
      %1005 = vmatpush2.bf16.msra.mxu0 0
      %1006 = vmatprep.mubr.bf16.mxu0 0
      %1007 = vmatmul.mubr.bf16.gmra.mxu0 %v972
      %v1008 = vpop.f32.mrf.mxu0
      %v1009 = vadd.f32 0.0, %v1008
      %v1010 = vpop.f32.mrf.mxu0
      %v1011 = vpop.f32.mrf.mxu0
      %v1012 = vpop.f32.mrf.mxu0
      %1013 = vdwg.mxu0
      %v1014 = vadd.f32 %v951, %v1009
      %v1015 = vld [vmem:[#allocation3 + $0x9] sm:$0xff]
      %v1016 = vpack.c.bf16 %v1015, %v1015
      %s1017 = scalar_lea.vmem %s3, 112
      %v1018 = vld [vmem:[%s1017] sm:$0xf]
      %v1019 = vld [vmem:[%s1017 + $0x4] sm:$0xf]
      %v1020 = vld [vmem:[%s1017 + $0x8] sm:$0xf]
      %v1021 = vld [vmem:[%s1017 + $0xc] sm:$0xf]
      %v1026 = vunpack.c.l.b16 %v1018
      %v1027 = vunpack.c.l.b16 %v1019
      %v1028 = vunpack.c.l.b16 %v1020
      %v1029 = vunpack.c.l.b16 %v1021
      %v1030 = vpack.c.b16 %v1027, %v1026
      %v1031 = vpack.c.b16 %v1029, %v1028
      %v1035 = vsel %vm571, %v1016, 0
      %1037 = vmatprep.subr.bf16.mxu0 0
      %1038 = vmatpush1.bf16.msra.mxu0 0
      %1039 = vmatprep.subr.bf16.mxu0 0
      %1040 = vmatpush1.bf16.msra.mxu0 0
      %1041 = vmatprep.subr.bf16.mxu0 0
      %1042 = vmatpush1.bf16.msra.mxu0 0
      %1043 = vmatprep.subr.bf16.mxu0 0
      %1044 = vmatpush1.bf16.msra.mxu0 0
      %1045 = vmatprep.subr.bf16.mxu0 0
      %1046 = vmatpush1.bf16.msra.mxu0 0
      %1047 = vmatprep.subr.bf16.mxu0 0
      %1048 = vmatpush1.bf16.msra.mxu0 0
      %1049 = vmatprep.subr.bf16.mxu0 0
      %1050 = vmatpush1.bf16.msra.mxu0 %v1031
      %1051 = vmatprep.subr.bf16.mxu0 0
      %1052 = vmatpush1.bf16.msra.mxu0 %v1030
      %1053 = vmatprep.subr.bf16.mxu0 0
      %1054 = vmatpush2.bf16.msra.mxu0 0
      %1055 = vmatprep.subr.bf16.mxu0 0
      %1056 = vmatpush2.bf16.msra.mxu0 0
      %1057 = vmatprep.subr.bf16.mxu0 0
      %1058 = vmatpush2.bf16.msra.mxu0 0
      %1059 = vmatprep.subr.bf16.mxu0 0
      %1060 = vmatpush2.bf16.msra.mxu0 0
      %1061 = vmatprep.subr.bf16.mxu0 0
      %1062 = vmatpush2.bf16.msra.mxu0 0
      %1063 = vmatprep.subr.bf16.mxu0 0
      %1064 = vmatpush2.bf16.msra.mxu0 0
      %1065 = vmatprep.subr.bf16.mxu0 0
      %1066 = vmatpush2.bf16.msra.mxu0 0
      %1067 = vmatprep.subr.bf16.mxu0 0
      %1068 = vmatpush2.bf16.msra.mxu0 0
      %1069 = vmatprep.mubr.bf16.mxu0 0
      %1070 = vmatmul.mubr.bf16.gmra.mxu0 %v1035
      %v1071 = vpop.f32.mrf.mxu0
      %v1072 = vadd.f32 0.0, %v1071
      %v1073 = vpop.f32.mrf.mxu0
      %v1074 = vpop.f32.mrf.mxu0
      %v1075 = vpop.f32.mrf.mxu0
      %1076 = vdwg.mxu0
      %v1077 = vadd.f32 %v1014, %v1072
      %v1078 = vld [vmem:[#allocation3 + $0xa] sm:$0xff]
      %v1079 = vpack.c.bf16 %v1078, %v1078
      %s1080 = scalar_lea.vmem %s3, 128
      %v1081 = vld [vmem:[%s1080] sm:$0xf]
      %v1082 = vld [vmem:[%s1080 + $0x4] sm:$0xf]
      %v1083 = vld [vmem:[%s1080 + $0x8] sm:$0xf]
      %v1084 = vld [vmem:[%s1080 + $0xc] sm:$0xf]
      %v1089 = vunpack.c.l.b16 %v1081
      %v1090 = vunpack.c.l.b16 %v1082
      %v1091 = vunpack.c.l.b16 %v1083
      %v1092 = vunpack.c.l.b16 %v1084
      %v1093 = vpack.c.b16 %v1090, %v1089
      %v1094 = vpack.c.b16 %v1092, %v1091
      %v1098 = vsel %vm571, %v1079, 0
      %1100 = vmatprep.subr.bf16.mxu0 0
      %1101 = vmatpush1.bf16.msra.mxu0 0
      %1102 = vmatprep.subr.bf16.mxu0 0
      %1103 = vmatpush1.bf16.msra.mxu0 0
      %1104 = vmatprep.subr.bf16.mxu0 0
      %1105 = vmatpush1.bf16.msra.mxu0 0
      %1106 = vmatprep.subr.bf16.mxu0 0
      %1107 = vmatpush1.bf16.msra.mxu0 0
      %1108 = vmatprep.subr.bf16.mxu0 0
      %1109 = vmatpush1.bf16.msra.mxu0 0
      %1110 = vmatprep.subr.bf16.mxu0 0
      %1111 = vmatpush1.bf16.msra.mxu0 0
      %1112 = vmatprep.subr.bf16.mxu0 0
      %1113 = vmatpush1.bf16.msra.mxu0 %v1094
      %1114 = vmatprep.subr.bf16.mxu0 0
      %1115 = vmatpush1.bf16.msra.mxu0 %v1093
      %1116 = vmatprep.subr.bf16.mxu0 0
      %1117 = vmatpush2.bf16.msra.mxu0 0
      %1118 = vmatprep.subr.bf16.mxu0 0
      %1119 = vmatpush2.bf16.msra.mxu0 0
      %1120 = vmatprep.subr.bf16.mxu0 0
      %1121 = vmatpush2.bf16.msra.mxu0 0
      %1122 = vmatprep.subr.bf16.mxu0 0
      %1123 = vmatpush2.bf16.msra.mxu0 0
      %1124 = vmatprep.subr.bf16.mxu0 0
      %1125 = vmatpush2.bf16.msra.mxu0 0
      %1126 = vmatprep.subr.bf16.mxu0 0
      %1127 = vmatpush2.bf16.msra.mxu0 0
      %1128 = vmatprep.subr.bf16.mxu0 0
      %1129 = vmatpush2.bf16.msra.mxu0 0
      %1130 = vmatprep.subr.bf16.mxu0 0
      %1131 = vmatpush2.bf16.msra.mxu0 0
      %1132 = vmatprep.mubr.bf16.mxu0 0
      %1133 = vmatmul.mubr.bf16.gmra.mxu0 %v1098
      %v1134 = vpop.f32.mrf.mxu0
      %v1135 = vadd.f32 0.0, %v1134
      %v1136 = vpop.f32.mrf.mxu0
      %v1137 = vpop.f32.mrf.mxu0
      %v1138 = vpop.f32.mrf.mxu0
      %1139 = vdwg.mxu0
      %v1140 = vadd.f32 %v1077, %v1135
      %v1141 = vld [vmem:[%s4] sm:$0x1]
      %v1143 = vlaneseq
      %v1144 = vshrl.u32 %v1143, 7
      %v1145 = vsub.s32 0, %v1144
      %v1146 = vrot.slane %v1141, %v1145
      %v1148 = vadd.f32 %v1140, %v1146
      %v1149 = vmax.f32 %v1148, 0.0
      %v1150 = vsel %vm569, %v1149, 0.0
      %v1151 = vpack.c.bf16 %v1150, %v1150
      %1152 = vst.msk [vmem:[%s222] sm:$0xf] %vm574, %v1151
      %p1153 = scmp.lt.s32.totalorder %s16, 1
      %s1154 = scalar_select %p1153, %s16, 1
      %s1155 = smul.addr %s1154, 4
      %s1156 = scalar_lea.vmem %s5, %s1155
      // Predicated region
      $region41: #{denoiser_forward.13} parent=39 // pred_check
        %p1157 = pneg %p144
      $region42: #{denoiser_forward.13} parent=39 // pred_check_branch
        %1159 = sbr.rel (%p1157) target = $region44
      $region43: #{denoiser_forward.13} parent=39 // pred_region
        _
      $region44: #{denoiser_forward.13} parent=39 // pred_fallthru
        _
    $region40: #{denoiser_forward.13} parent=5 // pred_fallthru
      _
    %p1160 = scmp.le.s32.totalorder 2, %s11
    // Predicated region
    $region45: #{denoiser_forward.13} parent=5 // pred_check
      %p1161 = pneg %p1160
    $region46: #{denoiser_forward.13} parent=5 // pred_check_branch
      %1163 = sbr.rel (%p1161) target = $region48
    $region47: #{denoiser_forward.13} parent=5 // pred_region
      %s1164 = ssub.s32 %s11, 2
      // Predicated region
      $region49: #{denoiser_forward.13} parent=47 // pred_check
        %p1165 = pneg %p150
      $region50: #{denoiser_forward.13} parent=47 // pred_check_branch
        %1167 = sbr.rel (%p1165) target = $region52
      $region51: #{denoiser_forward.13} parent=47 // pred_region
        %p1168 = scmp.lt.s32.totalorder %s17, 1
        %s1169 = scalar_select %p1168, %s17, 1
        %s1170 = smul.addr %s1169, 4
        %s1171 = scalar_lea.vmem %s5, %s1170
      $region52: #{denoiser_forward.13} parent=47 // pred_fallthru
        _
    $region48: #{denoiser_forward.13} parent=5 // pred_fallthru
      _
  $region6: #{denoiser_forward.13} parent=0 // loop_footer
    %s15 = sadd.s32 1, %s11
  $region7: #{denoiser_forward.13} parent=0 // loop_footer_branch
    %10 = sbr.rel target = $region3
  $region8: #{denoiser_forward.13} parent=0 // loop_exit
    _

// kernel: denoiser_forward.16
$region0: #{denoiser_forward.16}
  #allocation0 [shape = 'u32[]', space=smem, size = 0x4, offset = 0x4, fixed_abs, tag = 'smem constant byte address 0x4 - core index']
  #allocation1 [shape = 'u32[144,128]{1,0:T(1,128)}', space=vmem, size = 0x12000, scoped, tag = 'internal scratch']
  %s0 = inlined_call_operand.vmem [shape: bf16[48,16], index: 0, kind: input, shape index: {}]
  %s1 = inlined_call_operand.vmem [shape: bf16[48,16], index: 1, kind: input, shape index: {}]
  %s2 = inlined_call_operand.vmem [shape: bf16[16,32], index: 2, kind: input, shape index: {}]
  %s3 = inlined_call_operand.vmem [shape: f32[1,32], index: 3, kind: input, shape index: {}]
  %s4 = inlined_call_operand.vmem [shape: bf16[48,32], index: 4, kind: output, shape index: {}]
  %s5 = sld [smem:[#allocation0]]
  $region26: #{denoiser_forward.16} parent=0
    _
  %s7 = ssub.s32 1, %s5
  %s8 = scalar_select 0, %s7, %s5
  // Predicated region
  $region2: #{denoiser_forward.16} parent=0 // pred_check
    _
  $region3: #{denoiser_forward.16} parent=0 // pred_check_branch
    %10 = sbr.rel (0) target = $region5
  $region4: #{denoiser_forward.16} parent=0 // pred_region
    _
  $region5: #{denoiser_forward.16} parent=0 // pred_fallthru
    _
  // Predicated region
  $region6: #{denoiser_forward.16} parent=0 // pred_check
    _
  $region7: #{denoiser_forward.16} parent=0 // pred_check_branch
    %12 = sbr.rel (0) target = $region9
  $region8: #{denoiser_forward.16} parent=0 // pred_region
    _
  $region9: #{denoiser_forward.16} parent=0 // pred_fallthru
    _
  // Predicated region
  $region10: #{denoiser_forward.16} parent=0 // pred_check
    _
  $region11: #{denoiser_forward.16} parent=0 // pred_check_branch
    %14 = sbr.rel (0) target = $region13
  $region12: #{denoiser_forward.16} parent=0 // pred_region
    _
  $region13: #{denoiser_forward.16} parent=0 // pred_fallthru
    _
  // Predicated region
  $region14: #{denoiser_forward.16} parent=0 // pred_check
    _
  $region15: #{denoiser_forward.16} parent=0 // pred_check_branch
    %16 = sbr.rel (0) target = $region17
  $region16: #{denoiser_forward.16} parent=0 // pred_region
    _
  $region17: #{denoiser_forward.16} parent=0 // pred_fallthru
    _
  %v18 = vld [vmem:[%s0] sm:$0xf]
  %v19 = vld [vmem:[%s0 + $0x4] sm:$0xf]
  %v20 = vld [vmem:[%s0 + $0x8] sm:$0xf]
  %v21 = vld [vmem:[%s0 + $0xc] sm:$0xf]
  %v22 = vld [vmem:[%s0 + $0x10] sm:$0xf]
  %v23 = vld [vmem:[%s0 + $0x14] sm:$0xf]
  %v24 = vld [vmem:[%s1] sm:$0xf]
  %v25 = vld [vmem:[%s1 + $0x4] sm:$0xf]
  %v26 = vld [vmem:[%s1 + $0x8] sm:$0xf]
  %v27 = vld [vmem:[%s1 + $0xc] sm:$0xf]
  %v28 = vld [vmem:[%s1 + $0x10] sm:$0xf]
  %v29 = vld [vmem:[%s1 + $0x14] sm:$0xf]
  %v30 = vadd.bf16 %v18, %v24
  %v31 = vadd.bf16 %v19, %v25
  %v32 = vadd.bf16 %v20, %v26
  %v33 = vadd.bf16 %v21, %v27
  %v34 = vadd.bf16 %v22, %v28
  %v35 = vadd.bf16 %v23, %v29
  %v36 = vld [vmem:[%s2] sm:$0xf]
  %v37 = vld [vmem:[%s2 + $0x4] sm:$0xf]
  %v38 = vld [vmem:[%s3] sm:$0x1]
  %v40 = vlaneseq
  %v41 = vshrl.u32 %v40, 7
  %v42 = vsub.s32 0, %v41
  %v43 = vrot.slane %v38, %v42
  %v51 = vunpack.c.l.b16 %v30
  %v52 = vunpack.c.l.b16 %v31
  %v53 = vunpack.c.l.b16 %v32
  %v54 = vunpack.c.l.b16 %v33
  %v55 = vunpack.c.l.b16 %v34
  %v56 = vunpack.c.l.b16 %v35
  %v57 = vpack.c.b16 %v52, %v51
  %v58 = vpack.c.b16 %v54, %v53
  %v59 = vpack.c.b16 %v56, %v55
  %v62 = vunpack.c.l.b16 %v36
  %v63 = vunpack.c.l.b16 %v37
  %v64 = vpack.c.b16 %v63, %v62
  %vm66 = vcmask 130048
  %v68 = vsel %vm66, %v57, 0
  %v71 = vsel %vm66, %v58, 0
  %v74 = vsel %vm66, %v59, 0
  %76 = vmatprep.subr.bf16.mxu0 0
  %77 = vmatpush1.bf16.msra.mxu0 0
  %78 = vmatprep.subr.bf16.mxu0 0
  %79 = vmatpush1.bf16.msra.mxu0 0
  %80 = vmatprep.subr.bf16.mxu0 0
  %81 = vmatpush1.bf16.msra.mxu0 0
  %82 = vmatprep.subr.bf16.mxu0 0
  %83 = vmatpush1.bf16.msra.mxu0 0
  %84 = vmatprep.subr.bf16.mxu0 0
  %85 = vmatpush1.bf16.msra.mxu0 0
  %86 = vmatprep.subr.bf16.mxu0 0
  %87 = vmatpush1.bf16.msra.mxu0 0
  %88 = vmatprep.subr.bf16.mxu0 0
  %89 = vmatpush1.bf16.msra.mxu0 0
  %90 = vmatprep.subr.bf16.mxu0 0
  %91 = vmatpush1.bf16.msra.mxu0 %v64
  %92 = vmatprep.subr.bf16.mxu0 0
  %93 = vmatpush2.bf16.msra.mxu0 0
  %94 = vmatprep.subr.bf16.mxu0 0
  %95 = vmatpush2.bf16.msra.mxu0 0
  %96 = vmatprep.subr.bf16.mxu0 0
  %97 = vmatpush2.bf16.msra.mxu0 0
  %98 = vmatprep.subr.bf16.mxu0 0
  %99 = vmatpush2.bf16.msra.mxu0 0
  %100 = vmatprep.subr.bf16.mxu0 0
  %101 = vmatpush2.bf16.msra.mxu0 0
  %102 = vmatprep.subr.bf16.mxu0 0
  %103 = vmatpush2.bf16.msra.mxu0 0
  %104 = vmatprep.subr.bf16.mxu0 0
  %105 = vmatpush2.bf16.msra.mxu0 0
  %106 = vmatprep.subr.bf16.mxu0 0
  %107 = vmatpush2.bf16.msra.mxu0 0
  %108 = vmatprep.mubr.bf16.mxu0 0
  %109 = vmatmul.mubr.bf16.gmra.mxu0 %v68
  %v110 = vpop.f32.mrf.mxu0
  %v111 = vadd.f32 %v43, %v110
  %v112 = vpop.f32.mrf.mxu0
  %v113 = vpop.f32.mrf.mxu0
  %v114 = vadd.f32 %v43, %v113
  %v115 = vpop.f32.mrf.mxu0
  %116 = vmatprep.mubr.bf16.mxu0 0
  %117 = vmatmul.mubr.bf16.gmra.mxu0 %v71
  %v118 = vpop.f32.mrf.mxu0
  %v119 = vadd.f32 %v43, %v118
  %v120 = vpop.f32.mrf.mxu0
  %v121 = vpop.f32.mrf.mxu0
  %v122 = vadd.f32 %v43, %v121
  %v123 = vpop.f32.mrf.mxu0
  %124 = vmatprep.mubr.bf16.mxu0 0
  %125 = vmatmul.mubr.bf16.gmra.mxu0 %v74
  %v126 = vpop.f32.mrf.mxu0
  %v127 = vadd.f32 %v43, %v126
  %v128 = vpop.f32.mrf.mxu0
  %v129 = vpop.f32.mrf.mxu0
  %v130 = vadd.f32 %v43, %v129
  %v131 = vpop.f32.mrf.mxu0
  %132 = vdwg.mxu0
  %v133 = vmax.f32 %v111, 0.0
  %v134 = vmax.f32 %v114, 0.0
  %v135 = vmax.f32 %v119, 0.0
  %v136 = vmax.f32 %v122, 0.0
  %v137 = vmax.f32 %v127, 0.0
  %v138 = vmax.f32 %v130, 0.0
  %v139 = vpack.c.bf16 %v134, %v133
  %v140 = vpack.c.bf16 %v136, %v135
  %v141 = vpack.c.bf16 %v138, %v137
  %v145 = vunpack.c.l.b16 %v139
  %v146 = vunpack.c.h.b16 %v139
  %v147 = vunpack.c.l.b16 %v140
  %v148 = vunpack.c.h.b16 %v140
  %v149 = vunpack.c.l.b16 %v141
  %v150 = vunpack.c.h.b16 %v141
  %v151 = vpack.c.b16 %v145, %v145
  %v152 = vpack.c.b16 %v146, %v146
  %v153 = vpack.c.b16 %v147, %v147
  %v154 = vpack.c.b16 %v148, %v148
  %v155 = vpack.c.b16 %v149, %v149
  %v156 = vpack.c.b16 %v150, %v150
  %vm163 = vcmask 257024
  %164 = vst.msk [vmem:[%s4] sm:$0xf] %vm163, %v151
  %165 = vst.msk [vmem:[%s4 + $0x4] sm:$0xf] %vm163, %v152
  %166 = vst.msk [vmem:[%s4 + $0x8] sm:$0xf] %vm163, %v153
  %167 = vst.msk [vmem:[%s4 + $0xc] sm:$0xf] %vm163, %v154
  %168 = vst.msk [vmem:[%s4 + $0x10] sm:$0xf] %vm163, %v155
  %169 = vst.msk [vmem:[%s4 + $0x14] sm:$0xf] %vm163, %v156
  // Predicated region
  $region18: #{denoiser_forward.16} parent=0 // pred_check
    _
  $region19: #{denoiser_forward.16} parent=0 // pred_check_branch
    %171 = sbr.rel (0) target = $region21
  $region20: #{denoiser_forward.16} parent=0 // pred_region
    _
  $region21: #{denoiser_forward.16} parent=0 // pred_fallthru
    _
  // Predicated region
  $region22: #{denoiser_forward.16} parent=0 // pred_check
    _
  $region23: #{denoiser_forward.16} parent=0 // pred_check_branch
    %173 = sbr.rel (0) target = $region25
  $region24: #{denoiser_forward.16} parent=0 // pred_region
    _
  $region25: #{denoiser_forward.16} parent=0 // pred_fallthru
    _

// kernel: denoiser_forward.14
$region0: #{denoiser_forward.14}
  #allocation0 [shape = 'u32[]', space=smem, size = 0x4, offset = 0x4, fixed_abs, tag = 'smem constant byte address 0x4 - core index']
  #allocation1 [shape = 'u32[144,128]{1,0:T(1,128)}', space=vmem, size = 0x12000, scoped, tag = 'internal scratch']
  #allocation2 [shape = 'f32[20,32]{1,0:T(8,128)}', space=vmem, size = 0x3000, scoped, tag = 'scratch operand']
  #allocation3 [shape = 'f32[20,32]{1,0:T(8,128)}', space=vmem, size = 0x3000, scoped, tag = 'scratch operand']
  %s0 = inlined_call_operand.vmem [shape: bf16[2,8,32], index: 0, kind: input, shape index: {}]
  %s1 = inlined_call_operand.vmem [shape: bf16[9,32,32], index: 1, kind: input, shape index: {}]
  %s2 = inlined_call_operand.vmem [shape: f32[1,32], index: 2, kind: input, shape index: {}]
  %s3 = inlined_call_operand.vmem [shape: bf16[9,32,32], index: 3, kind: input, shape index: {}]
  %s4 = inlined_call_operand.vmem [shape: f32[1,32], index: 4, kind: input, shape index: {}]
  %s5 = inlined_call_operand.vmem [shape: f32[2,1,32], index: 5, kind: input, shape index: {}]
  %s6 = inlined_call_operand.vmem [shape: bf16[2,8,32], index: 6, kind: output, shape index: {}]
  %s7 = sld [smem:[#allocation0]]
  $region57: #{denoiser_forward.14} parent=0
    _
  %s9 = ssub.s32 1, %s7
  %s10 = scalar_select 0, %s9, %s7
  loop: start=0, step=1, limit=4
  $region2: #{denoiser_forward.14} parent=0 // loop_pre_header
    _
  $region3: #{denoiser_forward.14} parent=0 // loop_header
    %s12 = sphi 0, %s16
    %p13 = scmp.ge.s32.totalorder %s12, 4
    %s22 = sphi 0, %s24
    %s25 = sphi 0, %s22
    %s26 = sphi 0, %s25
    %s42 = sphi 0, %s26
    %s46 = sphi 0, %s46
    %s48 = sphi 0, %s46
    %s49 = sphi 0, %s48
    %s63 = sphi 0, %s49
    %s67 = sphi 0, %s67
    %s69 = sphi 0, %s67
    %s70 = sphi 0, %s69
    %s84 = sphi 0, %s70
    %s88 = sphi 0, %s88
    %s90 = sphi 0, %s88
    %s91 = sphi 0, %s90
    %s105 = sphi 0, %s91
    %s109 = sphi 0, %s109
    %s111 = sphi 0, %s109
    %s112 = sphi 0, %s111
    %s126 = sphi 0, %s112
    %s132 = sphi 0, %s134
    %s135 = sphi 0, %s132
    %s136 = sphi 0, %s135
    %s152 = sphi 0, %s136
    %s158 = sphi 0, %s160
    %s161 = sphi 0, %s158
    %s162 = sphi 0, %s161
    %s178 = sphi 0, %s162
  $region4: #{denoiser_forward.14} parent=0 // loop_header_branch
    %15 = sbr.rel (%p13) target = $region8
  $region5: #{denoiser_forward.14} parent=0 // loop_body
    %s17 = ssub.s32 %s12, 1
    %s18 = ssub.s32 %s12, 2
    %s19 = sadd.s32 %s12, 1
    %s20 = ssub.s32 %s12, %s19
    %p21 = scmp.eq.s32.totalorder %s20, 0
    %s23 = sadd.s32 %s22, 1
    %s24 = scalar_select %p21, %s22, %s23
    %p27 = pneg %p21
    %p28 = scmp.eq.s32.totalorder %s12, 1
    %p29 = por %p27, %p28
    %p30 = scmp.ne.s32.totalorder %s22, %s25
    %p31 = scmp.eq.s32.totalorder %s12, 0
    %p32 = por %p30, %p31
    %p33 = scmp.ne.s32.totalorder %s22, %s25
    %p34 = scmp.eq.s32.totalorder %s17, 1
    %p35 = por %p33, %p34
    %p36 = scmp.ne.s32.totalorder %s25, %s26
    %p37 = scmp.eq.s32.totalorder %s17, 0
    %p38 = por %p36, %p37
    %p39 = scmp.ne.s32.totalorder %s25, %s26
    %p40 = scmp.eq.s32.totalorder %s18, 1
    %p41 = por %p39, %p40
    %p43 = scmp.ne.s32.totalorder %s26, %s42
    %p44 = scmp.eq.s32.totalorder %s18, 0
    %p45 = por %p43, %p44
    %s47 = sadd.s32 %s46, 1
    %p50 = scmp.eq.s32.totalorder %s12, 1
    %p51 = scmp.ne.s32.totalorder %s46, %s48
    %p52 = scmp.eq.s32.totalorder %s12, 0
    %p53 = por %p51, %p52
    %p54 = scmp.ne.s32.totalorder %s46, %s48
    %p55 = scmp.eq.s32.totalorder %s17, 1
    %p56 = por %p54, %p55
    %p57 = scmp.ne.s32.totalorder %s48, %s49
    %p58 = scmp.eq.s32.totalorder %s17, 0
    %p59 = por %p57, %p58
    %p60 = scmp.ne.s32.totalorder %s48, %s49
    %p61 = scmp.eq.s32.totalorder %s18, 1
    %p62 = por %p60, %p61
    %p64 = scmp.ne.s32.totalorder %s49, %s63
    %p65 = scmp.eq.s32.totalorder %s18, 0
    %p66 = por %p64, %p65
    %s68 = sadd.s32 %s67, 1
    %p71 = scmp.eq.s32.totalorder %s12, 1
    %p72 = scmp.ne.s32.totalorder %s67, %s69
    %p73 = scmp.eq.s32.totalorder %s12, 0
    %p74 = por %p72, %p73
    %p75 = scmp.ne.s32.totalorder %s67, %s69
    %p76 = scmp.eq.s32.totalorder %s17, 1
    %p77 = por %p75, %p76
    %p78 = scmp.ne.s32.totalorder %s69, %s70
    %p79 = scmp.eq.s32.totalorder %s17, 0
    %p80 = por %p78, %p79
    %p81 = scmp.ne.s32.totalorder %s69, %s70
    %p82 = scmp.eq.s32.totalorder %s18, 1
    %p83 = por %p81, %p82
    %p85 = scmp.ne.s32.totalorder %s70, %s84
    %p86 = scmp.eq.s32.totalorder %s18, 0
    %p87 = por %p85, %p86
    %s89 = sadd.s32 %s88, 1
    %p92 = scmp.eq.s32.totalorder %s12, 1
    %p93 = scmp.ne.s32.totalorder %s88, %s90
    %p94 = scmp.eq.s32.totalorder %s12, 0
    %p95 = por %p93, %p94
    %p96 = scmp.ne.s32.totalorder %s88, %s90
    %p97 = scmp.eq.s32.totalorder %s17, 1
    %p98 = por %p96, %p97
    %p99 = scmp.ne.s32.totalorder %s90, %s91
    %p100 = scmp.eq.s32.totalorder %s17, 0
    %p101 = por %p99, %p100
    %p102 = scmp.ne.s32.totalorder %s90, %s91
    %p103 = scmp.eq.s32.totalorder %s18, 1
    %p104 = por %p102, %p103
    %p106 = scmp.ne.s32.totalorder %s91, %s105
    %p107 = scmp.eq.s32.totalorder %s18, 0
    %p108 = por %p106, %p107
    %s110 = sadd.s32 %s109, 1
    %p113 = scmp.eq.s32.totalorder %s12, 1
    %p114 = scmp.ne.s32.totalorder %s109, %s111
    %p115 = scmp.eq.s32.totalorder %s12, 0
    %p116 = por %p114, %p115
    %p117 = scmp.ne.s32.totalorder %s109, %s111
    %p118 = scmp.eq.s32.totalorder %s17, 1
    %p119 = por %p117, %p118
    %p120 = scmp.ne.s32.totalorder %s111, %s112
    %p121 = scmp.eq.s32.totalorder %s17, 0
    %p122 = por %p120, %p121
    %p123 = scmp.ne.s32.totalorder %s111, %s112
    %p124 = scmp.eq.s32.totalorder %s18, 1
    %p125 = por %p123, %p124
    %p127 = scmp.ne.s32.totalorder %s112, %s126
    %p128 = scmp.eq.s32.totalorder %s18, 0
    %p129 = por %p127, %p128
    %s130 = ssub.s32 %s12, %s19
    %p131 = scmp.eq.s32.totalorder %s130, 0
    %s133 = sadd.s32 %s132, 1
    %s134 = scalar_select %p131, %s132, %s133
    %p137 = pneg %p131
    %p138 = scmp.eq.s32.totalorder %s12, 1
    %p139 = por %p137, %p138
    %p140 = scmp.ne.s32.totalorder %s132, %s135
    %p141 = scmp.eq.s32.totalorder %s12, 0
    %p142 = por %p140, %p141
    %p143 = scmp.ne.s32.totalorder %s132, %s135
    %p144 = scmp.eq.s32.totalorder %s17, 1
    %p145 = por %p143, %p144
    %p146 = scmp.ne.s32.totalorder %s135, %s136
    %p147 = scmp.eq.s32.totalorder %s17, 0
    %p148 = por %p146, %p147
    %p149 = scmp.ne.s32.totalorder %s135, %s136
    %p150 = scmp.eq.s32.totalorder %s18, 1
    %p151 = por %p149, %p150
    %p153 = scmp.ne.s32.totalorder %s136, %s152
    %p154 = scmp.eq.s32.totalorder %s18, 0
    %p155 = por %p153, %p154
    %s156 = ssub.s32 %s12, %s19
    %p157 = scmp.eq.s32.totalorder %s156, 0
    %s159 = sadd.s32 %s158, 1
    %s160 = scalar_select %p157, %s158, %s159
    %p163 = pneg %p157
    %p164 = scmp.eq.s32.totalorder %s12, 1
    %p165 = por %p163, %p164
    %p166 = scmp.ne.s32.totalorder %s158, %s161
    %p167 = scmp.eq.s32.totalorder %s12, 0
    %p168 = por %p166, %p167
    %p169 = scmp.ne.s32.totalorder %s158, %s161
    %p170 = scmp.eq.s32.totalorder %s17, 1
    %p171 = por %p169, %p170
    %p172 = scmp.ne.s32.totalorder %s161, %s162
    %p173 = scmp.eq.s32.totalorder %s17, 0
    %p174 = por %p172, %p173
    %p175 = scmp.ne.s32.totalorder %s161, %s162
    %p176 = scmp.eq.s32.totalorder %s18, 1
    %p177 = por %p175, %p176
    %p179 = scmp.ne.s32.totalorder %s162, %s178
    %p180 = scmp.eq.s32.totalorder %s18, 0
    %p181 = por %p179, %p180
    %p182 = scmp.le.s32.totalorder 1, %s12
    %p183 = scmp.lt.s32.totalorder %s12, 3
    %p184 = pnand %p182, %p183
    %p185 = pneg %p184
    // Predicated region
    $region9: #{denoiser_forward.14} parent=5 // pred_check
      _
    $region10: #{denoiser_forward.14} parent=5 // pred_check_branch
      %187 = sbr.rel (%p184) target = $region12
    $region11: #{denoiser_forward.14} parent=5 // pred_region
      %s188 = ssub.s32 %s12, 1
      // Predicated region
      $region13: #{denoiser_forward.14} parent=11 // pred_check
        %p189 = pneg %p59
      $region14: #{denoiser_forward.14} parent=11 // pred_check_branch
        %191 = sbr.rel (%p189) target = $region16
      $region15: #{denoiser_forward.14} parent=11 // pred_region
        _
      $region16: #{denoiser_forward.14} parent=11 // pred_fallthru
        _
      // Predicated region
      $region17: #{denoiser_forward.14} parent=11 // pred_check
        %p192 = pneg %p80
      $region18: #{denoiser_forward.14} parent=11 // pred_check_branch
        %194 = sbr.rel (%p192) target = $region20
      $region19: #{denoiser_forward.14} parent=11 // pred_region
        _
      $region20: #{denoiser_forward.14} parent=11 // pred_fallthru
        _
      // Predicated region
      $region21: #{denoiser_forward.14} parent=11 // pred_check
        %p195 = pneg %p101
      $region22: #{denoiser_forward.14} parent=11 // pred_check_branch
        %197 = sbr.rel (%p195) target = $region24
      $region23: #{denoiser_forward.14} parent=11 // pred_region
        _
      $region24: #{denoiser_forward.14} parent=11 // pred_fallthru
        _
      // Predicated region
      $region25: #{denoiser_forward.14} parent=11 // pred_check
        %p198 = pneg %p122
      $region26: #{denoiser_forward.14} parent=11 // pred_check_branch
        %200 = sbr.rel (%p198) target = $region28
      $region27: #{denoiser_forward.14} parent=11 // pred_region
        _
      $region28: #{denoiser_forward.14} parent=11 // pred_fallthru
        _
    $region12: #{denoiser_forward.14} parent=5 // pred_fallthru
      _
    %p201 = scmp.lt.s32.totalorder %s12, 2
    // Predicated region
    $region29: #{denoiser_forward.14} parent=5 // pred_check
      %p202 = pneg %p201
    $region30: #{denoiser_forward.14} parent=5 // pred_check_branch
      %204 = sbr.rel (%p202) target = $region32
    $region31: #{denoiser_forward.14} parent=5 // pred_region
      // Predicated region
      $region33: #{denoiser_forward.14} parent=31 // pred_check
        %p205 = pneg %p32
      $region34: #{denoiser_forward.14} parent=31 // pred_check_branch
        %207 = sbr.rel (%p205) target = $region36
      $region35: #{denoiser_forward.14} parent=31 // pred_region
        %p208 = scmp.lt.s32.totalorder %s12, 1
        %s209 = scalar_select %p208, %s12, 1
        %s210 = smul.addr %s209, 4
        %s211 = scalar_lea.vmem %s0, %s210
      $region36: #{denoiser_forward.14} parent=31 // pred_fallthru
        _
      // Predicated region
      $region37: #{denoiser_forward.14} parent=31 // pred_check
        %p212 = pneg %p142
      $region38: #{denoiser_forward.14} parent=31 // pred_check_branch
        %214 = sbr.rel (%p212) target = $region40
      $region39: #{denoiser_forward.14} parent=31 // pred_region
        %p215 = scmp.lt.s32.totalorder %s12, 1
        %s216 = scalar_select %p215, %s12, 1
        %s217 = scalar_lea.vmem %s5, %s216
      $region40: #{denoiser_forward.14} parent=31 // pred_fallthru
        _
    $region32: #{denoiser_forward.14} parent=5 // pred_fallthru
      _
    %p218 = scmp.le.s32.totalorder 1, %s12
    %p219 = scmp.lt.s32.totalorder %s12, 3
    %p220 = pnand %p218, %p219
    %p221 = pneg %p220
    // Predicated region
    $region41: #{denoiser_forward.14} parent=5 // pred_check
      _
    $region42: #{denoiser_forward.14} parent=5 // pred_check_branch
      %223 = sbr.rel (%p220) target = $region44
    $region43: #{denoiser_forward.14} parent=5 // pred_region
      %s224 = ssub.s32 %s12, 1
      %p225 = scmp.lt.s32.totalorder %s17, 1
      %s226 = scalar_select %p225, %s17, 1
      %s227 = smul.addr %s226, 4
      %s228 = scalar_lea.vmem %s0, %s227
      %p229 = pneg %p38
      %p230 = pneg %p35
      %p231 = pneg %p59
      %p232 = pneg %p56
      %p233 = pneg %p80
      %p234 = pneg %p77
      %p235 = pneg %p101
      %p236 = pneg %p98
      %p237 = pneg %p122
      %p238 = pneg %p119
      %p239 = scmp.lt.s32.totalorder %s17, 1
      %s240 = scalar_select %p239, %s17, 1
      %s241 = scalar_lea.vmem %s5, %s240
      %p242 = pneg %p148
      %p243 = pneg %p145
      %p244 = pneg %p174
      %p245 = pneg %p171
      %p246 = scmp.lt.s32.totalorder %s17, 1
      %s247 = scalar_select %p246, %s17, 1
      %s248 = smul.addr %s247, 4
      %s249 = scalar_lea.vmem %s6, %s248
      %p250 = scmp.lt.s32.totalorder %s17, 1
      %s251 = scalar_select %p250, %s17, 1
      %s252 = smul.addr %s251, 4
      %s253 = scalar_lea.vmem %s0, %s252
      %p254 = scmp.lt.s32.totalorder %s17, 1
      %s255 = scalar_select %p254, %s17, 1
      %s256 = scalar_lea.vmem %s5, %s255
      %p257 = scmp.lt.s32.totalorder %s17, 1
      %s258 = scalar_select %p257, %s17, 1
      %s259 = smul.addr %s258, 4
      %s260 = scalar_lea.vmem %s6, %s259
      %v262 = vlaneseq
      %v263 = vshrl.u32 %v262, 7
      %vm264 = vcmp.lt.s32.totalorder %v263, 0
      %v265 = vsub.s32 0, %v263
      %v266 = vsel %vm264, %v265, %v263
      %v267 = vshrl.u32 %v266, 2
      %v268 = vand.u32 %v266, 3
      %v269 = vsub.s32 0, %v268
      %v270 = vsel %vm264, %v269, %v268
      %vm271 = vcmp.ne.s32.totalorder %v270, 0
      %vm272 = vcmp.lt.s32.totalorder %v270, 0
      %vm273 = vmand %vm272, %vm271
      %v274 = vadd.s32 %v270, 4
      %v275 = vsel %vm273, %v274, %v270
      %vm276 = vcmp.lt.s32.totalorder %v275, 2
      %vm277 = vcmask 261120
      %278 = vst.msk [vmem:[#allocation2] sm:$0xff] %vm277, 0.0
      %279 = vst.msk [vmem:[#allocation2 + $0x8] sm:$0xff] %vm277, 0.0
      %vm280 = vcmask 257024
      %281 = vst.msk [vmem:[#allocation2 + $0x10] sm:$0xf] %vm280, 0.0
      %v282 = vld [vmem:[%s253] sm:$0xf]
      %v283 = vunpack.c.l.bf16 %v282
      %284 = vst.msk [vmem:[#allocation2 + $0x5] sm:$0xff] %vm277, %v283
      %v285 = vld [vmem:[#allocation2] sm:$0xff]
      %v286 = vpack.c.bf16 %v285, %v285
      %v287 = vld [vmem:[%s1] sm:$0xf]
      %v288 = vld [vmem:[%s1 + $0x4] sm:$0xf]
      %v289 = vld [vmem:[%s1 + $0x8] sm:$0xf]
      %v290 = vld [vmem:[%s1 + $0xc] sm:$0xf]
      %v291 = vld [vmem:[#allocation2 + $0x1] sm:$0xff]
      %v292 = vpack.c.bf16 %v291, %v291
      %s293 = scalar_lea.vmem %s1, 16
      %v294 = vld [vmem:[%s293] sm:$0xf]
      %v295 = vld [vmem:[%s293 + $0x4] sm:$0xf]
      %v296 = vld [vmem:[%s293 + $0x8] sm:$0xf]
      %v297 = vld [vmem:[%s293 + $0xc] sm:$0xf]
      %v302 = vunpack.c.l.b16 %v294
      %v303 = vunpack.c.l.b16 %v295
      %v304 = vunpack.c.l.b16 %v296
      %v305 = vunpack.c.l.b16 %v297
      %v306 = vpack.c.b16 %v303, %v302
      %v307 = vpack.c.b16 %v305, %v304
      %v311 = vsel %vm277, %v292, 0
      %313 = vmatprep.subr.bf16.mxu0 0
      %314 = vmatpush1.bf16.msra.mxu0 0
      %315 = vmatprep.subr.bf16.mxu0 0
      %316 = vmatpush1.bf16.msra.mxu0 0
      %317 = vmatprep.subr.bf16.mxu0 0
      %318 = vmatpush1.bf16.msra.mxu0 0
      %319 = vmatprep.subr.bf16.mxu0 0
      %320 = vmatpush1.bf16.msra.mxu0 0
      %321 = vmatprep.subr.bf16.mxu0 0
      %322 = vmatpush1.bf16.msra.mxu0 0
      %323 = vmatprep.subr.bf16.mxu0 0
      %324 = vmatpush1.bf16.msra.mxu0 0
      %325 = vmatprep.subr.bf16.mxu0 0
      %326 = vmatpush1.bf16.msra.mxu0 %v307
      %327 = vmatprep.subr.bf16.mxu0 0
      %328 = vmatpush1.bf16.msra.mxu0 %v306
      %329 = vmatprep.subr.bf16.mxu0 0
      %330 = vmatpush2.bf16.msra.mxu0 0
      %331 = vmatprep.subr.bf16.mxu0 0
      %332 = vmatpush2.bf16.msra.mxu0 0
      %333 = vmatprep.subr.bf16.mxu0 0
      %334 = vmatpush2.bf16.msra.mxu0 0
      %335 = vmatprep.subr.bf16.mxu0 0
      %336 = vmatpush2.bf16.msra.mxu0 0
      %337 = vmatprep.subr.bf16.mxu0 0
      %338 = vmatpush2.bf16.msra.mxu0 0
      %339 = vmatprep.subr.bf16.mxu0 0
      %340 = vmatpush2.bf16.msra.mxu0 0
      %341 = vmatprep.subr.bf16.mxu0 0
      %342 = vmatpush2.bf16.msra.mxu0 0
      %343 = vmatprep.subr.bf16.mxu0 0
      %344 = vmatpush2.bf16.msra.mxu0 0
      %345 = vmatprep.mubr.bf16.mxu0 0
      %346 = vmatmul.mubr.bf16.gmra.mxu0 %v311
      %v347 = vpop.f32.mrf.mxu0
      %v348 = vadd.f32 0.0, %v347
      %v349 = vpop.f32.mrf.mxu0
      %v350 = vpop.f32.mrf.mxu0
      %v351 = vpop.f32.mrf.mxu0
      %352 = vdwg.mxu0
      %v357 = vunpack.c.l.b16 %v287
      %v358 = vunpack.c.l.b16 %v288
      %v359 = vunpack.c.l.b16 %v289
      %v360 = vunpack.c.l.b16 %v290
      %v361 = vpack.c.b16 %v358, %v357
      %v362 = vpack.c.b16 %v360, %v359
      %v366 = vsel %vm277, %v286, 0
      %368 = vmatprep.subr.bf16.mxu0 0
      %369 = vmatpush1.bf16.msra.mxu0 0
      %370 = vmatprep.subr.bf16.mxu0 0
      %371 = vmatpush1.bf16.msra.mxu0 0
      %372 = vmatprep.subr.bf16.mxu0 0
      %373 = vmatpush1.bf16.msra.mxu0 0
      %374 = vmatprep.subr.bf16.mxu0 0
      %375 = vmatpush1.bf16.msra.mxu0 0
      %376 = vmatprep.subr.bf16.mxu0 0
      %377 = vmatpush1.bf16.msra.mxu0 0
      %378 = vmatprep.subr.bf16.mxu0 0
      %379 = vmatpush1.bf16.msra.mxu0 0
      %380 = vmatprep.subr.bf16.mxu0 0
      %381 = vmatpush1.bf16.msra.mxu0 %v362
      %382 = vmatprep.subr.bf16.mxu0 0
      %383 = vmatpush1.bf16.msra.mxu0 %v361
      %384 = vmatprep.subr.bf16.mxu0 0
      %385 = vmatpush2.bf16.msra.mxu0 0
      %386 = vmatprep.subr.bf16.mxu0 0
      %387 = vmatpush2.bf16.msra.mxu0 0
      %388 = vmatprep.subr.bf16.mxu0 0
      %389 = vmatpush2.bf16.msra.mxu0 0
      %390 = vmatprep.subr.bf16.mxu0 0
      %391 = vmatpush2.bf16.msra.mxu0 0
      %392 = vmatprep.subr.bf16.mxu0 0
      %393 = vmatpush2.bf16.msra.mxu0 0
      %394 = vmatprep.subr.bf16.mxu0 0
      %395 = vmatpush2.bf16.msra.mxu0 0
      %396 = vmatprep.subr.bf16.mxu0 0
      %397 = vmatpush2.bf16.msra.mxu0 0
      %398 = vmatprep.subr.bf16.mxu0 0
      %399 = vmatpush2.bf16.msra.mxu0 0
      %400 = vmatprep.mubr.bf16.mxu0 0
      %401 = vmatmul.mubr.bf16.gmra.mxu0 %v366
      %v402 = vpop.f32.mrf.mxu0
      %v403 = vadd.f32 %v348, %v402
      %v404 = vpop.f32.mrf.mxu0
      %v405 = vpop.f32.mrf.mxu0
      %v406 = vpop.f32.mrf.mxu0
      %407 = vdwg.mxu0
      %v408 = vld [vmem:[#allocation2 + $0x2] sm:$0xff]
      %v409 = vpack.c.bf16 %v408, %v408
      %s410 = scalar_lea.vmem %s1, 32
      %v411 = vld [vmem:[%s410] sm:$0xf]
      %v412 = vld [vmem:[%s410 + $0x4] sm:$0xf]
      %v413 = vld [vmem:[%s410 + $0x8] sm:$0xf]
      %v414 = vld [vmem:[%s410 + $0xc] sm:$0xf]
      %v419 = vunpack.c.l.b16 %v411
      %v420 = vunpack.c.l.b16 %v412
      %v421 = vunpack.c.l.b16 %v413
      %v422 = vunpack.c.l.b16 %v414
      %v423 = vpack.c.b16 %v420, %v419
      %v424 = vpack.c.b16 %v422, %v421
      %v428 = vsel %vm277, %v409, 0
      %430 = vmatprep.subr.bf16.mxu0 0
      %431 = vmatpush1.bf16.msra.mxu0 0
      %432 = vmatprep.subr.bf16.mxu0 0
      %433 = vmatpush1.bf16.msra.mxu0 0
      %434 = vmatprep.subr.bf16.mxu0 0
      %435 = vmatpush1.bf16.msra.mxu0 0
      %436 = vmatprep.subr.bf16.mxu0 0
      %437 = vmatpush1.bf16.msra.mxu0 0
      %438 = vmatprep.subr.bf16.mxu0 0
      %439 = vmatpush1.bf16.msra.mxu0 0
      %440 = vmatprep.subr.bf16.mxu0 0
      %441 = vmatpush1.bf16.msra.mxu0 0
      %442 = vmatprep.subr.bf16.mxu0 0
      %443 = vmatpush1.bf16.msra.mxu0 %v424
      %444 = vmatprep.subr.bf16.mxu0 0
      %445 = vmatpush1.bf16.msra.mxu0 %v423
      %446 = vmatprep.subr.bf16.mxu0 0
      %447 = vmatpush2.bf16.msra.mxu0 0
      %448 = vmatprep.subr.bf16.mxu0 0
      %449 = vmatpush2.bf16.msra.mxu0 0
      %450 = vmatprep.subr.bf16.mxu0 0
      %451 = vmatpush2.bf16.msra.mxu0 0
      %452 = vmatprep.subr.bf16.mxu0 0
      %453 = vmatpush2.bf16.msra.mxu0 0
      %454 = vmatprep.subr.bf16.mxu0 0
      %455 = vmatpush2.bf16.msra.mxu0 0
      %456 = vmatprep.subr.bf16.mxu0 0
      %457 = vmatpush2.bf16.msra.mxu0 0
      %458 = vmatprep.subr.bf16.mxu0 0
      %459 = vmatpush2.bf16.msra.mxu0 0
      %460 = vmatprep.subr.bf16.mxu0 0
      %461 = vmatpush2.bf16.msra.mxu0 0
      %462 = vmatprep.mubr.bf16.mxu0 0
      %463 = vmatmul.mubr.bf16.gmra.mxu0 %v428
      %v464 = vpop.f32.mrf.mxu0
      %v465 = vadd.f32 0.0, %v464
      %v466 = vpop.f32.mrf.mxu0
      %v467 = vpop.f32.mrf.mxu0
      %v468 = vpop.f32.mrf.mxu0
      %469 = vdwg.mxu0
      %v470 = vadd.f32 %v403, %v465
      %v471 = vld [vmem:[#allocation2 + $0x4] sm:$0xff]
      %v472 = vpack.c.bf16 %v471, %v471
      %s473 = scalar_lea.vmem %s1, 48
      %v474 = vld [vmem:[%s473] sm:$0xf]
      %v475 = vld [vmem:[%s473 + $0x4] sm:$0xf]
      %v476 = vld [vmem:[%s473 + $0x8] sm:$0xf]
      %v477 = vld [vmem:[%s473 + $0xc] sm:$0xf]
      %v482 = vunpack.c.l.b16 %v474
      %v483 = vunpack.c.l.b16 %v475
      %v484 = vunpack.c.l.b16 %v476
      %v485 = vunpack.c.l.b16 %v477
      %v486 = vpack.c.b16 %v483, %v482
      %v487 = vpack.c.b16 %v485, %v484
      %v491 = vsel %vm277, %v472, 0
      %493 = vmatprep.subr.bf16.mxu0 0
      %494 = vmatpush1.bf16.msra.mxu0 0
      %495 = vmatprep.subr.bf16.mxu0 0
      %496 = vmatpush1.bf16.msra.mxu0 0
      %497 = vmatprep.subr.bf16.mxu0 0
      %498 = vmatpush1.bf16.msra.mxu0 0
      %499 = vmatprep.subr.bf16.mxu0 0
      %500 = vmatpush1.bf16.msra.mxu0 0
      %501 = vmatprep.subr.bf16.mxu0 0
      %502 = vmatpush1.bf16.msra.mxu0 0
      %503 = vmatprep.subr.bf16.mxu0 0
      %504 = vmatpush1.bf16.msra.mxu0 0
      %505 = vmatprep.subr.bf16.mxu0 0
      %506 = vmatpush1.bf16.msra.mxu0 %v487
      %507 = vmatprep.subr.bf16.mxu0 0
      %508 = vmatpush1.bf16.msra.mxu0 %v486
      %509 = vmatprep.subr.bf16.mxu0 0
      %510 = vmatpush2.bf16.msra.mxu0 0
      %511 = vmatprep.subr.bf16.mxu0 0
      %512 = vmatpush2.bf16.msra.mxu0 0
      %513 = vmatprep.subr.bf16.mxu0 0
      %514 = vmatpush2.bf16.msra.mxu0 0
      %515 = vmatprep.subr.bf16.mxu0 0
      %516 = vmatpush2.bf16.msra.mxu0 0
      %517 = vmatprep.subr.bf16.mxu0 0
      %518 = vmatpush2.bf16.msra.mxu0 0
      %519 = vmatprep.subr.bf16.mxu0 0
      %520 = vmatpush2.bf16.msra.mxu0 0
      %521 = vmatprep.subr.bf16.mxu0 0
      %522 = vmatpush2.bf16.msra.mxu0 0
      %523 = vmatprep.subr.bf16.mxu0 0
      %524 = vmatpush2.bf16.msra.mxu0 0
      %525 = vmatprep.mubr.bf16.mxu0 0
      %526 = vmatmul.mubr.bf16.gmra.mxu0 %v491
      %v527 = vpop.f32.mrf.mxu0
      %v528 = vadd.f32 0.0, %v527
      %v529 = vpop.f32.mrf.mxu0
      %v530 = vpop.f32.mrf.mxu0
      %v531 = vpop.f32.mrf.mxu0
      %532 = vdwg.mxu0
      %v533 = vadd.f32 %v470, %v528
      %v534 = vld [vmem:[#allocation2 + $0x5] sm:$0xff]
      %v535 = vpack.c.bf16 %v534, %v534
      %s536 = scalar_lea.vmem %s1, 64
      %v537 = vld [vmem:[%s536] sm:$0xf]
      %v538 = vld [vmem:[%s536 + $0x4] sm:$0xf]
      %v539 = vld [vmem:[%s536 + $0x8] sm:$0xf]
      %v540 = vld [vmem:[%s536 + $0xc] sm:$0xf]
      %v545 = vunpack.c.l.b16 %v537
      %v546 = vunpack.c.l.b16 %v538
      %v547 = vunpack.c.l.b16 %v539
      %v548 = vunpack.c.l.b16 %v540
      %v549 = vpack.c.b16 %v546, %v545
      %v550 = vpack.c.b16 %v548, %v547
      %v554 = vsel %vm277, %v535, 0
      %556 = vmatprep.subr.bf16.mxu0 0
      %557 = vmatpush1.bf16.msra.mxu0 0
      %558 = vmatprep.subr.bf16.mxu0 0
      %559 = vmatpush1.bf16.msra.mxu0 0
      %560 = vmatprep.subr.bf16.mxu0 0
      %561 = vmatpush1.bf16.msra.mxu0 0
      %562 = vmatprep.subr.bf16.mxu0 0
      %563 = vmatpush1.bf16.msra.mxu0 0
      %564 = vmatprep.subr.bf16.mxu0 0
      %565 = vmatpush1.bf16.msra.mxu0 0
      %566 = vmatprep.subr.bf16.mxu0 0
      %567 = vmatpush1.bf16.msra.mxu0 0
      %568 = vmatprep.subr.bf16.mxu0 0
      %569 = vmatpush1.bf16.msra.mxu0 %v550
      %570 = vmatprep.subr.bf16.mxu0 0
      %571 = vmatpush1.bf16.msra.mxu0 %v549
      %572 = vmatprep.subr.bf16.mxu0 0
      %573 = vmatpush2.bf16.msra.mxu0 0
      %574 = vmatprep.subr.bf16.mxu0 0
      %575 = vmatpush2.bf16.msra.mxu0 0
      %576 = vmatprep.subr.bf16.mxu0 0
      %577 = vmatpush2.bf16.msra.mxu0 0
      %578 = vmatprep.subr.bf16.mxu0 0
      %579 = vmatpush2.bf16.msra.mxu0 0
      %580 = vmatprep.subr.bf16.mxu0 0
      %581 = vmatpush2.bf16.msra.mxu0 0
      %582 = vmatprep.subr.bf16.mxu0 0
      %583 = vmatpush2.bf16.msra.mxu0 0
      %584 = vmatprep.subr.bf16.mxu0 0
      %585 = vmatpush2.bf16.msra.mxu0 0
      %586 = vmatprep.subr.bf16.mxu0 0
      %587 = vmatpush2.bf16.msra.mxu0 0
      %588 = vmatprep.mubr.bf16.mxu0 0
      %589 = vmatmul.mubr.bf16.gmra.mxu0 %v554
      %v590 = vpop.f32.mrf.mxu0
      %v591 = vadd.f32 0.0, %v590
      %v592 = vpop.f32.mrf.mxu0
      %v593 = vpop.f32.mrf.mxu0
      %v594 = vpop.f32.mrf.mxu0
      %595 = vdwg.mxu0
      %v596 = vadd.f32 %v533, %v591
      %v597 = vld [vmem:[#allocation2 + $0x6] sm:$0xff]
      %v598 = vpack.c.bf16 %v597, %v597
      %s599 = scalar_lea.vmem %s1, 80
      %v600 = vld [vmem:[%s599] sm:$0xf]
      %v601 = vld [vmem:[%s599 + $0x4] sm:$0xf]
      %v602 = vld [vmem:[%s599 + $0x8] sm:$0xf]
      %v603 = vld [vmem:[%s599 + $0xc] sm:$0xf]
      %v608 = vunpack.c.l.b16 %v600
      %v609 = vunpack.c.l.b16 %v601
      %v610 = vunpack.c.l.b16 %v602
      %v611 = vunpack.c.l.b16 %v603
      %v612 = vpack.c.b16 %v609, %v608
      %v613 = vpack.c.b16 %v611, %v610
      %v617 = vsel %vm277, %v598, 0
      %619 = vmatprep.subr.bf16.mxu0 0
      %620 = vmatpush1.bf16.msra.mxu0 0
      %621 = vmatprep.subr.bf16.mxu0 0
      %622 = vmatpush1.bf16.msra.mxu0 0
      %623 = vmatprep.subr.bf16.mxu0 0
      %624 = vmatpush1.bf16.msra.mxu0 0
      %625 = vmatprep.subr.bf16.mxu0 0
      %626 = vmatpush1.bf16.msra.mxu0 0
      %627 = vmatprep.subr.bf16.mxu0 0
      %628 = vmatpush1.bf16.msra.mxu0 0
      %629 = vmatprep.subr.bf16.mxu0 0
      %630 = vmatpush1.bf16.msra.mxu0 0
      %631 = vmatprep.subr.bf16.mxu0 0
      %632 = vmatpush1.bf16.msra.mxu0 %v613
      %633 = vmatprep.subr.bf16.mxu0 0
      %634 = vmatpush1.bf16.msra.mxu0 %v612
      %635 = vmatprep.subr.bf16.mxu0 0
      %636 = vmatpush2.bf16.msra.mxu0 0
      %637 = vmatprep.subr.bf16.mxu0 0
      %638 = vmatpush2.bf16.msra.mxu0 0
      %639 = vmatprep.subr.bf16.mxu0 0
      %640 = vmatpush2.bf16.msra.mxu0 0
      %641 = vmatprep.subr.bf16.mxu0 0
      %642 = vmatpush2.bf16.msra.mxu0 0
      %643 = vmatprep.subr.bf16.mxu0 0
      %644 = vmatpush2.bf16.msra.mxu0 0
      %645 = vmatprep.subr.bf16.mxu0 0
      %646 = vmatpush2.bf16.msra.mxu0 0
      %647 = vmatprep.subr.bf16.mxu0 0
      %648 = vmatpush2.bf16.msra.mxu0 0
      %649 = vmatprep.subr.bf16.mxu0 0
      %650 = vmatpush2.bf16.msra.mxu0 0
      %651 = vmatprep.mubr.bf16.mxu0 0
      %652 = vmatmul.mubr.bf16.gmra.mxu0 %v617
      %v653 = vpop.f32.mrf.mxu0
      %v654 = vadd.f32 0.0, %v653
      %v655 = vpop.f32.mrf.mxu0
      %v656 = vpop.f32.mrf.mxu0
      %v657 = vpop.f32.mrf.mxu0
      %658 = vdwg.mxu0
      %v659 = vadd.f32 %v596, %v654
      %v660 = vld [vmem:[#allocation2 + $0x8] sm:$0xff]
      %v661 = vpack.c.bf16 %v660, %v660
      %s662 = scalar_lea.vmem %s1, 96
      %v663 = vld [vmem:[%s662] sm:$0xf]
      %v664 = vld [vmem:[%s662 + $0x4] sm:$0xf]
      %v665 = vld [vmem:[%s662 + $0x8] sm:$0xf]
      %v666 = vld [vmem:[%s662 + $0xc] sm:$0xf]
      %v671 = vunpack.c.l.b16 %v663
      %v672 = vunpack.c.l.b16 %v664
      %v673 = vunpack.c.l.b16 %v665
      %v674 = vunpack.c.l.b16 %v666
      %v675 = vpack.c.b16 %v672, %v671
      %v676 = vpack.c.b16 %v674, %v673
      %v680 = vsel %vm277, %v661, 0
      %682 = vmatprep.subr.bf16.mxu0 0
      %683 = vmatpush1.bf16.msra.mxu0 0
      %684 = vmatprep.subr.bf16.mxu0 0
      %685 = vmatpush1.bf16.msra.mxu0 0
      %686 = vmatprep.subr.bf16.mxu0 0
      %687 = vmatpush1.bf16.msra.mxu0 0
      %688 = vmatprep.subr.bf16.mxu0 0
      %689 = vmatpush1.bf16.msra.mxu0 0
      %690 = vmatprep.subr.bf16.mxu0 0
      %691 = vmatpush1.bf16.msra.mxu0 0
      %692 = vmatprep.subr.bf16.mxu0 0
      %693 = vmatpush1.bf16.msra.mxu0 0
      %694 = vmatprep.subr.bf16.mxu0 0
      %695 = vmatpush1.bf16.msra.mxu0 %v676
      %696 = vmatprep.subr.bf16.mxu0 0
      %697 = vmatpush1.bf16.msra.mxu0 %v675
      %698 = vmatprep.subr.bf16.mxu0 0
      %699 = vmatpush2.bf16.msra.mxu0 0
      %700 = vmatprep.subr.bf16.mxu0 0
      %701 = vmatpush2.bf16.msra.mxu0 0
      %702 = vmatprep.subr.bf16.mxu0 0
      %703 = vmatpush2.bf16.msra.mxu0 0
      %704 = vmatprep.subr.bf16.mxu0 0
      %705 = vmatpush2.bf16.msra.mxu0 0
      %706 = vmatprep.subr.bf16.mxu0 0
      %707 = vmatpush2.bf16.msra.mxu0 0
      %708 = vmatprep.subr.bf16.mxu0 0
      %709 = vmatpush2.bf16.msra.mxu0 0
      %710 = vmatprep.subr.bf16.mxu0 0
      %711 = vmatpush2.bf16.msra.mxu0 0
      %712 = vmatprep.subr.bf16.mxu0 0
      %713 = vmatpush2.bf16.msra.mxu0 0
      %714 = vmatprep.mubr.bf16.mxu0 0
      %715 = vmatmul.mubr.bf16.gmra.mxu0 %v680
      %v716 = vpop.f32.mrf.mxu0
      %v717 = vadd.f32 0.0, %v716
      %v718 = vpop.f32.mrf.mxu0
      %v719 = vpop.f32.mrf.mxu0
      %v720 = vpop.f32.mrf.mxu0
      %721 = vdwg.mxu0
      %v722 = vadd.f32 %v659, %v717
      %v723 = vld [vmem:[#allocation2 + $0x9] sm:$0xff]
      %v724 = vpack.c.bf16 %v723, %v723
      %s725 = scalar_lea.vmem %s1, 112
      %v726 = vld [vmem:[%s725] sm:$0xf]
      %v727 = vld [vmem:[%s725 + $0x4] sm:$0xf]
      %v728 = vld [vmem:[%s725 + $0x8] sm:$0xf]
      %v729 = vld [vmem:[%s725 + $0xc] sm:$0xf]
      %v734 = vunpack.c.l.b16 %v726
      %v735 = vunpack.c.l.b16 %v727
      %v736 = vunpack.c.l.b16 %v728
      %v737 = vunpack.c.l.b16 %v729
      %v738 = vpack.c.b16 %v735, %v734
      %v739 = vpack.c.b16 %v737, %v736
      %v743 = vsel %vm277, %v724, 0
      %745 = vmatprep.subr.bf16.mxu0 0
      %746 = vmatpush1.bf16.msra.mxu0 0
      %747 = vmatprep.subr.bf16.mxu0 0
      %748 = vmatpush1.bf16.msra.mxu0 0
      %749 = vmatprep.subr.bf16.mxu0 0
      %750 = vmatpush1.bf16.msra.mxu0 0
      %751 = vmatprep.subr.bf16.mxu0 0
      %752 = vmatpush1.bf16.msra.mxu0 0
      %753 = vmatprep.subr.bf16.mxu0 0
      %754 = vmatpush1.bf16.msra.mxu0 0
      %755 = vmatprep.subr.bf16.mxu0 0
      %756 = vmatpush1.bf16.msra.mxu0 0
      %757 = vmatprep.subr.bf16.mxu0 0
      %758 = vmatpush1.bf16.msra.mxu0 %v739
      %759 = vmatprep.subr.bf16.mxu0 0
      %760 = vmatpush1.bf16.msra.mxu0 %v738
      %761 = vmatprep.subr.bf16.mxu0 0
      %762 = vmatpush2.bf16.msra.mxu0 0
      %763 = vmatprep.subr.bf16.mxu0 0
      %764 = vmatpush2.bf16.msra.mxu0 0
      %765 = vmatprep.subr.bf16.mxu0 0
      %766 = vmatpush2.bf16.msra.mxu0 0
      %767 = vmatprep.subr.bf16.mxu0 0
      %768 = vmatpush2.bf16.msra.mxu0 0
      %769 = vmatprep.subr.bf16.mxu0 0
      %770 = vmatpush2.bf16.msra.mxu0 0
      %771 = vmatprep.subr.bf16.mxu0 0
      %772 = vmatpush2.bf16.msra.mxu0 0
      %773 = vmatprep.subr.bf16.mxu0 0
      %774 = vmatpush2.bf16.msra.mxu0 0
      %775 = vmatprep.subr.bf16.mxu0 0
      %776 = vmatpush2.bf16.msra.mxu0 0
      %777 = vmatprep.mubr.bf16.mxu0 0
      %778 = vmatmul.mubr.bf16.gmra.mxu0 %v743
      %v779 = vpop.f32.mrf.mxu0
      %v780 = vadd.f32 0.0, %v779
      %v781 = vpop.f32.mrf.mxu0
      %v782 = vpop.f32.mrf.mxu0
      %v783 = vpop.f32.mrf.mxu0
      %784 = vdwg.mxu0
      %v785 = vadd.f32 %v722, %v780
      %v786 = vld [vmem:[#allocation2 + $0xa] sm:$0xff]
      %v787 = vpack.c.bf16 %v786, %v786
      %s788 = scalar_lea.vmem %s1, 128
      %v789 = vld [vmem:[%s788] sm:$0xf]
      %v790 = vld [vmem:[%s788 + $0x4] sm:$0xf]
      %v791 = vld [vmem:[%s788 + $0x8] sm:$0xf]
      %v792 = vld [vmem:[%s788 + $0xc] sm:$0xf]
      %v797 = vunpack.c.l.b16 %v789
      %v798 = vunpack.c.l.b16 %v790
      %v799 = vunpack.c.l.b16 %v791
      %v800 = vunpack.c.l.b16 %v792
      %v801 = vpack.c.b16 %v798, %v797
      %v802 = vpack.c.b16 %v800, %v799
      %v806 = vsel %vm277, %v787, 0
      %808 = vmatprep.subr.bf16.mxu0 0
      %809 = vmatpush1.bf16.msra.mxu0 0
      %810 = vmatprep.subr.bf16.mxu0 0
      %811 = vmatpush1.bf16.msra.mxu0 0
      %812 = vmatprep.subr.bf16.mxu0 0
      %813 = vmatpush1.bf16.msra.mxu0 0
      %814 = vmatprep.subr.bf16.mxu0 0
      %815 = vmatpush1.bf16.msra.mxu0 0
      %816 = vmatprep.subr.bf16.mxu0 0
      %817 = vmatpush1.bf16.msra.mxu0 0
      %818 = vmatprep.subr.bf16.mxu0 0
      %819 = vmatpush1.bf16.msra.mxu0 0
      %820 = vmatprep.subr.bf16.mxu0 0
      %821 = vmatpush1.bf16.msra.mxu0 %v802
      %822 = vmatprep.subr.bf16.mxu0 0
      %823 = vmatpush1.bf16.msra.mxu0 %v801
      %824 = vmatprep.subr.bf16.mxu0 0
      %825 = vmatpush2.bf16.msra.mxu0 0
      %826 = vmatprep.subr.bf16.mxu0 0
      %827 = vmatpush2.bf16.msra.mxu0 0
      %828 = vmatprep.subr.bf16.mxu0 0
      %829 = vmatpush2.bf16.msra.mxu0 0
      %830 = vmatprep.subr.bf16.mxu0 0
      %831 = vmatpush2.bf16.msra.mxu0 0
      %832 = vmatprep.subr.bf16.mxu0 0
      %833 = vmatpush2.bf16.msra.mxu0 0
      %834 = vmatprep.subr.bf16.mxu0 0
      %835 = vmatpush2.bf16.msra.mxu0 0
      %836 = vmatprep.subr.bf16.mxu0 0
      %837 = vmatpush2.bf16.msra.mxu0 0
      %838 = vmatprep.subr.bf16.mxu0 0
      %839 = vmatpush2.bf16.msra.mxu0 0
      %840 = vmatprep.mubr.bf16.mxu0 0
      %841 = vmatmul.mubr.bf16.gmra.mxu0 %v806
      %v842 = vpop.f32.mrf.mxu0
      %v843 = vadd.f32 0.0, %v842
      %v844 = vpop.f32.mrf.mxu0
      %v845 = vpop.f32.mrf.mxu0
      %v846 = vpop.f32.mrf.mxu0
      %847 = vdwg.mxu0
      %v848 = vadd.f32 %v785, %v843
      %v849 = vld [vmem:[%s2] sm:$0x1]
      %v851 = vlaneseq
      %v852 = vshrl.u32 %v851, 7
      %v853 = vsub.s32 0, %v852
      %v854 = vrot.slane %v849, %v853
      %v856 = vadd.f32 %v848, %v854
      %v857 = vmax.f32 %v856, 0.0
      %v858 = vsel %vm276, 1, 0
      %vm859 = vcmp.eq.s32.totalorder %v858, 1
      %v860 = vsel %vm859, %v857, 0.0
      %861 = vst.msk [vmem:[#allocation3] sm:$0xff] %vm277, 0.0
      %862 = vst.msk [vmem:[#allocation3 + $0x8] sm:$0xff] %vm277, 0.0
      %863 = vst.msk [vmem:[#allocation3 + $0x10] sm:$0xf] %vm280, 0.0
      %864 = vst.msk [vmem:[#allocation3 + $0x5] sm:$0xff] %vm277, %v860
      %v865 = vld [vmem:[#allocation3] sm:$0xff]
      %v866 = vpack.c.bf16 %v865, %v865
      %v867 = vld [vmem:[%s3] sm:$0xf]
      %v868 = vld [vmem:[%s3 + $0x4] sm:$0xf]
      %v869 = vld [vmem:[%s3 + $0x8] sm:$0xf]
      %v870 = vld [vmem:[%s3 + $0xc] sm:$0xf]
      %v871 = vld [vmem:[#allocation3 + $0x1] sm:$0xff]
      %v872 = vpack.c.bf16 %v871, %v871
      %s873 = scalar_lea.vmem %s3, 16
      %v874 = vld [vmem:[%s873] sm:$0xf]
      %v875 = vld [vmem:[%s873 + $0x4] sm:$0xf]
      %v876 = vld [vmem:[%s873 + $0x8] sm:$0xf]
      %v877 = vld [vmem:[%s873 + $0xc] sm:$0xf]
      %v882 = vunpack.c.l.b16 %v874
      %v883 = vunpack.c.l.b16 %v875
      %v884 = vunpack.c.l.b16 %v876
      %v885 = vunpack.c.l.b16 %v877
      %v886 = vpack.c.b16 %v883, %v882
      %v887 = vpack.c.b16 %v885, %v884
      %v891 = vsel %vm277, %v872, 0
      %893 = vmatprep.subr.bf16.mxu0 0
      %894 = vmatpush1.bf16.msra.mxu0 0
      %895 = vmatprep.subr.bf16.mxu0 0
      %896 = vmatpush1.bf16.msra.mxu0 0
      %897 = vmatprep.subr.bf16.mxu0 0
      %898 = vmatpush1.bf16.msra.mxu0 0
      %899 = vmatprep.subr.bf16.mxu0 0
      %900 = vmatpush1.bf16.msra.mxu0 0
      %901 = vmatprep.subr.bf16.mxu0 0
      %902 = vmatpush1.bf16.msra.mxu0 0
      %903 = vmatprep.subr.bf16.mxu0 0
      %904 = vmatpush1.bf16.msra.mxu0 0
      %905 = vmatprep.subr.bf16.mxu0 0
      %906 = vmatpush1.bf16.msra.mxu0 %v887
      %907 = vmatprep.subr.bf16.mxu0 0
      %908 = vmatpush1.bf16.msra.mxu0 %v886
      %909 = vmatprep.subr.bf16.mxu0 0
      %910 = vmatpush2.bf16.msra.mxu0 0
      %911 = vmatprep.subr.bf16.mxu0 0
      %912 = vmatpush2.bf16.msra.mxu0 0
      %913 = vmatprep.subr.bf16.mxu0 0
      %914 = vmatpush2.bf16.msra.mxu0 0
      %915 = vmatprep.subr.bf16.mxu0 0
      %916 = vmatpush2.bf16.msra.mxu0 0
      %917 = vmatprep.subr.bf16.mxu0 0
      %918 = vmatpush2.bf16.msra.mxu0 0
      %919 = vmatprep.subr.bf16.mxu0 0
      %920 = vmatpush2.bf16.msra.mxu0 0
      %921 = vmatprep.subr.bf16.mxu0 0
      %922 = vmatpush2.bf16.msra.mxu0 0
      %923 = vmatprep.subr.bf16.mxu0 0
      %924 = vmatpush2.bf16.msra.mxu0 0
      %925 = vmatprep.mubr.bf16.mxu0 0
      %926 = vmatmul.mubr.bf16.gmra.mxu0 %v891
      %v927 = vpop.f32.mrf.mxu0
      %v928 = vadd.f32 0.0, %v927
      %v929 = vpop.f32.mrf.mxu0
      %v930 = vpop.f32.mrf.mxu0
      %v931 = vpop.f32.mrf.mxu0
      %932 = vdwg.mxu0
      %v937 = vunpack.c.l.b16 %v867
      %v938 = vunpack.c.l.b16 %v868
      %v939 = vunpack.c.l.b16 %v869
      %v940 = vunpack.c.l.b16 %v870
      %v941 = vpack.c.b16 %v938, %v937
      %v942 = vpack.c.b16 %v940, %v939
      %v946 = vsel %vm277, %v866, 0
      %948 = vmatprep.subr.bf16.mxu0 0
      %949 = vmatpush1.bf16.msra.mxu0 0
      %950 = vmatprep.subr.bf16.mxu0 0
      %951 = vmatpush1.bf16.msra.mxu0 0
      %952 = vmatprep.subr.bf16.mxu0 0
      %953 = vmatpush1.bf16.msra.mxu0 0
      %954 = vmatprep.subr.bf16.mxu0 0
      %955 = vmatpush1.bf16.msra.mxu0 0
      %956 = vmatprep.subr.bf16.mxu0 0
      %957 = vmatpush1.bf16.msra.mxu0 0
      %958 = vmatprep.subr.bf16.mxu0 0
      %959 = vmatpush1.bf16.msra.mxu0 0
      %960 = vmatprep.subr.bf16.mxu0 0
      %961 = vmatpush1.bf16.msra.mxu0 %v942
      %962 = vmatprep.subr.bf16.mxu0 0
      %963 = vmatpush1.bf16.msra.mxu0 %v941
      %964 = vmatprep.subr.bf16.mxu0 0
      %965 = vmatpush2.bf16.msra.mxu0 0
      %966 = vmatprep.subr.bf16.mxu0 0
      %967 = vmatpush2.bf16.msra.mxu0 0
      %968 = vmatprep.subr.bf16.mxu0 0
      %969 = vmatpush2.bf16.msra.mxu0 0
      %970 = vmatprep.subr.bf16.mxu0 0
      %971 = vmatpush2.bf16.msra.mxu0 0
      %972 = vmatprep.subr.bf16.mxu0 0
      %973 = vmatpush2.bf16.msra.mxu0 0
      %974 = vmatprep.subr.bf16.mxu0 0
      %975 = vmatpush2.bf16.msra.mxu0 0
      %976 = vmatprep.subr.bf16.mxu0 0
      %977 = vmatpush2.bf16.msra.mxu0 0
      %978 = vmatprep.subr.bf16.mxu0 0
      %979 = vmatpush2.bf16.msra.mxu0 0
      %980 = vmatprep.mubr.bf16.mxu0 0
      %981 = vmatmul.mubr.bf16.gmra.mxu0 %v946
      %v982 = vpop.f32.mrf.mxu0
      %v983 = vadd.f32 %v928, %v982
      %v984 = vpop.f32.mrf.mxu0
      %v985 = vpop.f32.mrf.mxu0
      %v986 = vpop.f32.mrf.mxu0
      %987 = vdwg.mxu0
      %v988 = vld [vmem:[#allocation3 + $0x2] sm:$0xff]
      %v989 = vpack.c.bf16 %v988, %v988
      %s990 = scalar_lea.vmem %s3, 32
      %v991 = vld [vmem:[%s990] sm:$0xf]
      %v992 = vld [vmem:[%s990 + $0x4] sm:$0xf]
      %v993 = vld [vmem:[%s990 + $0x8] sm:$0xf]
      %v994 = vld [vmem:[%s990 + $0xc] sm:$0xf]
      %v999 = vunpack.c.l.b16 %v991
      %v1000 = vunpack.c.l.b16 %v992
      %v1001 = vunpack.c.l.b16 %v993
      %v1002 = vunpack.c.l.b16 %v994
      %v1003 = vpack.c.b16 %v1000, %v999
      %v1004 = vpack.c.b16 %v1002, %v1001
      %v1008 = vsel %vm277, %v989, 0
      %1010 = vmatprep.subr.bf16.mxu0 0
      %1011 = vmatpush1.bf16.msra.mxu0 0
      %1012 = vmatprep.subr.bf16.mxu0 0
      %1013 = vmatpush1.bf16.msra.mxu0 0
      %1014 = vmatprep.subr.bf16.mxu0 0
      %1015 = vmatpush1.bf16.msra.mxu0 0
      %1016 = vmatprep.subr.bf16.mxu0 0
      %1017 = vmatpush1.bf16.msra.mxu0 0
      %1018 = vmatprep.subr.bf16.mxu0 0
      %1019 = vmatpush1.bf16.msra.mxu0 0
      %1020 = vmatprep.subr.bf16.mxu0 0
      %1021 = vmatpush1.bf16.msra.mxu0 0
      %1022 = vmatprep.subr.bf16.mxu0 0
      %1023 = vmatpush1.bf16.msra.mxu0 %v1004
      %1024 = vmatprep.subr.bf16.mxu0 0
      %1025 = vmatpush1.bf16.msra.mxu0 %v1003
      %1026 = vmatprep.subr.bf16.mxu0 0
      %1027 = vmatpush2.bf16.msra.mxu0 0
      %1028 = vmatprep.subr.bf16.mxu0 0
      %1029 = vmatpush2.bf16.msra.mxu0 0
      %1030 = vmatprep.subr.bf16.mxu0 0
      %1031 = vmatpush2.bf16.msra.mxu0 0
      %1032 = vmatprep.subr.bf16.mxu0 0
      %1033 = vmatpush2.bf16.msra.mxu0 0
      %1034 = vmatprep.subr.bf16.mxu0 0
      %1035 = vmatpush2.bf16.msra.mxu0 0
      %1036 = vmatprep.subr.bf16.mxu0 0
      %1037 = vmatpush2.bf16.msra.mxu0 0
      %1038 = vmatprep.subr.bf16.mxu0 0
      %1039 = vmatpush2.bf16.msra.mxu0 0
      %1040 = vmatprep.subr.bf16.mxu0 0
      %1041 = vmatpush2.bf16.msra.mxu0 0
      %1042 = vmatprep.mubr.bf16.mxu0 0
      %1043 = vmatmul.mubr.bf16.gmra.mxu0 %v1008
      %v1044 = vpop.f32.mrf.mxu0
      %v1045 = vadd.f32 0.0, %v1044
      %v1046 = vpop.f32.mrf.mxu0
      %v1047 = vpop.f32.mrf.mxu0
      %v1048 = vpop.f32.mrf.mxu0
      %1049 = vdwg.mxu0
      %v1050 = vadd.f32 %v983, %v1045
      %v1051 = vld [vmem:[#allocation3 + $0x4] sm:$0xff]
      %v1052 = vpack.c.bf16 %v1051, %v1051
      %s1053 = scalar_lea.vmem %s3, 48
      %v1054 = vld [vmem:[%s1053] sm:$0xf]
      %v1055 = vld [vmem:[%s1053 + $0x4] sm:$0xf]
      %v1056 = vld [vmem:[%s1053 + $0x8] sm:$0xf]
      %v1057 = vld [vmem:[%s1053 + $0xc] sm:$0xf]
      %v1062 = vunpack.c.l.b16 %v1054
      %v1063 = vunpack.c.l.b16 %v1055
      %v1064 = vunpack.c.l.b16 %v1056
      %v1065 = vunpack.c.l.b16 %v1057
      %v1066 = vpack.c.b16 %v1063, %v1062
      %v1067 = vpack.c.b16 %v1065, %v1064
      %v1071 = vsel %vm277, %v1052, 0
      %1073 = vmatprep.subr.bf16.mxu0 0
      %1074 = vmatpush1.bf16.msra.mxu0 0
      %1075 = vmatprep.subr.bf16.mxu0 0
      %1076 = vmatpush1.bf16.msra.mxu0 0
      %1077 = vmatprep.subr.bf16.mxu0 0
      %1078 = vmatpush1.bf16.msra.mxu0 0
      %1079 = vmatprep.subr.bf16.mxu0 0
      %1080 = vmatpush1.bf16.msra.mxu0 0
      %1081 = vmatprep.subr.bf16.mxu0 0
      %1082 = vmatpush1.bf16.msra.mxu0 0
      %1083 = vmatprep.subr.bf16.mxu0 0
      %1084 = vmatpush1.bf16.msra.mxu0 0
      %1085 = vmatprep.subr.bf16.mxu0 0
      %1086 = vmatpush1.bf16.msra.mxu0 %v1067
      %1087 = vmatprep.subr.bf16.mxu0 0
      %1088 = vmatpush1.bf16.msra.mxu0 %v1066
      %1089 = vmatprep.subr.bf16.mxu0 0
      %1090 = vmatpush2.bf16.msra.mxu0 0
      %1091 = vmatprep.subr.bf16.mxu0 0
      %1092 = vmatpush2.bf16.msra.mxu0 0
      %1093 = vmatprep.subr.bf16.mxu0 0
      %1094 = vmatpush2.bf16.msra.mxu0 0
      %1095 = vmatprep.subr.bf16.mxu0 0
      %1096 = vmatpush2.bf16.msra.mxu0 0
      %1097 = vmatprep.subr.bf16.mxu0 0
      %1098 = vmatpush2.bf16.msra.mxu0 0
      %1099 = vmatprep.subr.bf16.mxu0 0
      %1100 = vmatpush2.bf16.msra.mxu0 0
      %1101 = vmatprep.subr.bf16.mxu0 0
      %1102 = vmatpush2.bf16.msra.mxu0 0
      %1103 = vmatprep.subr.bf16.mxu0 0
      %1104 = vmatpush2.bf16.msra.mxu0 0
      %1105 = vmatprep.mubr.bf16.mxu0 0
      %1106 = vmatmul.mubr.bf16.gmra.mxu0 %v1071
      %v1107 = vpop.f32.mrf.mxu0
      %v1108 = vadd.f32 0.0, %v1107
      %v1109 = vpop.f32.mrf.mxu0
      %v1110 = vpop.f32.mrf.mxu0
      %v1111 = vpop.f32.mrf.mxu0
      %1112 = vdwg.mxu0
      %v1113 = vadd.f32 %v1050, %v1108
      %v1114 = vld [vmem:[#allocation3 + $0x5] sm:$0xff]
      %v1115 = vpack.c.bf16 %v1114, %v1114
      %s1116 = scalar_lea.vmem %s3, 64
      %v1117 = vld [vmem:[%s1116] sm:$0xf]
      %v1118 = vld [vmem:[%s1116 + $0x4] sm:$0xf]
      %v1119 = vld [vmem:[%s1116 + $0x8] sm:$0xf]
      %v1120 = vld [vmem:[%s1116 + $0xc] sm:$0xf]
      %v1125 = vunpack.c.l.b16 %v1117
      %v1126 = vunpack.c.l.b16 %v1118
      %v1127 = vunpack.c.l.b16 %v1119
      %v1128 = vunpack.c.l.b16 %v1120
      %v1129 = vpack.c.b16 %v1126, %v1125
      %v1130 = vpack.c.b16 %v1128, %v1127
      %v1134 = vsel %vm277, %v1115, 0
      %1136 = vmatprep.subr.bf16.mxu0 0
      %1137 = vmatpush1.bf16.msra.mxu0 0
      %1138 = vmatprep.subr.bf16.mxu0 0
      %1139 = vmatpush1.bf16.msra.mxu0 0
      %1140 = vmatprep.subr.bf16.mxu0 0
      %1141 = vmatpush1.bf16.msra.mxu0 0
      %1142 = vmatprep.subr.bf16.mxu0 0
      %1143 = vmatpush1.bf16.msra.mxu0 0
      %1144 = vmatprep.subr.bf16.mxu0 0
      %1145 = vmatpush1.bf16.msra.mxu0 0
      %1146 = vmatprep.subr.bf16.mxu0 0
      %1147 = vmatpush1.bf16.msra.mxu0 0
      %1148 = vmatprep.subr.bf16.mxu0 0
      %1149 = vmatpush1.bf16.msra.mxu0 %v1130
      %1150 = vmatprep.subr.bf16.mxu0 0
      %1151 = vmatpush1.bf16.msra.mxu0 %v1129
      %1152 = vmatprep.subr.bf16.mxu0 0
      %1153 = vmatpush2.bf16.msra.mxu0 0
      %1154 = vmatprep.subr.bf16.mxu0 0
      %1155 = vmatpush2.bf16.msra.mxu0 0
      %1156 = vmatprep.subr.bf16.mxu0 0
      %1157 = vmatpush2.bf16.msra.mxu0 0
      %1158 = vmatprep.subr.bf16.mxu0 0
      %1159 = vmatpush2.bf16.msra.mxu0 0
      %1160 = vmatprep.subr.bf16.mxu0 0
      %1161 = vmatpush2.bf16.msra.mxu0 0
      %1162 = vmatprep.subr.bf16.mxu0 0
      %1163 = vmatpush2.bf16.msra.mxu0 0
      %1164 = vmatprep.subr.bf16.mxu0 0
      %1165 = vmatpush2.bf16.msra.mxu0 0
      %1166 = vmatprep.subr.bf16.mxu0 0
      %1167 = vmatpush2.bf16.msra.mxu0 0
      %1168 = vmatprep.mubr.bf16.mxu0 0
      %1169 = vmatmul.mubr.bf16.gmra.mxu0 %v1134
      %v1170 = vpop.f32.mrf.mxu0
      %v1171 = vadd.f32 0.0, %v1170
      %v1172 = vpop.f32.mrf.mxu0
      %v1173 = vpop.f32.mrf.mxu0
      %v1174 = vpop.f32.mrf.mxu0
      %1175 = vdwg.mxu0
      %v1176 = vadd.f32 %v1113, %v1171
      %v1177 = vld [vmem:[#allocation3 + $0x6] sm:$0xff]
      %v1178 = vpack.c.bf16 %v1177, %v1177
      %s1179 = scalar_lea.vmem %s3, 80
      %v1180 = vld [vmem:[%s1179] sm:$0xf]
      %v1181 = vld [vmem:[%s1179 + $0x4] sm:$0xf]
      %v1182 = vld [vmem:[%s1179 + $0x8] sm:$0xf]
      %v1183 = vld [vmem:[%s1179 + $0xc] sm:$0xf]
      %v1188 = vunpack.c.l.b16 %v1180
      %v1189 = vunpack.c.l.b16 %v1181
      %v1190 = vunpack.c.l.b16 %v1182
      %v1191 = vunpack.c.l.b16 %v1183
      %v1192 = vpack.c.b16 %v1189, %v1188
      %v1193 = vpack.c.b16 %v1191, %v1190
      %v1197 = vsel %vm277, %v1178, 0
      %1199 = vmatprep.subr.bf16.mxu0 0
      %1200 = vmatpush1.bf16.msra.mxu0 0
      %1201 = vmatprep.subr.bf16.mxu0 0
      %1202 = vmatpush1.bf16.msra.mxu0 0
      %1203 = vmatprep.subr.bf16.mxu0 0
      %1204 = vmatpush1.bf16.msra.mxu0 0
      %1205 = vmatprep.subr.bf16.mxu0 0
      %1206 = vmatpush1.bf16.msra.mxu0 0
      %1207 = vmatprep.subr.bf16.mxu0 0
      %1208 = vmatpush1.bf16.msra.mxu0 0
      %1209 = vmatprep.subr.bf16.mxu0 0
      %1210 = vmatpush1.bf16.msra.mxu0 0
      %1211 = vmatprep.subr.bf16.mxu0 0
      %1212 = vmatpush1.bf16.msra.mxu0 %v1193
      %1213 = vmatprep.subr.bf16.mxu0 0
      %1214 = vmatpush1.bf16.msra.mxu0 %v1192
      %1215 = vmatprep.subr.bf16.mxu0 0
      %1216 = vmatpush2.bf16.msra.mxu0 0
      %1217 = vmatprep.subr.bf16.mxu0 0
      %1218 = vmatpush2.bf16.msra.mxu0 0
      %1219 = vmatprep.subr.bf16.mxu0 0
      %1220 = vmatpush2.bf16.msra.mxu0 0
      %1221 = vmatprep.subr.bf16.mxu0 0
      %1222 = vmatpush2.bf16.msra.mxu0 0
      %1223 = vmatprep.subr.bf16.mxu0 0
      %1224 = vmatpush2.bf16.msra.mxu0 0
      %1225 = vmatprep.subr.bf16.mxu0 0
      %1226 = vmatpush2.bf16.msra.mxu0 0
      %1227 = vmatprep.subr.bf16.mxu0 0
      %1228 = vmatpush2.bf16.msra.mxu0 0
      %1229 = vmatprep.subr.bf16.mxu0 0
      %1230 = vmatpush2.bf16.msra.mxu0 0
      %1231 = vmatprep.mubr.bf16.mxu0 0
      %1232 = vmatmul.mubr.bf16.gmra.mxu0 %v1197
      %v1233 = vpop.f32.mrf.mxu0
      %v1234 = vadd.f32 0.0, %v1233
      %v1235 = vpop.f32.mrf.mxu0
      %v1236 = vpop.f32.mrf.mxu0
      %v1237 = vpop.f32.mrf.mxu0
      %1238 = vdwg.mxu0
      %v1239 = vadd.f32 %v1176, %v1234
      %v1240 = vld [vmem:[#allocation3 + $0x8] sm:$0xff]
      %v1241 = vpack.c.bf16 %v1240, %v1240
      %s1242 = scalar_lea.vmem %s3, 96
      %v1243 = vld [vmem:[%s1242] sm:$0xf]
      %v1244 = vld [vmem:[%s1242 + $0x4] sm:$0xf]
      %v1245 = vld [vmem:[%s1242 + $0x8] sm:$0xf]
      %v1246 = vld [vmem:[%s1242 + $0xc] sm:$0xf]
      %v1251 = vunpack.c.l.b16 %v1243
      %v1252 = vunpack.c.l.b16 %v1244
      %v1253 = vunpack.c.l.b16 %v1245
      %v1254 = vunpack.c.l.b16 %v1246
      %v1255 = vpack.c.b16 %v1252, %v1251
      %v1256 = vpack.c.b16 %v1254, %v1253
      %v1260 = vsel %vm277, %v1241, 0
      %1262 = vmatprep.subr.bf16.mxu0 0
      %1263 = vmatpush1.bf16.msra.mxu0 0
      %1264 = vmatprep.subr.bf16.mxu0 0
      %1265 = vmatpush1.bf16.msra.mxu0 0
      %1266 = vmatprep.subr.bf16.mxu0 0
      %1267 = vmatpush1.bf16.msra.mxu0 0
      %1268 = vmatprep.subr.bf16.mxu0 0
      %1269 = vmatpush1.bf16.msra.mxu0 0
      %1270 = vmatprep.subr.bf16.mxu0 0
      %1271 = vmatpush1.bf16.msra.mxu0 0
      %1272 = vmatprep.subr.bf16.mxu0 0
      %1273 = vmatpush1.bf16.msra.mxu0 0
      %1274 = vmatprep.subr.bf16.mxu0 0
      %1275 = vmatpush1.bf16.msra.mxu0 %v1256
      %1276 = vmatprep.subr.bf16.mxu0 0
      %1277 = vmatpush1.bf16.msra.mxu0 %v1255
      %1278 = vmatprep.subr.bf16.mxu0 0
      %1279 = vmatpush2.bf16.msra.mxu0 0
      %1280 = vmatprep.subr.bf16.mxu0 0
      %1281 = vmatpush2.bf16.msra.mxu0 0
      %1282 = vmatprep.subr.bf16.mxu0 0
      %1283 = vmatpush2.bf16.msra.mxu0 0
      %1284 = vmatprep.subr.bf16.mxu0 0
      %1285 = vmatpush2.bf16.msra.mxu0 0
      %1286 = vmatprep.subr.bf16.mxu0 0
      %1287 = vmatpush2.bf16.msra.mxu0 0
      %1288 = vmatprep.subr.bf16.mxu0 0
      %1289 = vmatpush2.bf16.msra.mxu0 0
      %1290 = vmatprep.subr.bf16.mxu0 0
      %1291 = vmatpush2.bf16.msra.mxu0 0
      %1292 = vmatprep.subr.bf16.mxu0 0
      %1293 = vmatpush2.bf16.msra.mxu0 0
      %1294 = vmatprep.mubr.bf16.mxu0 0
      %1295 = vmatmul.mubr.bf16.gmra.mxu0 %v1260
      %v1296 = vpop.f32.mrf.mxu0
      %v1297 = vadd.f32 0.0, %v1296
      %v1298 = vpop.f32.mrf.mxu0
      %v1299 = vpop.f32.mrf.mxu0
      %v1300 = vpop.f32.mrf.mxu0
      %1301 = vdwg.mxu0
      %v1302 = vadd.f32 %v1239, %v1297
      %v1303 = vld [vmem:[#allocation3 + $0x9] sm:$0xff]
      %v1304 = vpack.c.bf16 %v1303, %v1303
      %s1305 = scalar_lea.vmem %s3, 112
      %v1306 = vld [vmem:[%s1305] sm:$0xf]
      %v1307 = vld [vmem:[%s1305 + $0x4] sm:$0xf]
      %v1308 = vld [vmem:[%s1305 + $0x8] sm:$0xf]
      %v1309 = vld [vmem:[%s1305 + $0xc] sm:$0xf]
      %v1314 = vunpack.c.l.b16 %v1306
      %v1315 = vunpack.c.l.b16 %v1307
      %v1316 = vunpack.c.l.b16 %v1308
      %v1317 = vunpack.c.l.b16 %v1309
      %v1318 = vpack.c.b16 %v1315, %v1314
      %v1319 = vpack.c.b16 %v1317, %v1316
      %v1323 = vsel %vm277, %v1304, 0
      %1325 = vmatprep.subr.bf16.mxu0 0
      %1326 = vmatpush1.bf16.msra.mxu0 0
      %1327 = vmatprep.subr.bf16.mxu0 0
      %1328 = vmatpush1.bf16.msra.mxu0 0
      %1329 = vmatprep.subr.bf16.mxu0 0
      %1330 = vmatpush1.bf16.msra.mxu0 0
      %1331 = vmatprep.subr.bf16.mxu0 0
      %1332 = vmatpush1.bf16.msra.mxu0 0
      %1333 = vmatprep.subr.bf16.mxu0 0
      %1334 = vmatpush1.bf16.msra.mxu0 0
      %1335 = vmatprep.subr.bf16.mxu0 0
      %1336 = vmatpush1.bf16.msra.mxu0 0
      %1337 = vmatprep.subr.bf16.mxu0 0
      %1338 = vmatpush1.bf16.msra.mxu0 %v1319
      %1339 = vmatprep.subr.bf16.mxu0 0
      %1340 = vmatpush1.bf16.msra.mxu0 %v1318
      %1341 = vmatprep.subr.bf16.mxu0 0
      %1342 = vmatpush2.bf16.msra.mxu0 0
      %1343 = vmatprep.subr.bf16.mxu0 0
      %1344 = vmatpush2.bf16.msra.mxu0 0
      %1345 = vmatprep.subr.bf16.mxu0 0
      %1346 = vmatpush2.bf16.msra.mxu0 0
      %1347 = vmatprep.subr.bf16.mxu0 0
      %1348 = vmatpush2.bf16.msra.mxu0 0
      %1349 = vmatprep.subr.bf16.mxu0 0
      %1350 = vmatpush2.bf16.msra.mxu0 0
      %1351 = vmatprep.subr.bf16.mxu0 0
      %1352 = vmatpush2.bf16.msra.mxu0 0
      %1353 = vmatprep.subr.bf16.mxu0 0
      %1354 = vmatpush2.bf16.msra.mxu0 0
      %1355 = vmatprep.subr.bf16.mxu0 0
      %1356 = vmatpush2.bf16.msra.mxu0 0
      %1357 = vmatprep.mubr.bf16.mxu0 0
      %1358 = vmatmul.mubr.bf16.gmra.mxu0 %v1323
      %v1359 = vpop.f32.mrf.mxu0
      %v1360 = vadd.f32 0.0, %v1359
      %v1361 = vpop.f32.mrf.mxu0
      %v1362 = vpop.f32.mrf.mxu0
      %v1363 = vpop.f32.mrf.mxu0
      %1364 = vdwg.mxu0
      %v1365 = vadd.f32 %v1302, %v1360
      %v1366 = vld [vmem:[#allocation3 + $0xa] sm:$0xff]
      %v1367 = vpack.c.bf16 %v1366, %v1366
      %s1368 = scalar_lea.vmem %s3, 128
      %v1369 = vld [vmem:[%s1368] sm:$0xf]
      %v1370 = vld [vmem:[%s1368 + $0x4] sm:$0xf]
      %v1371 = vld [vmem:[%s1368 + $0x8] sm:$0xf]
      %v1372 = vld [vmem:[%s1368 + $0xc] sm:$0xf]
      %v1377 = vunpack.c.l.b16 %v1369
      %v1378 = vunpack.c.l.b16 %v1370
      %v1379 = vunpack.c.l.b16 %v1371
      %v1380 = vunpack.c.l.b16 %v1372
      %v1381 = vpack.c.b16 %v1378, %v1377
      %v1382 = vpack.c.b16 %v1380, %v1379
      %v1386 = vsel %vm277, %v1367, 0
      %1388 = vmatprep.subr.bf16.mxu0 0
      %1389 = vmatpush1.bf16.msra.mxu0 0
      %1390 = vmatprep.subr.bf16.mxu0 0
      %1391 = vmatpush1.bf16.msra.mxu0 0
      %1392 = vmatprep.subr.bf16.mxu0 0
      %1393 = vmatpush1.bf16.msra.mxu0 0
      %1394 = vmatprep.subr.bf16.mxu0 0
      %1395 = vmatpush1.bf16.msra.mxu0 0
      %1396 = vmatprep.subr.bf16.mxu0 0
      %1397 = vmatpush1.bf16.msra.mxu0 0
      %1398 = vmatprep.subr.bf16.mxu0 0
      %1399 = vmatpush1.bf16.msra.mxu0 0
      %1400 = vmatprep.subr.bf16.mxu0 0
      %1401 = vmatpush1.bf16.msra.mxu0 %v1382
      %1402 = vmatprep.subr.bf16.mxu0 0
      %1403 = vmatpush1.bf16.msra.mxu0 %v1381
      %1404 = vmatprep.subr.bf16.mxu0 0
      %1405 = vmatpush2.bf16.msra.mxu0 0
      %1406 = vmatprep.subr.bf16.mxu0 0
      %1407 = vmatpush2.bf16.msra.mxu0 0
      %1408 = vmatprep.subr.bf16.mxu0 0
      %1409 = vmatpush2.bf16.msra.mxu0 0
      %1410 = vmatprep.subr.bf16.mxu0 0
      %1411 = vmatpush2.bf16.msra.mxu0 0
      %1412 = vmatprep.subr.bf16.mxu0 0
      %1413 = vmatpush2.bf16.msra.mxu0 0
      %1414 = vmatprep.subr.bf16.mxu0 0
      %1415 = vmatpush2.bf16.msra.mxu0 0
      %1416 = vmatprep.subr.bf16.mxu0 0
      %1417 = vmatpush2.bf16.msra.mxu0 0
      %1418 = vmatprep.subr.bf16.mxu0 0
      %1419 = vmatpush2.bf16.msra.mxu0 0
      %1420 = vmatprep.mubr.bf16.mxu0 0
      %1421 = vmatmul.mubr.bf16.gmra.mxu0 %v1386
      %v1422 = vpop.f32.mrf.mxu0
      %v1423 = vadd.f32 0.0, %v1422
      %v1424 = vpop.f32.mrf.mxu0
      %v1425 = vpop.f32.mrf.mxu0
      %v1426 = vpop.f32.mrf.mxu0
      %1427 = vdwg.mxu0
      %v1428 = vadd.f32 %v1365, %v1423
      %v1429 = vld [vmem:[%s4] sm:$0x1]
      %v1431 = vlaneseq
      %v1432 = vshrl.u32 %v1431, 7
      %v1433 = vsub.s32 0, %v1432
      %v1434 = vrot.slane %v1429, %v1433
      %v1436 = vadd.f32 %v1428, %v1434
      %v1437 = vmax.f32 %v1436, 0.0
      %v1438 = vld [vmem:[%s256] sm:$0x1]
      %v1440 = vlaneseq
      %v1441 = vshrl.u32 %v1440, 7
      %v1442 = vsub.s32 0, %v1441
      %v1443 = vrot.slane %v1438, %v1442
      %v1445 = vadd.f32 %v1437, %v1443
      %v1446 = vsel %vm859, %v1445, 0.0
      %v1447 = vpack.c.bf16 %v1446, %v1446
      %1448 = vst.msk [vmem:[%s260] sm:$0xf] %vm280, %v1447
      %p1449 = scmp.lt.s32.totalorder %s17, 1
      %s1450 = scalar_select %p1449, %s17, 1
      %s1451 = smul.addr %s1450, 4
      %s1452 = scalar_lea.vmem %s6, %s1451
      // Predicated region
      $region45: #{denoiser_forward.14} parent=43 // pred_check
        %p1453 = pneg %p171
      $region46: #{denoiser_forward.14} parent=43 // pred_check_branch
        %1455 = sbr.rel (%p1453) target = $region48
      $region47: #{denoiser_forward.14} parent=43 // pred_region
        _
      $region48: #{denoiser_forward.14} parent=43 // pred_fallthru
        _
    $region44: #{denoiser_forward.14} parent=5 // pred_fallthru
      _
    %p1456 = scmp.le.s32.totalorder 2, %s12
    // Predicated region
    $region49: #{denoiser_forward.14} parent=5 // pred_check
      %p1457 = pneg %p1456
    $region50: #{denoiser_forward.14} parent=5 // pred_check_branch
      %1459 = sbr.rel (%p1457) target = $region52
    $region51: #{denoiser_forward.14} parent=5 // pred_region
      %s1460 = ssub.s32 %s12, 2
      // Predicated region
      $region53: #{denoiser_forward.14} parent=51 // pred_check
        %p1461 = pneg %p177
      $region54: #{denoiser_forward.14} parent=51 // pred_check_branch
        %1463 = sbr.rel (%p1461) target = $region56
      $region55: #{denoiser_forward.14} parent=51 // pred_region
        %p1464 = scmp.lt.s32.totalorder %s18, 1
        %s1465 = scalar_select %p1464, %s18, 1
        %s1466 = smul.addr %s1465, 4
        %s1467 = scalar_lea.vmem %s6, %s1466
      $region56: #{denoiser_forward.14} parent=51 // pred_fallthru
        _
    $region52: #{denoiser_forward.14} parent=5 // pred_fallthru
      _
  $region6: #{denoiser_forward.14} parent=0 // loop_footer
    %s16 = sadd.s32 1, %s12
  $region7: #{denoiser_forward.14} parent=0 // loop_footer_branch
    %11 = sbr.rel target = $region3
  $region8: #{denoiser_forward.14} parent=0 // loop_exit
    _

// kernel: denoiser_forward.17
$region0: #{denoiser_forward.17}
  #allocation0 [shape = 'u32[]', space=smem, size = 0x4, offset = 0x4, fixed_abs, tag = 'smem constant byte address 0x4 - core index']
  #allocation1 [shape = 'u32[144,128]{1,0:T(1,128)}', space=vmem, size = 0x12000, scoped, tag = 'internal scratch']
  %s0 = inlined_call_operand.vmem [shape: bf16[160,8], index: 0, kind: input, shape index: {}]
  %s1 = inlined_call_operand.vmem [shape: bf16[160,8], index: 1, kind: input, shape index: {}]
  %s2 = inlined_call_operand.vmem [shape: bf16[8,12], index: 2, kind: input, shape index: {}]
  %s3 = inlined_call_operand.vmem [shape: f32[1,12], index: 3, kind: input, shape index: {}]
  %s4 = inlined_call_operand.vmem [shape: bf16[12,12], index: 4, kind: input, shape index: {}]
  %s5 = inlined_call_operand.vmem [shape: f32[1,12], index: 5, kind: input, shape index: {}]
  %s6 = inlined_call_operand.vmem [shape: f32[160,12], index: 6, kind: output, shape index: {}]
  %s7 = sld [smem:[#allocation0]]
  $region34: #{denoiser_forward.17} parent=0
    _
  %s9 = ssub.s32 1, %s7
  %s10 = scalar_select 0, %s9, %s7
  // Predicated region
  $region2: #{denoiser_forward.17} parent=0 // pred_check
    _
  $region3: #{denoiser_forward.17} parent=0 // pred_check_branch
    %12 = sbr.rel (0) target = $region5
  $region4: #{denoiser_forward.17} parent=0 // pred_region
    _
  $region5: #{denoiser_forward.17} parent=0 // pred_fallthru
    _
  // Predicated region
  $region6: #{denoiser_forward.17} parent=0 // pred_check
    _
  $region7: #{denoiser_forward.17} parent=0 // pred_check_branch
    %14 = sbr.rel (0) target = $region9
  $region8: #{denoiser_forward.17} parent=0 // pred_region
    _
  $region9: #{denoiser_forward.17} parent=0 // pred_fallthru
    _
  // Predicated region
  $region10: #{denoiser_forward.17} parent=0 // pred_check
    _
  $region11: #{denoiser_forward.17} parent=0 // pred_check_branch
    %16 = sbr.rel (0) target = $region13
  $region12: #{denoiser_forward.17} parent=0 // pred_region
    _
  $region13: #{denoiser_forward.17} parent=0 // pred_fallthru
    _
  // Predicated region
  $region14: #{denoiser_forward.17} parent=0 // pred_check
    _
  $region15: #{denoiser_forward.17} parent=0 // pred_check_branch
    %18 = sbr.rel (0) target = $region17
  $region16: #{denoiser_forward.17} parent=0 // pred_region
    _
  $region17: #{denoiser_forward.17} parent=0 // pred_fallthru
    _
  // Predicated region
  $region18: #{denoiser_forward.17} parent=0 // pred_check
    _
  $region19: #{denoiser_forward.17} parent=0 // pred_check_branch
    %20 = sbr.rel (0) target = $region21
  $region20: #{denoiser_forward.17} parent=0 // pred_region
    _
  $region21: #{denoiser_forward.17} parent=0 // pred_fallthru
    _
  // Predicated region
  $region22: #{denoiser_forward.17} parent=0 // pred_check
    _
  $region23: #{denoiser_forward.17} parent=0 // pred_check_branch
    %22 = sbr.rel (0) target = $region25
  $region24: #{denoiser_forward.17} parent=0 // pred_region
    _
  $region25: #{denoiser_forward.17} parent=0 // pred_fallthru
    _
  %v24 = vld [vmem:[%s0] sm:$0xf]
  %v25 = vld [vmem:[%s0 + $0x4] sm:$0xf]
  %v26 = vld [vmem:[%s0 + $0x8] sm:$0xf]
  %v27 = vld [vmem:[%s0 + $0xc] sm:$0xf]
  %v28 = vld [vmem:[%s0 + $0x10] sm:$0xf]
  %v29 = vld [vmem:[%s0 + $0x14] sm:$0xf]
  %v30 = vld [vmem:[%s0 + $0x18] sm:$0xf]
  %v31 = vld [vmem:[%s0 + $0x1c] sm:$0xf]
  %v32 = vld [vmem:[%s0 + $0x20] sm:$0xf]
  %v33 = vld [vmem:[%s0 + $0x24] sm:$0xf]
  %v34 = vld [vmem:[%s0 + $0x28] sm:$0xf]
  %v35 = vld [vmem:[%s0 + $0x2c] sm:$0xf]
  %v36 = vld [vmem:[%s0 + $0x30] sm:$0xf]
  %v37 = vld [vmem:[%s0 + $0x34] sm:$0xf]
  %v38 = vld [vmem:[%s0 + $0x38] sm:$0xf]
  %v39 = vld [vmem:[%s0 + $0x3c] sm:$0xf]
  %v40 = vld [vmem:[%s0 + $0x40] sm:$0xf]
  %v41 = vld [vmem:[%s0 + $0x44] sm:$0xf]
  %v42 = vld [vmem:[%s0 + $0x48] sm:$0xf]
  %v43 = vld [vmem:[%s0 + $0x4c] sm:$0xf]
  %v44 = vld [vmem:[%s1] sm:$0xf]
  %v45 = vld [vmem:[%s1 + $0x4] sm:$0xf]
  %v46 = vld [vmem:[%s1 + $0x8] sm:$0xf]
  %v47 = vld [vmem:[%s1 + $0xc] sm:$0xf]
  %v48 = vld [vmem:[%s1 + $0x10] sm:$0xf]
  %v49 = vld [vmem:[%s1 + $0x14] sm:$0xf]
  %v50 = vld [vmem:[%s1 + $0x18] sm:$0xf]
  %v51 = vld [vmem:[%s1 + $0x1c] sm:$0xf]
  %v52 = vld [vmem:[%s1 + $0x20] sm:$0xf]
  %v53 = vld [vmem:[%s1 + $0x24] sm:$0xf]
  %v54 = vld [vmem:[%s1 + $0x28] sm:$0xf]
  %v55 = vld [vmem:[%s1 + $0x2c] sm:$0xf]
  %v56 = vld [vmem:[%s1 + $0x30] sm:$0xf]
  %v57 = vld [vmem:[%s1 + $0x34] sm:$0xf]
  %v58 = vld [vmem:[%s1 + $0x38] sm:$0xf]
  %v59 = vld [vmem:[%s1 + $0x3c] sm:$0xf]
  %v60 = vld [vmem:[%s1 + $0x40] sm:$0xf]
  %v61 = vld [vmem:[%s1 + $0x44] sm:$0xf]
  %v62 = vld [vmem:[%s1 + $0x48] sm:$0xf]
  %v63 = vld [vmem:[%s1 + $0x4c] sm:$0xf]
  %v64 = vadd.bf16 %v24, %v44
  %v65 = vadd.bf16 %v25, %v45
  %v66 = vadd.bf16 %v26, %v46
  %v67 = vadd.bf16 %v27, %v47
  %v68 = vadd.bf16 %v28, %v48
  %v69 = vadd.bf16 %v29, %v49
  %v70 = vadd.bf16 %v30, %v50
  %v71 = vadd.bf16 %v31, %v51
  %v72 = vadd.bf16 %v32, %v52
  %v73 = vadd.bf16 %v33, %v53
  %v74 = vadd.bf16 %v34, %v54
  %v75 = vadd.bf16 %v35, %v55
  %v76 = vadd.bf16 %v36, %v56
  %v77 = vadd.bf16 %v37, %v57
  %v78 = vadd.bf16 %v38, %v58
  %v79 = vadd.bf16 %v39, %v59
  %v80 = vadd.bf16 %v40, %v60
  %v81 = vadd.bf16 %v41, %v61
  %v82 = vadd.bf16 %v42, %v62
  %v83 = vadd.bf16 %v43, %v63
  %v84 = vld [vmem:[%s2] sm:$0xf]
  %v85 = vld [vmem:[%s3] sm:$0x1]
  %v87 = vlaneseq
  %v88 = vshrl.u32 %v87, 7
  %v89 = vsub.s32 0, %v88
  %v90 = vrot.slane %v85, %v89
  %v112 = vunpack.c.l.b16 %v64
  %v113 = vunpack.c.l.b16 %v65
  %v114 = vunpack.c.l.b16 %v66
  %v115 = vunpack.c.l.b16 %v67
  %v116 = vunpack.c.l.b16 %v68
  %v117 = vunpack.c.l.b16 %v69
  %v118 = vunpack.c.l.b16 %v70
  %v119 = vunpack.c.l.b16 %v71
  %v120 = vunpack.c.l.b16 %v72
  %v121 = vunpack.c.l.b16 %v73
  %v122 = vunpack.c.l.b16 %v74
  %v123 = vunpack.c.l.b16 %v75
  %v124 = vunpack.c.l.b16 %v76
  %v125 = vunpack.c.l.b16 %v77
  %v126 = vunpack.c.l.b16 %v78
  %v127 = vunpack.c.l.b16 %v79
  %v128 = vunpack.c.l.b16 %v80
  %v129 = vunpack.c.l.b16 %v81
  %v130 = vunpack.c.l.b16 %v82
  %v131 = vunpack.c.l.b16 %v83
  %v132 = vpack.c.b16 %v113, %v112
  %v133 = vpack.c.b16 %v115, %v114
  %v134 = vpack.c.b16 %v117, %v116
  %v135 = vpack.c.b16 %v119, %v118
  %v136 = vpack.c.b16 %v121, %v120
  %v137 = vpack.c.b16 %v123, %v122
  %v138 = vpack.c.b16 %v125, %v124
  %v139 = vpack.c.b16 %v127, %v126
  %v140 = vpack.c.b16 %v129, %v128
  %v141 = vpack.c.b16 %v131, %v130
  %vm142 = vcmask 64512
  %v144 = vsel %vm142, %v132, 0
  %v147 = vsel %vm142, %v133, 0
  %v150 = vsel %vm142, %v134, 0
  %v153 = vsel %vm142, %v135, 0
  %v156 = vsel %vm142, %v136, 0
  %v159 = vsel %vm142, %v137, 0
  %v162 = vsel %vm142, %v138, 0
  %v165 = vsel %vm142, %v139, 0
  %v168 = vsel %vm142, %v140, 0
  %v171 = vsel %vm142, %v141, 0
  %vm173 = vcmask 1043456
  %v175 = vsel %vm173, %v84, 0
  %177 = vmatprep.subr.bf16.mxu0 0
  %178 = vmatpush1.bf16.msra.mxu0 0
  %179 = vmatprep.subr.bf16.mxu0 0
  %180 = vmatpush1.bf16.msra.mxu0 0
  %181 = vmatprep.subr.bf16.mxu0 0
  %182 = vmatpush1.bf16.msra.mxu0 0
  %183 = vmatprep.subr.bf16.mxu0 0
  %184 = vmatpush1.bf16.msra.mxu0 0
  %185 = vmatprep.subr.bf16.mxu0 0
  %186 = vmatpush1.bf16.msra.mxu0 0
  %187 = vmatprep.subr.bf16.mxu0 0
  %188 = vmatpush1.bf16.msra.mxu0 0
  %189 = vmatprep.subr.bf16.mxu0 0
  %190 = vmatpush1.bf16.msra.mxu0 0
  %191 = vmatprep.subr.bf16.mxu0 0
  %192 = vmatpush1.bf16.msra.mxu0 %v175
  %193 = vmatprep.subr.bf16.mxu0 0
  %194 = vmatpush2.bf16.msra.mxu0 0
  %195 = vmatprep.subr.bf16.mxu0 0
  %196 = vmatpush2.bf16.msra.mxu0 0
  %197 = vmatprep.subr.bf16.mxu0 0
  %198 = vmatpush2.bf16.msra.mxu0 0
  %199 = vmatprep.subr.bf16.mxu0 0
  %200 = vmatpush2.bf16.msra.mxu0 0
  %201 = vmatprep.subr.bf16.mxu0 0
  %202 = vmatpush2.bf16.msra.mxu0 0
  %203 = vmatprep.subr.bf16.mxu0 0
  %204 = vmatpush2.bf16.msra.mxu0 0
  %205 = vmatprep.subr.bf16.mxu0 0
  %206 = vmatpush2.bf16.msra.mxu0 0
  %207 = vmatprep.subr.bf16.mxu0 0
  %208 = vmatpush2.bf16.msra.mxu0 0
  %209 = vmatprep.mubr.bf16.mxu0 0
  %210 = vmatmul.mubr.bf16.gmra.mxu0 %v144
  %v211 = vpop.f32.mrf.mxu0
  %v212 = vadd.f32 %v90, %v211
  %v213 = vpop.f32.mrf.mxu0
  %v214 = vpop.f32.mrf.mxu0
  %v215 = vadd.f32 %v90, %v214
  %v216 = vpop.f32.mrf.mxu0
  %217 = vmatprep.mubr.bf16.mxu0 0
  %218 = vmatmul.mubr.bf16.gmra.mxu0 %v147
  %v219 = vpop.f32.mrf.mxu0
  %v220 = vadd.f32 %v90, %v219
  %v221 = vpop.f32.mrf.mxu0
  %v222 = vpop.f32.mrf.mxu0
  %v223 = vadd.f32 %v90, %v222
  %v224 = vpop.f32.mrf.mxu0
  %225 = vmatprep.mubr.bf16.mxu0 0
  %226 = vmatmul.mubr.bf16.gmra.mxu0 %v150
  %v227 = vpop.f32.mrf.mxu0
  %v228 = vadd.f32 %v90, %v227
  %v229 = vpop.f32.mrf.mxu0
  %v230 = vpop.f32.mrf.mxu0
  %v231 = vadd.f32 %v90, %v230
  %v232 = vpop.f32.mrf.mxu0
  %233 = vmatprep.mubr.bf16.mxu0 0
  %234 = vmatmul.mubr.bf16.gmra.mxu0 %v153
  %v235 = vpop.f32.mrf.mxu0
  %v236 = vadd.f32 %v90, %v235
  %v237 = vpop.f32.mrf.mxu0
  %v238 = vpop.f32.mrf.mxu0
  %v239 = vadd.f32 %v90, %v238
  %v240 = vpop.f32.mrf.mxu0
  %241 = vmatprep.mubr.bf16.mxu0 0
  %242 = vmatmul.mubr.bf16.gmra.mxu0 %v156
  %v243 = vpop.f32.mrf.mxu0
  %v244 = vadd.f32 %v90, %v243
  %v245 = vpop.f32.mrf.mxu0
  %v246 = vpop.f32.mrf.mxu0
  %v247 = vadd.f32 %v90, %v246
  %v248 = vpop.f32.mrf.mxu0
  %249 = vmatprep.mubr.bf16.mxu0 0
  %250 = vmatmul.mubr.bf16.gmra.mxu0 %v159
  %v251 = vpop.f32.mrf.mxu0
  %v252 = vadd.f32 %v90, %v251
  %v253 = vpop.f32.mrf.mxu0
  %v254 = vpop.f32.mrf.mxu0
  %v255 = vadd.f32 %v90, %v254
  %v256 = vpop.f32.mrf.mxu0
  %257 = vmatprep.mubr.bf16.mxu0 0
  %258 = vmatmul.mubr.bf16.gmra.mxu0 %v162
  %v259 = vpop.f32.mrf.mxu0
  %v260 = vadd.f32 %v90, %v259
  %v261 = vpop.f32.mrf.mxu0
  %v262 = vpop.f32.mrf.mxu0
  %v263 = vadd.f32 %v90, %v262
  %v264 = vpop.f32.mrf.mxu0
  %265 = vmatprep.mubr.bf16.mxu0 0
  %266 = vmatmul.mubr.bf16.gmra.mxu0 %v165
  %v267 = vpop.f32.mrf.mxu0
  %v268 = vadd.f32 %v90, %v267
  %v269 = vpop.f32.mrf.mxu0
  %v270 = vpop.f32.mrf.mxu0
  %v271 = vadd.f32 %v90, %v270
  %v272 = vpop.f32.mrf.mxu0
  %273 = vmatprep.mubr.bf16.mxu0 0
  %274 = vmatmul.mubr.bf16.gmra.mxu0 %v168
  %v275 = vpop.f32.mrf.mxu0
  %v276 = vadd.f32 %v90, %v275
  %v277 = vpop.f32.mrf.mxu0
  %v278 = vpop.f32.mrf.mxu0
  %v279 = vadd.f32 %v90, %v278
  %v280 = vpop.f32.mrf.mxu0
  %281 = vmatprep.mubr.bf16.mxu0 0
  %282 = vmatmul.mubr.bf16.gmra.mxu0 %v171
  %v283 = vpop.f32.mrf.mxu0
  %v284 = vadd.f32 %v90, %v283
  %v285 = vpop.f32.mrf.mxu0
  %v286 = vpop.f32.mrf.mxu0
  %v287 = vadd.f32 %v90, %v286
  %v288 = vpop.f32.mrf.mxu0
  %289 = vdwg.mxu0
  %v290 = vmax.f32 %v212, 0.0
  %v291 = vmax.f32 %v215, 0.0
  %v292 = vmax.f32 %v220, 0.0
  %v293 = vmax.f32 %v223, 0.0
  %v294 = vmax.f32 %v228, 0.0
  %v295 = vmax.f32 %v231, 0.0
  %v296 = vmax.f32 %v236, 0.0
  %v297 = vmax.f32 %v239, 0.0
  %v298 = vmax.f32 %v244, 0.0
  %v299 = vmax.f32 %v247, 0.0
  %v300 = vmax.f32 %v252, 0.0
  %v301 = vmax.f32 %v255, 0.0
  %v302 = vmax.f32 %v260, 0.0
  %v303 = vmax.f32 %v263, 0.0
  %v304 = vmax.f32 %v268, 0.0
  %v305 = vmax.f32 %v271, 0.0
  %v306 = vmax.f32 %v276, 0.0
  %v307 = vmax.f32 %v279, 0.0
  %v308 = vmax.f32 %v284, 0.0
  %v309 = vmax.f32 %v287, 0.0
  %v310 = vpack.c.bf16 %v291, %v290
  %v311 = vpack.c.bf16 %v293, %v292
  %v312 = vpack.c.bf16 %v295, %v294
  %v313 = vpack.c.bf16 %v297, %v296
  %v314 = vpack.c.bf16 %v299, %v298
  %v315 = vpack.c.bf16 %v301, %v300
  %v316 = vpack.c.bf16 %v303, %v302
  %v317 = vpack.c.bf16 %v305, %v304
  %v318 = vpack.c.bf16 %v307, %v306
  %v319 = vpack.c.bf16 %v309, %v308
  %v320 = vld [vmem:[%s4] sm:$0xf]
  %v321 = vld [vmem:[%s4 + $0x4] sm:$0x3]
  %v322 = vld [vmem:[%s5] sm:$0x1]
  %v324 = vlaneseq
  %v325 = vshrl.u32 %v324, 7
  %v326 = vsub.s32 0, %v325
  %v327 = vrot.slane %v322, %v326
  %v331 = vunpack.c.l.b16 %v320
  %v332 = vunpack.c.l.b16 %v321
  %v333 = vpack.c.b16 %v332, %v331
  %vm334 = vcmask 97280
  %v336 = vsel %vm334, %v310, 0
  %v339 = vsel %vm334, %v311, 0
  %v342 = vsel %vm334, %v312, 0
  %v345 = vsel %vm334, %v313, 0
  %v348 = vsel %vm334, %v314, 0
  %v351 = vsel %vm334, %v315, 0
  %v354 = vsel %vm334, %v316, 0
  %v357 = vsel %vm334, %v317, 0
  %v360 = vsel %vm334, %v318, 0
  %v363 = vsel %vm334, %v319, 0
  %vm365 = vcmask 1045504
  %v367 = vsel %vm365, %v333, 0
  %369 = vmatprep.subr.bf16.mxu0 0
  %370 = vmatpush1.bf16.msra.mxu0 0
  %371 = vmatprep.subr.bf16.mxu0 0
  %372 = vmatpush1.bf16.msra.mxu0 0
  %373 = vmatprep.subr.bf16.mxu0 0
  %374 = vmatpush1.bf16.msra.mxu0 0
  %375 = vmatprep.subr.bf16.mxu0 0
  %376 = vmatpush1.bf16.msra.mxu0 0
  %377 = vmatprep.subr.bf16.mxu0 0
  %378 = vmatpush1.bf16.msra.mxu0 0
  %379 = vmatprep.subr.bf16.mxu0 0
  %380 = vmatpush1.bf16.msra.mxu0 0
  %381 = vmatprep.subr.bf16.mxu0 0
  %382 = vmatpush1.bf16.msra.mxu0 0
  %383 = vmatprep.subr.bf16.mxu0 0
  %384 = vmatpush1.bf16.msra.mxu0 %v367
  %385 = vmatprep.subr.bf16.mxu0 0
  %386 = vmatpush2.bf16.msra.mxu0 0
  %387 = vmatprep.subr.bf16.mxu0 0
  %388 = vmatpush2.bf16.msra.mxu0 0
  %389 = vmatprep.subr.bf16.mxu0 0
  %390 = vmatpush2.bf16.msra.mxu0 0
  %391 = vmatprep.subr.bf16.mxu0 0
  %392 = vmatpush2.bf16.msra.mxu0 0
  %393 = vmatprep.subr.bf16.mxu0 0
  %394 = vmatpush2.bf16.msra.mxu0 0
  %395 = vmatprep.subr.bf16.mxu0 0
  %396 = vmatpush2.bf16.msra.mxu0 0
  %397 = vmatprep.subr.bf16.mxu0 0
  %398 = vmatpush2.bf16.msra.mxu0 0
  %399 = vmatprep.subr.bf16.mxu0 0
  %400 = vmatpush2.bf16.msra.mxu0 0
  %401 = vmatprep.mubr.bf16.mxu0 0
  %402 = vmatmul.mubr.bf16.gmra.mxu0 %v336
  %v403 = vpop.f32.mrf.mxu0
  %v404 = vadd.f32 %v327, %v403
  %v405 = vpop.f32.mrf.mxu0
  %v406 = vpop.f32.mrf.mxu0
  %v407 = vadd.f32 %v327, %v406
  %v408 = vpop.f32.mrf.mxu0
  %409 = vmatprep.mubr.bf16.mxu0 0
  %410 = vmatmul.mubr.bf16.gmra.mxu0 %v339
  %v411 = vpop.f32.mrf.mxu0
  %v412 = vadd.f32 %v327, %v411
  %v413 = vpop.f32.mrf.mxu0
  %v414 = vpop.f32.mrf.mxu0
  %v415 = vadd.f32 %v327, %v414
  %v416 = vpop.f32.mrf.mxu0
  %417 = vmatprep.mubr.bf16.mxu0 0
  %418 = vmatmul.mubr.bf16.gmra.mxu0 %v342
  %v419 = vpop.f32.mrf.mxu0
  %v420 = vadd.f32 %v327, %v419
  %v421 = vpop.f32.mrf.mxu0
  %v422 = vpop.f32.mrf.mxu0
  %v423 = vadd.f32 %v327, %v422
  %v424 = vpop.f32.mrf.mxu0
  %425 = vmatprep.mubr.bf16.mxu0 0
  %426 = vmatmul.mubr.bf16.gmra.mxu0 %v345
  %v427 = vpop.f32.mrf.mxu0
  %v428 = vadd.f32 %v327, %v427
  %v429 = vpop.f32.mrf.mxu0
  %v430 = vpop.f32.mrf.mxu0
  %v431 = vadd.f32 %v327, %v430
  %v432 = vpop.f32.mrf.mxu0
  %433 = vmatprep.mubr.bf16.mxu0 0
  %434 = vmatmul.mubr.bf16.gmra.mxu0 %v348
  %v435 = vpop.f32.mrf.mxu0
  %v436 = vadd.f32 %v327, %v435
  %v437 = vpop.f32.mrf.mxu0
  %v438 = vpop.f32.mrf.mxu0
  %v439 = vadd.f32 %v327, %v438
  %v440 = vpop.f32.mrf.mxu0
  %441 = vmatprep.mubr.bf16.mxu0 0
  %442 = vmatmul.mubr.bf16.gmra.mxu0 %v351
  %v443 = vpop.f32.mrf.mxu0
  %v444 = vadd.f32 %v327, %v443
  %v445 = vpop.f32.mrf.mxu0
  %v446 = vpop.f32.mrf.mxu0
  %v447 = vadd.f32 %v327, %v446
  %v448 = vpop.f32.mrf.mxu0
  %449 = vmatprep.mubr.bf16.mxu0 0
  %450 = vmatmul.mubr.bf16.gmra.mxu0 %v354
  %v451 = vpop.f32.mrf.mxu0
  %v452 = vadd.f32 %v327, %v451
  %v453 = vpop.f32.mrf.mxu0
  %v454 = vpop.f32.mrf.mxu0
  %v455 = vadd.f32 %v327, %v454
  %v456 = vpop.f32.mrf.mxu0
  %457 = vmatprep.mubr.bf16.mxu0 0
  %458 = vmatmul.mubr.bf16.gmra.mxu0 %v357
  %v459 = vpop.f32.mrf.mxu0
  %v460 = vadd.f32 %v327, %v459
  %v461 = vpop.f32.mrf.mxu0
  %v462 = vpop.f32.mrf.mxu0
  %v463 = vadd.f32 %v327, %v462
  %v464 = vpop.f32.mrf.mxu0
  %465 = vmatprep.mubr.bf16.mxu0 0
  %466 = vmatmul.mubr.bf16.gmra.mxu0 %v360
  %v467 = vpop.f32.mrf.mxu0
  %v468 = vadd.f32 %v327, %v467
  %v469 = vpop.f32.mrf.mxu0
  %v470 = vpop.f32.mrf.mxu0
  %v471 = vadd.f32 %v327, %v470
  %v472 = vpop.f32.mrf.mxu0
  %473 = vmatprep.mubr.bf16.mxu0 0
  %474 = vmatmul.mubr.bf16.gmra.mxu0 %v363
  %v475 = vpop.f32.mrf.mxu0
  %v476 = vadd.f32 %v327, %v475
  %v477 = vpop.f32.mrf.mxu0
  %v478 = vpop.f32.mrf.mxu0
  %v479 = vadd.f32 %v327, %v478
  %v480 = vpop.f32.mrf.mxu0
  %481 = vdwg.mxu0
  %482 = vst.msk [vmem:[%s6] sm:$0xff] %vm334, %v404
  %483 = vst.msk [vmem:[%s6 + $0x8] sm:$0xff] %vm334, %v407
  %484 = vst.msk [vmem:[%s6 + $0x10] sm:$0xff] %vm334, %v412
  %485 = vst.msk [vmem:[%s6 + $0x18] sm:$0xff] %vm334, %v415
  %486 = vst.msk [vmem:[%s6 + $0x20] sm:$0xff] %vm334, %v420
  %487 = vst.msk [vmem:[%s6 + $0x28] sm:$0xff] %vm334, %v423
  %488 = vst.msk [vmem:[%s6 + $0x30] sm:$0xff] %vm334, %v428
  %489 = vst.msk [vmem:[%s6 + $0x38] sm:$0xff] %vm334, %v431
  %490 = vst.msk [vmem:[%s6 + $0x40] sm:$0xff] %vm334, %v436
  %491 = vst.msk [vmem:[%s6 + $0x48] sm:$0xff] %vm334, %v439
  %492 = vst.msk [vmem:[%s6 + $0x50] sm:$0xff] %vm334, %v444
  %493 = vst.msk [vmem:[%s6 + $0x58] sm:$0xff] %vm334, %v447
  %494 = vst.msk [vmem:[%s6 + $0x60] sm:$0xff] %vm334, %v452
  %495 = vst.msk [vmem:[%s6 + $0x68] sm:$0xff] %vm334, %v455
  %496 = vst.msk [vmem:[%s6 + $0x70] sm:$0xff] %vm334, %v460
  %497 = vst.msk [vmem:[%s6 + $0x78] sm:$0xff] %vm334, %v463
  %498 = vst.msk [vmem:[%s6 + $0x80] sm:$0xff] %vm334, %v468
  %499 = vst.msk [vmem:[%s6 + $0x88] sm:$0xff] %vm334, %v471
  %500 = vst.msk [vmem:[%s6 + $0x90] sm:$0xff] %vm334, %v476
  %501 = vst.msk [vmem:[%s6 + $0x98] sm:$0xff] %vm334, %v479
  // Predicated region
  $region26: #{denoiser_forward.17} parent=0 // pred_check
    _
  $region27: #{denoiser_forward.17} parent=0 // pred_check_branch
    %503 = sbr.rel (0) target = $region29
  $region28: #{denoiser_forward.17} parent=0 // pred_region
    _
  $region29: #{denoiser_forward.17} parent=0 // pred_fallthru
    _
  // Predicated region
  $region30: #{denoiser_forward.17} parent=0 // pred_check
    _
  $region31: #{denoiser_forward.17} parent=0 // pred_check_branch
    %505 = sbr.rel (0) target = $region33
  $region32: #{denoiser_forward.17} parent=0 // pred_region
    _
  $region33: #{denoiser_forward.17} parent=0 // pred_fallthru
    _

</llo_original>
